<compile_context>
chip_gen: v5e
topology: v5e:2x2
jax: 0.10.0
libtpu: 0.0.40
codegen_flags: <defaults>
</compile_context>

<pallas_src>
import math
from functools import partial
from types import SimpleNamespace

import jax
import jax.numpy as jnp
import numpy as np
from jax.experimental import pallas as pl
from jax.experimental.pallas import tpu as pltpu

_VMEM = pl.BlockSpec(memory_space=pltpu.MemorySpace.VMEM)


def conv2d_size_out(size, kernel_size=5, stride=2):
    return (size - (kernel_size - 1) - 1) // stride + 1


# ----------------------------- fused Pallas kernel -----------------------------

def _make_horde_kernel(*, k, s, n_b, ow2, rows_pad, f2, f3, oh3, ow3):
    """Builds the fused conv1+conv2+conv3+heads kernel (static-config closure)."""
    n_tap = k * k

    def kernel(p1g_ref, w1_ref, b1_ref, w2_ref, b2_ref, w3_ref, b3_ref,
               wh_ref, bh_ref, z_ref, heads_ref, a2_ref):
        # ---- conv1 + conv2, fused per-(conv2 tap) accumulation -------------
        # p1g_ref[t] holds, for conv2 tap t, the conv1 im2col row of every
        # conv2 output position (rows ordered (oh2, ow2, b), zero-padded to
        # rows_pad).  Every tap is one contiguous, tile-aligned VMEM block, so
        # the kernel never gathers or does strided access.
        w1 = w1_ref[...]                                   # [k*k*C, F1]
        b1 = b1_ref[...]                                   # [1, F1]
        acc2 = jnp.zeros((rows_pad, f2), jnp.float32)
        for t in range(n_tap):
            a1_t = jnp.maximum(
                jnp.dot(p1g_ref[t], w1, preferred_element_type=jnp.float32) + b1,
                0.0)                                       # [rows_pad, F1]
            acc2 = acc2 + jnp.dot(a1_t, w2_ref[t],
                                  preferred_element_type=jnp.float32)
        a2_ref[...] = jnp.maximum(acc2 + b2_ref[...], 0.0)  # rows = (pos2, b)

        # ---- conv3 + flatten (per output position, per tap) ----------------
        b3 = b3_ref[...]                                   # [1, F3]
        z_parts = []
        for oh in range(oh3):
            for ow in range(ow3):
                acc3 = jnp.zeros((n_b, f3), jnp.float32)
                for di in range(k):
                    for dj in range(k):
                        pos2 = (oh * s + di) * ow2 + (ow * s + dj)
                        a2_blk = a2_ref[pl.ds(pos2 * n_b, n_b), :]   # [B, F2]
                        acc3 = acc3 + jnp.dot(
                            a2_blk, w3_ref[di * k + dj],
                            preferred_element_type=jnp.float32)
                z_parts.append(jnp.maximum(acc3 + b3, 0.0))          # [B, F3]
        z = jnp.concatenate(z_parts, axis=-1)              # [B, D] lane-dense
        z_ref[...] = z

        # ---- all three demon heads: one lane-dense (128-padded) matmul -----
        heads_ref[...] = (jnp.dot(z, wh_ref[...],
                                  preferred_element_type=jnp.float32)
                          + bh_ref[...])

    return kernel


# ----------------------------- layout plumbing (zero FLOPs, jitted) -----------------------------

def _grouped_conv1_patches(xh, *, k, s, oh1, ow1, oh2, ow2, rows_pad):
    """For each conv2 tap (di2, dj2): the conv1 im2col row of every conv2
    output position.  Returns [k*k, rows_pad, k*k*C]; row order (oh2, ow2, b),
    feature order (kh, kw, c); rows zero-padded to rows_pad (8-aligned)."""
    n_b, h, w, c = xh.shape
    cols = []
    for di in range(k):
        for dj in range(k):
            cols.append(xh[:, di:di + s * (oh1 - 1) + 1:s,
                            dj:dj + s * (ow1 - 1) + 1:s, :])
    p1 = jnp.concatenate(cols, axis=-1)                    # [B, OH1, OW1, k*k*C]
    blocks = []
    for di2 in range(k):
        for dj2 in range(k):
            sub = p1[:, di2:di2 + s * (oh2 - 1) + 1:s,
                        dj2:dj2 + s * (ow2 - 1) + 1:s, :]  # [B, OH2, OW2, k*k*C]
            sub = jnp.transpose(sub, (1, 2, 0, 3)).reshape(oh2 * ow2 * n_b,
                                                           k * k * c)
            blocks.append(jnp.pad(sub, ((0, rows_pad - oh2 * ow2 * n_b), (0, 0))))
    return jnp.stack(blocks, axis=0)


# ----------------------------- forward -----------------------------

@partial(jax.jit, static_argnames=("heads", "outputs"))
def _horde_forward_impl(params, x, *, heads, outputs):
    k, s = 5, 2
    n_b, c, h, w = x.shape
    xh = jnp.transpose(x, (0, 2, 3, 1))                    # NHWC (plumbing only)
    oh1, ow1 = conv2d_size_out(h, k, s), conv2d_size_out(w, k, s)
    oh2, ow2 = conv2d_size_out(oh1, k, s), conv2d_size_out(ow1, k, s)
    oh3, ow3 = conv2d_size_out(oh2, k, s), conv2d_size_out(ow2, k, s)
    assert oh3 >= 1 and ow3 >= 1, "spatial size too small for 3x (k=5, s=2) convs"

    f1 = params["w1"].shape[-1]
    f2 = params["w2"].shape[-1]
    f3 = params["w3"].shape[-1]
    d = oh3 * ow3 * f3
    total_pad = params["w_heads"].shape[-1]
    n_tap = k * k
    rows = oh2 * ow2 * n_b
    rows_pad = -(-rows // 8) * 8

    p1g = _grouped_conv1_patches(xh, k=k, s=s, oh1=oh1, ow1=ow1,
                                 oh2=oh2, ow2=ow2, rows_pad=rows_pad)

    kernel = _make_horde_kernel(k=k, s=s, n_b=n_b, ow2=ow2, rows_pad=rows_pad,
                                f2=f2, f3=f3, oh3=oh3, ow3=ow3)

    operands = (p1g, params["w1"], params["b1"], params["w2"], params["b2"],
                params["w3"], params["b3"], params["w_heads"], params["b_heads"])
    flops = 2 * (n_tap * rows_pad * (k * k * c) * f1
                 + n_tap * rows_pad * f1 * f2
                 + oh3 * ow3 * n_tap * n_b * f2 * f3
                 + n_b * d * total_pad)
    bytes_accessed = sum(int(o.size) * 4 for o in operands) \
        + (n_b * d + n_b * total_pad) * 4

    z, heads_pad = pl.pallas_call(
        kernel,
        in_specs=[_VMEM] * len(operands),
        out_specs=(_VMEM, _VMEM),
        out_shape=(
            jax.ShapeDtypeStruct((n_b, d), jnp.float32),
            jax.ShapeDtypeStruct((n_b, total_pad), jnp.float32),
        ),
        scratch_shapes=[pltpu.VMEM((rows_pad, f2), jnp.float32)],
        cost_estimate=pl.CostEstimate(flops=flops, transcendentals=0,
                                      bytes_accessed=bytes_accessed),
    )(*operands)

    main = heads_pad[:, :outputs]
    if heads > 0:
        control = heads_pad[:, outputs:outputs * (1 + heads)
                            ].reshape(n_b, heads, outputs)
        prediction = heads_pad[:, outputs * (1 + heads):outputs * (1 + 2 * heads)
                               ].reshape(n_b, heads, outputs)
    else:
        control = None
        prediction = None
    # detach_aux_demons=True: detach is a forward no-op (gradient-only).
    demon_z = jax.lax.stop_gradient(z)
    return dict(embedding=z, demon_embedding=demon_z, main_demon=main,
                control_demons=control, prediction_demons=prediction)


def horde_forward(params, x, heads, outputs):
    out = _horde_forward_impl(params, x, heads=heads, outputs=outputs)
    return SimpleNamespace(**out)


# ----------------------------- param init -----------------------------

def init_params(key, c, h, w, heads, outputs,
                conv_layers=((16, 5, 2), (32, 5, 2), (32, 5, 2))):
    """Conv weights stored im2col-style ([k*k*Cin, F] for layer 1, [k*k, Cin, F]
    per-tap for layers 2-3; row order (kh, kw, cin)); biases as [1, F].
    All three demon heads packed into one [D, total] matrix, zero-padded to a
    128-multiple output width so the kernel's final store is lane-dense."""
    assert len(conv_layers) == 3 and all(ks == 5 and st == 2
                                         for _, ks, st in conv_layers), \
        "TODO(synk): only the default 3x (k=5, s=2) conv stack is implemented"
    keys = jax.random.split(key, 2 * len(conv_layers) + 2)
    params = {}
    cin = c
    convh, convw = h, w
    for i, (filters, ksz, stride) in enumerate(conv_layers):
        fan_in = cin * ksz * ksz
        bound = 1.0 / math.sqrt(fan_in)
        wmat = jax.random.uniform(keys[2 * i], (ksz * ksz, cin, filters),
                                  jnp.float32, -bound, bound)
        params[f"w{i + 1}"] = (wmat.reshape(ksz * ksz * cin, filters)
                               if i == 0 else wmat)
        params[f"b{i + 1}"] = jax.random.uniform(keys[2 * i + 1], (1, filters),
                                                 jnp.float32, -bound, bound)
        cin = filters
        convh = conv2d_size_out(convh, ksz, stride)
        convw = conv2d_size_out(convw, ksz, stride)
    d = convh * convw * cin                       # linear_input_size
    total = outputs * (1 + 2 * heads)             # [main | control | prediction]
    total_pad = -(-total // 128) * 128
    bound = 1.0 / math.sqrt(d)
    wh = jax.random.uniform(keys[-2], (d, total), jnp.float32, -bound, bound)
    bh = jax.random.uniform(keys[-1], (1, total), jnp.float32, -bound, bound)
    params["w_heads"] = jnp.pad(wh, ((0, 0), (0, total_pad - total)))
    params["b_heads"] = jnp.pad(bh, ((0, 0), (0, total_pad - total)))
    return params, d


# ----------------------------- pure-XLA reference (for checking) -----------------------------

def _reference_forward(params, x, heads, outputs):
    k, s = 5, 2
    a = jnp.transpose(x, (0, 2, 3, 1))
    for i in range(1, 4):
        wf = params[f"w{i}"]
        cin = a.shape[-1]
        f = wf.shape[-1]
        w_hwio = wf.reshape(k, k, cin, f)
        a = jax.lax.conv_general_dilated(
            a, w_hwio, window_strides=(s, s), padding="VALID",
            dimension_numbers=("NHWC", "HWIO", "NHWC"))
        a = jnp.maximum(a + params[f"b{i}"].reshape(1, 1, 1, f), 0.0)
    z = a.reshape(a.shape[0], -1)
    hp = jnp.dot(z, params["w_heads"]) + params["b_heads"]
    main = hp[:, :outputs]
    control = hp[:, outputs:outputs * (1 + heads)].reshape(z.shape[0], heads, outputs)
    prediction = hp[:, outputs * (1 + heads):outputs * (1 + 2 * heads)
                    ].reshape(z.shape[0], heads, outputs)
    return z, main, control, prediction


# ----------------------------- main -----------------------------

if __name__ == "__main__":
    # Smallest sane spatial size for three k=5, s=2 convs is ~23; 40x40 gives
    # a 2x2x32 = 128-wide (lane-dense) embedding.
    B, C, H, W = 2, 4, 40, 40
    HEADS, OUTPUTS = 4, 6

    root = jax.random.PRNGKey(0)
    kx, kp = jax.random.split(root)
    x = jax.random.normal(kx, (B, C, H, W), jnp.float32)

    params, lin_in = init_params(kp, C, H, W, HEADS, OUTPUTS)
    assert lin_in == 128

    out = horde_forward(params, x, HEADS, OUTPUTS)
    jax.block_until_ready((out.embedding, out.demon_embedding, out.main_demon,
                           out.control_demons, out.prediction_demons))

    assert out.embedding.shape == (B, lin_in)
    assert out.demon_embedding.shape == (B, lin_in)
    assert out.main_demon.shape == (B, OUTPUTS)
    assert out.control_demons.shape == (B, HEADS, OUTPUTS)
    assert out.prediction_demons.shape == (B, HEADS, OUTPUTS)

    # Cross-check the fused kernel against a plain-XLA reference of the same net.
    z_ref, main_ref, ctrl_ref, pred_ref = _reference_forward(params, x, HEADS, OUTPUTS)
    np.testing.assert_allclose(np.asarray(out.embedding), np.asarray(z_ref),
                               rtol=2e-2, atol=2e-2)
    np.testing.assert_allclose(np.asarray(out.main_demon), np.asarray(main_ref),
                               rtol=2e-2, atol=2e-2)
    np.testing.assert_allclose(np.asarray(out.control_demons), np.asarray(ctrl_ref),
                               rtol=2e-2, atol=2e-2)
    np.testing.assert_allclose(np.asarray(out.prediction_demons), np.asarray(pred_ref),
                               rtol=2e-2, atol=2e-2)

    print("KERNEL_OK")
</pallas_src>

<mosaic_0001>
module attributes {stable_mosaic.version = 11 : i64} {
  func.func @kernel(%arg0: memref<25x104x100xf32, #tpu.memory_space<vmem>>, %arg1: memref<100x16xf32, #tpu.memory_space<vmem>>, %arg2: memref<1x16xf32, #tpu.memory_space<vmem>>, %arg3: memref<25x16x32xf32, #tpu.memory_space<vmem>>, %arg4: memref<1x32xf32, #tpu.memory_space<vmem>>, %arg5: memref<25x32x32xf32, #tpu.memory_space<vmem>>, %arg6: memref<1x32xf32, #tpu.memory_space<vmem>>, %arg7: memref<128x128xf32, #tpu.memory_space<vmem>>, %arg8: memref<1x128xf32, #tpu.memory_space<vmem>>, %arg9: memref<2x128xf32, #tpu.memory_space<vmem>>, %arg10: memref<2x128xf32, #tpu.memory_space<vmem>>, %arg11: memref<104x32xf32, #tpu.memory_space<vmem>>) attributes {dimension_semantics = [], scalar_prefetch = 0 : i64, scratch_operands = 1 : i64, tpu.core_type = #tpu.core_type<tc>} {
    %c0 = arith.constant 0 : index
    %c0_0 = arith.constant 0 : index
    %0 = vector.load %arg1[%c0, %c0_0] : memref<100x16xf32, #tpu.memory_space<vmem>>, vector<100x16xf32>
    %c0_1 = arith.constant 0 : index
    %c0_2 = arith.constant 0 : index
    %1 = vector.load %arg2[%c0_1, %c0_2] : memref<1x16xf32, #tpu.memory_space<vmem>>, vector<1x16xf32>
    %cst = arith.constant 0.000000e+00 : f32
    %2 = vector.broadcast %cst : f32 to vector<104x32xf32>
    %c0_3 = arith.constant 0 : index
    %c0_4 = arith.constant 0 : index
    %c0_5 = arith.constant 0 : index
    %3 = vector.load %arg0[%c0_3, %c0_4, %c0_5] : memref<25x104x100xf32, #tpu.memory_space<vmem>>, vector<1x104x100xf32>
    %4 = vector.shape_cast %3 : vector<1x104x100xf32> to vector<104x100xf32>
    %cst_6 = arith.constant dense<0.000000e+00> : vector<104x16xf32>
    %5 = tpu.matmul %4, %0, %cst_6 {dimension_numbers = #tpu.dot_dimension_numbers<[1], [0], [0], [1], [0, 0, 1, 1], [], []>} : vector<104x100xf32>, vector<100x16xf32>, vector<104x16xf32> -> vector<104x16xf32>
    %6 = vector.broadcast %1 : vector<1x16xf32> to vector<104x16xf32>
    %7 = arith.addf %5, %6 : vector<104x16xf32>
    %cst_7 = arith.constant 0.000000e+00 : f32
    %8 = vector.broadcast %cst_7 : f32 to vector<104x16xf32>
    %9 = arith.maximumf %7, %8 : vector<104x16xf32>
    %c0_8 = arith.constant 0 : index
    %c0_9 = arith.constant 0 : index
    %c0_10 = arith.constant 0 : index
    %10 = vector.load %arg3[%c0_8, %c0_9, %c0_10] : memref<25x16x32xf32, #tpu.memory_space<vmem>>, vector<1x16x32xf32>
    %11 = vector.shape_cast %10 : vector<1x16x32xf32> to vector<16x32xf32>
    %cst_11 = arith.constant dense<0.000000e+00> : vector<104x32xf32>
    %12 = tpu.matmul %9, %11, %cst_11 {dimension_numbers = #tpu.dot_dimension_numbers<[1], [0], [0], [1], [0, 0, 1, 1], [], []>} : vector<104x16xf32>, vector<16x32xf32>, vector<104x32xf32> -> vector<104x32xf32>
    %13 = arith.addf %2, %12 : vector<104x32xf32>
    %c1 = arith.constant 1 : index
    %c0_12 = arith.constant 0 : index
    %c0_13 = arith.constant 0 : index
    %14 = vector.load %arg0[%c1, %c0_12, %c0_13] : memref<25x104x100xf32, #tpu.memory_space<vmem>>, vector<1x104x100xf32>
    %15 = vector.shape_cast %14 : vector<1x104x100xf32> to vector<104x100xf32>
    %cst_14 = arith.constant dense<0.000000e+00> : vector<104x16xf32>
    %16 = tpu.matmul %15, %0, %cst_14 {dimension_numbers = #tpu.dot_dimension_numbers<[1], [0], [0], [1], [0, 0, 1, 1], [], []>} : vector<104x100xf32>, vector<100x16xf32>, vector<104x16xf32> -> vector<104x16xf32>
    %17 = vector.broadcast %1 : vector<1x16xf32> to vector<104x16xf32>
    %18 = arith.addf %16, %17 : vector<104x16xf32>
    %cst_15 = arith.constant 0.000000e+00 : f32
    %19 = vector.broadcast %cst_15 : f32 to vector<104x16xf32>
    %20 = arith.maximumf %18, %19 : vector<104x16xf32>
    %c1_16 = arith.constant 1 : index
    %c0_17 = arith.constant 0 : index
    %c0_18 = arith.constant 0 : index
    %21 = vector.load %arg3[%c1_16, %c0_17, %c0_18] : memref<25x16x32xf32, #tpu.memory_space<vmem>>, vector<1x16x32xf32>
    %22 = vector.shape_cast %21 : vector<1x16x32xf32> to vector<16x32xf32>
    %cst_19 = arith.constant dense<0.000000e+00> : vector<104x32xf32>
    %23 = tpu.matmul %20, %22, %cst_19 {dimension_numbers = #tpu.dot_dimension_numbers<[1], [0], [0], [1], [0, 0, 1, 1], [], []>} : vector<104x16xf32>, vector<16x32xf32>, vector<104x32xf32> -> vector<104x32xf32>
    %24 = arith.addf %13, %23 : vector<104x32xf32>
    %c2 = arith.constant 2 : index
    %c0_20 = arith.constant 0 : index
    %c0_21 = arith.constant 0 : index
    %25 = vector.load %arg0[%c2, %c0_20, %c0_21] : memref<25x104x100xf32, #tpu.memory_space<vmem>>, vector<1x104x100xf32>
    %26 = vector.shape_cast %25 : vector<1x104x100xf32> to vector<104x100xf32>
    %cst_22 = arith.constant dense<0.000000e+00> : vector<104x16xf32>
    %27 = tpu.matmul %26, %0, %cst_22 {dimension_numbers = #tpu.dot_dimension_numbers<[1], [0], [0], [1], [0, 0, 1, 1], [], []>} : vector<104x100xf32>, vector<100x16xf32>, vector<104x16xf32> -> vector<104x16xf32>
    %28 = vector.broadcast %1 : vector<1x16xf32> to vector<104x16xf32>
    %29 = arith.addf %27, %28 : vector<104x16xf32>
    %cst_23 = arith.constant 0.000000e+00 : f32
    %30 = vector.broadcast %cst_23 : f32 to vector<104x16xf32>
    %31 = arith.maximumf %29, %30 : vector<104x16xf32>
    %c2_24 = arith.constant 2 : index
    %c0_25 = arith.constant 0 : index
    %c0_26 = arith.constant 0 : index
    %32 = vector.load %arg3[%c2_24, %c0_25, %c0_26] : memref<25x16x32xf32, #tpu.memory_space<vmem>>, vector<1x16x32xf32>
    %33 = vector.shape_cast %32 : vector<1x16x32xf32> to vector<16x32xf32>
    %cst_27 = arith.constant dense<0.000000e+00> : vector<104x32xf32>
    %34 = tpu.matmul %31, %33, %cst_27 {dimension_numbers = #tpu.dot_dimension_numbers<[1], [0], [0], [1], [0, 0, 1, 1], [], []>} : vector<104x16xf32>, vector<16x32xf32>, vector<104x32xf32> -> vector<104x32xf32>
    %35 = arith.addf %24, %34 : vector<104x32xf32>
    %c3 = arith.constant 3 : index
    %c0_28 = arith.constant 0 : index
    %c0_29 = arith.constant 0 : index
    %36 = vector.load %arg0[%c3, %c0_28, %c0_29] : memref<25x104x100xf32, #tpu.memory_space<vmem>>, vector<1x104x100xf32>
    %37 = vector.shape_cast %36 : vector<1x104x100xf32> to vector<104x100xf32>
    %cst_30 = arith.constant dense<0.000000e+00> : vector<104x16xf32>
    %38 = tpu.matmul %37, %0, %cst_30 {dimension_numbers = #tpu.dot_dimension_numbers<[1], [0], [0], [1], [0, 0, 1, 1], [], []>} : vector<104x100xf32>, vector<100x16xf32>, vector<104x16xf32> -> vector<104x16xf32>
    %39 = vector.broadcast %1 : vector<1x16xf32> to vector<104x16xf32>
    %40 = arith.addf %38, %39 : vector<104x16xf32>
    %cst_31 = arith.constant 0.000000e+00 : f32
    %41 = vector.broadcast %cst_31 : f32 to vector<104x16xf32>
    %42 = arith.maximumf %40, %41 : vector<104x16xf32>
    %c3_32 = arith.constant 3 : index
    %c0_33 = arith.constant 0 : index
    %c0_34 = arith.constant 0 : index
    %43 = vector.load %arg3[%c3_32, %c0_33, %c0_34] : memref<25x16x32xf32, #tpu.memory_space<vmem>>, vector<1x16x32xf32>
    %44 = vector.shape_cast %43 : vector<1x16x32xf32> to vector<16x32xf32>
    %cst_35 = arith.constant dense<0.000000e+00> : vector<104x32xf32>
    %45 = tpu.matmul %42, %44, %cst_35 {dimension_numbers = #tpu.dot_dimension_numbers<[1], [0], [0], [1], [0, 0, 1, 1], [], []>} : vector<104x16xf32>, vector<16x32xf32>, vector<104x32xf32> -> vector<104x32xf32>
    %46 = arith.addf %35, %45 : vector<104x32xf32>
    %c4 = arith.constant 4 : index
    %c0_36 = arith.constant 0 : index
    %c0_37 = arith.constant 0 : index
    %47 = vector.load %arg0[%c4, %c0_36, %c0_37] : memref<25x104x100xf32, #tpu.memory_space<vmem>>, vector<1x104x100xf32>
    %48 = vector.shape_cast %47 : vector<1x104x100xf32> to vector<104x100xf32>
    %cst_38 = arith.constant dense<0.000000e+00> : vector<104x16xf32>
    %49 = tpu.matmul %48, %0, %cst_38 {dimension_numbers = #tpu.dot_dimension_numbers<[1], [0], [0], [1], [0, 0, 1, 1], [], []>} : vector<104x100xf32>, vector<100x16xf32>, vector<104x16xf32> -> vector<104x16xf32>
    %50 = vector.broadcast %1 : vector<1x16xf32> to vector<104x16xf32>
    %51 = arith.addf %49, %50 : vector<104x16xf32>
    %cst_39 = arith.constant 0.000000e+00 : f32
    %52 = vector.broadcast %cst_39 : f32 to vector<104x16xf32>
    %53 = arith.maximumf %51, %52 : vector<104x16xf32>
    %c4_40 = arith.constant 4 : index
    %c0_41 = arith.constant 0 : index
    %c0_42 = arith.constant 0 : index
    %54 = vector.load %arg3[%c4_40, %c0_41, %c0_42] : memref<25x16x32xf32, #tpu.memory_space<vmem>>, vector<1x16x32xf32>
    %55 = vector.shape_cast %54 : vector<1x16x32xf32> to vector<16x32xf32>
    %cst_43 = arith.constant dense<0.000000e+00> : vector<104x32xf32>
    %56 = tpu.matmul %53, %55, %cst_43 {dimension_numbers = #tpu.dot_dimension_numbers<[1], [0], [0], [1], [0, 0, 1, 1], [], []>} : vector<104x16xf32>, vector<16x32xf32>, vector<104x32xf32> -> vector<104x32xf32>
    %57 = arith.addf %46, %56 : vector<104x32xf32>
    %c5 = arith.constant 5 : index
    %c0_44 = arith.constant 0 : index
    %c0_45 = arith.constant 0 : index
    %58 = vector.load %arg0[%c5, %c0_44, %c0_45] : memref<25x104x100xf32, #tpu.memory_space<vmem>>, vector<1x104x100xf32>
    %59 = vector.shape_cast %58 : vector<1x104x100xf32> to vector<104x100xf32>
    %cst_46 = arith.constant dense<0.000000e+00> : vector<104x16xf32>
    %60 = tpu.matmul %59, %0, %cst_46 {dimension_numbers = #tpu.dot_dimension_numbers<[1], [0], [0], [1], [0, 0, 1, 1], [], []>} : vector<104x100xf32>, vector<100x16xf32>, vector<104x16xf32> -> vector<104x16xf32>
    %61 = vector.broadcast %1 : vector<1x16xf32> to vector<104x16xf32>
    %62 = arith.addf %60, %61 : vector<104x16xf32>
    %cst_47 = arith.constant 0.000000e+00 : f32
    %63 = vector.broadcast %cst_47 : f32 to vector<104x16xf32>
    %64 = arith.maximumf %62, %63 : vector<104x16xf32>
    %c5_48 = arith.constant 5 : index
    %c0_49 = arith.constant 0 : index
    %c0_50 = arith.constant 0 : index
    %65 = vector.load %arg3[%c5_48, %c0_49, %c0_50] : memref<25x16x32xf32, #tpu.memory_space<vmem>>, vector<1x16x32xf32>
    %66 = vector.shape_cast %65 : vector<1x16x32xf32> to vector<16x32xf32>
    %cst_51 = arith.constant dense<0.000000e+00> : vector<104x32xf32>
    %67 = tpu.matmul %64, %66, %cst_51 {dimension_numbers = #tpu.dot_dimension_numbers<[1], [0], [0], [1], [0, 0, 1, 1], [], []>} : vector<104x16xf32>, vector<16x32xf32>, vector<104x32xf32> -> vector<104x32xf32>
    %68 = arith.addf %57, %67 : vector<104x32xf32>
    %c6 = arith.constant 6 : index
    %c0_52 = arith.constant 0 : index
    %c0_53 = arith.constant 0 : index
    %69 = vector.load %arg0[%c6, %c0_52, %c0_53] : memref<25x104x100xf32, #tpu.memory_space<vmem>>, vector<1x104x100xf32>
    %70 = vector.shape_cast %69 : vector<1x104x100xf32> to vector<104x100xf32>
    %cst_54 = arith.constant dense<0.000000e+00> : vector<104x16xf32>
    %71 = tpu.matmul %70, %0, %cst_54 {dimension_numbers = #tpu.dot_dimension_numbers<[1], [0], [0], [1], [0, 0, 1, 1], [], []>} : vector<104x100xf32>, vector<100x16xf32>, vector<104x16xf32> -> vector<104x16xf32>
    %72 = vector.broadcast %1 : vector<1x16xf32> to vector<104x16xf32>
    %73 = arith.addf %71, %72 : vector<104x16xf32>
    %cst_55 = arith.constant 0.000000e+00 : f32
    %74 = vector.broadcast %cst_55 : f32 to vector<104x16xf32>
    %75 = arith.maximumf %73, %74 : vector<104x16xf32>
    %c6_56 = arith.constant 6 : index
    %c0_57 = arith.constant 0 : index
    %c0_58 = arith.constant 0 : index
    %76 = vector.load %arg3[%c6_56, %c0_57, %c0_58] : memref<25x16x32xf32, #tpu.memory_space<vmem>>, vector<1x16x32xf32>
    %77 = vector.shape_cast %76 : vector<1x16x32xf32> to vector<16x32xf32>
    %cst_59 = arith.constant dense<0.000000e+00> : vector<104x32xf32>
    %78 = tpu.matmul %75, %77, %cst_59 {dimension_numbers = #tpu.dot_dimension_numbers<[1], [0], [0], [1], [0, 0, 1, 1], [], []>} : vector<104x16xf32>, vector<16x32xf32>, vector<104x32xf32> -> vector<104x32xf32>
    %79 = arith.addf %68, %78 : vector<104x32xf32>
    %c7 = arith.constant 7 : index
    %c0_60 = arith.constant 0 : index
    %c0_61 = arith.constant 0 : index
    %80 = vector.load %arg0[%c7, %c0_60, %c0_61] : memref<25x104x100xf32, #tpu.memory_space<vmem>>, vector<1x104x100xf32>
    %81 = vector.shape_cast %80 : vector<1x104x100xf32> to vector<104x100xf32>
    %cst_62 = arith.constant dense<0.000000e+00> : vector<104x16xf32>
    %82 = tpu.matmul %81, %0, %cst_62 {dimension_numbers = #tpu.dot_dimension_numbers<[1], [0], [0], [1], [0, 0, 1, 1], [], []>} : vector<104x100xf32>, vector<100x16xf32>, vector<104x16xf32> -> vector<104x16xf32>
    %83 = vector.broadcast %1 : vector<1x16xf32> to vector<104x16xf32>
    %84 = arith.addf %82, %83 : vector<104x16xf32>
    %cst_63 = arith.constant 0.000000e+00 : f32
    %85 = vector.broadcast %cst_63 : f32 to vector<104x16xf32>
    %86 = arith.maximumf %84, %85 : vector<104x16xf32>
    %c7_64 = arith.constant 7 : index
    %c0_65 = arith.constant 0 : index
    %c0_66 = arith.constant 0 : index
    %87 = vector.load %arg3[%c7_64, %c0_65, %c0_66] : memref<25x16x32xf32, #tpu.memory_space<vmem>>, vector<1x16x32xf32>
    %88 = vector.shape_cast %87 : vector<1x16x32xf32> to vector<16x32xf32>
    %cst_67 = arith.constant dense<0.000000e+00> : vector<104x32xf32>
    %89 = tpu.matmul %86, %88, %cst_67 {dimension_numbers = #tpu.dot_dimension_numbers<[1], [0], [0], [1], [0, 0, 1, 1], [], []>} : vector<104x16xf32>, vector<16x32xf32>, vector<104x32xf32> -> vector<104x32xf32>
    %90 = arith.addf %79, %89 : vector<104x32xf32>
    %c8 = arith.constant 8 : index
    %c0_68 = arith.constant 0 : index
    %c0_69 = arith.constant 0 : index
    %91 = vector.load %arg0[%c8, %c0_68, %c0_69] : memref<25x104x100xf32, #tpu.memory_space<vmem>>, vector<1x104x100xf32>
    %92 = vector.shape_cast %91 : vector<1x104x100xf32> to vector<104x100xf32>
    %cst_70 = arith.constant dense<0.000000e+00> : vector<104x16xf32>
    %93 = tpu.matmul %92, %0, %cst_70 {dimension_numbers = #tpu.dot_dimension_numbers<[1], [0], [0], [1], [0, 0, 1, 1], [], []>} : vector<104x100xf32>, vector<100x16xf32>, vector<104x16xf32> -> vector<104x16xf32>
    %94 = vector.broadcast %1 : vector<1x16xf32> to vector<104x16xf32>
    %95 = arith.addf %93, %94 : vector<104x16xf32>
    %cst_71 = arith.constant 0.000000e+00 : f32
    %96 = vector.broadcast %cst_71 : f32 to vector<104x16xf32>
    %97 = arith.maximumf %95, %96 : vector<104x16xf32>
    %c8_72 = arith.constant 8 : index
    %c0_73 = arith.constant 0 : index
    %c0_74 = arith.constant 0 : index
    %98 = vector.load %arg3[%c8_72, %c0_73, %c0_74] : memref<25x16x32xf32, #tpu.memory_space<vmem>>, vector<1x16x32xf32>
    %99 = vector.shape_cast %98 : vector<1x16x32xf32> to vector<16x32xf32>
    %cst_75 = arith.constant dense<0.000000e+00> : vector<104x32xf32>
    %100 = tpu.matmul %97, %99, %cst_75 {dimension_numbers = #tpu.dot_dimension_numbers<[1], [0], [0], [1], [0, 0, 1, 1], [], []>} : vector<104x16xf32>, vector<16x32xf32>, vector<104x32xf32> -> vector<104x32xf32>
    %101 = arith.addf %90, %100 : vector<104x32xf32>
    %c9 = arith.constant 9 : index
    %c0_76 = arith.constant 0 : index
    %c0_77 = arith.constant 0 : index
    %102 = vector.load %arg0[%c9, %c0_76, %c0_77] : memref<25x104x100xf32, #tpu.memory_space<vmem>>, vector<1x104x100xf32>
    %103 = vector.shape_cast %102 : vector<1x104x100xf32> to vector<104x100xf32>
    %cst_78 = arith.constant dense<0.000000e+00> : vector<104x16xf32>
    %104 = tpu.matmul %103, %0, %cst_78 {dimension_numbers = #tpu.dot_dimension_numbers<[1], [0], [0], [1], [0, 0, 1, 1], [], []>} : vector<104x100xf32>, vector<100x16xf32>, vector<104x16xf32> -> vector<104x16xf32>
    %105 = vector.broadcast %1 : vector<1x16xf32> to vector<104x16xf32>
    %106 = arith.addf %104, %105 : vector<104x16xf32>
    %cst_79 = arith.constant 0.000000e+00 : f32
    %107 = vector.broadcast %cst_79 : f32 to vector<104x16xf32>
    %108 = arith.maximumf %106, %107 : vector<104x16xf32>
    %c9_80 = arith.constant 9 : index
    %c0_81 = arith.constant 0 : index
    %c0_82 = arith.constant 0 : index
    %109 = vector.load %arg3[%c9_80, %c0_81, %c0_82] : memref<25x16x32xf32, #tpu.memory_space<vmem>>, vector<1x16x32xf32>
    %110 = vector.shape_cast %109 : vector<1x16x32xf32> to vector<16x32xf32>
    %cst_83 = arith.constant dense<0.000000e+00> : vector<104x32xf32>
    %111 = tpu.matmul %108, %110, %cst_83 {dimension_numbers = #tpu.dot_dimension_numbers<[1], [0], [0], [1], [0, 0, 1, 1], [], []>} : vector<104x16xf32>, vector<16x32xf32>, vector<104x32xf32> -> vector<104x32xf32>
    %112 = arith.addf %101, %111 : vector<104x32xf32>
    %c10 = arith.constant 10 : index
    %c0_84 = arith.constant 0 : index
    %c0_85 = arith.constant 0 : index
    %113 = vector.load %arg0[%c10, %c0_84, %c0_85] : memref<25x104x100xf32, #tpu.memory_space<vmem>>, vector<1x104x100xf32>
    %114 = vector.shape_cast %113 : vector<1x104x100xf32> to vector<104x100xf32>
    %cst_86 = arith.constant dense<0.000000e+00> : vector<104x16xf32>
    %115 = tpu.matmul %114, %0, %cst_86 {dimension_numbers = #tpu.dot_dimension_numbers<[1], [0], [0], [1], [0, 0, 1, 1], [], []>} : vector<104x100xf32>, vector<100x16xf32>, vector<104x16xf32> -> vector<104x16xf32>
    %116 = vector.broadcast %1 : vector<1x16xf32> to vector<104x16xf32>
    %117 = arith.addf %115, %116 : vector<104x16xf32>
    %cst_87 = arith.constant 0.000000e+00 : f32
    %118 = vector.broadcast %cst_87 : f32 to vector<104x16xf32>
    %119 = arith.maximumf %117, %118 : vector<104x16xf32>
    %c10_88 = arith.constant 10 : index
    %c0_89 = arith.constant 0 : index
    %c0_90 = arith.constant 0 : index
    %120 = vector.load %arg3[%c10_88, %c0_89, %c0_90] : memref<25x16x32xf32, #tpu.memory_space<vmem>>, vector<1x16x32xf32>
    %121 = vector.shape_cast %120 : vector<1x16x32xf32> to vector<16x32xf32>
    %cst_91 = arith.constant dense<0.000000e+00> : vector<104x32xf32>
    %122 = tpu.matmul %119, %121, %cst_91 {dimension_numbers = #tpu.dot_dimension_numbers<[1], [0], [0], [1], [0, 0, 1, 1], [], []>} : vector<104x16xf32>, vector<16x32xf32>, vector<104x32xf32> -> vector<104x32xf32>
    %123 = arith.addf %112, %122 : vector<104x32xf32>
    %c11 = arith.constant 11 : index
    %c0_92 = arith.constant 0 : index
    %c0_93 = arith.constant 0 : index
    %124 = vector.load %arg0[%c11, %c0_92, %c0_93] : memref<25x104x100xf32, #tpu.memory_space<vmem>>, vector<1x104x100xf32>
    %125 = vector.shape_cast %124 : vector<1x104x100xf32> to vector<104x100xf32>
    %cst_94 = arith.constant dense<0.000000e+00> : vector<104x16xf32>
    %126 = tpu.matmul %125, %0, %cst_94 {dimension_numbers = #tpu.dot_dimension_numbers<[1], [0], [0], [1], [0, 0, 1, 1], [], []>} : vector<104x100xf32>, vector<100x16xf32>, vector<104x16xf32> -> vector<104x16xf32>
    %127 = vector.broadcast %1 : vector<1x16xf32> to vector<104x16xf32>
    %128 = arith.addf %126, %127 : vector<104x16xf32>
    %cst_95 = arith.constant 0.000000e+00 : f32
    %129 = vector.broadcast %cst_95 : f32 to vector<104x16xf32>
    %130 = arith.maximumf %128, %129 : vector<104x16xf32>
    %c11_96 = arith.constant 11 : index
    %c0_97 = arith.constant 0 : index
    %c0_98 = arith.constant 0 : index
    %131 = vector.load %arg3[%c11_96, %c0_97, %c0_98] : memref<25x16x32xf32, #tpu.memory_space<vmem>>, vector<1x16x32xf32>
    %132 = vector.shape_cast %131 : vector<1x16x32xf32> to vector<16x32xf32>
    %cst_99 = arith.constant dense<0.000000e+00> : vector<104x32xf32>
    %133 = tpu.matmul %130, %132, %cst_99 {dimension_numbers = #tpu.dot_dimension_numbers<[1], [0], [0], [1], [0, 0, 1, 1], [], []>} : vector<104x16xf32>, vector<16x32xf32>, vector<104x32xf32> -> vector<104x32xf32>
    %134 = arith.addf %123, %133 : vector<104x32xf32>
    %c12 = arith.constant 12 : index
    %c0_100 = arith.constant 0 : index
    %c0_101 = arith.constant 0 : index
    %135 = vector.load %arg0[%c12, %c0_100, %c0_101] : memref<25x104x100xf32, #tpu.memory_space<vmem>>, vector<1x104x100xf32>
    %136 = vector.shape_cast %135 : vector<1x104x100xf32> to vector<104x100xf32>
    %cst_102 = arith.constant dense<0.000000e+00> : vector<104x16xf32>
    %137 = tpu.matmul %136, %0, %cst_102 {dimension_numbers = #tpu.dot_dimension_numbers<[1], [0], [0], [1], [0, 0, 1, 1], [], []>} : vector<104x100xf32>, vector<100x16xf32>, vector<104x16xf32> -> vector<104x16xf32>
    %138 = vector.broadcast %1 : vector<1x16xf32> to vector<104x16xf32>
    %139 = arith.addf %137, %138 : vector<104x16xf32>
    %cst_103 = arith.constant 0.000000e+00 : f32
    %140 = vector.broadcast %cst_103 : f32 to vector<104x16xf32>
    %141 = arith.maximumf %139, %140 : vector<104x16xf32>
    %c12_104 = arith.constant 12 : index
    %c0_105 = arith.constant 0 : index
    %c0_106 = arith.constant 0 : index
    %142 = vector.load %arg3[%c12_104, %c0_105, %c0_106] : memref<25x16x32xf32, #tpu.memory_space<vmem>>, vector<1x16x32xf32>
    %143 = vector.shape_cast %142 : vector<1x16x32xf32> to vector<16x32xf32>
    %cst_107 = arith.constant dense<0.000000e+00> : vector<104x32xf32>
    %144 = tpu.matmul %141, %143, %cst_107 {dimension_numbers = #tpu.dot_dimension_numbers<[1], [0], [0], [1], [0, 0, 1, 1], [], []>} : vector<104x16xf32>, vector<16x32xf32>, vector<104x32xf32> -> vector<104x32xf32>
    %145 = arith.addf %134, %144 : vector<104x32xf32>
    %c13 = arith.constant 13 : index
    %c0_108 = arith.constant 0 : index
    %c0_109 = arith.constant 0 : index
    %146 = vector.load %arg0[%c13, %c0_108, %c0_109] : memref<25x104x100xf32, #tpu.memory_space<vmem>>, vector<1x104x100xf32>
    %147 = vector.shape_cast %146 : vector<1x104x100xf32> to vector<104x100xf32>
    %cst_110 = arith.constant dense<0.000000e+00> : vector<104x16xf32>
    %148 = tpu.matmul %147, %0, %cst_110 {dimension_numbers = #tpu.dot_dimension_numbers<[1], [0], [0], [1], [0, 0, 1, 1], [], []>} : vector<104x100xf32>, vector<100x16xf32>, vector<104x16xf32> -> vector<104x16xf32>
    %149 = vector.broadcast %1 : vector<1x16xf32> to vector<104x16xf32>
    %150 = arith.addf %148, %149 : vector<104x16xf32>
    %cst_111 = arith.constant 0.000000e+00 : f32
    %151 = vector.broadcast %cst_111 : f32 to vector<104x16xf32>
    %152 = arith.maximumf %150, %151 : vector<104x16xf32>
    %c13_112 = arith.constant 13 : index
    %c0_113 = arith.constant 0 : index
    %c0_114 = arith.constant 0 : index
    %153 = vector.load %arg3[%c13_112, %c0_113, %c0_114] : memref<25x16x32xf32, #tpu.memory_space<vmem>>, vector<1x16x32xf32>
    %154 = vector.shape_cast %153 : vector<1x16x32xf32> to vector<16x32xf32>
    %cst_115 = arith.constant dense<0.000000e+00> : vector<104x32xf32>
    %155 = tpu.matmul %152, %154, %cst_115 {dimension_numbers = #tpu.dot_dimension_numbers<[1], [0], [0], [1], [0, 0, 1, 1], [], []>} : vector<104x16xf32>, vector<16x32xf32>, vector<104x32xf32> -> vector<104x32xf32>
    %156 = arith.addf %145, %155 : vector<104x32xf32>
    %c14 = arith.constant 14 : index
    %c0_116 = arith.constant 0 : index
    %c0_117 = arith.constant 0 : index
    %157 = vector.load %arg0[%c14, %c0_116, %c0_117] : memref<25x104x100xf32, #tpu.memory_space<vmem>>, vector<1x104x100xf32>
    %158 = vector.shape_cast %157 : vector<1x104x100xf32> to vector<104x100xf32>
    %cst_118 = arith.constant dense<0.000000e+00> : vector<104x16xf32>
    %159 = tpu.matmul %158, %0, %cst_118 {dimension_numbers = #tpu.dot_dimension_numbers<[1], [0], [0], [1], [0, 0, 1, 1], [], []>} : vector<104x100xf32>, vector<100x16xf32>, vector<104x16xf32> -> vector<104x16xf32>
    %160 = vector.broadcast %1 : vector<1x16xf32> to vector<104x16xf32>
    %161 = arith.addf %159, %160 : vector<104x16xf32>
    %cst_119 = arith.constant 0.000000e+00 : f32
    %162 = vector.broadcast %cst_119 : f32 to vector<104x16xf32>
    %163 = arith.maximumf %161, %162 : vector<104x16xf32>
    %c14_120 = arith.constant 14 : index
    %c0_121 = arith.constant 0 : index
    %c0_122 = arith.constant 0 : index
    %164 = vector.load %arg3[%c14_120, %c0_121, %c0_122] : memref<25x16x32xf32, #tpu.memory_space<vmem>>, vector<1x16x32xf32>
    %165 = vector.shape_cast %164 : vector<1x16x32xf32> to vector<16x32xf32>
    %cst_123 = arith.constant dense<0.000000e+00> : vector<104x32xf32>
    %166 = tpu.matmul %163, %165, %cst_123 {dimension_numbers = #tpu.dot_dimension_numbers<[1], [0], [0], [1], [0, 0, 1, 1], [], []>} : vector<104x16xf32>, vector<16x32xf32>, vector<104x32xf32> -> vector<104x32xf32>
    %167 = arith.addf %156, %166 : vector<104x32xf32>
    %c15 = arith.constant 15 : index
    %c0_124 = arith.constant 0 : index
    %c0_125 = arith.constant 0 : index
    %168 = vector.load %arg0[%c15, %c0_124, %c0_125] : memref<25x104x100xf32, #tpu.memory_space<vmem>>, vector<1x104x100xf32>
    %169 = vector.shape_cast %168 : vector<1x104x100xf32> to vector<104x100xf32>
    %cst_126 = arith.constant dense<0.000000e+00> : vector<104x16xf32>
    %170 = tpu.matmul %169, %0, %cst_126 {dimension_numbers = #tpu.dot_dimension_numbers<[1], [0], [0], [1], [0, 0, 1, 1], [], []>} : vector<104x100xf32>, vector<100x16xf32>, vector<104x16xf32> -> vector<104x16xf32>
    %171 = vector.broadcast %1 : vector<1x16xf32> to vector<104x16xf32>
    %172 = arith.addf %170, %171 : vector<104x16xf32>
    %cst_127 = arith.constant 0.000000e+00 : f32
    %173 = vector.broadcast %cst_127 : f32 to vector<104x16xf32>
    %174 = arith.maximumf %172, %173 : vector<104x16xf32>
    %c15_128 = arith.constant 15 : index
    %c0_129 = arith.constant 0 : index
    %c0_130 = arith.constant 0 : index
    %175 = vector.load %arg3[%c15_128, %c0_129, %c0_130] : memref<25x16x32xf32, #tpu.memory_space<vmem>>, vector<1x16x32xf32>
    %176 = vector.shape_cast %175 : vector<1x16x32xf32> to vector<16x32xf32>
    %cst_131 = arith.constant dense<0.000000e+00> : vector<104x32xf32>
    %177 = tpu.matmul %174, %176, %cst_131 {dimension_numbers = #tpu.dot_dimension_numbers<[1], [0], [0], [1], [0, 0, 1, 1], [], []>} : vector<104x16xf32>, vector<16x32xf32>, vector<104x32xf32> -> vector<104x32xf32>
    %178 = arith.addf %167, %177 : vector<104x32xf32>
    %c16 = arith.constant 16 : index
    %c0_132 = arith.constant 0 : index
    %c0_133 = arith.constant 0 : index
    %179 = vector.load %arg0[%c16, %c0_132, %c0_133] : memref<25x104x100xf32, #tpu.memory_space<vmem>>, vector<1x104x100xf32>
    %180 = vector.shape_cast %179 : vector<1x104x100xf32> to vector<104x100xf32>
    %cst_134 = arith.constant dense<0.000000e+00> : vector<104x16xf32>
    %181 = tpu.matmul %180, %0, %cst_134 {dimension_numbers = #tpu.dot_dimension_numbers<[1], [0], [0], [1], [0, 0, 1, 1], [], []>} : vector<104x100xf32>, vector<100x16xf32>, vector<104x16xf32> -> vector<104x16xf32>
    %182 = vector.broadcast %1 : vector<1x16xf32> to vector<104x16xf32>
    %183 = arith.addf %181, %182 : vector<104x16xf32>
    %cst_135 = arith.constant 0.000000e+00 : f32
    %184 = vector.broadcast %cst_135 : f32 to vector<104x16xf32>
    %185 = arith.maximumf %183, %184 : vector<104x16xf32>
    %c16_136 = arith.constant 16 : index
    %c0_137 = arith.constant 0 : index
    %c0_138 = arith.constant 0 : index
    %186 = vector.load %arg3[%c16_136, %c0_137, %c0_138] : memref<25x16x32xf32, #tpu.memory_space<vmem>>, vector<1x16x32xf32>
    %187 = vector.shape_cast %186 : vector<1x16x32xf32> to vector<16x32xf32>
    %cst_139 = arith.constant dense<0.000000e+00> : vector<104x32xf32>
    %188 = tpu.matmul %185, %187, %cst_139 {dimension_numbers = #tpu.dot_dimension_numbers<[1], [0], [0], [1], [0, 0, 1, 1], [], []>} : vector<104x16xf32>, vector<16x32xf32>, vector<104x32xf32> -> vector<104x32xf32>
    %189 = arith.addf %178, %188 : vector<104x32xf32>
    %c17 = arith.constant 17 : index
    %c0_140 = arith.constant 0 : index
    %c0_141 = arith.constant 0 : index
    %190 = vector.load %arg0[%c17, %c0_140, %c0_141] : memref<25x104x100xf32, #tpu.memory_space<vmem>>, vector<1x104x100xf32>
    %191 = vector.shape_cast %190 : vector<1x104x100xf32> to vector<104x100xf32>
    %cst_142 = arith.constant dense<0.000000e+00> : vector<104x16xf32>
    %192 = tpu.matmul %191, %0, %cst_142 {dimension_numbers = #tpu.dot_dimension_numbers<[1], [0], [0], [1], [0, 0, 1, 1], [], []>} : vector<104x100xf32>, vector<100x16xf32>, vector<104x16xf32> -> vector<104x16xf32>
    %193 = vector.broadcast %1 : vector<1x16xf32> to vector<104x16xf32>
    %194 = arith.addf %192, %193 : vector<104x16xf32>
    %cst_143 = arith.constant 0.000000e+00 : f32
    %195 = vector.broadcast %cst_143 : f32 to vector<104x16xf32>
    %196 = arith.maximumf %194, %195 : vector<104x16xf32>
    %c17_144 = arith.constant 17 : index
    %c0_145 = arith.constant 0 : index
    %c0_146 = arith.constant 0 : index
    %197 = vector.load %arg3[%c17_144, %c0_145, %c0_146] : memref<25x16x32xf32, #tpu.memory_space<vmem>>, vector<1x16x32xf32>
    %198 = vector.shape_cast %197 : vector<1x16x32xf32> to vector<16x32xf32>
    %cst_147 = arith.constant dense<0.000000e+00> : vector<104x32xf32>
    %199 = tpu.matmul %196, %198, %cst_147 {dimension_numbers = #tpu.dot_dimension_numbers<[1], [0], [0], [1], [0, 0, 1, 1], [], []>} : vector<104x16xf32>, vector<16x32xf32>, vector<104x32xf32> -> vector<104x32xf32>
    %200 = arith.addf %189, %199 : vector<104x32xf32>
    %c18 = arith.constant 18 : index
    %c0_148 = arith.constant 0 : index
    %c0_149 = arith.constant 0 : index
    %201 = vector.load %arg0[%c18, %c0_148, %c0_149] : memref<25x104x100xf32, #tpu.memory_space<vmem>>, vector<1x104x100xf32>
    %202 = vector.shape_cast %201 : vector<1x104x100xf32> to vector<104x100xf32>
    %cst_150 = arith.constant dense<0.000000e+00> : vector<104x16xf32>
    %203 = tpu.matmul %202, %0, %cst_150 {dimension_numbers = #tpu.dot_dimension_numbers<[1], [0], [0], [1], [0, 0, 1, 1], [], []>} : vector<104x100xf32>, vector<100x16xf32>, vector<104x16xf32> -> vector<104x16xf32>
    %204 = vector.broadcast %1 : vector<1x16xf32> to vector<104x16xf32>
    %205 = arith.addf %203, %204 : vector<104x16xf32>
    %cst_151 = arith.constant 0.000000e+00 : f32
    %206 = vector.broadcast %cst_151 : f32 to vector<104x16xf32>
    %207 = arith.maximumf %205, %206 : vector<104x16xf32>
    %c18_152 = arith.constant 18 : index
    %c0_153 = arith.constant 0 : index
    %c0_154 = arith.constant 0 : index
    %208 = vector.load %arg3[%c18_152, %c0_153, %c0_154] : memref<25x16x32xf32, #tpu.memory_space<vmem>>, vector<1x16x32xf32>
    %209 = vector.shape_cast %208 : vector<1x16x32xf32> to vector<16x32xf32>
    %cst_155 = arith.constant dense<0.000000e+00> : vector<104x32xf32>
    %210 = tpu.matmul %207, %209, %cst_155 {dimension_numbers = #tpu.dot_dimension_numbers<[1], [0], [0], [1], [0, 0, 1, 1], [], []>} : vector<104x16xf32>, vector<16x32xf32>, vector<104x32xf32> -> vector<104x32xf32>
    %211 = arith.addf %200, %210 : vector<104x32xf32>
    %c19 = arith.constant 19 : index
    %c0_156 = arith.constant 0 : index
    %c0_157 = arith.constant 0 : index
    %212 = vector.load %arg0[%c19, %c0_156, %c0_157] : memref<25x104x100xf32, #tpu.memory_space<vmem>>, vector<1x104x100xf32>
    %213 = vector.shape_cast %212 : vector<1x104x100xf32> to vector<104x100xf32>
    %cst_158 = arith.constant dense<0.000000e+00> : vector<104x16xf32>
    %214 = tpu.matmul %213, %0, %cst_158 {dimension_numbers = #tpu.dot_dimension_numbers<[1], [0], [0], [1], [0, 0, 1, 1], [], []>} : vector<104x100xf32>, vector<100x16xf32>, vector<104x16xf32> -> vector<104x16xf32>
    %215 = vector.broadcast %1 : vector<1x16xf32> to vector<104x16xf32>
    %216 = arith.addf %214, %215 : vector<104x16xf32>
    %cst_159 = arith.constant 0.000000e+00 : f32
    %217 = vector.broadcast %cst_159 : f32 to vector<104x16xf32>
    %218 = arith.maximumf %216, %217 : vector<104x16xf32>
    %c19_160 = arith.constant 19 : index
    %c0_161 = arith.constant 0 : index
    %c0_162 = arith.constant 0 : index
    %219 = vector.load %arg3[%c19_160, %c0_161, %c0_162] : memref<25x16x32xf32, #tpu.memory_space<vmem>>, vector<1x16x32xf32>
    %220 = vector.shape_cast %219 : vector<1x16x32xf32> to vector<16x32xf32>
    %cst_163 = arith.constant dense<0.000000e+00> : vector<104x32xf32>
    %221 = tpu.matmul %218, %220, %cst_163 {dimension_numbers = #tpu.dot_dimension_numbers<[1], [0], [0], [1], [0, 0, 1, 1], [], []>} : vector<104x16xf32>, vector<16x32xf32>, vector<104x32xf32> -> vector<104x32xf32>
    %222 = arith.addf %211, %221 : vector<104x32xf32>
    %c20 = arith.constant 20 : index
    %c0_164 = arith.constant 0 : index
    %c0_165 = arith.constant 0 : index
    %223 = vector.load %arg0[%c20, %c0_164, %c0_165] : memref<25x104x100xf32, #tpu.memory_space<vmem>>, vector<1x104x100xf32>
    %224 = vector.shape_cast %223 : vector<1x104x100xf32> to vector<104x100xf32>
    %cst_166 = arith.constant dense<0.000000e+00> : vector<104x16xf32>
    %225 = tpu.matmul %224, %0, %cst_166 {dimension_numbers = #tpu.dot_dimension_numbers<[1], [0], [0], [1], [0, 0, 1, 1], [], []>} : vector<104x100xf32>, vector<100x16xf32>, vector<104x16xf32> -> vector<104x16xf32>
    %226 = vector.broadcast %1 : vector<1x16xf32> to vector<104x16xf32>
    %227 = arith.addf %225, %226 : vector<104x16xf32>
    %cst_167 = arith.constant 0.000000e+00 : f32
    %228 = vector.broadcast %cst_167 : f32 to vector<104x16xf32>
    %229 = arith.maximumf %227, %228 : vector<104x16xf32>
    %c20_168 = arith.constant 20 : index
    %c0_169 = arith.constant 0 : index
    %c0_170 = arith.constant 0 : index
    %230 = vector.load %arg3[%c20_168, %c0_169, %c0_170] : memref<25x16x32xf32, #tpu.memory_space<vmem>>, vector<1x16x32xf32>
    %231 = vector.shape_cast %230 : vector<1x16x32xf32> to vector<16x32xf32>
    %cst_171 = arith.constant dense<0.000000e+00> : vector<104x32xf32>
    %232 = tpu.matmul %229, %231, %cst_171 {dimension_numbers = #tpu.dot_dimension_numbers<[1], [0], [0], [1], [0, 0, 1, 1], [], []>} : vector<104x16xf32>, vector<16x32xf32>, vector<104x32xf32> -> vector<104x32xf32>
    %233 = arith.addf %222, %232 : vector<104x32xf32>
    %c21 = arith.constant 21 : index
    %c0_172 = arith.constant 0 : index
    %c0_173 = arith.constant 0 : index
    %234 = vector.load %arg0[%c21, %c0_172, %c0_173] : memref<25x104x100xf32, #tpu.memory_space<vmem>>, vector<1x104x100xf32>
    %235 = vector.shape_cast %234 : vector<1x104x100xf32> to vector<104x100xf32>
    %cst_174 = arith.constant dense<0.000000e+00> : vector<104x16xf32>
    %236 = tpu.matmul %235, %0, %cst_174 {dimension_numbers = #tpu.dot_dimension_numbers<[1], [0], [0], [1], [0, 0, 1, 1], [], []>} : vector<104x100xf32>, vector<100x16xf32>, vector<104x16xf32> -> vector<104x16xf32>
    %237 = vector.broadcast %1 : vector<1x16xf32> to vector<104x16xf32>
    %238 = arith.addf %236, %237 : vector<104x16xf32>
    %cst_175 = arith.constant 0.000000e+00 : f32
    %239 = vector.broadcast %cst_175 : f32 to vector<104x16xf32>
    %240 = arith.maximumf %238, %239 : vector<104x16xf32>
    %c21_176 = arith.constant 21 : index
    %c0_177 = arith.constant 0 : index
    %c0_178 = arith.constant 0 : index
    %241 = vector.load %arg3[%c21_176, %c0_177, %c0_178] : memref<25x16x32xf32, #tpu.memory_space<vmem>>, vector<1x16x32xf32>
    %242 = vector.shape_cast %241 : vector<1x16x32xf32> to vector<16x32xf32>
    %cst_179 = arith.constant dense<0.000000e+00> : vector<104x32xf32>
    %243 = tpu.matmul %240, %242, %cst_179 {dimension_numbers = #tpu.dot_dimension_numbers<[1], [0], [0], [1], [0, 0, 1, 1], [], []>} : vector<104x16xf32>, vector<16x32xf32>, vector<104x32xf32> -> vector<104x32xf32>
    %244 = arith.addf %233, %243 : vector<104x32xf32>
    %c22 = arith.constant 22 : index
    %c0_180 = arith.constant 0 : index
    %c0_181 = arith.constant 0 : index
    %245 = vector.load %arg0[%c22, %c0_180, %c0_181] : memref<25x104x100xf32, #tpu.memory_space<vmem>>, vector<1x104x100xf32>
    %246 = vector.shape_cast %245 : vector<1x104x100xf32> to vector<104x100xf32>
    %cst_182 = arith.constant dense<0.000000e+00> : vector<104x16xf32>
    %247 = tpu.matmul %246, %0, %cst_182 {dimension_numbers = #tpu.dot_dimension_numbers<[1], [0], [0], [1], [0, 0, 1, 1], [], []>} : vector<104x100xf32>, vector<100x16xf32>, vector<104x16xf32> -> vector<104x16xf32>
    %248 = vector.broadcast %1 : vector<1x16xf32> to vector<104x16xf32>
    %249 = arith.addf %247, %248 : vector<104x16xf32>
    %cst_183 = arith.constant 0.000000e+00 : f32
    %250 = vector.broadcast %cst_183 : f32 to vector<104x16xf32>
    %251 = arith.maximumf %249, %250 : vector<104x16xf32>
    %c22_184 = arith.constant 22 : index
    %c0_185 = arith.constant 0 : index
    %c0_186 = arith.constant 0 : index
    %252 = vector.load %arg3[%c22_184, %c0_185, %c0_186] : memref<25x16x32xf32, #tpu.memory_space<vmem>>, vector<1x16x32xf32>
    %253 = vector.shape_cast %252 : vector<1x16x32xf32> to vector<16x32xf32>
    %cst_187 = arith.constant dense<0.000000e+00> : vector<104x32xf32>
    %254 = tpu.matmul %251, %253, %cst_187 {dimension_numbers = #tpu.dot_dimension_numbers<[1], [0], [0], [1], [0, 0, 1, 1], [], []>} : vector<104x16xf32>, vector<16x32xf32>, vector<104x32xf32> -> vector<104x32xf32>
    %255 = arith.addf %244, %254 : vector<104x32xf32>
    %c23 = arith.constant 23 : index
    %c0_188 = arith.constant 0 : index
    %c0_189 = arith.constant 0 : index
    %256 = vector.load %arg0[%c23, %c0_188, %c0_189] : memref<25x104x100xf32, #tpu.memory_space<vmem>>, vector<1x104x100xf32>
    %257 = vector.shape_cast %256 : vector<1x104x100xf32> to vector<104x100xf32>
    %cst_190 = arith.constant dense<0.000000e+00> : vector<104x16xf32>
    %258 = tpu.matmul %257, %0, %cst_190 {dimension_numbers = #tpu.dot_dimension_numbers<[1], [0], [0], [1], [0, 0, 1, 1], [], []>} : vector<104x100xf32>, vector<100x16xf32>, vector<104x16xf32> -> vector<104x16xf32>
    %259 = vector.broadcast %1 : vector<1x16xf32> to vector<104x16xf32>
    %260 = arith.addf %258, %259 : vector<104x16xf32>
    %cst_191 = arith.constant 0.000000e+00 : f32
    %261 = vector.broadcast %cst_191 : f32 to vector<104x16xf32>
    %262 = arith.maximumf %260, %261 : vector<104x16xf32>
    %c23_192 = arith.constant 23 : index
    %c0_193 = arith.constant 0 : index
    %c0_194 = arith.constant 0 : index
    %263 = vector.load %arg3[%c23_192, %c0_193, %c0_194] : memref<25x16x32xf32, #tpu.memory_space<vmem>>, vector<1x16x32xf32>
    %264 = vector.shape_cast %263 : vector<1x16x32xf32> to vector<16x32xf32>
    %cst_195 = arith.constant dense<0.000000e+00> : vector<104x32xf32>
    %265 = tpu.matmul %262, %264, %cst_195 {dimension_numbers = #tpu.dot_dimension_numbers<[1], [0], [0], [1], [0, 0, 1, 1], [], []>} : vector<104x16xf32>, vector<16x32xf32>, vector<104x32xf32> -> vector<104x32xf32>
    %266 = arith.addf %255, %265 : vector<104x32xf32>
    %c24 = arith.constant 24 : index
    %c0_196 = arith.constant 0 : index
    %c0_197 = arith.constant 0 : index
    %267 = vector.load %arg0[%c24, %c0_196, %c0_197] : memref<25x104x100xf32, #tpu.memory_space<vmem>>, vector<1x104x100xf32>
    %268 = vector.shape_cast %267 : vector<1x104x100xf32> to vector<104x100xf32>
    %cst_198 = arith.constant dense<0.000000e+00> : vector<104x16xf32>
    %269 = tpu.matmul %268, %0, %cst_198 {dimension_numbers = #tpu.dot_dimension_numbers<[1], [0], [0], [1], [0, 0, 1, 1], [], []>} : vector<104x100xf32>, vector<100x16xf32>, vector<104x16xf32> -> vector<104x16xf32>
    %270 = vector.broadcast %1 : vector<1x16xf32> to vector<104x16xf32>
    %271 = arith.addf %269, %270 : vector<104x16xf32>
    %cst_199 = arith.constant 0.000000e+00 : f32
    %272 = vector.broadcast %cst_199 : f32 to vector<104x16xf32>
    %273 = arith.maximumf %271, %272 : vector<104x16xf32>
    %c24_200 = arith.constant 24 : index
    %c0_201 = arith.constant 0 : index
    %c0_202 = arith.constant 0 : index
    %274 = vector.load %arg3[%c24_200, %c0_201, %c0_202] : memref<25x16x32xf32, #tpu.memory_space<vmem>>, vector<1x16x32xf32>
    %275 = vector.shape_cast %274 : vector<1x16x32xf32> to vector<16x32xf32>
    %cst_203 = arith.constant dense<0.000000e+00> : vector<104x32xf32>
    %276 = tpu.matmul %273, %275, %cst_203 {dimension_numbers = #tpu.dot_dimension_numbers<[1], [0], [0], [1], [0, 0, 1, 1], [], []>} : vector<104x16xf32>, vector<16x32xf32>, vector<104x32xf32> -> vector<104x32xf32>
    %277 = arith.addf %266, %276 : vector<104x32xf32>
    %c0_204 = arith.constant 0 : index
    %c0_205 = arith.constant 0 : index
    %278 = vector.load %arg4[%c0_204, %c0_205] : memref<1x32xf32, #tpu.memory_space<vmem>>, vector<1x32xf32>
    %279 = vector.broadcast %278 : vector<1x32xf32> to vector<104x32xf32>
    %280 = arith.addf %277, %279 : vector<104x32xf32>
    %cst_206 = arith.constant 0.000000e+00 : f32
    %281 = vector.broadcast %cst_206 : f32 to vector<104x32xf32>
    %282 = arith.maximumf %280, %281 : vector<104x32xf32>
    %c0_207 = arith.constant 0 : index
    %c0_208 = arith.constant 0 : index
    %283 = vector.load %arg11[%c0_207, %c0_208] : memref<104x32xf32, #tpu.memory_space<vmem>>, vector<104x32xf32>
    tpu.vector_store %arg11[%c0_207, %c0_208], %282 {strides = array<i32>} : memref<104x32xf32, #tpu.memory_space<vmem>>, vector<104x32xf32>,
    %c0_209 = arith.constant 0 : index
    %c0_210 = arith.constant 0 : index
    %284 = vector.load %arg6[%c0_209, %c0_210] : memref<1x32xf32, #tpu.memory_space<vmem>>, vector<1x32xf32>
    %cst_211 = arith.constant 0.000000e+00 : f32
    %285 = vector.broadcast %cst_211 : f32 to vector<2x32xf32>
    %c0_212 = arith.constant 0 : index
    %c0_213 = arith.constant 0 : index
    %286 = vector.load %arg11[%c0_212, %c0_213] : memref<104x32xf32, #tpu.memory_space<vmem>>, vector<2x32xf32>
    %c0_214 = arith.constant 0 : index
    %c0_215 = arith.constant 0 : index
    %c0_216 = arith.constant 0 : index
    %287 = vector.load %arg5[%c0_214, %c0_215, %c0_216] : memref<25x32x32xf32, #tpu.memory_space<vmem>>, vector<1x32x32xf32>
    %288 = vector.shape_cast %287 : vector<1x32x32xf32> to vector<32x32xf32>
    %cst_217 = arith.constant dense<0.000000e+00> : vector<2x32xf32>
    %289 = tpu.matmul %286, %288, %cst_217 {dimension_numbers = #tpu.dot_dimension_numbers<[1], [0], [0], [1], [0, 0, 1, 1], [], []>} : vector<2x32xf32>, vector<32x32xf32>, vector<2x32xf32> -> vector<2x32xf32>
    %290 = arith.addf %285, %289 : vector<2x32xf32>
    %c2_218 = arith.constant 2 : index
    %c0_219 = arith.constant 0 : index
    %291 = vector.load %arg11[%c2_218, %c0_219] : memref<104x32xf32, #tpu.memory_space<vmem>>, vector<2x32xf32>
    %c1_220 = arith.constant 1 : index
    %c0_221 = arith.constant 0 : index
    %c0_222 = arith.constant 0 : index
    %292 = vector.load %arg5[%c1_220, %c0_221, %c0_222] : memref<25x32x32xf32, #tpu.memory_space<vmem>>, vector<1x32x32xf32>
    %293 = vector.shape_cast %292 : vector<1x32x32xf32> to vector<32x32xf32>
    %cst_223 = arith.constant dense<0.000000e+00> : vector<2x32xf32>
    %294 = tpu.matmul %291, %293, %cst_223 {dimension_numbers = #tpu.dot_dimension_numbers<[1], [0], [0], [1], [0, 0, 1, 1], [], []>} : vector<2x32xf32>, vector<32x32xf32>, vector<2x32xf32> -> vector<2x32xf32>
    %295 = arith.addf %290, %294 : vector<2x32xf32>
    %c4_224 = arith.constant 4 : index
    %c0_225 = arith.constant 0 : index
    %296 = vector.load %arg11[%c4_224, %c0_225] : memref<104x32xf32, #tpu.memory_space<vmem>>, vector<2x32xf32>
    %c2_226 = arith.constant 2 : index
    %c0_227 = arith.constant 0 : index
    %c0_228 = arith.constant 0 : index
    %297 = vector.load %arg5[%c2_226, %c0_227, %c0_228] : memref<25x32x32xf32, #tpu.memory_space<vmem>>, vector<1x32x32xf32>
    %298 = vector.shape_cast %297 : vector<1x32x32xf32> to vector<32x32xf32>
    %cst_229 = arith.constant dense<0.000000e+00> : vector<2x32xf32>
    %299 = tpu.matmul %296, %298, %cst_229 {dimension_numbers = #tpu.dot_dimension_numbers<[1], [0], [0], [1], [0, 0, 1, 1], [], []>} : vector<2x32xf32>, vector<32x32xf32>, vector<2x32xf32> -> vector<2x32xf32>
    %300 = arith.addf %295, %299 : vector<2x32xf32>
    %c6_230 = arith.constant 6 : index
    %c0_231 = arith.constant 0 : index
    %301 = vector.load %arg11[%c6_230, %c0_231] : memref<104x32xf32, #tpu.memory_space<vmem>>, vector<2x32xf32>
    %c3_232 = arith.constant 3 : index
    %c0_233 = arith.constant 0 : index
    %c0_234 = arith.constant 0 : index
    %302 = vector.load %arg5[%c3_232, %c0_233, %c0_234] : memref<25x32x32xf32, #tpu.memory_space<vmem>>, vector<1x32x32xf32>
    %303 = vector.shape_cast %302 : vector<1x32x32xf32> to vector<32x32xf32>
    %cst_235 = arith.constant dense<0.000000e+00> : vector<2x32xf32>
    %304 = tpu.matmul %301, %303, %cst_235 {dimension_numbers = #tpu.dot_dimension_numbers<[1], [0], [0], [1], [0, 0, 1, 1], [], []>} : vector<2x32xf32>, vector<32x32xf32>, vector<2x32xf32> -> vector<2x32xf32>
    %305 = arith.addf %300, %304 : vector<2x32xf32>
    %c8_236 = arith.constant 8 : index
    %c0_237 = arith.constant 0 : index
    %306 = vector.load %arg11[%c8_236, %c0_237] : memref<104x32xf32, #tpu.memory_space<vmem>>, vector<2x32xf32>
    %c4_238 = arith.constant 4 : index
    %c0_239 = arith.constant 0 : index
    %c0_240 = arith.constant 0 : index
    %307 = vector.load %arg5[%c4_238, %c0_239, %c0_240] : memref<25x32x32xf32, #tpu.memory_space<vmem>>, vector<1x32x32xf32>
    %308 = vector.shape_cast %307 : vector<1x32x32xf32> to vector<32x32xf32>
    %cst_241 = arith.constant dense<0.000000e+00> : vector<2x32xf32>
    %309 = tpu.matmul %306, %308, %cst_241 {dimension_numbers = #tpu.dot_dimension_numbers<[1], [0], [0], [1], [0, 0, 1, 1], [], []>} : vector<2x32xf32>, vector<32x32xf32>, vector<2x32xf32> -> vector<2x32xf32>
    %310 = arith.addf %305, %309 : vector<2x32xf32>
    %c14_242 = arith.constant 14 : index
    %c0_243 = arith.constant 0 : index
    %311 = vector.load %arg11[%c14_242, %c0_243] : memref<104x32xf32, #tpu.memory_space<vmem>>, vector<2x32xf32>
    %c5_244 = arith.constant 5 : index
    %c0_245 = arith.constant 0 : index
    %c0_246 = arith.constant 0 : index
    %312 = vector.load %arg5[%c5_244, %c0_245, %c0_246] : memref<25x32x32xf32, #tpu.memory_space<vmem>>, vector<1x32x32xf32>
    %313 = vector.shape_cast %312 : vector<1x32x32xf32> to vector<32x32xf32>
    %cst_247 = arith.constant dense<0.000000e+00> : vector<2x32xf32>
    %314 = tpu.matmul %311, %313, %cst_247 {dimension_numbers = #tpu.dot_dimension_numbers<[1], [0], [0], [1], [0, 0, 1, 1], [], []>} : vector<2x32xf32>, vector<32x32xf32>, vector<2x32xf32> -> vector<2x32xf32>
    %315 = arith.addf %310, %314 : vector<2x32xf32>
    %c16_248 = arith.constant 16 : index
    %c0_249 = arith.constant 0 : index
    %316 = vector.load %arg11[%c16_248, %c0_249] : memref<104x32xf32, #tpu.memory_space<vmem>>, vector<2x32xf32>
    %c6_250 = arith.constant 6 : index
    %c0_251 = arith.constant 0 : index
    %c0_252 = arith.constant 0 : index
    %317 = vector.load %arg5[%c6_250, %c0_251, %c0_252] : memref<25x32x32xf32, #tpu.memory_space<vmem>>, vector<1x32x32xf32>
    %318 = vector.shape_cast %317 : vector<1x32x32xf32> to vector<32x32xf32>
    %cst_253 = arith.constant dense<0.000000e+00> : vector<2x32xf32>
    %319 = tpu.matmul %316, %318, %cst_253 {dimension_numbers = #tpu.dot_dimension_numbers<[1], [0], [0], [1], [0, 0, 1, 1], [], []>} : vector<2x32xf32>, vector<32x32xf32>, vector<2x32xf32> -> vector<2x32xf32>
    %320 = arith.addf %315, %319 : vector<2x32xf32>
    %c18_254 = arith.constant 18 : index
    %c0_255 = arith.constant 0 : index
    %321 = vector.load %arg11[%c18_254, %c0_255] : memref<104x32xf32, #tpu.memory_space<vmem>>, vector<2x32xf32>
    %c7_256 = arith.constant 7 : index
    %c0_257 = arith.constant 0 : index
    %c0_258 = arith.constant 0 : index
    %322 = vector.load %arg5[%c7_256, %c0_257, %c0_258] : memref<25x32x32xf32, #tpu.memory_space<vmem>>, vector<1x32x32xf32>
    %323 = vector.shape_cast %322 : vector<1x32x32xf32> to vector<32x32xf32>
    %cst_259 = arith.constant dense<0.000000e+00> : vector<2x32xf32>
    %324 = tpu.matmul %321, %323, %cst_259 {dimension_numbers = #tpu.dot_dimension_numbers<[1], [0], [0], [1], [0, 0, 1, 1], [], []>} : vector<2x32xf32>, vector<32x32xf32>, vector<2x32xf32> -> vector<2x32xf32>
    %325 = arith.addf %320, %324 : vector<2x32xf32>
    %c20_260 = arith.constant 20 : index
    %c0_261 = arith.constant 0 : index
    %326 = vector.load %arg11[%c20_260, %c0_261] : memref<104x32xf32, #tpu.memory_space<vmem>>, vector<2x32xf32>
    %c8_262 = arith.constant 8 : index
    %c0_263 = arith.constant 0 : index
    %c0_264 = arith.constant 0 : index
    %327 = vector.load %arg5[%c8_262, %c0_263, %c0_264] : memref<25x32x32xf32, #tpu.memory_space<vmem>>, vector<1x32x32xf32>
    %328 = vector.shape_cast %327 : vector<1x32x32xf32> to vector<32x32xf32>
    %cst_265 = arith.constant dense<0.000000e+00> : vector<2x32xf32>
    %329 = tpu.matmul %326, %328, %cst_265 {dimension_numbers = #tpu.dot_dimension_numbers<[1], [0], [0], [1], [0, 0, 1, 1], [], []>} : vector<2x32xf32>, vector<32x32xf32>, vector<2x32xf32> -> vector<2x32xf32>
    %330 = arith.addf %325, %329 : vector<2x32xf32>
    %c22_266 = arith.constant 22 : index
    %c0_267 = arith.constant 0 : index
    %331 = vector.load %arg11[%c22_266, %c0_267] : memref<104x32xf32, #tpu.memory_space<vmem>>, vector<2x32xf32>
    %c9_268 = arith.constant 9 : index
    %c0_269 = arith.constant 0 : index
    %c0_270 = arith.constant 0 : index
    %332 = vector.load %arg5[%c9_268, %c0_269, %c0_270] : memref<25x32x32xf32, #tpu.memory_space<vmem>>, vector<1x32x32xf32>
    %333 = vector.shape_cast %332 : vector<1x32x32xf32> to vector<32x32xf32>
    %cst_271 = arith.constant dense<0.000000e+00> : vector<2x32xf32>
    %334 = tpu.matmul %331, %333, %cst_271 {dimension_numbers = #tpu.dot_dimension_numbers<[1], [0], [0], [1], [0, 0, 1, 1], [], []>} : vector<2x32xf32>, vector<32x32xf32>, vector<2x32xf32> -> vector<2x32xf32>
    %335 = arith.addf %330, %334 : vector<2x32xf32>
    %c28 = arith.constant 28 : index
    %c0_272 = arith.constant 0 : index
    %336 = vector.load %arg11[%c28, %c0_272] : memref<104x32xf32, #tpu.memory_space<vmem>>, vector<2x32xf32>
    %c10_273 = arith.constant 10 : index
    %c0_274 = arith.constant 0 : index
    %c0_275 = arith.constant 0 : index
    %337 = vector.load %arg5[%c10_273, %c0_274, %c0_275] : memref<25x32x32xf32, #tpu.memory_space<vmem>>, vector<1x32x32xf32>
    %338 = vector.shape_cast %337 : vector<1x32x32xf32> to vector<32x32xf32>
    %cst_276 = arith.constant dense<0.000000e+00> : vector<2x32xf32>
    %339 = tpu.matmul %336, %338, %cst_276 {dimension_numbers = #tpu.dot_dimension_numbers<[1], [0], [0], [1], [0, 0, 1, 1], [], []>} : vector<2x32xf32>, vector<32x32xf32>, vector<2x32xf32> -> vector<2x32xf32>
    %340 = arith.addf %335, %339 : vector<2x32xf32>
    %c30 = arith.constant 30 : index
    %c0_277 = arith.constant 0 : index
    %341 = vector.load %arg11[%c30, %c0_277] : memref<104x32xf32, #tpu.memory_space<vmem>>, vector<2x32xf32>
    %c11_278 = arith.constant 11 : index
    %c0_279 = arith.constant 0 : index
    %c0_280 = arith.constant 0 : index
    %342 = vector.load %arg5[%c11_278, %c0_279, %c0_280] : memref<25x32x32xf32, #tpu.memory_space<vmem>>, vector<1x32x32xf32>
    %343 = vector.shape_cast %342 : vector<1x32x32xf32> to vector<32x32xf32>
    %cst_281 = arith.constant dense<0.000000e+00> : vector<2x32xf32>
    %344 = tpu.matmul %341, %343, %cst_281 {dimension_numbers = #tpu.dot_dimension_numbers<[1], [0], [0], [1], [0, 0, 1, 1], [], []>} : vector<2x32xf32>, vector<32x32xf32>, vector<2x32xf32> -> vector<2x32xf32>
    %345 = arith.addf %340, %344 : vector<2x32xf32>
    %c32 = arith.constant 32 : index
    %c0_282 = arith.constant 0 : index
    %346 = vector.load %arg11[%c32, %c0_282] : memref<104x32xf32, #tpu.memory_space<vmem>>, vector<2x32xf32>
    %c12_283 = arith.constant 12 : index
    %c0_284 = arith.constant 0 : index
    %c0_285 = arith.constant 0 : index
    %347 = vector.load %arg5[%c12_283, %c0_284, %c0_285] : memref<25x32x32xf32, #tpu.memory_space<vmem>>, vector<1x32x32xf32>
    %348 = vector.shape_cast %347 : vector<1x32x32xf32> to vector<32x32xf32>
    %cst_286 = arith.constant dense<0.000000e+00> : vector<2x32xf32>
    %349 = tpu.matmul %346, %348, %cst_286 {dimension_numbers = #tpu.dot_dimension_numbers<[1], [0], [0], [1], [0, 0, 1, 1], [], []>} : vector<2x32xf32>, vector<32x32xf32>, vector<2x32xf32> -> vector<2x32xf32>
    %350 = arith.addf %345, %349 : vector<2x32xf32>
    %c34 = arith.constant 34 : index
    %c0_287 = arith.constant 0 : index
    %351 = vector.load %arg11[%c34, %c0_287] : memref<104x32xf32, #tpu.memory_space<vmem>>, vector<2x32xf32>
    %c13_288 = arith.constant 13 : index
    %c0_289 = arith.constant 0 : index
    %c0_290 = arith.constant 0 : index
    %352 = vector.load %arg5[%c13_288, %c0_289, %c0_290] : memref<25x32x32xf32, #tpu.memory_space<vmem>>, vector<1x32x32xf32>
    %353 = vector.shape_cast %352 : vector<1x32x32xf32> to vector<32x32xf32>
    %cst_291 = arith.constant dense<0.000000e+00> : vector<2x32xf32>
    %354 = tpu.matmul %351, %353, %cst_291 {dimension_numbers = #tpu.dot_dimension_numbers<[1], [0], [0], [1], [0, 0, 1, 1], [], []>} : vector<2x32xf32>, vector<32x32xf32>, vector<2x32xf32> -> vector<2x32xf32>
    %355 = arith.addf %350, %354 : vector<2x32xf32>
    %c36 = arith.constant 36 : index
    %c0_292 = arith.constant 0 : index
    %356 = vector.load %arg11[%c36, %c0_292] : memref<104x32xf32, #tpu.memory_space<vmem>>, vector<2x32xf32>
    %c14_293 = arith.constant 14 : index
    %c0_294 = arith.constant 0 : index
    %c0_295 = arith.constant 0 : index
    %357 = vector.load %arg5[%c14_293, %c0_294, %c0_295] : memref<25x32x32xf32, #tpu.memory_space<vmem>>, vector<1x32x32xf32>
    %358 = vector.shape_cast %357 : vector<1x32x32xf32> to vector<32x32xf32>
    %cst_296 = arith.constant dense<0.000000e+00> : vector<2x32xf32>
    %359 = tpu.matmul %356, %358, %cst_296 {dimension_numbers = #tpu.dot_dimension_numbers<[1], [0], [0], [1], [0, 0, 1, 1], [], []>} : vector<2x32xf32>, vector<32x32xf32>, vector<2x32xf32> -> vector<2x32xf32>
    %360 = arith.addf %355, %359 : vector<2x32xf32>
    %c42 = arith.constant 42 : index
    %c0_297 = arith.constant 0 : index
    %361 = vector.load %arg11[%c42, %c0_297] : memref<104x32xf32, #tpu.memory_space<vmem>>, vector<2x32xf32>
    %c15_298 = arith.constant 15 : index
    %c0_299 = arith.constant 0 : index
    %c0_300 = arith.constant 0 : index
    %362 = vector.load %arg5[%c15_298, %c0_299, %c0_300] : memref<25x32x32xf32, #tpu.memory_space<vmem>>, vector<1x32x32xf32>
    %363 = vector.shape_cast %362 : vector<1x32x32xf32> to vector<32x32xf32>
    %cst_301 = arith.constant dense<0.000000e+00> : vector<2x32xf32>
    %364 = tpu.matmul %361, %363, %cst_301 {dimension_numbers = #tpu.dot_dimension_numbers<[1], [0], [0], [1], [0, 0, 1, 1], [], []>} : vector<2x32xf32>, vector<32x32xf32>, vector<2x32xf32> -> vector<2x32xf32>
    %365 = arith.addf %360, %364 : vector<2x32xf32>
    %c44 = arith.constant 44 : index
    %c0_302 = arith.constant 0 : index
    %366 = vector.load %arg11[%c44, %c0_302] : memref<104x32xf32, #tpu.memory_space<vmem>>, vector<2x32xf32>
    %c16_303 = arith.constant 16 : index
    %c0_304 = arith.constant 0 : index
    %c0_305 = arith.constant 0 : index
    %367 = vector.load %arg5[%c16_303, %c0_304, %c0_305] : memref<25x32x32xf32, #tpu.memory_space<vmem>>, vector<1x32x32xf32>
    %368 = vector.shape_cast %367 : vector<1x32x32xf32> to vector<32x32xf32>
    %cst_306 = arith.constant dense<0.000000e+00> : vector<2x32xf32>
    %369 = tpu.matmul %366, %368, %cst_306 {dimension_numbers = #tpu.dot_dimension_numbers<[1], [0], [0], [1], [0, 0, 1, 1], [], []>} : vector<2x32xf32>, vector<32x32xf32>, vector<2x32xf32> -> vector<2x32xf32>
    %370 = arith.addf %365, %369 : vector<2x32xf32>
    %c46 = arith.constant 46 : index
    %c0_307 = arith.constant 0 : index
    %371 = vector.load %arg11[%c46, %c0_307] : memref<104x32xf32, #tpu.memory_space<vmem>>, vector<2x32xf32>
    %c17_308 = arith.constant 17 : index
    %c0_309 = arith.constant 0 : index
    %c0_310 = arith.constant 0 : index
    %372 = vector.load %arg5[%c17_308, %c0_309, %c0_310] : memref<25x32x32xf32, #tpu.memory_space<vmem>>, vector<1x32x32xf32>
    %373 = vector.shape_cast %372 : vector<1x32x32xf32> to vector<32x32xf32>
    %cst_311 = arith.constant dense<0.000000e+00> : vector<2x32xf32>
    %374 = tpu.matmul %371, %373, %cst_311 {dimension_numbers = #tpu.dot_dimension_numbers<[1], [0], [0], [1], [0, 0, 1, 1], [], []>} : vector<2x32xf32>, vector<32x32xf32>, vector<2x32xf32> -> vector<2x32xf32>
    %375 = arith.addf %370, %374 : vector<2x32xf32>
    %c48 = arith.constant 48 : index
    %c0_312 = arith.constant 0 : index
    %376 = vector.load %arg11[%c48, %c0_312] : memref<104x32xf32, #tpu.memory_space<vmem>>, vector<2x32xf32>
    %c18_313 = arith.constant 18 : index
    %c0_314 = arith.constant 0 : index
    %c0_315 = arith.constant 0 : index
    %377 = vector.load %arg5[%c18_313, %c0_314, %c0_315] : memref<25x32x32xf32, #tpu.memory_space<vmem>>, vector<1x32x32xf32>
    %378 = vector.shape_cast %377 : vector<1x32x32xf32> to vector<32x32xf32>
    %cst_316 = arith.constant dense<0.000000e+00> : vector<2x32xf32>
    %379 = tpu.matmul %376, %378, %cst_316 {dimension_numbers = #tpu.dot_dimension_numbers<[1], [0], [0], [1], [0, 0, 1, 1], [], []>} : vector<2x32xf32>, vector<32x32xf32>, vector<2x32xf32> -> vector<2x32xf32>
    %380 = arith.addf %375, %379 : vector<2x32xf32>
    %c50 = arith.constant 50 : index
    %c0_317 = arith.constant 0 : index
    %381 = vector.load %arg11[%c50, %c0_317] : memref<104x32xf32, #tpu.memory_space<vmem>>, vector<2x32xf32>
    %c19_318 = arith.constant 19 : index
    %c0_319 = arith.constant 0 : index
    %c0_320 = arith.constant 0 : index
    %382 = vector.load %arg5[%c19_318, %c0_319, %c0_320] : memref<25x32x32xf32, #tpu.memory_space<vmem>>, vector<1x32x32xf32>
    %383 = vector.shape_cast %382 : vector<1x32x32xf32> to vector<32x32xf32>
    %cst_321 = arith.constant dense<0.000000e+00> : vector<2x32xf32>
    %384 = tpu.matmul %381, %383, %cst_321 {dimension_numbers = #tpu.dot_dimension_numbers<[1], [0], [0], [1], [0, 0, 1, 1], [], []>} : vector<2x32xf32>, vector<32x32xf32>, vector<2x32xf32> -> vector<2x32xf32>
    %385 = arith.addf %380, %384 : vector<2x32xf32>
    %c56 = arith.constant 56 : index
    %c0_322 = arith.constant 0 : index
    %386 = vector.load %arg11[%c56, %c0_322] : memref<104x32xf32, #tpu.memory_space<vmem>>, vector<2x32xf32>
    %c20_323 = arith.constant 20 : index
    %c0_324 = arith.constant 0 : index
    %c0_325 = arith.constant 0 : index
    %387 = vector.load %arg5[%c20_323, %c0_324, %c0_325] : memref<25x32x32xf32, #tpu.memory_space<vmem>>, vector<1x32x32xf32>
    %388 = vector.shape_cast %387 : vector<1x32x32xf32> to vector<32x32xf32>
    %cst_326 = arith.constant dense<0.000000e+00> : vector<2x32xf32>
    %389 = tpu.matmul %386, %388, %cst_326 {dimension_numbers = #tpu.dot_dimension_numbers<[1], [0], [0], [1], [0, 0, 1, 1], [], []>} : vector<2x32xf32>, vector<32x32xf32>, vector<2x32xf32> -> vector<2x32xf32>
    %390 = arith.addf %385, %389 : vector<2x32xf32>
    %c58 = arith.constant 58 : index
    %c0_327 = arith.constant 0 : index
    %391 = vector.load %arg11[%c58, %c0_327] : memref<104x32xf32, #tpu.memory_space<vmem>>, vector<2x32xf32>
    %c21_328 = arith.constant 21 : index
    %c0_329 = arith.constant 0 : index
    %c0_330 = arith.constant 0 : index
    %392 = vector.load %arg5[%c21_328, %c0_329, %c0_330] : memref<25x32x32xf32, #tpu.memory_space<vmem>>, vector<1x32x32xf32>
    %393 = vector.shape_cast %392 : vector<1x32x32xf32> to vector<32x32xf32>
    %cst_331 = arith.constant dense<0.000000e+00> : vector<2x32xf32>
    %394 = tpu.matmul %391, %393, %cst_331 {dimension_numbers = #tpu.dot_dimension_numbers<[1], [0], [0], [1], [0, 0, 1, 1], [], []>} : vector<2x32xf32>, vector<32x32xf32>, vector<2x32xf32> -> vector<2x32xf32>
    %395 = arith.addf %390, %394 : vector<2x32xf32>
    %c60 = arith.constant 60 : index
    %c0_332 = arith.constant 0 : index
    %396 = vector.load %arg11[%c60, %c0_332] : memref<104x32xf32, #tpu.memory_space<vmem>>, vector<2x32xf32>
    %c22_333 = arith.constant 22 : index
    %c0_334 = arith.constant 0 : index
    %c0_335 = arith.constant 0 : index
    %397 = vector.load %arg5[%c22_333, %c0_334, %c0_335] : memref<25x32x32xf32, #tpu.memory_space<vmem>>, vector<1x32x32xf32>
    %398 = vector.shape_cast %397 : vector<1x32x32xf32> to vector<32x32xf32>
    %cst_336 = arith.constant dense<0.000000e+00> : vector<2x32xf32>
    %399 = tpu.matmul %396, %398, %cst_336 {dimension_numbers = #tpu.dot_dimension_numbers<[1], [0], [0], [1], [0, 0, 1, 1], [], []>} : vector<2x32xf32>, vector<32x32xf32>, vector<2x32xf32> -> vector<2x32xf32>
    %400 = arith.addf %395, %399 : vector<2x32xf32>
    %c62 = arith.constant 62 : index
    %c0_337 = arith.constant 0 : index
    %401 = vector.load %arg11[%c62, %c0_337] : memref<104x32xf32, #tpu.memory_space<vmem>>, vector<2x32xf32>
    %c23_338 = arith.constant 23 : index
    %c0_339 = arith.constant 0 : index
    %c0_340 = arith.constant 0 : index
    %402 = vector.load %arg5[%c23_338, %c0_339, %c0_340] : memref<25x32x32xf32, #tpu.memory_space<vmem>>, vector<1x32x32xf32>
    %403 = vector.shape_cast %402 : vector<1x32x32xf32> to vector<32x32xf32>
    %cst_341 = arith.constant dense<0.000000e+00> : vector<2x32xf32>
    %404 = tpu.matmul %401, %403, %cst_341 {dimension_numbers = #tpu.dot_dimension_numbers<[1], [0], [0], [1], [0, 0, 1, 1], [], []>} : vector<2x32xf32>, vector<32x32xf32>, vector<2x32xf32> -> vector<2x32xf32>
    %405 = arith.addf %400, %404 : vector<2x32xf32>
    %c64 = arith.constant 64 : index
    %c0_342 = arith.constant 0 : index
    %406 = vector.load %arg11[%c64, %c0_342] : memref<104x32xf32, #tpu.memory_space<vmem>>, vector<2x32xf32>
    %c24_343 = arith.constant 24 : index
    %c0_344 = arith.constant 0 : index
    %c0_345 = arith.constant 0 : index
    %407 = vector.load %arg5[%c24_343, %c0_344, %c0_345] : memref<25x32x32xf32, #tpu.memory_space<vmem>>, vector<1x32x32xf32>
    %408 = vector.shape_cast %407 : vector<1x32x32xf32> to vector<32x32xf32>
    %cst_346 = arith.constant dense<0.000000e+00> : vector<2x32xf32>
    %409 = tpu.matmul %406, %408, %cst_346 {dimension_numbers = #tpu.dot_dimension_numbers<[1], [0], [0], [1], [0, 0, 1, 1], [], []>} : vector<2x32xf32>, vector<32x32xf32>, vector<2x32xf32> -> vector<2x32xf32>
    %410 = arith.addf %405, %409 : vector<2x32xf32>
    %411 = vector.broadcast %284 : vector<1x32xf32> to vector<2x32xf32>
    %412 = arith.addf %410, %411 : vector<2x32xf32>
    %cst_347 = arith.constant 0.000000e+00 : f32
    %413 = vector.broadcast %cst_347 : f32 to vector<2x32xf32>
    %414 = arith.maximumf %412, %413 : vector<2x32xf32>
    %cst_348 = arith.constant 0.000000e+00 : f32
    %415 = vector.broadcast %cst_348 : f32 to vector<2x32xf32>
    %c4_349 = arith.constant 4 : index
    %c0_350 = arith.constant 0 : index
    %416 = vector.load %arg11[%c4_349, %c0_350] : memref<104x32xf32, #tpu.memory_space<vmem>>, vector<2x32xf32>
    %c0_351 = arith.constant 0 : index
    %c0_352 = arith.constant 0 : index
    %c0_353 = arith.constant 0 : index
    %417 = vector.load %arg5[%c0_351, %c0_352, %c0_353] : memref<25x32x32xf32, #tpu.memory_space<vmem>>, vector<1x32x32xf32>
    %418 = vector.shape_cast %417 : vector<1x32x32xf32> to vector<32x32xf32>
    %cst_354 = arith.constant dense<0.000000e+00> : vector<2x32xf32>
    %419 = tpu.matmul %416, %418, %cst_354 {dimension_numbers = #tpu.dot_dimension_numbers<[1], [0], [0], [1], [0, 0, 1, 1], [], []>} : vector<2x32xf32>, vector<32x32xf32>, vector<2x32xf32> -> vector<2x32xf32>
    %420 = arith.addf %415, %419 : vector<2x32xf32>
    %c6_355 = arith.constant 6 : index
    %c0_356 = arith.constant 0 : index
    %421 = vector.load %arg11[%c6_355, %c0_356] : memref<104x32xf32, #tpu.memory_space<vmem>>, vector<2x32xf32>
    %c1_357 = arith.constant 1 : index
    %c0_358 = arith.constant 0 : index
    %c0_359 = arith.constant 0 : index
    %422 = vector.load %arg5[%c1_357, %c0_358, %c0_359] : memref<25x32x32xf32, #tpu.memory_space<vmem>>, vector<1x32x32xf32>
    %423 = vector.shape_cast %422 : vector<1x32x32xf32> to vector<32x32xf32>
    %cst_360 = arith.constant dense<0.000000e+00> : vector<2x32xf32>
    %424 = tpu.matmul %421, %423, %cst_360 {dimension_numbers = #tpu.dot_dimension_numbers<[1], [0], [0], [1], [0, 0, 1, 1], [], []>} : vector<2x32xf32>, vector<32x32xf32>, vector<2x32xf32> -> vector<2x32xf32>
    %425 = arith.addf %420, %424 : vector<2x32xf32>
    %c8_361 = arith.constant 8 : index
    %c0_362 = arith.constant 0 : index
    %426 = vector.load %arg11[%c8_361, %c0_362] : memref<104x32xf32, #tpu.memory_space<vmem>>, vector<2x32xf32>
    %c2_363 = arith.constant 2 : index
    %c0_364 = arith.constant 0 : index
    %c0_365 = arith.constant 0 : index
    %427 = vector.load %arg5[%c2_363, %c0_364, %c0_365] : memref<25x32x32xf32, #tpu.memory_space<vmem>>, vector<1x32x32xf32>
    %428 = vector.shape_cast %427 : vector<1x32x32xf32> to vector<32x32xf32>
    %cst_366 = arith.constant dense<0.000000e+00> : vector<2x32xf32>
    %429 = tpu.matmul %426, %428, %cst_366 {dimension_numbers = #tpu.dot_dimension_numbers<[1], [0], [0], [1], [0, 0, 1, 1], [], []>} : vector<2x32xf32>, vector<32x32xf32>, vector<2x32xf32> -> vector<2x32xf32>
    %430 = arith.addf %425, %429 : vector<2x32xf32>
    %c10_367 = arith.constant 10 : index
    %c0_368 = arith.constant 0 : index
    %431 = vector.load %arg11[%c10_367, %c0_368] : memref<104x32xf32, #tpu.memory_space<vmem>>, vector<2x32xf32>
    %c3_369 = arith.constant 3 : index
    %c0_370 = arith.constant 0 : index
    %c0_371 = arith.constant 0 : index
    %432 = vector.load %arg5[%c3_369, %c0_370, %c0_371] : memref<25x32x32xf32, #tpu.memory_space<vmem>>, vector<1x32x32xf32>
    %433 = vector.shape_cast %432 : vector<1x32x32xf32> to vector<32x32xf32>
    %cst_372 = arith.constant dense<0.000000e+00> : vector<2x32xf32>
    %434 = tpu.matmul %431, %433, %cst_372 {dimension_numbers = #tpu.dot_dimension_numbers<[1], [0], [0], [1], [0, 0, 1, 1], [], []>} : vector<2x32xf32>, vector<32x32xf32>, vector<2x32xf32> -> vector<2x32xf32>
    %435 = arith.addf %430, %434 : vector<2x32xf32>
    %c12_373 = arith.constant 12 : index
    %c0_374 = arith.constant 0 : index
    %436 = vector.load %arg11[%c12_373, %c0_374] : memref<104x32xf32, #tpu.memory_space<vmem>>, vector<2x32xf32>
    %c4_375 = arith.constant 4 : index
    %c0_376 = arith.constant 0 : index
    %c0_377 = arith.constant 0 : index
    %437 = vector.load %arg5[%c4_375, %c0_376, %c0_377] : memref<25x32x32xf32, #tpu.memory_space<vmem>>, vector<1x32x32xf32>
    %438 = vector.shape_cast %437 : vector<1x32x32xf32> to vector<32x32xf32>
    %cst_378 = arith.constant dense<0.000000e+00> : vector<2x32xf32>
    %439 = tpu.matmul %436, %438, %cst_378 {dimension_numbers = #tpu.dot_dimension_numbers<[1], [0], [0], [1], [0, 0, 1, 1], [], []>} : vector<2x32xf32>, vector<32x32xf32>, vector<2x32xf32> -> vector<2x32xf32>
    %440 = arith.addf %435, %439 : vector<2x32xf32>
    %c18_379 = arith.constant 18 : index
    %c0_380 = arith.constant 0 : index
    %441 = vector.load %arg11[%c18_379, %c0_380] : memref<104x32xf32, #tpu.memory_space<vmem>>, vector<2x32xf32>
    %c5_381 = arith.constant 5 : index
    %c0_382 = arith.constant 0 : index
    %c0_383 = arith.constant 0 : index
    %442 = vector.load %arg5[%c5_381, %c0_382, %c0_383] : memref<25x32x32xf32, #tpu.memory_space<vmem>>, vector<1x32x32xf32>
    %443 = vector.shape_cast %442 : vector<1x32x32xf32> to vector<32x32xf32>
    %cst_384 = arith.constant dense<0.000000e+00> : vector<2x32xf32>
    %444 = tpu.matmul %441, %443, %cst_384 {dimension_numbers = #tpu.dot_dimension_numbers<[1], [0], [0], [1], [0, 0, 1, 1], [], []>} : vector<2x32xf32>, vector<32x32xf32>, vector<2x32xf32> -> vector<2x32xf32>
    %445 = arith.addf %440, %444 : vector<2x32xf32>
    %c20_385 = arith.constant 20 : index
    %c0_386 = arith.constant 0 : index
    %446 = vector.load %arg11[%c20_385, %c0_386] : memref<104x32xf32, #tpu.memory_space<vmem>>, vector<2x32xf32>
    %c6_387 = arith.constant 6 : index
    %c0_388 = arith.constant 0 : index
    %c0_389 = arith.constant 0 : index
    %447 = vector.load %arg5[%c6_387, %c0_388, %c0_389] : memref<25x32x32xf32, #tpu.memory_space<vmem>>, vector<1x32x32xf32>
    %448 = vector.shape_cast %447 : vector<1x32x32xf32> to vector<32x32xf32>
    %cst_390 = arith.constant dense<0.000000e+00> : vector<2x32xf32>
    %449 = tpu.matmul %446, %448, %cst_390 {dimension_numbers = #tpu.dot_dimension_numbers<[1], [0], [0], [1], [0, 0, 1, 1], [], []>} : vector<2x32xf32>, vector<32x32xf32>, vector<2x32xf32> -> vector<2x32xf32>
    %450 = arith.addf %445, %449 : vector<2x32xf32>
    %c22_391 = arith.constant 22 : index
    %c0_392 = arith.constant 0 : index
    %451 = vector.load %arg11[%c22_391, %c0_392] : memref<104x32xf32, #tpu.memory_space<vmem>>, vector<2x32xf32>
    %c7_393 = arith.constant 7 : index
    %c0_394 = arith.constant 0 : index
    %c0_395 = arith.constant 0 : index
    %452 = vector.load %arg5[%c7_393, %c0_394, %c0_395] : memref<25x32x32xf32, #tpu.memory_space<vmem>>, vector<1x32x32xf32>
    %453 = vector.shape_cast %452 : vector<1x32x32xf32> to vector<32x32xf32>
    %cst_396 = arith.constant dense<0.000000e+00> : vector<2x32xf32>
    %454 = tpu.matmul %451, %453, %cst_396 {dimension_numbers = #tpu.dot_dimension_numbers<[1], [0], [0], [1], [0, 0, 1, 1], [], []>} : vector<2x32xf32>, vector<32x32xf32>, vector<2x32xf32> -> vector<2x32xf32>
    %455 = arith.addf %450, %454 : vector<2x32xf32>
    %c24_397 = arith.constant 24 : index
    %c0_398 = arith.constant 0 : index
    %456 = vector.load %arg11[%c24_397, %c0_398] : memref<104x32xf32, #tpu.memory_space<vmem>>, vector<2x32xf32>
    %c8_399 = arith.constant 8 : index
    %c0_400 = arith.constant 0 : index
    %c0_401 = arith.constant 0 : index
    %457 = vector.load %arg5[%c8_399, %c0_400, %c0_401] : memref<25x32x32xf32, #tpu.memory_space<vmem>>, vector<1x32x32xf32>
    %458 = vector.shape_cast %457 : vector<1x32x32xf32> to vector<32x32xf32>
    %cst_402 = arith.constant dense<0.000000e+00> : vector<2x32xf32>
    %459 = tpu.matmul %456, %458, %cst_402 {dimension_numbers = #tpu.dot_dimension_numbers<[1], [0], [0], [1], [0, 0, 1, 1], [], []>} : vector<2x32xf32>, vector<32x32xf32>, vector<2x32xf32> -> vector<2x32xf32>
    %460 = arith.addf %455, %459 : vector<2x32xf32>
    %c26 = arith.constant 26 : index
    %c0_403 = arith.constant 0 : index
    %461 = vector.load %arg11[%c26, %c0_403] : memref<104x32xf32, #tpu.memory_space<vmem>>, vector<2x32xf32>
    %c9_404 = arith.constant 9 : index
    %c0_405 = arith.constant 0 : index
    %c0_406 = arith.constant 0 : index
    %462 = vector.load %arg5[%c9_404, %c0_405, %c0_406] : memref<25x32x32xf32, #tpu.memory_space<vmem>>, vector<1x32x32xf32>
    %463 = vector.shape_cast %462 : vector<1x32x32xf32> to vector<32x32xf32>
    %cst_407 = arith.constant dense<0.000000e+00> : vector<2x32xf32>
    %464 = tpu.matmul %461, %463, %cst_407 {dimension_numbers = #tpu.dot_dimension_numbers<[1], [0], [0], [1], [0, 0, 1, 1], [], []>} : vector<2x32xf32>, vector<32x32xf32>, vector<2x32xf32> -> vector<2x32xf32>
    %465 = arith.addf %460, %464 : vector<2x32xf32>
    %c32_408 = arith.constant 32 : index
    %c0_409 = arith.constant 0 : index
    %466 = vector.load %arg11[%c32_408, %c0_409] : memref<104x32xf32, #tpu.memory_space<vmem>>, vector<2x32xf32>
    %c10_410 = arith.constant 10 : index
    %c0_411 = arith.constant 0 : index
    %c0_412 = arith.constant 0 : index
    %467 = vector.load %arg5[%c10_410, %c0_411, %c0_412] : memref<25x32x32xf32, #tpu.memory_space<vmem>>, vector<1x32x32xf32>
    %468 = vector.shape_cast %467 : vector<1x32x32xf32> to vector<32x32xf32>
    %cst_413 = arith.constant dense<0.000000e+00> : vector<2x32xf32>
    %469 = tpu.matmul %466, %468, %cst_413 {dimension_numbers = #tpu.dot_dimension_numbers<[1], [0], [0], [1], [0, 0, 1, 1], [], []>} : vector<2x32xf32>, vector<32x32xf32>, vector<2x32xf32> -> vector<2x32xf32>
    %470 = arith.addf %465, %469 : vector<2x32xf32>
    %c34_414 = arith.constant 34 : index
    %c0_415 = arith.constant 0 : index
    %471 = vector.load %arg11[%c34_414, %c0_415] : memref<104x32xf32, #tpu.memory_space<vmem>>, vector<2x32xf32>
    %c11_416 = arith.constant 11 : index
    %c0_417 = arith.constant 0 : index
    %c0_418 = arith.constant 0 : index
    %472 = vector.load %arg5[%c11_416, %c0_417, %c0_418] : memref<25x32x32xf32, #tpu.memory_space<vmem>>, vector<1x32x32xf32>
    %473 = vector.shape_cast %472 : vector<1x32x32xf32> to vector<32x32xf32>
    %cst_419 = arith.constant dense<0.000000e+00> : vector<2x32xf32>
    %474 = tpu.matmul %471, %473, %cst_419 {dimension_numbers = #tpu.dot_dimension_numbers<[1], [0], [0], [1], [0, 0, 1, 1], [], []>} : vector<2x32xf32>, vector<32x32xf32>, vector<2x32xf32> -> vector<2x32xf32>
    %475 = arith.addf %470, %474 : vector<2x32xf32>
    %c36_420 = arith.constant 36 : index
    %c0_421 = arith.constant 0 : index
    %476 = vector.load %arg11[%c36_420, %c0_421] : memref<104x32xf32, #tpu.memory_space<vmem>>, vector<2x32xf32>
    %c12_422 = arith.constant 12 : index
    %c0_423 = arith.constant 0 : index
    %c0_424 = arith.constant 0 : index
    %477 = vector.load %arg5[%c12_422, %c0_423, %c0_424] : memref<25x32x32xf32, #tpu.memory_space<vmem>>, vector<1x32x32xf32>
    %478 = vector.shape_cast %477 : vector<1x32x32xf32> to vector<32x32xf32>
    %cst_425 = arith.constant dense<0.000000e+00> : vector<2x32xf32>
    %479 = tpu.matmul %476, %478, %cst_425 {dimension_numbers = #tpu.dot_dimension_numbers<[1], [0], [0], [1], [0, 0, 1, 1], [], []>} : vector<2x32xf32>, vector<32x32xf32>, vector<2x32xf32> -> vector<2x32xf32>
    %480 = arith.addf %475, %479 : vector<2x32xf32>
    %c38 = arith.constant 38 : index
    %c0_426 = arith.constant 0 : index
    %481 = vector.load %arg11[%c38, %c0_426] : memref<104x32xf32, #tpu.memory_space<vmem>>, vector<2x32xf32>
    %c13_427 = arith.constant 13 : index
    %c0_428 = arith.constant 0 : index
    %c0_429 = arith.constant 0 : index
    %482 = vector.load %arg5[%c13_427, %c0_428, %c0_429] : memref<25x32x32xf32, #tpu.memory_space<vmem>>, vector<1x32x32xf32>
    %483 = vector.shape_cast %482 : vector<1x32x32xf32> to vector<32x32xf32>
    %cst_430 = arith.constant dense<0.000000e+00> : vector<2x32xf32>
    %484 = tpu.matmul %481, %483, %cst_430 {dimension_numbers = #tpu.dot_dimension_numbers<[1], [0], [0], [1], [0, 0, 1, 1], [], []>} : vector<2x32xf32>, vector<32x32xf32>, vector<2x32xf32> -> vector<2x32xf32>
    %485 = arith.addf %480, %484 : vector<2x32xf32>
    %c40 = arith.constant 40 : index
    %c0_431 = arith.constant 0 : index
    %486 = vector.load %arg11[%c40, %c0_431] : memref<104x32xf32, #tpu.memory_space<vmem>>, vector<2x32xf32>
    %c14_432 = arith.constant 14 : index
    %c0_433 = arith.constant 0 : index
    %c0_434 = arith.constant 0 : index
    %487 = vector.load %arg5[%c14_432, %c0_433, %c0_434] : memref<25x32x32xf32, #tpu.memory_space<vmem>>, vector<1x32x32xf32>
    %488 = vector.shape_cast %487 : vector<1x32x32xf32> to vector<32x32xf32>
    %cst_435 = arith.constant dense<0.000000e+00> : vector<2x32xf32>
    %489 = tpu.matmul %486, %488, %cst_435 {dimension_numbers = #tpu.dot_dimension_numbers<[1], [0], [0], [1], [0, 0, 1, 1], [], []>} : vector<2x32xf32>, vector<32x32xf32>, vector<2x32xf32> -> vector<2x32xf32>
    %490 = arith.addf %485, %489 : vector<2x32xf32>
    %c46_436 = arith.constant 46 : index
    %c0_437 = arith.constant 0 : index
    %491 = vector.load %arg11[%c46_436, %c0_437] : memref<104x32xf32, #tpu.memory_space<vmem>>, vector<2x32xf32>
    %c15_438 = arith.constant 15 : index
    %c0_439 = arith.constant 0 : index
    %c0_440 = arith.constant 0 : index
    %492 = vector.load %arg5[%c15_438, %c0_439, %c0_440] : memref<25x32x32xf32, #tpu.memory_space<vmem>>, vector<1x32x32xf32>
    %493 = vector.shape_cast %492 : vector<1x32x32xf32> to vector<32x32xf32>
    %cst_441 = arith.constant dense<0.000000e+00> : vector<2x32xf32>
    %494 = tpu.matmul %491, %493, %cst_441 {dimension_numbers = #tpu.dot_dimension_numbers<[1], [0], [0], [1], [0, 0, 1, 1], [], []>} : vector<2x32xf32>, vector<32x32xf32>, vector<2x32xf32> -> vector<2x32xf32>
    %495 = arith.addf %490, %494 : vector<2x32xf32>
    %c48_442 = arith.constant 48 : index
    %c0_443 = arith.constant 0 : index
    %496 = vector.load %arg11[%c48_442, %c0_443] : memref<104x32xf32, #tpu.memory_space<vmem>>, vector<2x32xf32>
    %c16_444 = arith.constant 16 : index
    %c0_445 = arith.constant 0 : index
    %c0_446 = arith.constant 0 : index
    %497 = vector.load %arg5[%c16_444, %c0_445, %c0_446] : memref<25x32x32xf32, #tpu.memory_space<vmem>>, vector<1x32x32xf32>
    %498 = vector.shape_cast %497 : vector<1x32x32xf32> to vector<32x32xf32>
    %cst_447 = arith.constant dense<0.000000e+00> : vector<2x32xf32>
    %499 = tpu.matmul %496, %498, %cst_447 {dimension_numbers = #tpu.dot_dimension_numbers<[1], [0], [0], [1], [0, 0, 1, 1], [], []>} : vector<2x32xf32>, vector<32x32xf32>, vector<2x32xf32> -> vector<2x32xf32>
    %500 = arith.addf %495, %499 : vector<2x32xf32>
    %c50_448 = arith.constant 50 : index
    %c0_449 = arith.constant 0 : index
    %501 = vector.load %arg11[%c50_448, %c0_449] : memref<104x32xf32, #tpu.memory_space<vmem>>, vector<2x32xf32>
    %c17_450 = arith.constant 17 : index
    %c0_451 = arith.constant 0 : index
    %c0_452 = arith.constant 0 : index
    %502 = vector.load %arg5[%c17_450, %c0_451, %c0_452] : memref<25x32x32xf32, #tpu.memory_space<vmem>>, vector<1x32x32xf32>
    %503 = vector.shape_cast %502 : vector<1x32x32xf32> to vector<32x32xf32>
    %cst_453 = arith.constant dense<0.000000e+00> : vector<2x32xf32>
    %504 = tpu.matmul %501, %503, %cst_453 {dimension_numbers = #tpu.dot_dimension_numbers<[1], [0], [0], [1], [0, 0, 1, 1], [], []>} : vector<2x32xf32>, vector<32x32xf32>, vector<2x32xf32> -> vector<2x32xf32>
    %505 = arith.addf %500, %504 : vector<2x32xf32>
    %c52 = arith.constant 52 : index
    %c0_454 = arith.constant 0 : index
    %506 = vector.load %arg11[%c52, %c0_454] : memref<104x32xf32, #tpu.memory_space<vmem>>, vector<2x32xf32>
    %c18_455 = arith.constant 18 : index
    %c0_456 = arith.constant 0 : index
    %c0_457 = arith.constant 0 : index
    %507 = vector.load %arg5[%c18_455, %c0_456, %c0_457] : memref<25x32x32xf32, #tpu.memory_space<vmem>>, vector<1x32x32xf32>
    %508 = vector.shape_cast %507 : vector<1x32x32xf32> to vector<32x32xf32>
    %cst_458 = arith.constant dense<0.000000e+00> : vector<2x32xf32>
    %509 = tpu.matmul %506, %508, %cst_458 {dimension_numbers = #tpu.dot_dimension_numbers<[1], [0], [0], [1], [0, 0, 1, 1], [], []>} : vector<2x32xf32>, vector<32x32xf32>, vector<2x32xf32> -> vector<2x32xf32>
    %510 = arith.addf %505, %509 : vector<2x32xf32>
    %c54 = arith.constant 54 : index
    %c0_459 = arith.constant 0 : index
    %511 = vector.load %arg11[%c54, %c0_459] : memref<104x32xf32, #tpu.memory_space<vmem>>, vector<2x32xf32>
    %c19_460 = arith.constant 19 : index
    %c0_461 = arith.constant 0 : index
    %c0_462 = arith.constant 0 : index
    %512 = vector.load %arg5[%c19_460, %c0_461, %c0_462] : memref<25x32x32xf32, #tpu.memory_space<vmem>>, vector<1x32x32xf32>
    %513 = vector.shape_cast %512 : vector<1x32x32xf32> to vector<32x32xf32>
    %cst_463 = arith.constant dense<0.000000e+00> : vector<2x32xf32>
    %514 = tpu.matmul %511, %513, %cst_463 {dimension_numbers = #tpu.dot_dimension_numbers<[1], [0], [0], [1], [0, 0, 1, 1], [], []>} : vector<2x32xf32>, vector<32x32xf32>, vector<2x32xf32> -> vector<2x32xf32>
    %515 = arith.addf %510, %514 : vector<2x32xf32>
    %c60_464 = arith.constant 60 : index
    %c0_465 = arith.constant 0 : index
    %516 = vector.load %arg11[%c60_464, %c0_465] : memref<104x32xf32, #tpu.memory_space<vmem>>, vector<2x32xf32>
    %c20_466 = arith.constant 20 : index
    %c0_467 = arith.constant 0 : index
    %c0_468 = arith.constant 0 : index
    %517 = vector.load %arg5[%c20_466, %c0_467, %c0_468] : memref<25x32x32xf32, #tpu.memory_space<vmem>>, vector<1x32x32xf32>
    %518 = vector.shape_cast %517 : vector<1x32x32xf32> to vector<32x32xf32>
    %cst_469 = arith.constant dense<0.000000e+00> : vector<2x32xf32>
    %519 = tpu.matmul %516, %518, %cst_469 {dimension_numbers = #tpu.dot_dimension_numbers<[1], [0], [0], [1], [0, 0, 1, 1], [], []>} : vector<2x32xf32>, vector<32x32xf32>, vector<2x32xf32> -> vector<2x32xf32>
    %520 = arith.addf %515, %519 : vector<2x32xf32>
    %c62_470 = arith.constant 62 : index
    %c0_471 = arith.constant 0 : index
    %521 = vector.load %arg11[%c62_470, %c0_471] : memref<104x32xf32, #tpu.memory_space<vmem>>, vector<2x32xf32>
    %c21_472 = arith.constant 21 : index
    %c0_473 = arith.constant 0 : index
    %c0_474 = arith.constant 0 : index
    %522 = vector.load %arg5[%c21_472, %c0_473, %c0_474] : memref<25x32x32xf32, #tpu.memory_space<vmem>>, vector<1x32x32xf32>
    %523 = vector.shape_cast %522 : vector<1x32x32xf32> to vector<32x32xf32>
    %cst_475 = arith.constant dense<0.000000e+00> : vector<2x32xf32>
    %524 = tpu.matmul %521, %523, %cst_475 {dimension_numbers = #tpu.dot_dimension_numbers<[1], [0], [0], [1], [0, 0, 1, 1], [], []>} : vector<2x32xf32>, vector<32x32xf32>, vector<2x32xf32> -> vector<2x32xf32>
    %525 = arith.addf %520, %524 : vector<2x32xf32>
    %c64_476 = arith.constant 64 : index
    %c0_477 = arith.constant 0 : index
    %526 = vector.load %arg11[%c64_476, %c0_477] : memref<104x32xf32, #tpu.memory_space<vmem>>, vector<2x32xf32>
    %c22_478 = arith.constant 22 : index
    %c0_479 = arith.constant 0 : index
    %c0_480 = arith.constant 0 : index
    %527 = vector.load %arg5[%c22_478, %c0_479, %c0_480] : memref<25x32x32xf32, #tpu.memory_space<vmem>>, vector<1x32x32xf32>
    %528 = vector.shape_cast %527 : vector<1x32x32xf32> to vector<32x32xf32>
    %cst_481 = arith.constant dense<0.000000e+00> : vector<2x32xf32>
    %529 = tpu.matmul %526, %528, %cst_481 {dimension_numbers = #tpu.dot_dimension_numbers<[1], [0], [0], [1], [0, 0, 1, 1], [], []>} : vector<2x32xf32>, vector<32x32xf32>, vector<2x32xf32> -> vector<2x32xf32>
    %530 = arith.addf %525, %529 : vector<2x32xf32>
    %c66 = arith.constant 66 : index
    %c0_482 = arith.constant 0 : index
    %531 = vector.load %arg11[%c66, %c0_482] : memref<104x32xf32, #tpu.memory_space<vmem>>, vector<2x32xf32>
    %c23_483 = arith.constant 23 : index
    %c0_484 = arith.constant 0 : index
    %c0_485 = arith.constant 0 : index
    %532 = vector.load %arg5[%c23_483, %c0_484, %c0_485] : memref<25x32x32xf32, #tpu.memory_space<vmem>>, vector<1x32x32xf32>
    %533 = vector.shape_cast %532 : vector<1x32x32xf32> to vector<32x32xf32>
    %cst_486 = arith.constant dense<0.000000e+00> : vector<2x32xf32>
    %534 = tpu.matmul %531, %533, %cst_486 {dimension_numbers = #tpu.dot_dimension_numbers<[1], [0], [0], [1], [0, 0, 1, 1], [], []>} : vector<2x32xf32>, vector<32x32xf32>, vector<2x32xf32> -> vector<2x32xf32>
    %535 = arith.addf %530, %534 : vector<2x32xf32>
    %c68 = arith.constant 68 : index
    %c0_487 = arith.constant 0 : index
    %536 = vector.load %arg11[%c68, %c0_487] : memref<104x32xf32, #tpu.memory_space<vmem>>, vector<2x32xf32>
    %c24_488 = arith.constant 24 : index
    %c0_489 = arith.constant 0 : index
    %c0_490 = arith.constant 0 : index
    %537 = vector.load %arg5[%c24_488, %c0_489, %c0_490] : memref<25x32x32xf32, #tpu.memory_space<vmem>>, vector<1x32x32xf32>
    %538 = vector.shape_cast %537 : vector<1x32x32xf32> to vector<32x32xf32>
    %cst_491 = arith.constant dense<0.000000e+00> : vector<2x32xf32>
    %539 = tpu.matmul %536, %538, %cst_491 {dimension_numbers = #tpu.dot_dimension_numbers<[1], [0], [0], [1], [0, 0, 1, 1], [], []>} : vector<2x32xf32>, vector<32x32xf32>, vector<2x32xf32> -> vector<2x32xf32>
    %540 = arith.addf %535, %539 : vector<2x32xf32>
    %541 = vector.broadcast %284 : vector<1x32xf32> to vector<2x32xf32>
    %542 = arith.addf %540, %541 : vector<2x32xf32>
    %cst_492 = arith.constant 0.000000e+00 : f32
    %543 = vector.broadcast %cst_492 : f32 to vector<2x32xf32>
    %544 = arith.maximumf %542, %543 : vector<2x32xf32>
    %cst_493 = arith.constant 0.000000e+00 : f32
    %545 = vector.broadcast %cst_493 : f32 to vector<2x32xf32>
    %c28_494 = arith.constant 28 : index
    %c0_495 = arith.constant 0 : index
    %546 = vector.load %arg11[%c28_494, %c0_495] : memref<104x32xf32, #tpu.memory_space<vmem>>, vector<2x32xf32>
    %c0_496 = arith.constant 0 : index
    %c0_497 = arith.constant 0 : index
    %c0_498 = arith.constant 0 : index
    %547 = vector.load %arg5[%c0_496, %c0_497, %c0_498] : memref<25x32x32xf32, #tpu.memory_space<vmem>>, vector<1x32x32xf32>
    %548 = vector.shape_cast %547 : vector<1x32x32xf32> to vector<32x32xf32>
    %cst_499 = arith.constant dense<0.000000e+00> : vector<2x32xf32>
    %549 = tpu.matmul %546, %548, %cst_499 {dimension_numbers = #tpu.dot_dimension_numbers<[1], [0], [0], [1], [0, 0, 1, 1], [], []>} : vector<2x32xf32>, vector<32x32xf32>, vector<2x32xf32> -> vector<2x32xf32>
    %550 = arith.addf %545, %549 : vector<2x32xf32>
    %c30_500 = arith.constant 30 : index
    %c0_501 = arith.constant 0 : index
    %551 = vector.load %arg11[%c30_500, %c0_501] : memref<104x32xf32, #tpu.memory_space<vmem>>, vector<2x32xf32>
    %c1_502 = arith.constant 1 : index
    %c0_503 = arith.constant 0 : index
    %c0_504 = arith.constant 0 : index
    %552 = vector.load %arg5[%c1_502, %c0_503, %c0_504] : memref<25x32x32xf32, #tpu.memory_space<vmem>>, vector<1x32x32xf32>
    %553 = vector.shape_cast %552 : vector<1x32x32xf32> to vector<32x32xf32>
    %cst_505 = arith.constant dense<0.000000e+00> : vector<2x32xf32>
    %554 = tpu.matmul %551, %553, %cst_505 {dimension_numbers = #tpu.dot_dimension_numbers<[1], [0], [0], [1], [0, 0, 1, 1], [], []>} : vector<2x32xf32>, vector<32x32xf32>, vector<2x32xf32> -> vector<2x32xf32>
    %555 = arith.addf %550, %554 : vector<2x32xf32>
    %c32_506 = arith.constant 32 : index
    %c0_507 = arith.constant 0 : index
    %556 = vector.load %arg11[%c32_506, %c0_507] : memref<104x32xf32, #tpu.memory_space<vmem>>, vector<2x32xf32>
    %c2_508 = arith.constant 2 : index
    %c0_509 = arith.constant 0 : index
    %c0_510 = arith.constant 0 : index
    %557 = vector.load %arg5[%c2_508, %c0_509, %c0_510] : memref<25x32x32xf32, #tpu.memory_space<vmem>>, vector<1x32x32xf32>
    %558 = vector.shape_cast %557 : vector<1x32x32xf32> to vector<32x32xf32>
    %cst_511 = arith.constant dense<0.000000e+00> : vector<2x32xf32>
    %559 = tpu.matmul %556, %558, %cst_511 {dimension_numbers = #tpu.dot_dimension_numbers<[1], [0], [0], [1], [0, 0, 1, 1], [], []>} : vector<2x32xf32>, vector<32x32xf32>, vector<2x32xf32> -> vector<2x32xf32>
    %560 = arith.addf %555, %559 : vector<2x32xf32>
    %c34_512 = arith.constant 34 : index
    %c0_513 = arith.constant 0 : index
    %561 = vector.load %arg11[%c34_512, %c0_513] : memref<104x32xf32, #tpu.memory_space<vmem>>, vector<2x32xf32>
    %c3_514 = arith.constant 3 : index
    %c0_515 = arith.constant 0 : index
    %c0_516 = arith.constant 0 : index
    %562 = vector.load %arg5[%c3_514, %c0_515, %c0_516] : memref<25x32x32xf32, #tpu.memory_space<vmem>>, vector<1x32x32xf32>
    %563 = vector.shape_cast %562 : vector<1x32x32xf32> to vector<32x32xf32>
    %cst_517 = arith.constant dense<0.000000e+00> : vector<2x32xf32>
    %564 = tpu.matmul %561, %563, %cst_517 {dimension_numbers = #tpu.dot_dimension_numbers<[1], [0], [0], [1], [0, 0, 1, 1], [], []>} : vector<2x32xf32>, vector<32x32xf32>, vector<2x32xf32> -> vector<2x32xf32>
    %565 = arith.addf %560, %564 : vector<2x32xf32>
    %c36_518 = arith.constant 36 : index
    %c0_519 = arith.constant 0 : index
    %566 = vector.load %arg11[%c36_518, %c0_519] : memref<104x32xf32, #tpu.memory_space<vmem>>, vector<2x32xf32>
    %c4_520 = arith.constant 4 : index
    %c0_521 = arith.constant 0 : index
    %c0_522 = arith.constant 0 : index
    %567 = vector.load %arg5[%c4_520, %c0_521, %c0_522] : memref<25x32x32xf32, #tpu.memory_space<vmem>>, vector<1x32x32xf32>
    %568 = vector.shape_cast %567 : vector<1x32x32xf32> to vector<32x32xf32>
    %cst_523 = arith.constant dense<0.000000e+00> : vector<2x32xf32>
    %569 = tpu.matmul %566, %568, %cst_523 {dimension_numbers = #tpu.dot_dimension_numbers<[1], [0], [0], [1], [0, 0, 1, 1], [], []>} : vector<2x32xf32>, vector<32x32xf32>, vector<2x32xf32> -> vector<2x32xf32>
    %570 = arith.addf %565, %569 : vector<2x32xf32>
    %c42_524 = arith.constant 42 : index
    %c0_525 = arith.constant 0 : index
    %571 = vector.load %arg11[%c42_524, %c0_525] : memref<104x32xf32, #tpu.memory_space<vmem>>, vector<2x32xf32>
    %c5_526 = arith.constant 5 : index
    %c0_527 = arith.constant 0 : index
    %c0_528 = arith.constant 0 : index
    %572 = vector.load %arg5[%c5_526, %c0_527, %c0_528] : memref<25x32x32xf32, #tpu.memory_space<vmem>>, vector<1x32x32xf32>
    %573 = vector.shape_cast %572 : vector<1x32x32xf32> to vector<32x32xf32>
    %cst_529 = arith.constant dense<0.000000e+00> : vector<2x32xf32>
    %574 = tpu.matmul %571, %573, %cst_529 {dimension_numbers = #tpu.dot_dimension_numbers<[1], [0], [0], [1], [0, 0, 1, 1], [], []>} : vector<2x32xf32>, vector<32x32xf32>, vector<2x32xf32> -> vector<2x32xf32>
    %575 = arith.addf %570, %574 : vector<2x32xf32>
    %c44_530 = arith.constant 44 : index
    %c0_531 = arith.constant 0 : index
    %576 = vector.load %arg11[%c44_530, %c0_531] : memref<104x32xf32, #tpu.memory_space<vmem>>, vector<2x32xf32>
    %c6_532 = arith.constant 6 : index
    %c0_533 = arith.constant 0 : index
    %c0_534 = arith.constant 0 : index
    %577 = vector.load %arg5[%c6_532, %c0_533, %c0_534] : memref<25x32x32xf32, #tpu.memory_space<vmem>>, vector<1x32x32xf32>
    %578 = vector.shape_cast %577 : vector<1x32x32xf32> to vector<32x32xf32>
    %cst_535 = arith.constant dense<0.000000e+00> : vector<2x32xf32>
    %579 = tpu.matmul %576, %578, %cst_535 {dimension_numbers = #tpu.dot_dimension_numbers<[1], [0], [0], [1], [0, 0, 1, 1], [], []>} : vector<2x32xf32>, vector<32x32xf32>, vector<2x32xf32> -> vector<2x32xf32>
    %580 = arith.addf %575, %579 : vector<2x32xf32>
    %c46_536 = arith.constant 46 : index
    %c0_537 = arith.constant 0 : index
    %581 = vector.load %arg11[%c46_536, %c0_537] : memref<104x32xf32, #tpu.memory_space<vmem>>, vector<2x32xf32>
    %c7_538 = arith.constant 7 : index
    %c0_539 = arith.constant 0 : index
    %c0_540 = arith.constant 0 : index
    %582 = vector.load %arg5[%c7_538, %c0_539, %c0_540] : memref<25x32x32xf32, #tpu.memory_space<vmem>>, vector<1x32x32xf32>
    %583 = vector.shape_cast %582 : vector<1x32x32xf32> to vector<32x32xf32>
    %cst_541 = arith.constant dense<0.000000e+00> : vector<2x32xf32>
    %584 = tpu.matmul %581, %583, %cst_541 {dimension_numbers = #tpu.dot_dimension_numbers<[1], [0], [0], [1], [0, 0, 1, 1], [], []>} : vector<2x32xf32>, vector<32x32xf32>, vector<2x32xf32> -> vector<2x32xf32>
    %585 = arith.addf %580, %584 : vector<2x32xf32>
    %c48_542 = arith.constant 48 : index
    %c0_543 = arith.constant 0 : index
    %586 = vector.load %arg11[%c48_542, %c0_543] : memref<104x32xf32, #tpu.memory_space<vmem>>, vector<2x32xf32>
    %c8_544 = arith.constant 8 : index
    %c0_545 = arith.constant 0 : index
    %c0_546 = arith.constant 0 : index
    %587 = vector.load %arg5[%c8_544, %c0_545, %c0_546] : memref<25x32x32xf32, #tpu.memory_space<vmem>>, vector<1x32x32xf32>
    %588 = vector.shape_cast %587 : vector<1x32x32xf32> to vector<32x32xf32>
    %cst_547 = arith.constant dense<0.000000e+00> : vector<2x32xf32>
    %589 = tpu.matmul %586, %588, %cst_547 {dimension_numbers = #tpu.dot_dimension_numbers<[1], [0], [0], [1], [0, 0, 1, 1], [], []>} : vector<2x32xf32>, vector<32x32xf32>, vector<2x32xf32> -> vector<2x32xf32>
    %590 = arith.addf %585, %589 : vector<2x32xf32>
    %c50_548 = arith.constant 50 : index
    %c0_549 = arith.constant 0 : index
    %591 = vector.load %arg11[%c50_548, %c0_549] : memref<104x32xf32, #tpu.memory_space<vmem>>, vector<2x32xf32>
    %c9_550 = arith.constant 9 : index
    %c0_551 = arith.constant 0 : index
    %c0_552 = arith.constant 0 : index
    %592 = vector.load %arg5[%c9_550, %c0_551, %c0_552] : memref<25x32x32xf32, #tpu.memory_space<vmem>>, vector<1x32x32xf32>
    %593 = vector.shape_cast %592 : vector<1x32x32xf32> to vector<32x32xf32>
    %cst_553 = arith.constant dense<0.000000e+00> : vector<2x32xf32>
    %594 = tpu.matmul %591, %593, %cst_553 {dimension_numbers = #tpu.dot_dimension_numbers<[1], [0], [0], [1], [0, 0, 1, 1], [], []>} : vector<2x32xf32>, vector<32x32xf32>, vector<2x32xf32> -> vector<2x32xf32>
    %595 = arith.addf %590, %594 : vector<2x32xf32>
    %c56_554 = arith.constant 56 : index
    %c0_555 = arith.constant 0 : index
    %596 = vector.load %arg11[%c56_554, %c0_555] : memref<104x32xf32, #tpu.memory_space<vmem>>, vector<2x32xf32>
    %c10_556 = arith.constant 10 : index
    %c0_557 = arith.constant 0 : index
    %c0_558 = arith.constant 0 : index
    %597 = vector.load %arg5[%c10_556, %c0_557, %c0_558] : memref<25x32x32xf32, #tpu.memory_space<vmem>>, vector<1x32x32xf32>
    %598 = vector.shape_cast %597 : vector<1x32x32xf32> to vector<32x32xf32>
    %cst_559 = arith.constant dense<0.000000e+00> : vector<2x32xf32>
    %599 = tpu.matmul %596, %598, %cst_559 {dimension_numbers = #tpu.dot_dimension_numbers<[1], [0], [0], [1], [0, 0, 1, 1], [], []>} : vector<2x32xf32>, vector<32x32xf32>, vector<2x32xf32> -> vector<2x32xf32>
    %600 = arith.addf %595, %599 : vector<2x32xf32>
    %c58_560 = arith.constant 58 : index
    %c0_561 = arith.constant 0 : index
    %601 = vector.load %arg11[%c58_560, %c0_561] : memref<104x32xf32, #tpu.memory_space<vmem>>, vector<2x32xf32>
    %c11_562 = arith.constant 11 : index
    %c0_563 = arith.constant 0 : index
    %c0_564 = arith.constant 0 : index
    %602 = vector.load %arg5[%c11_562, %c0_563, %c0_564] : memref<25x32x32xf32, #tpu.memory_space<vmem>>, vector<1x32x32xf32>
    %603 = vector.shape_cast %602 : vector<1x32x32xf32> to vector<32x32xf32>
    %cst_565 = arith.constant dense<0.000000e+00> : vector<2x32xf32>
    %604 = tpu.matmul %601, %603, %cst_565 {dimension_numbers = #tpu.dot_dimension_numbers<[1], [0], [0], [1], [0, 0, 1, 1], [], []>} : vector<2x32xf32>, vector<32x32xf32>, vector<2x32xf32> -> vector<2x32xf32>
    %605 = arith.addf %600, %604 : vector<2x32xf32>
    %c60_566 = arith.constant 60 : index
    %c0_567 = arith.constant 0 : index
    %606 = vector.load %arg11[%c60_566, %c0_567] : memref<104x32xf32, #tpu.memory_space<vmem>>, vector<2x32xf32>
    %c12_568 = arith.constant 12 : index
    %c0_569 = arith.constant 0 : index
    %c0_570 = arith.constant 0 : index
    %607 = vector.load %arg5[%c12_568, %c0_569, %c0_570] : memref<25x32x32xf32, #tpu.memory_space<vmem>>, vector<1x32x32xf32>
    %608 = vector.shape_cast %607 : vector<1x32x32xf32> to vector<32x32xf32>
    %cst_571 = arith.constant dense<0.000000e+00> : vector<2x32xf32>
    %609 = tpu.matmul %606, %608, %cst_571 {dimension_numbers = #tpu.dot_dimension_numbers<[1], [0], [0], [1], [0, 0, 1, 1], [], []>} : vector<2x32xf32>, vector<32x32xf32>, vector<2x32xf32> -> vector<2x32xf32>
    %610 = arith.addf %605, %609 : vector<2x32xf32>
    %c62_572 = arith.constant 62 : index
    %c0_573 = arith.constant 0 : index
    %611 = vector.load %arg11[%c62_572, %c0_573] : memref<104x32xf32, #tpu.memory_space<vmem>>, vector<2x32xf32>
    %c13_574 = arith.constant 13 : index
    %c0_575 = arith.constant 0 : index
    %c0_576 = arith.constant 0 : index
    %612 = vector.load %arg5[%c13_574, %c0_575, %c0_576] : memref<25x32x32xf32, #tpu.memory_space<vmem>>, vector<1x32x32xf32>
    %613 = vector.shape_cast %612 : vector<1x32x32xf32> to vector<32x32xf32>
    %cst_577 = arith.constant dense<0.000000e+00> : vector<2x32xf32>
    %614 = tpu.matmul %611, %613, %cst_577 {dimension_numbers = #tpu.dot_dimension_numbers<[1], [0], [0], [1], [0, 0, 1, 1], [], []>} : vector<2x32xf32>, vector<32x32xf32>, vector<2x32xf32> -> vector<2x32xf32>
    %615 = arith.addf %610, %614 : vector<2x32xf32>
    %c64_578 = arith.constant 64 : index
    %c0_579 = arith.constant 0 : index
    %616 = vector.load %arg11[%c64_578, %c0_579] : memref<104x32xf32, #tpu.memory_space<vmem>>, vector<2x32xf32>
    %c14_580 = arith.constant 14 : index
    %c0_581 = arith.constant 0 : index
    %c0_582 = arith.constant 0 : index
    %617 = vector.load %arg5[%c14_580, %c0_581, %c0_582] : memref<25x32x32xf32, #tpu.memory_space<vmem>>, vector<1x32x32xf32>
    %618 = vector.shape_cast %617 : vector<1x32x32xf32> to vector<32x32xf32>
    %cst_583 = arith.constant dense<0.000000e+00> : vector<2x32xf32>
    %619 = tpu.matmul %616, %618, %cst_583 {dimension_numbers = #tpu.dot_dimension_numbers<[1], [0], [0], [1], [0, 0, 1, 1], [], []>} : vector<2x32xf32>, vector<32x32xf32>, vector<2x32xf32> -> vector<2x32xf32>
    %620 = arith.addf %615, %619 : vector<2x32xf32>
    %c70 = arith.constant 70 : index
    %c0_584 = arith.constant 0 : index
    %621 = vector.load %arg11[%c70, %c0_584] : memref<104x32xf32, #tpu.memory_space<vmem>>, vector<2x32xf32>
    %c15_585 = arith.constant 15 : index
    %c0_586 = arith.constant 0 : index
    %c0_587 = arith.constant 0 : index
    %622 = vector.load %arg5[%c15_585, %c0_586, %c0_587] : memref<25x32x32xf32, #tpu.memory_space<vmem>>, vector<1x32x32xf32>
    %623 = vector.shape_cast %622 : vector<1x32x32xf32> to vector<32x32xf32>
    %cst_588 = arith.constant dense<0.000000e+00> : vector<2x32xf32>
    %624 = tpu.matmul %621, %623, %cst_588 {dimension_numbers = #tpu.dot_dimension_numbers<[1], [0], [0], [1], [0, 0, 1, 1], [], []>} : vector<2x32xf32>, vector<32x32xf32>, vector<2x32xf32> -> vector<2x32xf32>
    %625 = arith.addf %620, %624 : vector<2x32xf32>
    %c72 = arith.constant 72 : index
    %c0_589 = arith.constant 0 : index
    %626 = vector.load %arg11[%c72, %c0_589] : memref<104x32xf32, #tpu.memory_space<vmem>>, vector<2x32xf32>
    %c16_590 = arith.constant 16 : index
    %c0_591 = arith.constant 0 : index
    %c0_592 = arith.constant 0 : index
    %627 = vector.load %arg5[%c16_590, %c0_591, %c0_592] : memref<25x32x32xf32, #tpu.memory_space<vmem>>, vector<1x32x32xf32>
    %628 = vector.shape_cast %627 : vector<1x32x32xf32> to vector<32x32xf32>
    %cst_593 = arith.constant dense<0.000000e+00> : vector<2x32xf32>
    %629 = tpu.matmul %626, %628, %cst_593 {dimension_numbers = #tpu.dot_dimension_numbers<[1], [0], [0], [1], [0, 0, 1, 1], [], []>} : vector<2x32xf32>, vector<32x32xf32>, vector<2x32xf32> -> vector<2x32xf32>
    %630 = arith.addf %625, %629 : vector<2x32xf32>
    %c74 = arith.constant 74 : index
    %c0_594 = arith.constant 0 : index
    %631 = vector.load %arg11[%c74, %c0_594] : memref<104x32xf32, #tpu.memory_space<vmem>>, vector<2x32xf32>
    %c17_595 = arith.constant 17 : index
    %c0_596 = arith.constant 0 : index
    %c0_597 = arith.constant 0 : index
    %632 = vector.load %arg5[%c17_595, %c0_596, %c0_597] : memref<25x32x32xf32, #tpu.memory_space<vmem>>, vector<1x32x32xf32>
    %633 = vector.shape_cast %632 : vector<1x32x32xf32> to vector<32x32xf32>
    %cst_598 = arith.constant dense<0.000000e+00> : vector<2x32xf32>
    %634 = tpu.matmul %631, %633, %cst_598 {dimension_numbers = #tpu.dot_dimension_numbers<[1], [0], [0], [1], [0, 0, 1, 1], [], []>} : vector<2x32xf32>, vector<32x32xf32>, vector<2x32xf32> -> vector<2x32xf32>
    %635 = arith.addf %630, %634 : vector<2x32xf32>
    %c76 = arith.constant 76 : index
    %c0_599 = arith.constant 0 : index
    %636 = vector.load %arg11[%c76, %c0_599] : memref<104x32xf32, #tpu.memory_space<vmem>>, vector<2x32xf32>
    %c18_600 = arith.constant 18 : index
    %c0_601 = arith.constant 0 : index
    %c0_602 = arith.constant 0 : index
    %637 = vector.load %arg5[%c18_600, %c0_601, %c0_602] : memref<25x32x32xf32, #tpu.memory_space<vmem>>, vector<1x32x32xf32>
    %638 = vector.shape_cast %637 : vector<1x32x32xf32> to vector<32x32xf32>
    %cst_603 = arith.constant dense<0.000000e+00> : vector<2x32xf32>
    %639 = tpu.matmul %636, %638, %cst_603 {dimension_numbers = #tpu.dot_dimension_numbers<[1], [0], [0], [1], [0, 0, 1, 1], [], []>} : vector<2x32xf32>, vector<32x32xf32>, vector<2x32xf32> -> vector<2x32xf32>
    %640 = arith.addf %635, %639 : vector<2x32xf32>
    %c78 = arith.constant 78 : index
    %c0_604 = arith.constant 0 : index
    %641 = vector.load %arg11[%c78, %c0_604] : memref<104x32xf32, #tpu.memory_space<vmem>>, vector<2x32xf32>
    %c19_605 = arith.constant 19 : index
    %c0_606 = arith.constant 0 : index
    %c0_607 = arith.constant 0 : index
    %642 = vector.load %arg5[%c19_605, %c0_606, %c0_607] : memref<25x32x32xf32, #tpu.memory_space<vmem>>, vector<1x32x32xf32>
    %643 = vector.shape_cast %642 : vector<1x32x32xf32> to vector<32x32xf32>
    %cst_608 = arith.constant dense<0.000000e+00> : vector<2x32xf32>
    %644 = tpu.matmul %641, %643, %cst_608 {dimension_numbers = #tpu.dot_dimension_numbers<[1], [0], [0], [1], [0, 0, 1, 1], [], []>} : vector<2x32xf32>, vector<32x32xf32>, vector<2x32xf32> -> vector<2x32xf32>
    %645 = arith.addf %640, %644 : vector<2x32xf32>
    %c84 = arith.constant 84 : index
    %c0_609 = arith.constant 0 : index
    %646 = vector.load %arg11[%c84, %c0_609] : memref<104x32xf32, #tpu.memory_space<vmem>>, vector<2x32xf32>
    %c20_610 = arith.constant 20 : index
    %c0_611 = arith.constant 0 : index
    %c0_612 = arith.constant 0 : index
    %647 = vector.load %arg5[%c20_610, %c0_611, %c0_612] : memref<25x32x32xf32, #tpu.memory_space<vmem>>, vector<1x32x32xf32>
    %648 = vector.shape_cast %647 : vector<1x32x32xf32> to vector<32x32xf32>
    %cst_613 = arith.constant dense<0.000000e+00> : vector<2x32xf32>
    %649 = tpu.matmul %646, %648, %cst_613 {dimension_numbers = #tpu.dot_dimension_numbers<[1], [0], [0], [1], [0, 0, 1, 1], [], []>} : vector<2x32xf32>, vector<32x32xf32>, vector<2x32xf32> -> vector<2x32xf32>
    %650 = arith.addf %645, %649 : vector<2x32xf32>
    %c86 = arith.constant 86 : index
    %c0_614 = arith.constant 0 : index
    %651 = vector.load %arg11[%c86, %c0_614] : memref<104x32xf32, #tpu.memory_space<vmem>>, vector<2x32xf32>
    %c21_615 = arith.constant 21 : index
    %c0_616 = arith.constant 0 : index
    %c0_617 = arith.constant 0 : index
    %652 = vector.load %arg5[%c21_615, %c0_616, %c0_617] : memref<25x32x32xf32, #tpu.memory_space<vmem>>, vector<1x32x32xf32>
    %653 = vector.shape_cast %652 : vector<1x32x32xf32> to vector<32x32xf32>
    %cst_618 = arith.constant dense<0.000000e+00> : vector<2x32xf32>
    %654 = tpu.matmul %651, %653, %cst_618 {dimension_numbers = #tpu.dot_dimension_numbers<[1], [0], [0], [1], [0, 0, 1, 1], [], []>} : vector<2x32xf32>, vector<32x32xf32>, vector<2x32xf32> -> vector<2x32xf32>
    %655 = arith.addf %650, %654 : vector<2x32xf32>
    %c88 = arith.constant 88 : index
    %c0_619 = arith.constant 0 : index
    %656 = vector.load %arg11[%c88, %c0_619] : memref<104x32xf32, #tpu.memory_space<vmem>>, vector<2x32xf32>
    %c22_620 = arith.constant 22 : index
    %c0_621 = arith.constant 0 : index
    %c0_622 = arith.constant 0 : index
    %657 = vector.load %arg5[%c22_620, %c0_621, %c0_622] : memref<25x32x32xf32, #tpu.memory_space<vmem>>, vector<1x32x32xf32>
    %658 = vector.shape_cast %657 : vector<1x32x32xf32> to vector<32x32xf32>
    %cst_623 = arith.constant dense<0.000000e+00> : vector<2x32xf32>
    %659 = tpu.matmul %656, %658, %cst_623 {dimension_numbers = #tpu.dot_dimension_numbers<[1], [0], [0], [1], [0, 0, 1, 1], [], []>} : vector<2x32xf32>, vector<32x32xf32>, vector<2x32xf32> -> vector<2x32xf32>
    %660 = arith.addf %655, %659 : vector<2x32xf32>
    %c90 = arith.constant 90 : index
    %c0_624 = arith.constant 0 : index
    %661 = vector.load %arg11[%c90, %c0_624] : memref<104x32xf32, #tpu.memory_space<vmem>>, vector<2x32xf32>
    %c23_625 = arith.constant 23 : index
    %c0_626 = arith.constant 0 : index
    %c0_627 = arith.constant 0 : index
    %662 = vector.load %arg5[%c23_625, %c0_626, %c0_627] : memref<25x32x32xf32, #tpu.memory_space<vmem>>, vector<1x32x32xf32>
    %663 = vector.shape_cast %662 : vector<1x32x32xf32> to vector<32x32xf32>
    %cst_628 = arith.constant dense<0.000000e+00> : vector<2x32xf32>
    %664 = tpu.matmul %661, %663, %cst_628 {dimension_numbers = #tpu.dot_dimension_numbers<[1], [0], [0], [1], [0, 0, 1, 1], [], []>} : vector<2x32xf32>, vector<32x32xf32>, vector<2x32xf32> -> vector<2x32xf32>
    %665 = arith.addf %660, %664 : vector<2x32xf32>
    %c92 = arith.constant 92 : index
    %c0_629 = arith.constant 0 : index
    %666 = vector.load %arg11[%c92, %c0_629] : memref<104x32xf32, #tpu.memory_space<vmem>>, vector<2x32xf32>
    %c24_630 = arith.constant 24 : index
    %c0_631 = arith.constant 0 : index
    %c0_632 = arith.constant 0 : index
    %667 = vector.load %arg5[%c24_630, %c0_631, %c0_632] : memref<25x32x32xf32, #tpu.memory_space<vmem>>, vector<1x32x32xf32>
    %668 = vector.shape_cast %667 : vector<1x32x32xf32> to vector<32x32xf32>
    %cst_633 = arith.constant dense<0.000000e+00> : vector<2x32xf32>
    %669 = tpu.matmul %666, %668, %cst_633 {dimension_numbers = #tpu.dot_dimension_numbers<[1], [0], [0], [1], [0, 0, 1, 1], [], []>} : vector<2x32xf32>, vector<32x32xf32>, vector<2x32xf32> -> vector<2x32xf32>
    %670 = arith.addf %665, %669 : vector<2x32xf32>
    %671 = vector.broadcast %284 : vector<1x32xf32> to vector<2x32xf32>
    %672 = arith.addf %670, %671 : vector<2x32xf32>
    %cst_634 = arith.constant 0.000000e+00 : f32
    %673 = vector.broadcast %cst_634 : f32 to vector<2x32xf32>
    %674 = arith.maximumf %672, %673 : vector<2x32xf32>
    %cst_635 = arith.constant 0.000000e+00 : f32
    %675 = vector.broadcast %cst_635 : f32 to vector<2x32xf32>
    %c32_636 = arith.constant 32 : index
    %c0_637 = arith.constant 0 : index
    %676 = vector.load %arg11[%c32_636, %c0_637] : memref<104x32xf32, #tpu.memory_space<vmem>>, vector<2x32xf32>
    %c0_638 = arith.constant 0 : index
    %c0_639 = arith.constant 0 : index
    %c0_640 = arith.constant 0 : index
    %677 = vector.load %arg5[%c0_638, %c0_639, %c0_640] : memref<25x32x32xf32, #tpu.memory_space<vmem>>, vector<1x32x32xf32>
    %678 = vector.shape_cast %677 : vector<1x32x32xf32> to vector<32x32xf32>
    %cst_641 = arith.constant dense<0.000000e+00> : vector<2x32xf32>
    %679 = tpu.matmul %676, %678, %cst_641 {dimension_numbers = #tpu.dot_dimension_numbers<[1], [0], [0], [1], [0, 0, 1, 1], [], []>} : vector<2x32xf32>, vector<32x32xf32>, vector<2x32xf32> -> vector<2x32xf32>
    %680 = arith.addf %675, %679 : vector<2x32xf32>
    %c34_642 = arith.constant 34 : index
    %c0_643 = arith.constant 0 : index
    %681 = vector.load %arg11[%c34_642, %c0_643] : memref<104x32xf32, #tpu.memory_space<vmem>>, vector<2x32xf32>
    %c1_644 = arith.constant 1 : index
    %c0_645 = arith.constant 0 : index
    %c0_646 = arith.constant 0 : index
    %682 = vector.load %arg5[%c1_644, %c0_645, %c0_646] : memref<25x32x32xf32, #tpu.memory_space<vmem>>, vector<1x32x32xf32>
    %683 = vector.shape_cast %682 : vector<1x32x32xf32> to vector<32x32xf32>
    %cst_647 = arith.constant dense<0.000000e+00> : vector<2x32xf32>
    %684 = tpu.matmul %681, %683, %cst_647 {dimension_numbers = #tpu.dot_dimension_numbers<[1], [0], [0], [1], [0, 0, 1, 1], [], []>} : vector<2x32xf32>, vector<32x32xf32>, vector<2x32xf32> -> vector<2x32xf32>
    %685 = arith.addf %680, %684 : vector<2x32xf32>
    %c36_648 = arith.constant 36 : index
    %c0_649 = arith.constant 0 : index
    %686 = vector.load %arg11[%c36_648, %c0_649] : memref<104x32xf32, #tpu.memory_space<vmem>>, vector<2x32xf32>
    %c2_650 = arith.constant 2 : index
    %c0_651 = arith.constant 0 : index
    %c0_652 = arith.constant 0 : index
    %687 = vector.load %arg5[%c2_650, %c0_651, %c0_652] : memref<25x32x32xf32, #tpu.memory_space<vmem>>, vector<1x32x32xf32>
    %688 = vector.shape_cast %687 : vector<1x32x32xf32> to vector<32x32xf32>
    %cst_653 = arith.constant dense<0.000000e+00> : vector<2x32xf32>
    %689 = tpu.matmul %686, %688, %cst_653 {dimension_numbers = #tpu.dot_dimension_numbers<[1], [0], [0], [1], [0, 0, 1, 1], [], []>} : vector<2x32xf32>, vector<32x32xf32>, vector<2x32xf32> -> vector<2x32xf32>
    %690 = arith.addf %685, %689 : vector<2x32xf32>
    %c38_654 = arith.constant 38 : index
    %c0_655 = arith.constant 0 : index
    %691 = vector.load %arg11[%c38_654, %c0_655] : memref<104x32xf32, #tpu.memory_space<vmem>>, vector<2x32xf32>
    %c3_656 = arith.constant 3 : index
    %c0_657 = arith.constant 0 : index
    %c0_658 = arith.constant 0 : index
    %692 = vector.load %arg5[%c3_656, %c0_657, %c0_658] : memref<25x32x32xf32, #tpu.memory_space<vmem>>, vector<1x32x32xf32>
    %693 = vector.shape_cast %692 : vector<1x32x32xf32> to vector<32x32xf32>
    %cst_659 = arith.constant dense<0.000000e+00> : vector<2x32xf32>
    %694 = tpu.matmul %691, %693, %cst_659 {dimension_numbers = #tpu.dot_dimension_numbers<[1], [0], [0], [1], [0, 0, 1, 1], [], []>} : vector<2x32xf32>, vector<32x32xf32>, vector<2x32xf32> -> vector<2x32xf32>
    %695 = arith.addf %690, %694 : vector<2x32xf32>
    %c40_660 = arith.constant 40 : index
    %c0_661 = arith.constant 0 : index
    %696 = vector.load %arg11[%c40_660, %c0_661] : memref<104x32xf32, #tpu.memory_space<vmem>>, vector<2x32xf32>
    %c4_662 = arith.constant 4 : index
    %c0_663 = arith.constant 0 : index
    %c0_664 = arith.constant 0 : index
    %697 = vector.load %arg5[%c4_662, %c0_663, %c0_664] : memref<25x32x32xf32, #tpu.memory_space<vmem>>, vector<1x32x32xf32>
    %698 = vector.shape_cast %697 : vector<1x32x32xf32> to vector<32x32xf32>
    %cst_665 = arith.constant dense<0.000000e+00> : vector<2x32xf32>
    %699 = tpu.matmul %696, %698, %cst_665 {dimension_numbers = #tpu.dot_dimension_numbers<[1], [0], [0], [1], [0, 0, 1, 1], [], []>} : vector<2x32xf32>, vector<32x32xf32>, vector<2x32xf32> -> vector<2x32xf32>
    %700 = arith.addf %695, %699 : vector<2x32xf32>
    %c46_666 = arith.constant 46 : index
    %c0_667 = arith.constant 0 : index
    %701 = vector.load %arg11[%c46_666, %c0_667] : memref<104x32xf32, #tpu.memory_space<vmem>>, vector<2x32xf32>
    %c5_668 = arith.constant 5 : index
    %c0_669 = arith.constant 0 : index
    %c0_670 = arith.constant 0 : index
    %702 = vector.load %arg5[%c5_668, %c0_669, %c0_670] : memref<25x32x32xf32, #tpu.memory_space<vmem>>, vector<1x32x32xf32>
    %703 = vector.shape_cast %702 : vector<1x32x32xf32> to vector<32x32xf32>
    %cst_671 = arith.constant dense<0.000000e+00> : vector<2x32xf32>
    %704 = tpu.matmul %701, %703, %cst_671 {dimension_numbers = #tpu.dot_dimension_numbers<[1], [0], [0], [1], [0, 0, 1, 1], [], []>} : vector<2x32xf32>, vector<32x32xf32>, vector<2x32xf32> -> vector<2x32xf32>
    %705 = arith.addf %700, %704 : vector<2x32xf32>
    %c48_672 = arith.constant 48 : index
    %c0_673 = arith.constant 0 : index
    %706 = vector.load %arg11[%c48_672, %c0_673] : memref<104x32xf32, #tpu.memory_space<vmem>>, vector<2x32xf32>
    %c6_674 = arith.constant 6 : index
    %c0_675 = arith.constant 0 : index
    %c0_676 = arith.constant 0 : index
    %707 = vector.load %arg5[%c6_674, %c0_675, %c0_676] : memref<25x32x32xf32, #tpu.memory_space<vmem>>, vector<1x32x32xf32>
    %708 = vector.shape_cast %707 : vector<1x32x32xf32> to vector<32x32xf32>
    %cst_677 = arith.constant dense<0.000000e+00> : vector<2x32xf32>
    %709 = tpu.matmul %706, %708, %cst_677 {dimension_numbers = #tpu.dot_dimension_numbers<[1], [0], [0], [1], [0, 0, 1, 1], [], []>} : vector<2x32xf32>, vector<32x32xf32>, vector<2x32xf32> -> vector<2x32xf32>
    %710 = arith.addf %705, %709 : vector<2x32xf32>
    %c50_678 = arith.constant 50 : index
    %c0_679 = arith.constant 0 : index
    %711 = vector.load %arg11[%c50_678, %c0_679] : memref<104x32xf32, #tpu.memory_space<vmem>>, vector<2x32xf32>
    %c7_680 = arith.constant 7 : index
    %c0_681 = arith.constant 0 : index
    %c0_682 = arith.constant 0 : index
    %712 = vector.load %arg5[%c7_680, %c0_681, %c0_682] : memref<25x32x32xf32, #tpu.memory_space<vmem>>, vector<1x32x32xf32>
    %713 = vector.shape_cast %712 : vector<1x32x32xf32> to vector<32x32xf32>
    %cst_683 = arith.constant dense<0.000000e+00> : vector<2x32xf32>
    %714 = tpu.matmul %711, %713, %cst_683 {dimension_numbers = #tpu.dot_dimension_numbers<[1], [0], [0], [1], [0, 0, 1, 1], [], []>} : vector<2x32xf32>, vector<32x32xf32>, vector<2x32xf32> -> vector<2x32xf32>
    %715 = arith.addf %710, %714 : vector<2x32xf32>
    %c52_684 = arith.constant 52 : index
    %c0_685 = arith.constant 0 : index
    %716 = vector.load %arg11[%c52_684, %c0_685] : memref<104x32xf32, #tpu.memory_space<vmem>>, vector<2x32xf32>
    %c8_686 = arith.constant 8 : index
    %c0_687 = arith.constant 0 : index
    %c0_688 = arith.constant 0 : index
    %717 = vector.load %arg5[%c8_686, %c0_687, %c0_688] : memref<25x32x32xf32, #tpu.memory_space<vmem>>, vector<1x32x32xf32>
    %718 = vector.shape_cast %717 : vector<1x32x32xf32> to vector<32x32xf32>
    %cst_689 = arith.constant dense<0.000000e+00> : vector<2x32xf32>
    %719 = tpu.matmul %716, %718, %cst_689 {dimension_numbers = #tpu.dot_dimension_numbers<[1], [0], [0], [1], [0, 0, 1, 1], [], []>} : vector<2x32xf32>, vector<32x32xf32>, vector<2x32xf32> -> vector<2x32xf32>
    %720 = arith.addf %715, %719 : vector<2x32xf32>
    %c54_690 = arith.constant 54 : index
    %c0_691 = arith.constant 0 : index
    %721 = vector.load %arg11[%c54_690, %c0_691] : memref<104x32xf32, #tpu.memory_space<vmem>>, vector<2x32xf32>
    %c9_692 = arith.constant 9 : index
    %c0_693 = arith.constant 0 : index
    %c0_694 = arith.constant 0 : index
    %722 = vector.load %arg5[%c9_692, %c0_693, %c0_694] : memref<25x32x32xf32, #tpu.memory_space<vmem>>, vector<1x32x32xf32>
    %723 = vector.shape_cast %722 : vector<1x32x32xf32> to vector<32x32xf32>
    %cst_695 = arith.constant dense<0.000000e+00> : vector<2x32xf32>
    %724 = tpu.matmul %721, %723, %cst_695 {dimension_numbers = #tpu.dot_dimension_numbers<[1], [0], [0], [1], [0, 0, 1, 1], [], []>} : vector<2x32xf32>, vector<32x32xf32>, vector<2x32xf32> -> vector<2x32xf32>
    %725 = arith.addf %720, %724 : vector<2x32xf32>
    %c60_696 = arith.constant 60 : index
    %c0_697 = arith.constant 0 : index
    %726 = vector.load %arg11[%c60_696, %c0_697] : memref<104x32xf32, #tpu.memory_space<vmem>>, vector<2x32xf32>
    %c10_698 = arith.constant 10 : index
    %c0_699 = arith.constant 0 : index
    %c0_700 = arith.constant 0 : index
    %727 = vector.load %arg5[%c10_698, %c0_699, %c0_700] : memref<25x32x32xf32, #tpu.memory_space<vmem>>, vector<1x32x32xf32>
    %728 = vector.shape_cast %727 : vector<1x32x32xf32> to vector<32x32xf32>
    %cst_701 = arith.constant dense<0.000000e+00> : vector<2x32xf32>
    %729 = tpu.matmul %726, %728, %cst_701 {dimension_numbers = #tpu.dot_dimension_numbers<[1], [0], [0], [1], [0, 0, 1, 1], [], []>} : vector<2x32xf32>, vector<32x32xf32>, vector<2x32xf32> -> vector<2x32xf32>
    %730 = arith.addf %725, %729 : vector<2x32xf32>
    %c62_702 = arith.constant 62 : index
    %c0_703 = arith.constant 0 : index
    %731 = vector.load %arg11[%c62_702, %c0_703] : memref<104x32xf32, #tpu.memory_space<vmem>>, vector<2x32xf32>
    %c11_704 = arith.constant 11 : index
    %c0_705 = arith.constant 0 : index
    %c0_706 = arith.constant 0 : index
    %732 = vector.load %arg5[%c11_704, %c0_705, %c0_706] : memref<25x32x32xf32, #tpu.memory_space<vmem>>, vector<1x32x32xf32>
    %733 = vector.shape_cast %732 : vector<1x32x32xf32> to vector<32x32xf32>
    %cst_707 = arith.constant dense<0.000000e+00> : vector<2x32xf32>
    %734 = tpu.matmul %731, %733, %cst_707 {dimension_numbers = #tpu.dot_dimension_numbers<[1], [0], [0], [1], [0, 0, 1, 1], [], []>} : vector<2x32xf32>, vector<32x32xf32>, vector<2x32xf32> -> vector<2x32xf32>
    %735 = arith.addf %730, %734 : vector<2x32xf32>
    %c64_708 = arith.constant 64 : index
    %c0_709 = arith.constant 0 : index
    %736 = vector.load %arg11[%c64_708, %c0_709] : memref<104x32xf32, #tpu.memory_space<vmem>>, vector<2x32xf32>
    %c12_710 = arith.constant 12 : index
    %c0_711 = arith.constant 0 : index
    %c0_712 = arith.constant 0 : index
    %737 = vector.load %arg5[%c12_710, %c0_711, %c0_712] : memref<25x32x32xf32, #tpu.memory_space<vmem>>, vector<1x32x32xf32>
    %738 = vector.shape_cast %737 : vector<1x32x32xf32> to vector<32x32xf32>
    %cst_713 = arith.constant dense<0.000000e+00> : vector<2x32xf32>
    %739 = tpu.matmul %736, %738, %cst_713 {dimension_numbers = #tpu.dot_dimension_numbers<[1], [0], [0], [1], [0, 0, 1, 1], [], []>} : vector<2x32xf32>, vector<32x32xf32>, vector<2x32xf32> -> vector<2x32xf32>
    %740 = arith.addf %735, %739 : vector<2x32xf32>
    %c66_714 = arith.constant 66 : index
    %c0_715 = arith.constant 0 : index
    %741 = vector.load %arg11[%c66_714, %c0_715] : memref<104x32xf32, #tpu.memory_space<vmem>>, vector<2x32xf32>
    %c13_716 = arith.constant 13 : index
    %c0_717 = arith.constant 0 : index
    %c0_718 = arith.constant 0 : index
    %742 = vector.load %arg5[%c13_716, %c0_717, %c0_718] : memref<25x32x32xf32, #tpu.memory_space<vmem>>, vector<1x32x32xf32>
    %743 = vector.shape_cast %742 : vector<1x32x32xf32> to vector<32x32xf32>
    %cst_719 = arith.constant dense<0.000000e+00> : vector<2x32xf32>
    %744 = tpu.matmul %741, %743, %cst_719 {dimension_numbers = #tpu.dot_dimension_numbers<[1], [0], [0], [1], [0, 0, 1, 1], [], []>} : vector<2x32xf32>, vector<32x32xf32>, vector<2x32xf32> -> vector<2x32xf32>
    %745 = arith.addf %740, %744 : vector<2x32xf32>
    %c68_720 = arith.constant 68 : index
    %c0_721 = arith.constant 0 : index
    %746 = vector.load %arg11[%c68_720, %c0_721] : memref<104x32xf32, #tpu.memory_space<vmem>>, vector<2x32xf32>
    %c14_722 = arith.constant 14 : index
    %c0_723 = arith.constant 0 : index
    %c0_724 = arith.constant 0 : index
    %747 = vector.load %arg5[%c14_722, %c0_723, %c0_724] : memref<25x32x32xf32, #tpu.memory_space<vmem>>, vector<1x32x32xf32>
    %748 = vector.shape_cast %747 : vector<1x32x32xf32> to vector<32x32xf32>
    %cst_725 = arith.constant dense<0.000000e+00> : vector<2x32xf32>
    %749 = tpu.matmul %746, %748, %cst_725 {dimension_numbers = #tpu.dot_dimension_numbers<[1], [0], [0], [1], [0, 0, 1, 1], [], []>} : vector<2x32xf32>, vector<32x32xf32>, vector<2x32xf32> -> vector<2x32xf32>
    %750 = arith.addf %745, %749 : vector<2x32xf32>
    %c74_726 = arith.constant 74 : index
    %c0_727 = arith.constant 0 : index
    %751 = vector.load %arg11[%c74_726, %c0_727] : memref<104x32xf32, #tpu.memory_space<vmem>>, vector<2x32xf32>
    %c15_728 = arith.constant 15 : index
    %c0_729 = arith.constant 0 : index
    %c0_730 = arith.constant 0 : index
    %752 = vector.load %arg5[%c15_728, %c0_729, %c0_730] : memref<25x32x32xf32, #tpu.memory_space<vmem>>, vector<1x32x32xf32>
    %753 = vector.shape_cast %752 : vector<1x32x32xf32> to vector<32x32xf32>
    %cst_731 = arith.constant dense<0.000000e+00> : vector<2x32xf32>
    %754 = tpu.matmul %751, %753, %cst_731 {dimension_numbers = #tpu.dot_dimension_numbers<[1], [0], [0], [1], [0, 0, 1, 1], [], []>} : vector<2x32xf32>, vector<32x32xf32>, vector<2x32xf32> -> vector<2x32xf32>
    %755 = arith.addf %750, %754 : vector<2x32xf32>
    %c76_732 = arith.constant 76 : index
    %c0_733 = arith.constant 0 : index
    %756 = vector.load %arg11[%c76_732, %c0_733] : memref<104x32xf32, #tpu.memory_space<vmem>>, vector<2x32xf32>
    %c16_734 = arith.constant 16 : index
    %c0_735 = arith.constant 0 : index
    %c0_736 = arith.constant 0 : index
    %757 = vector.load %arg5[%c16_734, %c0_735, %c0_736] : memref<25x32x32xf32, #tpu.memory_space<vmem>>, vector<1x32x32xf32>
    %758 = vector.shape_cast %757 : vector<1x32x32xf32> to vector<32x32xf32>
    %cst_737 = arith.constant dense<0.000000e+00> : vector<2x32xf32>
    %759 = tpu.matmul %756, %758, %cst_737 {dimension_numbers = #tpu.dot_dimension_numbers<[1], [0], [0], [1], [0, 0, 1, 1], [], []>} : vector<2x32xf32>, vector<32x32xf32>, vector<2x32xf32> -> vector<2x32xf32>
    %760 = arith.addf %755, %759 : vector<2x32xf32>
    %c78_738 = arith.constant 78 : index
    %c0_739 = arith.constant 0 : index
    %761 = vector.load %arg11[%c78_738, %c0_739] : memref<104x32xf32, #tpu.memory_space<vmem>>, vector<2x32xf32>
    %c17_740 = arith.constant 17 : index
    %c0_741 = arith.constant 0 : index
    %c0_742 = arith.constant 0 : index
    %762 = vector.load %arg5[%c17_740, %c0_741, %c0_742] : memref<25x32x32xf32, #tpu.memory_space<vmem>>, vector<1x32x32xf32>
    %763 = vector.shape_cast %762 : vector<1x32x32xf32> to vector<32x32xf32>
    %cst_743 = arith.constant dense<0.000000e+00> : vector<2x32xf32>
    %764 = tpu.matmul %761, %763, %cst_743 {dimension_numbers = #tpu.dot_dimension_numbers<[1], [0], [0], [1], [0, 0, 1, 1], [], []>} : vector<2x32xf32>, vector<32x32xf32>, vector<2x32xf32> -> vector<2x32xf32>
    %765 = arith.addf %760, %764 : vector<2x32xf32>
    %c80 = arith.constant 80 : index
    %c0_744 = arith.constant 0 : index
    %766 = vector.load %arg11[%c80, %c0_744] : memref<104x32xf32, #tpu.memory_space<vmem>>, vector<2x32xf32>
    %c18_745 = arith.constant 18 : index
    %c0_746 = arith.constant 0 : index
    %c0_747 = arith.constant 0 : index
    %767 = vector.load %arg5[%c18_745, %c0_746, %c0_747] : memref<25x32x32xf32, #tpu.memory_space<vmem>>, vector<1x32x32xf32>
    %768 = vector.shape_cast %767 : vector<1x32x32xf32> to vector<32x32xf32>
    %cst_748 = arith.constant dense<0.000000e+00> : vector<2x32xf32>
    %769 = tpu.matmul %766, %768, %cst_748 {dimension_numbers = #tpu.dot_dimension_numbers<[1], [0], [0], [1], [0, 0, 1, 1], [], []>} : vector<2x32xf32>, vector<32x32xf32>, vector<2x32xf32> -> vector<2x32xf32>
    %770 = arith.addf %765, %769 : vector<2x32xf32>
    %c82 = arith.constant 82 : index
    %c0_749 = arith.constant 0 : index
    %771 = vector.load %arg11[%c82, %c0_749] : memref<104x32xf32, #tpu.memory_space<vmem>>, vector<2x32xf32>
    %c19_750 = arith.constant 19 : index
    %c0_751 = arith.constant 0 : index
    %c0_752 = arith.constant 0 : index
    %772 = vector.load %arg5[%c19_750, %c0_751, %c0_752] : memref<25x32x32xf32, #tpu.memory_space<vmem>>, vector<1x32x32xf32>
    %773 = vector.shape_cast %772 : vector<1x32x32xf32> to vector<32x32xf32>
    %cst_753 = arith.constant dense<0.000000e+00> : vector<2x32xf32>
    %774 = tpu.matmul %771, %773, %cst_753 {dimension_numbers = #tpu.dot_dimension_numbers<[1], [0], [0], [1], [0, 0, 1, 1], [], []>} : vector<2x32xf32>, vector<32x32xf32>, vector<2x32xf32> -> vector<2x32xf32>
    %775 = arith.addf %770, %774 : vector<2x32xf32>
    %c88_754 = arith.constant 88 : index
    %c0_755 = arith.constant 0 : index
    %776 = vector.load %arg11[%c88_754, %c0_755] : memref<104x32xf32, #tpu.memory_space<vmem>>, vector<2x32xf32>
    %c20_756 = arith.constant 20 : index
    %c0_757 = arith.constant 0 : index
    %c0_758 = arith.constant 0 : index
    %777 = vector.load %arg5[%c20_756, %c0_757, %c0_758] : memref<25x32x32xf32, #tpu.memory_space<vmem>>, vector<1x32x32xf32>
    %778 = vector.shape_cast %777 : vector<1x32x32xf32> to vector<32x32xf32>
    %cst_759 = arith.constant dense<0.000000e+00> : vector<2x32xf32>
    %779 = tpu.matmul %776, %778, %cst_759 {dimension_numbers = #tpu.dot_dimension_numbers<[1], [0], [0], [1], [0, 0, 1, 1], [], []>} : vector<2x32xf32>, vector<32x32xf32>, vector<2x32xf32> -> vector<2x32xf32>
    %780 = arith.addf %775, %779 : vector<2x32xf32>
    %c90_760 = arith.constant 90 : index
    %c0_761 = arith.constant 0 : index
    %781 = vector.load %arg11[%c90_760, %c0_761] : memref<104x32xf32, #tpu.memory_space<vmem>>, vector<2x32xf32>
    %c21_762 = arith.constant 21 : index
    %c0_763 = arith.constant 0 : index
    %c0_764 = arith.constant 0 : index
    %782 = vector.load %arg5[%c21_762, %c0_763, %c0_764] : memref<25x32x32xf32, #tpu.memory_space<vmem>>, vector<1x32x32xf32>
    %783 = vector.shape_cast %782 : vector<1x32x32xf32> to vector<32x32xf32>
    %cst_765 = arith.constant dense<0.000000e+00> : vector<2x32xf32>
    %784 = tpu.matmul %781, %783, %cst_765 {dimension_numbers = #tpu.dot_dimension_numbers<[1], [0], [0], [1], [0, 0, 1, 1], [], []>} : vector<2x32xf32>, vector<32x32xf32>, vector<2x32xf32> -> vector<2x32xf32>
    %785 = arith.addf %780, %784 : vector<2x32xf32>
    %c92_766 = arith.constant 92 : index
    %c0_767 = arith.constant 0 : index
    %786 = vector.load %arg11[%c92_766, %c0_767] : memref<104x32xf32, #tpu.memory_space<vmem>>, vector<2x32xf32>
    %c22_768 = arith.constant 22 : index
    %c0_769 = arith.constant 0 : index
    %c0_770 = arith.constant 0 : index
    %787 = vector.load %arg5[%c22_768, %c0_769, %c0_770] : memref<25x32x32xf32, #tpu.memory_space<vmem>>, vector<1x32x32xf32>
    %788 = vector.shape_cast %787 : vector<1x32x32xf32> to vector<32x32xf32>
    %cst_771 = arith.constant dense<0.000000e+00> : vector<2x32xf32>
    %789 = tpu.matmul %786, %788, %cst_771 {dimension_numbers = #tpu.dot_dimension_numbers<[1], [0], [0], [1], [0, 0, 1, 1], [], []>} : vector<2x32xf32>, vector<32x32xf32>, vector<2x32xf32> -> vector<2x32xf32>
    %790 = arith.addf %785, %789 : vector<2x32xf32>
    %c94 = arith.constant 94 : index
    %c0_772 = arith.constant 0 : index
    %791 = vector.load %arg11[%c94, %c0_772] : memref<104x32xf32, #tpu.memory_space<vmem>>, vector<2x32xf32>
    %c23_773 = arith.constant 23 : index
    %c0_774 = arith.constant 0 : index
    %c0_775 = arith.constant 0 : index
    %792 = vector.load %arg5[%c23_773, %c0_774, %c0_775] : memref<25x32x32xf32, #tpu.memory_space<vmem>>, vector<1x32x32xf32>
    %793 = vector.shape_cast %792 : vector<1x32x32xf32> to vector<32x32xf32>
    %cst_776 = arith.constant dense<0.000000e+00> : vector<2x32xf32>
    %794 = tpu.matmul %791, %793, %cst_776 {dimension_numbers = #tpu.dot_dimension_numbers<[1], [0], [0], [1], [0, 0, 1, 1], [], []>} : vector<2x32xf32>, vector<32x32xf32>, vector<2x32xf32> -> vector<2x32xf32>
    %795 = arith.addf %790, %794 : vector<2x32xf32>
    %c96 = arith.constant 96 : index
    %c0_777 = arith.constant 0 : index
    %796 = vector.load %arg11[%c96, %c0_777] : memref<104x32xf32, #tpu.memory_space<vmem>>, vector<2x32xf32>
    %c24_778 = arith.constant 24 : index
    %c0_779 = arith.constant 0 : index
    %c0_780 = arith.constant 0 : index
    %797 = vector.load %arg5[%c24_778, %c0_779, %c0_780] : memref<25x32x32xf32, #tpu.memory_space<vmem>>, vector<1x32x32xf32>
    %798 = vector.shape_cast %797 : vector<1x32x32xf32> to vector<32x32xf32>
    %cst_781 = arith.constant dense<0.000000e+00> : vector<2x32xf32>
    %799 = tpu.matmul %796, %798, %cst_781 {dimension_numbers = #tpu.dot_dimension_numbers<[1], [0], [0], [1], [0, 0, 1, 1], [], []>} : vector<2x32xf32>, vector<32x32xf32>, vector<2x32xf32> -> vector<2x32xf32>
    %800 = arith.addf %795, %799 : vector<2x32xf32>
    %801 = vector.broadcast %284 : vector<1x32xf32> to vector<2x32xf32>
    %802 = arith.addf %800, %801 : vector<2x32xf32>
    %cst_782 = arith.constant 0.000000e+00 : f32
    %803 = vector.broadcast %cst_782 : f32 to vector<2x32xf32>
    %804 = arith.maximumf %802, %803 : vector<2x32xf32>
    %805 = tpu.concatenate %414, %544, %674, %804 in 1 : vector<2x32xf32>, vector<2x32xf32>, vector<2x32xf32>, vector<2x32xf32> -> vector<2x128xf32>
    %c0_783 = arith.constant 0 : index
    %c0_784 = arith.constant 0 : index
    %806 = vector.load %arg9[%c0_783, %c0_784] : memref<2x128xf32, #tpu.memory_space<vmem>>, vector<2x128xf32>
    tpu.vector_store %arg9[%c0_783, %c0_784], %805 {strides = array<i32>} : memref<2x128xf32, #tpu.memory_space<vmem>>, vector<2x128xf32>,
    %c0_785 = arith.constant 0 : index
    %c0_786 = arith.constant 0 : index
    %807 = vector.load %arg7[%c0_785, %c0_786] : memref<128x128xf32, #tpu.memory_space<vmem>>, vector<128x128xf32>
    %cst_787 = arith.constant dense<0.000000e+00> : vector<2x128xf32>
    %808 = tpu.matmul %805, %807, %cst_787 {dimension_numbers = #tpu.dot_dimension_numbers<[1], [0], [0], [1], [0, 0, 1, 1], [], []>} : vector<2x128xf32>, vector<128x128xf32>, vector<2x128xf32> -> vector<2x128xf32>
    %c0_788 = arith.constant 0 : index
    %c0_789 = arith.constant 0 : index
    %809 = vector.load %arg8[%c0_788, %c0_789] : memref<1x128xf32, #tpu.memory_space<vmem>>, vector<1x128xf32>
    %810 = vector.broadcast %809 : vector<1x128xf32> to vector<2x128xf32>
    %811 = arith.addf %808, %810 : vector<2x128xf32>
    %c0_790 = arith.constant 0 : index
    %c0_791 = arith.constant 0 : index
    %812 = vector.load %arg10[%c0_790, %c0_791] : memref<2x128xf32, #tpu.memory_space<vmem>>, vector<2x128xf32>
    tpu.vector_store %arg10[%c0_790, %c0_791], %811 {strides = array<i32>} : memref<2x128xf32, #tpu.memory_space<vmem>>, vector<2x128xf32>,
    return
  }
}

</mosaic_0001>

<llo_original>
// kernel: _horde_forward_impl.1
$region0: #{_horde_forward_impl.1}
  #allocation0 [shape = 'u32[]', space=smem, size = 0x4, offset = 0x4, fixed_abs, tag = 'smem constant byte address 0x4 - core index']
  #allocation1 [shape = 'u32[72,128]{1,0:T(1,128)}', space=vmem, size = 0x9000, scoped, tag = 'internal scratch']
  #allocation2 [shape = 'f32[104,32]{1,0:T(8,128)}', space=vmem, size = 0xd000, scoped, tag = 'scratch operand']
  %s0 = inlined_call_operand.vmem [shape: f32[25,104,100], index: 0, kind: input, shape index: {}]
  %s1 = inlined_call_operand.vmem [shape: f32[100,16], index: 1, kind: input, shape index: {}]
  %s2 = inlined_call_operand.vmem [shape: f32[1,16], index: 2, kind: input, shape index: {}]
  %s3 = inlined_call_operand.vmem [shape: f32[25,16,32], index: 3, kind: input, shape index: {}]
  %s4 = inlined_call_operand.vmem [shape: f32[1,32], index: 4, kind: input, shape index: {}]
  %s5 = inlined_call_operand.vmem [shape: f32[25,32,32], index: 5, kind: input, shape index: {}]
  %s6 = inlined_call_operand.vmem [shape: f32[1,32], index: 6, kind: input, shape index: {}]
  %s7 = inlined_call_operand.vmem [shape: f32[128,128], index: 7, kind: input, shape index: {}]
  %s8 = inlined_call_operand.vmem [shape: f32[1,128], index: 8, kind: input, shape index: {}]
  %s9 = inlined_call_operand.vmem [shape: f32[2,128], index: 9, kind: output, shape index: {0}]
  %s10 = inlined_call_operand.vmem [shape: f32[2,128], index: 10, kind: output, shape index: {1}]
  %11 = xla_tuple %s9, %s10
  %s12 = sld [smem:[#allocation0]]
  $region54: #{_horde_forward_impl.1} parent=0
    _
  %s14 = ssub.s32 1, %s12
  %s15 = scalar_select 0, %s14, %s12
  // Predicated region
  $region2: #{_horde_forward_impl.1} parent=0 // pred_check
    _
  $region3: #{_horde_forward_impl.1} parent=0 // pred_check_branch
    %17 = sbr.rel (0) target = $region5
  $region4: #{_horde_forward_impl.1} parent=0 // pred_region
    _
  $region5: #{_horde_forward_impl.1} parent=0 // pred_fallthru
    _
  // Predicated region
  $region6: #{_horde_forward_impl.1} parent=0 // pred_check
    _
  $region7: #{_horde_forward_impl.1} parent=0 // pred_check_branch
    %19 = sbr.rel (0) target = $region9
  $region8: #{_horde_forward_impl.1} parent=0 // pred_region
    _
  $region9: #{_horde_forward_impl.1} parent=0 // pred_fallthru
    _
  // Predicated region
  $region10: #{_horde_forward_impl.1} parent=0 // pred_check
    _
  $region11: #{_horde_forward_impl.1} parent=0 // pred_check_branch
    %21 = sbr.rel (0) target = $region13
  $region12: #{_horde_forward_impl.1} parent=0 // pred_region
    _
  $region13: #{_horde_forward_impl.1} parent=0 // pred_fallthru
    _
  // Predicated region
  $region14: #{_horde_forward_impl.1} parent=0 // pred_check
    _
  $region15: #{_horde_forward_impl.1} parent=0 // pred_check_branch
    %23 = sbr.rel (0) target = $region17
  $region16: #{_horde_forward_impl.1} parent=0 // pred_region
    _
  $region17: #{_horde_forward_impl.1} parent=0 // pred_fallthru
    _
  // Predicated region
  $region18: #{_horde_forward_impl.1} parent=0 // pred_check
    _
  $region19: #{_horde_forward_impl.1} parent=0 // pred_check_branch
    %25 = sbr.rel (0) target = $region21
  $region20: #{_horde_forward_impl.1} parent=0 // pred_region
    _
  $region21: #{_horde_forward_impl.1} parent=0 // pred_fallthru
    _
  // Predicated region
  $region22: #{_horde_forward_impl.1} parent=0 // pred_check
    _
  $region23: #{_horde_forward_impl.1} parent=0 // pred_check_branch
    %27 = sbr.rel (0) target = $region25
  $region24: #{_horde_forward_impl.1} parent=0 // pred_region
    _
  $region25: #{_horde_forward_impl.1} parent=0 // pred_fallthru
    _
  // Predicated region
  $region26: #{_horde_forward_impl.1} parent=0 // pred_check
    _
  $region27: #{_horde_forward_impl.1} parent=0 // pred_check_branch
    %29 = sbr.rel (0) target = $region29
  $region28: #{_horde_forward_impl.1} parent=0 // pred_region
    _
  $region29: #{_horde_forward_impl.1} parent=0 // pred_fallthru
    _
  // Predicated region
  $region30: #{_horde_forward_impl.1} parent=0 // pred_check
    _
  $region31: #{_horde_forward_impl.1} parent=0 // pred_check_branch
    %31 = sbr.rel (0) target = $region33
  $region32: #{_horde_forward_impl.1} parent=0 // pred_region
    _
  $region33: #{_horde_forward_impl.1} parent=0 // pred_fallthru
    _
  // Predicated region
  $region34: #{_horde_forward_impl.1} parent=0 // pred_check
    _
  $region35: #{_horde_forward_impl.1} parent=0 // pred_check_branch
    %33 = sbr.rel (0) target = $region37
  $region36: #{_horde_forward_impl.1} parent=0 // pred_region
    _
  $region37: #{_horde_forward_impl.1} parent=0 // pred_fallthru
    _
  %v34 = vld [vmem:[%s1] sm:$0xff]
  %v35 = vld [vmem:[%s1 + $0x8] sm:$0xff]
  %v36 = vld [vmem:[%s1 + $0x10] sm:$0xff]
  %v37 = vld [vmem:[%s1 + $0x18] sm:$0xff]
  %v38 = vld [vmem:[%s1 + $0x20] sm:$0xff]
  %v39 = vld [vmem:[%s1 + $0x28] sm:$0xff]
  %v40 = vld [vmem:[%s1 + $0x30] sm:$0xff]
  %v41 = vld [vmem:[%s1 + $0x38] sm:$0xff]
  %v42 = vld [vmem:[%s1 + $0x40] sm:$0xff]
  %v43 = vld [vmem:[%s1 + $0x48] sm:$0xff]
  %v44 = vld [vmem:[%s1 + $0x50] sm:$0xff]
  %v45 = vld [vmem:[%s1 + $0x58] sm:$0xff]
  %v46 = vld [vmem:[%s1 + $0x60] sm:$0xf]
  %v47 = vld [vmem:[%s2] sm:$0x1]
  %v48 = vld [vmem:[%s0] sm:$0xff]
  %v49 = vld [vmem:[%s0 + $0x8] sm:$0xff]
  %v50 = vld [vmem:[%s0 + $0x10] sm:$0xff]
  %v51 = vld [vmem:[%s0 + $0x18] sm:$0xff]
  %v52 = vld [vmem:[%s0 + $0x20] sm:$0xff]
  %v53 = vld [vmem:[%s0 + $0x28] sm:$0xff]
  %v54 = vld [vmem:[%s0 + $0x30] sm:$0xff]
  %v55 = vld [vmem:[%s0 + $0x38] sm:$0xff]
  %v56 = vld [vmem:[%s0 + $0x40] sm:$0xff]
  %v57 = vld [vmem:[%s0 + $0x48] sm:$0xff]
  %v58 = vld [vmem:[%s0 + $0x50] sm:$0xff]
  %v59 = vld [vmem:[%s0 + $0x58] sm:$0xff]
  %v60 = vld [vmem:[%s0 + $0x60] sm:$0xff]
  %v62 = vperm.slane %v47, 0
  %vm64 = vcmask 818176
  %v66 = vsel %vm64, %v48, 0
  %v69 = vsel %vm64, %v49, 0
  %v72 = vsel %vm64, %v50, 0
  %v75 = vsel %vm64, %v51, 0
  %v78 = vsel %vm64, %v52, 0
  %v81 = vsel %vm64, %v53, 0
  %v84 = vsel %vm64, %v54, 0
  %v87 = vsel %vm64, %v55, 0
  %v90 = vsel %vm64, %v56, 0
  %v93 = vsel %vm64, %v57, 0
  %v96 = vsel %vm64, %v58, 0
  %v99 = vsel %vm64, %v59, 0
  %v102 = vsel %vm64, %v60, 0
  %vm104 = vcmask 1043456
  %v106 = vsel %vm104, %v46, 0
  %108 = vmatpush.msra.mxu0 0.0
  %109 = vmatpush.msra.mxu0 0.0
  %110 = vmatpush.msra.mxu0 0.0
  %111 = vmatpush.msra.mxu0 %v106
  %112 = vmatpush.msra.mxu0 %v45
  %113 = vmatpush.msra.mxu0 %v44
  %114 = vmatpush.msra.mxu0 %v43
  %115 = vmatpush.msra.mxu0 %v42
  %116 = vmatpush.msra.mxu0 %v41
  %117 = vmatpush.msra.mxu0 %v40
  %118 = vmatpush.msra.mxu0 %v39
  %119 = vmatpush.msra.mxu0 %v38
  %120 = vmatpush.msra.mxu0 %v37
  %121 = vmatpush.msra.mxu0 %v36
  %122 = vmatpush.msra.mxu0 %v35
  %123 = vmatpush.msra.mxu0 %v34
  %124 = vmatmul.f32.gmra.mxu0 %v66
  %v125 = vpop.f32.mrf.mxu0
  %v126 = vadd.f32 %v62, %v125
  %127 = vmatmul.f32.gmra.mxu0 %v69
  %v128 = vpop.f32.mrf.mxu0
  %v129 = vadd.f32 %v62, %v128
  %130 = vmatmul.f32.gmra.mxu0 %v72
  %v131 = vpop.f32.mrf.mxu0
  %v132 = vadd.f32 %v62, %v131
  %133 = vmatmul.f32.gmra.mxu0 %v75
  %v134 = vpop.f32.mrf.mxu0
  %v135 = vadd.f32 %v62, %v134
  %136 = vmatmul.f32.gmra.mxu0 %v78
  %v137 = vpop.f32.mrf.mxu0
  %v138 = vadd.f32 %v62, %v137
  %139 = vmatmul.f32.gmra.mxu0 %v81
  %v140 = vpop.f32.mrf.mxu0
  %v141 = vadd.f32 %v62, %v140
  %142 = vmatmul.f32.gmra.mxu0 %v84
  %v143 = vpop.f32.mrf.mxu0
  %v144 = vadd.f32 %v62, %v143
  %145 = vmatmul.f32.gmra.mxu0 %v87
  %v146 = vpop.f32.mrf.mxu0
  %v147 = vadd.f32 %v62, %v146
  %148 = vmatmul.f32.gmra.mxu0 %v90
  %v149 = vpop.f32.mrf.mxu0
  %v150 = vadd.f32 %v62, %v149
  %151 = vmatmul.f32.gmra.mxu0 %v93
  %v152 = vpop.f32.mrf.mxu0
  %v153 = vadd.f32 %v62, %v152
  %154 = vmatmul.f32.gmra.mxu0 %v96
  %v155 = vpop.f32.mrf.mxu0
  %v156 = vadd.f32 %v62, %v155
  %157 = vmatmul.f32.gmra.mxu0 %v99
  %v158 = vpop.f32.mrf.mxu0
  %v159 = vadd.f32 %v62, %v158
  %160 = vmatmul.f32.gmra.mxu0 %v102
  %v161 = vpop.f32.mrf.mxu0
  %v162 = vadd.f32 %v62, %v161
  %163 = vdwg.mxu0
  %v164 = vmax.f32 %v126, 0.0
  %v165 = vmax.f32 %v129, 0.0
  %v166 = vmax.f32 %v132, 0.0
  %v167 = vmax.f32 %v135, 0.0
  %v168 = vmax.f32 %v138, 0.0
  %v169 = vmax.f32 %v141, 0.0
  %v170 = vmax.f32 %v144, 0.0
  %v171 = vmax.f32 %v147, 0.0
  %v172 = vmax.f32 %v150, 0.0
  %v173 = vmax.f32 %v153, 0.0
  %v174 = vmax.f32 %v156, 0.0
  %v175 = vmax.f32 %v159, 0.0
  %v176 = vmax.f32 %v162, 0.0
  %v177 = vld [vmem:[%s3] sm:$0xff]
  %v178 = vld [vmem:[%s3 + $0x8] sm:$0xff]
  %s179 = scalar_lea.vmem %s0, 104
  %v180 = vld [vmem:[%s179] sm:$0xff]
  %v181 = vld [vmem:[%s179 + $0x8] sm:$0xff]
  %v182 = vld [vmem:[%s179 + $0x10] sm:$0xff]
  %v183 = vld [vmem:[%s179 + $0x18] sm:$0xff]
  %v184 = vld [vmem:[%s179 + $0x20] sm:$0xff]
  %v185 = vld [vmem:[%s179 + $0x28] sm:$0xff]
  %v186 = vld [vmem:[%s179 + $0x30] sm:$0xff]
  %v187 = vld [vmem:[%s179 + $0x38] sm:$0xff]
  %v188 = vld [vmem:[%s179 + $0x40] sm:$0xff]
  %v189 = vld [vmem:[%s179 + $0x48] sm:$0xff]
  %v190 = vld [vmem:[%s179 + $0x50] sm:$0xff]
  %v191 = vld [vmem:[%s179 + $0x58] sm:$0xff]
  %v192 = vld [vmem:[%s179 + $0x60] sm:$0xff]
  %v194 = vsel %vm64, %v180, 0
  %v197 = vsel %vm64, %v181, 0
  %v200 = vsel %vm64, %v182, 0
  %v203 = vsel %vm64, %v183, 0
  %v206 = vsel %vm64, %v184, 0
  %v209 = vsel %vm64, %v185, 0
  %v212 = vsel %vm64, %v186, 0
  %v215 = vsel %vm64, %v187, 0
  %v218 = vsel %vm64, %v188, 0
  %v221 = vsel %vm64, %v189, 0
  %v224 = vsel %vm64, %v190, 0
  %v227 = vsel %vm64, %v191, 0
  %v230 = vsel %vm64, %v192, 0
  %232 = vmatpush.msra.mxu0 0.0
  %233 = vmatpush.msra.mxu0 0.0
  %234 = vmatpush.msra.mxu0 0.0
  %235 = vmatpush.msra.mxu0 %v106
  %236 = vmatpush.msra.mxu0 %v45
  %237 = vmatpush.msra.mxu0 %v44
  %238 = vmatpush.msra.mxu0 %v43
  %239 = vmatpush.msra.mxu0 %v42
  %240 = vmatpush.msra.mxu0 %v41
  %241 = vmatpush.msra.mxu0 %v40
  %242 = vmatpush.msra.mxu0 %v39
  %243 = vmatpush.msra.mxu0 %v38
  %244 = vmatpush.msra.mxu0 %v37
  %245 = vmatpush.msra.mxu0 %v36
  %246 = vmatpush.msra.mxu0 %v35
  %247 = vmatpush.msra.mxu0 %v34
  %248 = vmatmul.f32.gmra.mxu0 %v194
  %v249 = vpop.f32.mrf.mxu0
  %v250 = vadd.f32 %v62, %v249
  %251 = vmatmul.f32.gmra.mxu0 %v197
  %v252 = vpop.f32.mrf.mxu0
  %v253 = vadd.f32 %v62, %v252
  %254 = vmatmul.f32.gmra.mxu0 %v200
  %v255 = vpop.f32.mrf.mxu0
  %v256 = vadd.f32 %v62, %v255
  %257 = vmatmul.f32.gmra.mxu0 %v203
  %v258 = vpop.f32.mrf.mxu0
  %v259 = vadd.f32 %v62, %v258
  %260 = vmatmul.f32.gmra.mxu0 %v206
  %v261 = vpop.f32.mrf.mxu0
  %v262 = vadd.f32 %v62, %v261
  %263 = vmatmul.f32.gmra.mxu0 %v209
  %v264 = vpop.f32.mrf.mxu0
  %v265 = vadd.f32 %v62, %v264
  %266 = vmatmul.f32.gmra.mxu0 %v212
  %v267 = vpop.f32.mrf.mxu0
  %v268 = vadd.f32 %v62, %v267
  %269 = vmatmul.f32.gmra.mxu0 %v215
  %v270 = vpop.f32.mrf.mxu0
  %v271 = vadd.f32 %v62, %v270
  %272 = vmatmul.f32.gmra.mxu0 %v218
  %v273 = vpop.f32.mrf.mxu0
  %v274 = vadd.f32 %v62, %v273
  %275 = vmatmul.f32.gmra.mxu0 %v221
  %v276 = vpop.f32.mrf.mxu0
  %v277 = vadd.f32 %v62, %v276
  %278 = vmatmul.f32.gmra.mxu0 %v224
  %v279 = vpop.f32.mrf.mxu0
  %v280 = vadd.f32 %v62, %v279
  %281 = vmatmul.f32.gmra.mxu0 %v227
  %v282 = vpop.f32.mrf.mxu0
  %v283 = vadd.f32 %v62, %v282
  %284 = vmatmul.f32.gmra.mxu0 %v230
  %v285 = vpop.f32.mrf.mxu0
  %v286 = vadd.f32 %v62, %v285
  %287 = vdwg.mxu0
  %v288 = vmax.f32 %v250, 0.0
  %v289 = vmax.f32 %v253, 0.0
  %v290 = vmax.f32 %v256, 0.0
  %v291 = vmax.f32 %v259, 0.0
  %v292 = vmax.f32 %v262, 0.0
  %v293 = vmax.f32 %v265, 0.0
  %v294 = vmax.f32 %v268, 0.0
  %v295 = vmax.f32 %v271, 0.0
  %v296 = vmax.f32 %v274, 0.0
  %v297 = vmax.f32 %v277, 0.0
  %v298 = vmax.f32 %v280, 0.0
  %v299 = vmax.f32 %v283, 0.0
  %v300 = vmax.f32 %v286, 0.0
  %s301 = scalar_lea.vmem %s3, 16
  %v302 = vld [vmem:[%s301] sm:$0xff]
  %v303 = vld [vmem:[%s301 + $0x8] sm:$0xff]
  %vm304 = vcmask 130048
  %v306 = vsel %vm304, %v288, 0
  %v309 = vsel %vm304, %v289, 0
  %v312 = vsel %vm304, %v290, 0
  %v315 = vsel %vm304, %v291, 0
  %v318 = vsel %vm304, %v292, 0
  %v321 = vsel %vm304, %v293, 0
  %v324 = vsel %vm304, %v294, 0
  %v327 = vsel %vm304, %v295, 0
  %v330 = vsel %vm304, %v296, 0
  %v333 = vsel %vm304, %v297, 0
  %v336 = vsel %vm304, %v298, 0
  %v339 = vsel %vm304, %v299, 0
  %v342 = vsel %vm304, %v300, 0
  %344 = vmatpush.msra.mxu0 0.0
  %345 = vmatpush.msra.mxu0 0.0
  %346 = vmatpush.msra.mxu0 0.0
  %347 = vmatpush.msra.mxu0 0.0
  %348 = vmatpush.msra.mxu0 0.0
  %349 = vmatpush.msra.mxu0 0.0
  %350 = vmatpush.msra.mxu0 0.0
  %351 = vmatpush.msra.mxu0 0.0
  %352 = vmatpush.msra.mxu0 0.0
  %353 = vmatpush.msra.mxu0 0.0
  %354 = vmatpush.msra.mxu0 0.0
  %355 = vmatpush.msra.mxu0 0.0
  %356 = vmatpush.msra.mxu0 0.0
  %357 = vmatpush.msra.mxu0 0.0
  %358 = vmatpush.msra.mxu0 %v303
  %359 = vmatpush.msra.mxu0 %v302
  %360 = vmatmul.f32.gmra.mxu0 %v306
  %v361 = vpop.f32.mrf.mxu0
  %v362 = vadd.f32 0.0, %v361
  %363 = vmatmul.f32.gmra.mxu0 %v309
  %v364 = vpop.f32.mrf.mxu0
  %v365 = vadd.f32 0.0, %v364
  %366 = vmatmul.f32.gmra.mxu0 %v312
  %v367 = vpop.f32.mrf.mxu0
  %v368 = vadd.f32 0.0, %v367
  %369 = vmatmul.f32.gmra.mxu0 %v315
  %v370 = vpop.f32.mrf.mxu0
  %v371 = vadd.f32 0.0, %v370
  %372 = vmatmul.f32.gmra.mxu0 %v318
  %v373 = vpop.f32.mrf.mxu0
  %v374 = vadd.f32 0.0, %v373
  %375 = vmatmul.f32.gmra.mxu0 %v321
  %v376 = vpop.f32.mrf.mxu0
  %v377 = vadd.f32 0.0, %v376
  %378 = vmatmul.f32.gmra.mxu0 %v324
  %v379 = vpop.f32.mrf.mxu0
  %v380 = vadd.f32 0.0, %v379
  %381 = vmatmul.f32.gmra.mxu0 %v327
  %v382 = vpop.f32.mrf.mxu0
  %v383 = vadd.f32 0.0, %v382
  %384 = vmatmul.f32.gmra.mxu0 %v330
  %v385 = vpop.f32.mrf.mxu0
  %v386 = vadd.f32 0.0, %v385
  %387 = vmatmul.f32.gmra.mxu0 %v333
  %v388 = vpop.f32.mrf.mxu0
  %v389 = vadd.f32 0.0, %v388
  %390 = vmatmul.f32.gmra.mxu0 %v336
  %v391 = vpop.f32.mrf.mxu0
  %v392 = vadd.f32 0.0, %v391
  %393 = vmatmul.f32.gmra.mxu0 %v339
  %v394 = vpop.f32.mrf.mxu0
  %v395 = vadd.f32 0.0, %v394
  %396 = vmatmul.f32.gmra.mxu0 %v342
  %v397 = vpop.f32.mrf.mxu0
  %v398 = vadd.f32 0.0, %v397
  %399 = vdwg.mxu0
  %v401 = vsel %vm304, %v164, 0
  %v404 = vsel %vm304, %v165, 0
  %v407 = vsel %vm304, %v166, 0
  %v410 = vsel %vm304, %v167, 0
  %v413 = vsel %vm304, %v168, 0
  %v416 = vsel %vm304, %v169, 0
  %v419 = vsel %vm304, %v170, 0
  %v422 = vsel %vm304, %v171, 0
  %v425 = vsel %vm304, %v172, 0
  %v428 = vsel %vm304, %v173, 0
  %v431 = vsel %vm304, %v174, 0
  %v434 = vsel %vm304, %v175, 0
  %v437 = vsel %vm304, %v176, 0
  %439 = vmatpush.msra.mxu0 0.0
  %440 = vmatpush.msra.mxu0 0.0
  %441 = vmatpush.msra.mxu0 0.0
  %442 = vmatpush.msra.mxu0 0.0
  %443 = vmatpush.msra.mxu0 0.0
  %444 = vmatpush.msra.mxu0 0.0
  %445 = vmatpush.msra.mxu0 0.0
  %446 = vmatpush.msra.mxu0 0.0
  %447 = vmatpush.msra.mxu0 0.0
  %448 = vmatpush.msra.mxu0 0.0
  %449 = vmatpush.msra.mxu0 0.0
  %450 = vmatpush.msra.mxu0 0.0
  %451 = vmatpush.msra.mxu0 0.0
  %452 = vmatpush.msra.mxu0 0.0
  %453 = vmatpush.msra.mxu0 %v178
  %454 = vmatpush.msra.mxu0 %v177
  %455 = vmatmul.f32.gmra.mxu0 %v401
  %v456 = vpop.f32.mrf.mxu0
  %v457 = vadd.f32 %v362, %v456
  %458 = vmatmul.f32.gmra.mxu0 %v404
  %v459 = vpop.f32.mrf.mxu0
  %v460 = vadd.f32 %v365, %v459
  %461 = vmatmul.f32.gmra.mxu0 %v407
  %v462 = vpop.f32.mrf.mxu0
  %v463 = vadd.f32 %v368, %v462
  %464 = vmatmul.f32.gmra.mxu0 %v410
  %v465 = vpop.f32.mrf.mxu0
  %v466 = vadd.f32 %v371, %v465
  %467 = vmatmul.f32.gmra.mxu0 %v413
  %v468 = vpop.f32.mrf.mxu0
  %v469 = vadd.f32 %v374, %v468
  %470 = vmatmul.f32.gmra.mxu0 %v416
  %v471 = vpop.f32.mrf.mxu0
  %v472 = vadd.f32 %v377, %v471
  %473 = vmatmul.f32.gmra.mxu0 %v419
  %v474 = vpop.f32.mrf.mxu0
  %v475 = vadd.f32 %v380, %v474
  %476 = vmatmul.f32.gmra.mxu0 %v422
  %v477 = vpop.f32.mrf.mxu0
  %v478 = vadd.f32 %v383, %v477
  %479 = vmatmul.f32.gmra.mxu0 %v425
  %v480 = vpop.f32.mrf.mxu0
  %v481 = vadd.f32 %v386, %v480
  %482 = vmatmul.f32.gmra.mxu0 %v428
  %v483 = vpop.f32.mrf.mxu0
  %v484 = vadd.f32 %v389, %v483
  %485 = vmatmul.f32.gmra.mxu0 %v431
  %v486 = vpop.f32.mrf.mxu0
  %v487 = vadd.f32 %v392, %v486
  %488 = vmatmul.f32.gmra.mxu0 %v434
  %v489 = vpop.f32.mrf.mxu0
  %v490 = vadd.f32 %v395, %v489
  %491 = vmatmul.f32.gmra.mxu0 %v437
  %v492 = vpop.f32.mrf.mxu0
  %v493 = vadd.f32 %v398, %v492
  %494 = vdwg.mxu0
  %s495 = scalar_lea.vmem %s0, 208
  %v496 = vld [vmem:[%s495] sm:$0xff]
  %v497 = vld [vmem:[%s495 + $0x8] sm:$0xff]
  %v498 = vld [vmem:[%s495 + $0x10] sm:$0xff]
  %v499 = vld [vmem:[%s495 + $0x18] sm:$0xff]
  %v500 = vld [vmem:[%s495 + $0x20] sm:$0xff]
  %v501 = vld [vmem:[%s495 + $0x28] sm:$0xff]
  %v502 = vld [vmem:[%s495 + $0x30] sm:$0xff]
  %v503 = vld [vmem:[%s495 + $0x38] sm:$0xff]
  %v504 = vld [vmem:[%s495 + $0x40] sm:$0xff]
  %v505 = vld [vmem:[%s495 + $0x48] sm:$0xff]
  %v506 = vld [vmem:[%s495 + $0x50] sm:$0xff]
  %v507 = vld [vmem:[%s495 + $0x58] sm:$0xff]
  %v508 = vld [vmem:[%s495 + $0x60] sm:$0xff]
  %v510 = vsel %vm64, %v496, 0
  %v513 = vsel %vm64, %v497, 0
  %v516 = vsel %vm64, %v498, 0
  %v519 = vsel %vm64, %v499, 0
  %v522 = vsel %vm64, %v500, 0
  %v525 = vsel %vm64, %v501, 0
  %v528 = vsel %vm64, %v502, 0
  %v531 = vsel %vm64, %v503, 0
  %v534 = vsel %vm64, %v504, 0
  %v537 = vsel %vm64, %v505, 0
  %v540 = vsel %vm64, %v506, 0
  %v543 = vsel %vm64, %v507, 0
  %v546 = vsel %vm64, %v508, 0
  %548 = vmatpush.msra.mxu0 0.0
  %549 = vmatpush.msra.mxu0 0.0
  %550 = vmatpush.msra.mxu0 0.0
  %551 = vmatpush.msra.mxu0 %v106
  %552 = vmatpush.msra.mxu0 %v45
  %553 = vmatpush.msra.mxu0 %v44
  %554 = vmatpush.msra.mxu0 %v43
  %555 = vmatpush.msra.mxu0 %v42
  %556 = vmatpush.msra.mxu0 %v41
  %557 = vmatpush.msra.mxu0 %v40
  %558 = vmatpush.msra.mxu0 %v39
  %559 = vmatpush.msra.mxu0 %v38
  %560 = vmatpush.msra.mxu0 %v37
  %561 = vmatpush.msra.mxu0 %v36
  %562 = vmatpush.msra.mxu0 %v35
  %563 = vmatpush.msra.mxu0 %v34
  %564 = vmatmul.f32.gmra.mxu0 %v510
  %v565 = vpop.f32.mrf.mxu0
  %v566 = vadd.f32 %v62, %v565
  %567 = vmatmul.f32.gmra.mxu0 %v513
  %v568 = vpop.f32.mrf.mxu0
  %v569 = vadd.f32 %v62, %v568
  %570 = vmatmul.f32.gmra.mxu0 %v516
  %v571 = vpop.f32.mrf.mxu0
  %v572 = vadd.f32 %v62, %v571
  %573 = vmatmul.f32.gmra.mxu0 %v519
  %v574 = vpop.f32.mrf.mxu0
  %v575 = vadd.f32 %v62, %v574
  %576 = vmatmul.f32.gmra.mxu0 %v522
  %v577 = vpop.f32.mrf.mxu0
  %v578 = vadd.f32 %v62, %v577
  %579 = vmatmul.f32.gmra.mxu0 %v525
  %v580 = vpop.f32.mrf.mxu0
  %v581 = vadd.f32 %v62, %v580
  %582 = vmatmul.f32.gmra.mxu0 %v528
  %v583 = vpop.f32.mrf.mxu0
  %v584 = vadd.f32 %v62, %v583
  %585 = vmatmul.f32.gmra.mxu0 %v531
  %v586 = vpop.f32.mrf.mxu0
  %v587 = vadd.f32 %v62, %v586
  %588 = vmatmul.f32.gmra.mxu0 %v534
  %v589 = vpop.f32.mrf.mxu0
  %v590 = vadd.f32 %v62, %v589
  %591 = vmatmul.f32.gmra.mxu0 %v537
  %v592 = vpop.f32.mrf.mxu0
  %v593 = vadd.f32 %v62, %v592
  %594 = vmatmul.f32.gmra.mxu0 %v540
  %v595 = vpop.f32.mrf.mxu0
  %v596 = vadd.f32 %v62, %v595
  %597 = vmatmul.f32.gmra.mxu0 %v543
  %v598 = vpop.f32.mrf.mxu0
  %v599 = vadd.f32 %v62, %v598
  %600 = vmatmul.f32.gmra.mxu0 %v546
  %v601 = vpop.f32.mrf.mxu0
  %v602 = vadd.f32 %v62, %v601
  %603 = vdwg.mxu0
  %v604 = vmax.f32 %v566, 0.0
  %v605 = vmax.f32 %v569, 0.0
  %v606 = vmax.f32 %v572, 0.0
  %v607 = vmax.f32 %v575, 0.0
  %v608 = vmax.f32 %v578, 0.0
  %v609 = vmax.f32 %v581, 0.0
  %v610 = vmax.f32 %v584, 0.0
  %v611 = vmax.f32 %v587, 0.0
  %v612 = vmax.f32 %v590, 0.0
  %v613 = vmax.f32 %v593, 0.0
  %v614 = vmax.f32 %v596, 0.0
  %v615 = vmax.f32 %v599, 0.0
  %v616 = vmax.f32 %v602, 0.0
  %s617 = scalar_lea.vmem %s3, 32
  %v618 = vld [vmem:[%s617] sm:$0xff]
  %v619 = vld [vmem:[%s617 + $0x8] sm:$0xff]
  %v621 = vsel %vm304, %v604, 0
  %v624 = vsel %vm304, %v605, 0
  %v627 = vsel %vm304, %v606, 0
  %v630 = vsel %vm304, %v607, 0
  %v633 = vsel %vm304, %v608, 0
  %v636 = vsel %vm304, %v609, 0
  %v639 = vsel %vm304, %v610, 0
  %v642 = vsel %vm304, %v611, 0
  %v645 = vsel %vm304, %v612, 0
  %v648 = vsel %vm304, %v613, 0
  %v651 = vsel %vm304, %v614, 0
  %v654 = vsel %vm304, %v615, 0
  %v657 = vsel %vm304, %v616, 0
  %659 = vmatpush.msra.mxu0 0.0
  %660 = vmatpush.msra.mxu0 0.0
  %661 = vmatpush.msra.mxu0 0.0
  %662 = vmatpush.msra.mxu0 0.0
  %663 = vmatpush.msra.mxu0 0.0
  %664 = vmatpush.msra.mxu0 0.0
  %665 = vmatpush.msra.mxu0 0.0
  %666 = vmatpush.msra.mxu0 0.0
  %667 = vmatpush.msra.mxu0 0.0
  %668 = vmatpush.msra.mxu0 0.0
  %669 = vmatpush.msra.mxu0 0.0
  %670 = vmatpush.msra.mxu0 0.0
  %671 = vmatpush.msra.mxu0 0.0
  %672 = vmatpush.msra.mxu0 0.0
  %673 = vmatpush.msra.mxu0 %v619
  %674 = vmatpush.msra.mxu0 %v618
  %675 = vmatmul.f32.gmra.mxu0 %v621
  %v676 = vpop.f32.mrf.mxu0
  %v677 = vadd.f32 0.0, %v676
  %678 = vmatmul.f32.gmra.mxu0 %v624
  %v679 = vpop.f32.mrf.mxu0
  %v680 = vadd.f32 0.0, %v679
  %681 = vmatmul.f32.gmra.mxu0 %v627
  %v682 = vpop.f32.mrf.mxu0
  %v683 = vadd.f32 0.0, %v682
  %684 = vmatmul.f32.gmra.mxu0 %v630
  %v685 = vpop.f32.mrf.mxu0
  %v686 = vadd.f32 0.0, %v685
  %687 = vmatmul.f32.gmra.mxu0 %v633
  %v688 = vpop.f32.mrf.mxu0
  %v689 = vadd.f32 0.0, %v688
  %690 = vmatmul.f32.gmra.mxu0 %v636
  %v691 = vpop.f32.mrf.mxu0
  %v692 = vadd.f32 0.0, %v691
  %693 = vmatmul.f32.gmra.mxu0 %v639
  %v694 = vpop.f32.mrf.mxu0
  %v695 = vadd.f32 0.0, %v694
  %696 = vmatmul.f32.gmra.mxu0 %v642
  %v697 = vpop.f32.mrf.mxu0
  %v698 = vadd.f32 0.0, %v697
  %699 = vmatmul.f32.gmra.mxu0 %v645
  %v700 = vpop.f32.mrf.mxu0
  %v701 = vadd.f32 0.0, %v700
  %702 = vmatmul.f32.gmra.mxu0 %v648
  %v703 = vpop.f32.mrf.mxu0
  %v704 = vadd.f32 0.0, %v703
  %705 = vmatmul.f32.gmra.mxu0 %v651
  %v706 = vpop.f32.mrf.mxu0
  %v707 = vadd.f32 0.0, %v706
  %708 = vmatmul.f32.gmra.mxu0 %v654
  %v709 = vpop.f32.mrf.mxu0
  %v710 = vadd.f32 0.0, %v709
  %711 = vmatmul.f32.gmra.mxu0 %v657
  %v712 = vpop.f32.mrf.mxu0
  %v713 = vadd.f32 0.0, %v712
  %714 = vdwg.mxu0
  %v715 = vadd.f32 %v457, %v677
  %v716 = vadd.f32 %v460, %v680
  %v717 = vadd.f32 %v463, %v683
  %v718 = vadd.f32 %v466, %v686
  %v719 = vadd.f32 %v469, %v689
  %v720 = vadd.f32 %v472, %v692
  %v721 = vadd.f32 %v475, %v695
  %v722 = vadd.f32 %v478, %v698
  %v723 = vadd.f32 %v481, %v701
  %v724 = vadd.f32 %v484, %v704
  %v725 = vadd.f32 %v487, %v707
  %v726 = vadd.f32 %v490, %v710
  %v727 = vadd.f32 %v493, %v713
  %s728 = scalar_lea.vmem %s0, 312
  %v729 = vld [vmem:[%s728] sm:$0xff]
  %v730 = vld [vmem:[%s728 + $0x8] sm:$0xff]
  %v731 = vld [vmem:[%s728 + $0x10] sm:$0xff]
  %v732 = vld [vmem:[%s728 + $0x18] sm:$0xff]
  %v733 = vld [vmem:[%s728 + $0x20] sm:$0xff]
  %v734 = vld [vmem:[%s728 + $0x28] sm:$0xff]
  %v735 = vld [vmem:[%s728 + $0x30] sm:$0xff]
  %v736 = vld [vmem:[%s728 + $0x38] sm:$0xff]
  %v737 = vld [vmem:[%s728 + $0x40] sm:$0xff]
  %v738 = vld [vmem:[%s728 + $0x48] sm:$0xff]
  %v739 = vld [vmem:[%s728 + $0x50] sm:$0xff]
  %v740 = vld [vmem:[%s728 + $0x58] sm:$0xff]
  %v741 = vld [vmem:[%s728 + $0x60] sm:$0xff]
  %v743 = vsel %vm64, %v729, 0
  %v746 = vsel %vm64, %v730, 0
  %v749 = vsel %vm64, %v731, 0
  %v752 = vsel %vm64, %v732, 0
  %v755 = vsel %vm64, %v733, 0
  %v758 = vsel %vm64, %v734, 0
  %v761 = vsel %vm64, %v735, 0
  %v764 = vsel %vm64, %v736, 0
  %v767 = vsel %vm64, %v737, 0
  %v770 = vsel %vm64, %v738, 0
  %v773 = vsel %vm64, %v739, 0
  %v776 = vsel %vm64, %v740, 0
  %v779 = vsel %vm64, %v741, 0
  %781 = vmatpush.msra.mxu0 0.0
  %782 = vmatpush.msra.mxu0 0.0
  %783 = vmatpush.msra.mxu0 0.0
  %784 = vmatpush.msra.mxu0 %v106
  %785 = vmatpush.msra.mxu0 %v45
  %786 = vmatpush.msra.mxu0 %v44
  %787 = vmatpush.msra.mxu0 %v43
  %788 = vmatpush.msra.mxu0 %v42
  %789 = vmatpush.msra.mxu0 %v41
  %790 = vmatpush.msra.mxu0 %v40
  %791 = vmatpush.msra.mxu0 %v39
  %792 = vmatpush.msra.mxu0 %v38
  %793 = vmatpush.msra.mxu0 %v37
  %794 = vmatpush.msra.mxu0 %v36
  %795 = vmatpush.msra.mxu0 %v35
  %796 = vmatpush.msra.mxu0 %v34
  %797 = vmatmul.f32.gmra.mxu0 %v743
  %v798 = vpop.f32.mrf.mxu0
  %v799 = vadd.f32 %v62, %v798
  %800 = vmatmul.f32.gmra.mxu0 %v746
  %v801 = vpop.f32.mrf.mxu0
  %v802 = vadd.f32 %v62, %v801
  %803 = vmatmul.f32.gmra.mxu0 %v749
  %v804 = vpop.f32.mrf.mxu0
  %v805 = vadd.f32 %v62, %v804
  %806 = vmatmul.f32.gmra.mxu0 %v752
  %v807 = vpop.f32.mrf.mxu0
  %v808 = vadd.f32 %v62, %v807
  %809 = vmatmul.f32.gmra.mxu0 %v755
  %v810 = vpop.f32.mrf.mxu0
  %v811 = vadd.f32 %v62, %v810
  %812 = vmatmul.f32.gmra.mxu0 %v758
  %v813 = vpop.f32.mrf.mxu0
  %v814 = vadd.f32 %v62, %v813
  %815 = vmatmul.f32.gmra.mxu0 %v761
  %v816 = vpop.f32.mrf.mxu0
  %v817 = vadd.f32 %v62, %v816
  %818 = vmatmul.f32.gmra.mxu0 %v764
  %v819 = vpop.f32.mrf.mxu0
  %v820 = vadd.f32 %v62, %v819
  %821 = vmatmul.f32.gmra.mxu0 %v767
  %v822 = vpop.f32.mrf.mxu0
  %v823 = vadd.f32 %v62, %v822
  %824 = vmatmul.f32.gmra.mxu0 %v770
  %v825 = vpop.f32.mrf.mxu0
  %v826 = vadd.f32 %v62, %v825
  %827 = vmatmul.f32.gmra.mxu0 %v773
  %v828 = vpop.f32.mrf.mxu0
  %v829 = vadd.f32 %v62, %v828
  %830 = vmatmul.f32.gmra.mxu0 %v776
  %v831 = vpop.f32.mrf.mxu0
  %v832 = vadd.f32 %v62, %v831
  %833 = vmatmul.f32.gmra.mxu0 %v779
  %v834 = vpop.f32.mrf.mxu0
  %v835 = vadd.f32 %v62, %v834
  %836 = vdwg.mxu0
  %v837 = vmax.f32 %v799, 0.0
  %v838 = vmax.f32 %v802, 0.0
  %v839 = vmax.f32 %v805, 0.0
  %v840 = vmax.f32 %v808, 0.0
  %v841 = vmax.f32 %v811, 0.0
  %v842 = vmax.f32 %v814, 0.0
  %v843 = vmax.f32 %v817, 0.0
  %v844 = vmax.f32 %v820, 0.0
  %v845 = vmax.f32 %v823, 0.0
  %v846 = vmax.f32 %v826, 0.0
  %v847 = vmax.f32 %v829, 0.0
  %v848 = vmax.f32 %v832, 0.0
  %v849 = vmax.f32 %v835, 0.0
  %s850 = scalar_lea.vmem %s3, 48
  %v851 = vld [vmem:[%s850] sm:$0xff]
  %v852 = vld [vmem:[%s850 + $0x8] sm:$0xff]
  %v854 = vsel %vm304, %v837, 0
  %v857 = vsel %vm304, %v838, 0
  %v860 = vsel %vm304, %v839, 0
  %v863 = vsel %vm304, %v840, 0
  %v866 = vsel %vm304, %v841, 0
  %v869 = vsel %vm304, %v842, 0
  %v872 = vsel %vm304, %v843, 0
  %v875 = vsel %vm304, %v844, 0
  %v878 = vsel %vm304, %v845, 0
  %v881 = vsel %vm304, %v846, 0
  %v884 = vsel %vm304, %v847, 0
  %v887 = vsel %vm304, %v848, 0
  %v890 = vsel %vm304, %v849, 0
  %892 = vmatpush.msra.mxu0 0.0
  %893 = vmatpush.msra.mxu0 0.0
  %894 = vmatpush.msra.mxu0 0.0
  %895 = vmatpush.msra.mxu0 0.0
  %896 = vmatpush.msra.mxu0 0.0
  %897 = vmatpush.msra.mxu0 0.0
  %898 = vmatpush.msra.mxu0 0.0
  %899 = vmatpush.msra.mxu0 0.0
  %900 = vmatpush.msra.mxu0 0.0
  %901 = vmatpush.msra.mxu0 0.0
  %902 = vmatpush.msra.mxu0 0.0
  %903 = vmatpush.msra.mxu0 0.0
  %904 = vmatpush.msra.mxu0 0.0
  %905 = vmatpush.msra.mxu0 0.0
  %906 = vmatpush.msra.mxu0 %v852
  %907 = vmatpush.msra.mxu0 %v851
  %908 = vmatmul.f32.gmra.mxu0 %v854
  %v909 = vpop.f32.mrf.mxu0
  %v910 = vadd.f32 0.0, %v909
  %911 = vmatmul.f32.gmra.mxu0 %v857
  %v912 = vpop.f32.mrf.mxu0
  %v913 = vadd.f32 0.0, %v912
  %914 = vmatmul.f32.gmra.mxu0 %v860
  %v915 = vpop.f32.mrf.mxu0
  %v916 = vadd.f32 0.0, %v915
  %917 = vmatmul.f32.gmra.mxu0 %v863
  %v918 = vpop.f32.mrf.mxu0
  %v919 = vadd.f32 0.0, %v918
  %920 = vmatmul.f32.gmra.mxu0 %v866
  %v921 = vpop.f32.mrf.mxu0
  %v922 = vadd.f32 0.0, %v921
  %923 = vmatmul.f32.gmra.mxu0 %v869
  %v924 = vpop.f32.mrf.mxu0
  %v925 = vadd.f32 0.0, %v924
  %926 = vmatmul.f32.gmra.mxu0 %v872
  %v927 = vpop.f32.mrf.mxu0
  %v928 = vadd.f32 0.0, %v927
  %929 = vmatmul.f32.gmra.mxu0 %v875
  %v930 = vpop.f32.mrf.mxu0
  %v931 = vadd.f32 0.0, %v930
  %932 = vmatmul.f32.gmra.mxu0 %v878
  %v933 = vpop.f32.mrf.mxu0
  %v934 = vadd.f32 0.0, %v933
  %935 = vmatmul.f32.gmra.mxu0 %v881
  %v936 = vpop.f32.mrf.mxu0
  %v937 = vadd.f32 0.0, %v936
  %938 = vmatmul.f32.gmra.mxu0 %v884
  %v939 = vpop.f32.mrf.mxu0
  %v940 = vadd.f32 0.0, %v939
  %941 = vmatmul.f32.gmra.mxu0 %v887
  %v942 = vpop.f32.mrf.mxu0
  %v943 = vadd.f32 0.0, %v942
  %944 = vmatmul.f32.gmra.mxu0 %v890
  %v945 = vpop.f32.mrf.mxu0
  %v946 = vadd.f32 0.0, %v945
  %947 = vdwg.mxu0
  %v948 = vadd.f32 %v715, %v910
  %v949 = vadd.f32 %v716, %v913
  %v950 = vadd.f32 %v717, %v916
  %v951 = vadd.f32 %v718, %v919
  %v952 = vadd.f32 %v719, %v922
  %v953 = vadd.f32 %v720, %v925
  %v954 = vadd.f32 %v721, %v928
  %v955 = vadd.f32 %v722, %v931
  %v956 = vadd.f32 %v723, %v934
  %v957 = vadd.f32 %v724, %v937
  %v958 = vadd.f32 %v725, %v940
  %v959 = vadd.f32 %v726, %v943
  %v960 = vadd.f32 %v727, %v946
  %s961 = scalar_lea.vmem %s0, 416
  %v962 = vld [vmem:[%s961] sm:$0xff]
  %v963 = vld [vmem:[%s961 + $0x8] sm:$0xff]
  %v964 = vld [vmem:[%s961 + $0x10] sm:$0xff]
  %v965 = vld [vmem:[%s961 + $0x18] sm:$0xff]
  %v966 = vld [vmem:[%s961 + $0x20] sm:$0xff]
  %v967 = vld [vmem:[%s961 + $0x28] sm:$0xff]
  %v968 = vld [vmem:[%s961 + $0x30] sm:$0xff]
  %v969 = vld [vmem:[%s961 + $0x38] sm:$0xff]
  %v970 = vld [vmem:[%s961 + $0x40] sm:$0xff]
  %v971 = vld [vmem:[%s961 + $0x48] sm:$0xff]
  %v972 = vld [vmem:[%s961 + $0x50] sm:$0xff]
  %v973 = vld [vmem:[%s961 + $0x58] sm:$0xff]
  %v974 = vld [vmem:[%s961 + $0x60] sm:$0xff]
  %v976 = vsel %vm64, %v962, 0
  %v979 = vsel %vm64, %v963, 0
  %v982 = vsel %vm64, %v964, 0
  %v985 = vsel %vm64, %v965, 0
  %v988 = vsel %vm64, %v966, 0
  %v991 = vsel %vm64, %v967, 0
  %v994 = vsel %vm64, %v968, 0
  %v997 = vsel %vm64, %v969, 0
  %v1000 = vsel %vm64, %v970, 0
  %v1003 = vsel %vm64, %v971, 0
  %v1006 = vsel %vm64, %v972, 0
  %v1009 = vsel %vm64, %v973, 0
  %v1012 = vsel %vm64, %v974, 0
  %1014 = vmatpush.msra.mxu0 0.0
  %1015 = vmatpush.msra.mxu0 0.0
  %1016 = vmatpush.msra.mxu0 0.0
  %1017 = vmatpush.msra.mxu0 %v106
  %1018 = vmatpush.msra.mxu0 %v45
  %1019 = vmatpush.msra.mxu0 %v44
  %1020 = vmatpush.msra.mxu0 %v43
  %1021 = vmatpush.msra.mxu0 %v42
  %1022 = vmatpush.msra.mxu0 %v41
  %1023 = vmatpush.msra.mxu0 %v40
  %1024 = vmatpush.msra.mxu0 %v39
  %1025 = vmatpush.msra.mxu0 %v38
  %1026 = vmatpush.msra.mxu0 %v37
  %1027 = vmatpush.msra.mxu0 %v36
  %1028 = vmatpush.msra.mxu0 %v35
  %1029 = vmatpush.msra.mxu0 %v34
  %1030 = vmatmul.f32.gmra.mxu0 %v976
  %v1031 = vpop.f32.mrf.mxu0
  %v1032 = vadd.f32 %v62, %v1031
  %1033 = vmatmul.f32.gmra.mxu0 %v979
  %v1034 = vpop.f32.mrf.mxu0
  %v1035 = vadd.f32 %v62, %v1034
  %1036 = vmatmul.f32.gmra.mxu0 %v982
  %v1037 = vpop.f32.mrf.mxu0
  %v1038 = vadd.f32 %v62, %v1037
  %1039 = vmatmul.f32.gmra.mxu0 %v985
  %v1040 = vpop.f32.mrf.mxu0
  %v1041 = vadd.f32 %v62, %v1040
  %1042 = vmatmul.f32.gmra.mxu0 %v988
  %v1043 = vpop.f32.mrf.mxu0
  %v1044 = vadd.f32 %v62, %v1043
  %1045 = vmatmul.f32.gmra.mxu0 %v991
  %v1046 = vpop.f32.mrf.mxu0
  %v1047 = vadd.f32 %v62, %v1046
  %1048 = vmatmul.f32.gmra.mxu0 %v994
  %v1049 = vpop.f32.mrf.mxu0
  %v1050 = vadd.f32 %v62, %v1049
  %1051 = vmatmul.f32.gmra.mxu0 %v997
  %v1052 = vpop.f32.mrf.mxu0
  %v1053 = vadd.f32 %v62, %v1052
  %1054 = vmatmul.f32.gmra.mxu0 %v1000
  %v1055 = vpop.f32.mrf.mxu0
  %v1056 = vadd.f32 %v62, %v1055
  %1057 = vmatmul.f32.gmra.mxu0 %v1003
  %v1058 = vpop.f32.mrf.mxu0
  %v1059 = vadd.f32 %v62, %v1058
  %1060 = vmatmul.f32.gmra.mxu0 %v1006
  %v1061 = vpop.f32.mrf.mxu0
  %v1062 = vadd.f32 %v62, %v1061
  %1063 = vmatmul.f32.gmra.mxu0 %v1009
  %v1064 = vpop.f32.mrf.mxu0
  %v1065 = vadd.f32 %v62, %v1064
  %1066 = vmatmul.f32.gmra.mxu0 %v1012
  %v1067 = vpop.f32.mrf.mxu0
  %v1068 = vadd.f32 %v62, %v1067
  %1069 = vdwg.mxu0
  %v1070 = vmax.f32 %v1032, 0.0
  %v1071 = vmax.f32 %v1035, 0.0
  %v1072 = vmax.f32 %v1038, 0.0
  %v1073 = vmax.f32 %v1041, 0.0
  %v1074 = vmax.f32 %v1044, 0.0
  %v1075 = vmax.f32 %v1047, 0.0
  %v1076 = vmax.f32 %v1050, 0.0
  %v1077 = vmax.f32 %v1053, 0.0
  %v1078 = vmax.f32 %v1056, 0.0
  %v1079 = vmax.f32 %v1059, 0.0
  %v1080 = vmax.f32 %v1062, 0.0
  %v1081 = vmax.f32 %v1065, 0.0
  %v1082 = vmax.f32 %v1068, 0.0
  %s1083 = scalar_lea.vmem %s3, 64
  %v1084 = vld [vmem:[%s1083] sm:$0xff]
  %v1085 = vld [vmem:[%s1083 + $0x8] sm:$0xff]
  %v1087 = vsel %vm304, %v1070, 0
  %v1090 = vsel %vm304, %v1071, 0
  %v1093 = vsel %vm304, %v1072, 0
  %v1096 = vsel %vm304, %v1073, 0
  %v1099 = vsel %vm304, %v1074, 0
  %v1102 = vsel %vm304, %v1075, 0
  %v1105 = vsel %vm304, %v1076, 0
  %v1108 = vsel %vm304, %v1077, 0
  %v1111 = vsel %vm304, %v1078, 0
  %v1114 = vsel %vm304, %v1079, 0
  %v1117 = vsel %vm304, %v1080, 0
  %v1120 = vsel %vm304, %v1081, 0
  %v1123 = vsel %vm304, %v1082, 0
  %1125 = vmatpush.msra.mxu0 0.0
  %1126 = vmatpush.msra.mxu0 0.0
  %1127 = vmatpush.msra.mxu0 0.0
  %1128 = vmatpush.msra.mxu0 0.0
  %1129 = vmatpush.msra.mxu0 0.0
  %1130 = vmatpush.msra.mxu0 0.0
  %1131 = vmatpush.msra.mxu0 0.0
  %1132 = vmatpush.msra.mxu0 0.0
  %1133 = vmatpush.msra.mxu0 0.0
  %1134 = vmatpush.msra.mxu0 0.0
  %1135 = vmatpush.msra.mxu0 0.0
  %1136 = vmatpush.msra.mxu0 0.0
  %1137 = vmatpush.msra.mxu0 0.0
  %1138 = vmatpush.msra.mxu0 0.0
  %1139 = vmatpush.msra.mxu0 %v1085
  %1140 = vmatpush.msra.mxu0 %v1084
  %1141 = vmatmul.f32.gmra.mxu0 %v1087
  %v1142 = vpop.f32.mrf.mxu0
  %v1143 = vadd.f32 0.0, %v1142
  %1144 = vmatmul.f32.gmra.mxu0 %v1090
  %v1145 = vpop.f32.mrf.mxu0
  %v1146 = vadd.f32 0.0, %v1145
  %1147 = vmatmul.f32.gmra.mxu0 %v1093
  %v1148 = vpop.f32.mrf.mxu0
  %v1149 = vadd.f32 0.0, %v1148
  %1150 = vmatmul.f32.gmra.mxu0 %v1096
  %v1151 = vpop.f32.mrf.mxu0
  %v1152 = vadd.f32 0.0, %v1151
  %1153 = vmatmul.f32.gmra.mxu0 %v1099
  %v1154 = vpop.f32.mrf.mxu0
  %v1155 = vadd.f32 0.0, %v1154
  %1156 = vmatmul.f32.gmra.mxu0 %v1102
  %v1157 = vpop.f32.mrf.mxu0
  %v1158 = vadd.f32 0.0, %v1157
  %1159 = vmatmul.f32.gmra.mxu0 %v1105
  %v1160 = vpop.f32.mrf.mxu0
  %v1161 = vadd.f32 0.0, %v1160
  %1162 = vmatmul.f32.gmra.mxu0 %v1108
  %v1163 = vpop.f32.mrf.mxu0
  %v1164 = vadd.f32 0.0, %v1163
  %1165 = vmatmul.f32.gmra.mxu0 %v1111
  %v1166 = vpop.f32.mrf.mxu0
  %v1167 = vadd.f32 0.0, %v1166
  %1168 = vmatmul.f32.gmra.mxu0 %v1114
  %v1169 = vpop.f32.mrf.mxu0
  %v1170 = vadd.f32 0.0, %v1169
  %1171 = vmatmul.f32.gmra.mxu0 %v1117
  %v1172 = vpop.f32.mrf.mxu0
  %v1173 = vadd.f32 0.0, %v1172
  %1174 = vmatmul.f32.gmra.mxu0 %v1120
  %v1175 = vpop.f32.mrf.mxu0
  %v1176 = vadd.f32 0.0, %v1175
  %1177 = vmatmul.f32.gmra.mxu0 %v1123
  %v1178 = vpop.f32.mrf.mxu0
  %v1179 = vadd.f32 0.0, %v1178
  %1180 = vdwg.mxu0
  %v1181 = vadd.f32 %v948, %v1143
  %v1182 = vadd.f32 %v949, %v1146
  %v1183 = vadd.f32 %v950, %v1149
  %v1184 = vadd.f32 %v951, %v1152
  %v1185 = vadd.f32 %v952, %v1155
  %v1186 = vadd.f32 %v953, %v1158
  %v1187 = vadd.f32 %v954, %v1161
  %v1188 = vadd.f32 %v955, %v1164
  %v1189 = vadd.f32 %v956, %v1167
  %v1190 = vadd.f32 %v957, %v1170
  %v1191 = vadd.f32 %v958, %v1173
  %v1192 = vadd.f32 %v959, %v1176
  %v1193 = vadd.f32 %v960, %v1179
  %s1194 = scalar_lea.vmem %s0, 520
  %v1195 = vld [vmem:[%s1194] sm:$0xff]
  %v1196 = vld [vmem:[%s1194 + $0x8] sm:$0xff]
  %v1197 = vld [vmem:[%s1194 + $0x10] sm:$0xff]
  %v1198 = vld [vmem:[%s1194 + $0x18] sm:$0xff]
  %v1199 = vld [vmem:[%s1194 + $0x20] sm:$0xff]
  %v1200 = vld [vmem:[%s1194 + $0x28] sm:$0xff]
  %v1201 = vld [vmem:[%s1194 + $0x30] sm:$0xff]
  %v1202 = vld [vmem:[%s1194 + $0x38] sm:$0xff]
  %v1203 = vld [vmem:[%s1194 + $0x40] sm:$0xff]
  %v1204 = vld [vmem:[%s1194 + $0x48] sm:$0xff]
  %v1205 = vld [vmem:[%s1194 + $0x50] sm:$0xff]
  %v1206 = vld [vmem:[%s1194 + $0x58] sm:$0xff]
  %v1207 = vld [vmem:[%s1194 + $0x60] sm:$0xff]
  %v1209 = vsel %vm64, %v1195, 0
  %v1212 = vsel %vm64, %v1196, 0
  %v1215 = vsel %vm64, %v1197, 0
  %v1218 = vsel %vm64, %v1198, 0
  %v1221 = vsel %vm64, %v1199, 0
  %v1224 = vsel %vm64, %v1200, 0
  %v1227 = vsel %vm64, %v1201, 0
  %v1230 = vsel %vm64, %v1202, 0
  %v1233 = vsel %vm64, %v1203, 0
  %v1236 = vsel %vm64, %v1204, 0
  %v1239 = vsel %vm64, %v1205, 0
  %v1242 = vsel %vm64, %v1206, 0
  %v1245 = vsel %vm64, %v1207, 0
  %1247 = vmatpush.msra.mxu0 0.0
  %1248 = vmatpush.msra.mxu0 0.0
  %1249 = vmatpush.msra.mxu0 0.0
  %1250 = vmatpush.msra.mxu0 %v106
  %1251 = vmatpush.msra.mxu0 %v45
  %1252 = vmatpush.msra.mxu0 %v44
  %1253 = vmatpush.msra.mxu0 %v43
  %1254 = vmatpush.msra.mxu0 %v42
  %1255 = vmatpush.msra.mxu0 %v41
  %1256 = vmatpush.msra.mxu0 %v40
  %1257 = vmatpush.msra.mxu0 %v39
  %1258 = vmatpush.msra.mxu0 %v38
  %1259 = vmatpush.msra.mxu0 %v37
  %1260 = vmatpush.msra.mxu0 %v36
  %1261 = vmatpush.msra.mxu0 %v35
  %1262 = vmatpush.msra.mxu0 %v34
  %1263 = vmatmul.f32.gmra.mxu0 %v1209
  %v1264 = vpop.f32.mrf.mxu0
  %v1265 = vadd.f32 %v62, %v1264
  %1266 = vmatmul.f32.gmra.mxu0 %v1212
  %v1267 = vpop.f32.mrf.mxu0
  %v1268 = vadd.f32 %v62, %v1267
  %1269 = vmatmul.f32.gmra.mxu0 %v1215
  %v1270 = vpop.f32.mrf.mxu0
  %v1271 = vadd.f32 %v62, %v1270
  %1272 = vmatmul.f32.gmra.mxu0 %v1218
  %v1273 = vpop.f32.mrf.mxu0
  %v1274 = vadd.f32 %v62, %v1273
  %1275 = vmatmul.f32.gmra.mxu0 %v1221
  %v1276 = vpop.f32.mrf.mxu0
  %v1277 = vadd.f32 %v62, %v1276
  %1278 = vmatmul.f32.gmra.mxu0 %v1224
  %v1279 = vpop.f32.mrf.mxu0
  %v1280 = vadd.f32 %v62, %v1279
  %1281 = vmatmul.f32.gmra.mxu0 %v1227
  %v1282 = vpop.f32.mrf.mxu0
  %v1283 = vadd.f32 %v62, %v1282
  %1284 = vmatmul.f32.gmra.mxu0 %v1230
  %v1285 = vpop.f32.mrf.mxu0
  %v1286 = vadd.f32 %v62, %v1285
  %1287 = vmatmul.f32.gmra.mxu0 %v1233
  %v1288 = vpop.f32.mrf.mxu0
  %v1289 = vadd.f32 %v62, %v1288
  %1290 = vmatmul.f32.gmra.mxu0 %v1236
  %v1291 = vpop.f32.mrf.mxu0
  %v1292 = vadd.f32 %v62, %v1291
  %1293 = vmatmul.f32.gmra.mxu0 %v1239
  %v1294 = vpop.f32.mrf.mxu0
  %v1295 = vadd.f32 %v62, %v1294
  %1296 = vmatmul.f32.gmra.mxu0 %v1242
  %v1297 = vpop.f32.mrf.mxu0
  %v1298 = vadd.f32 %v62, %v1297
  %1299 = vmatmul.f32.gmra.mxu0 %v1245
  %v1300 = vpop.f32.mrf.mxu0
  %v1301 = vadd.f32 %v62, %v1300
  %1302 = vdwg.mxu0
  %v1303 = vmax.f32 %v1265, 0.0
  %v1304 = vmax.f32 %v1268, 0.0
  %v1305 = vmax.f32 %v1271, 0.0
  %v1306 = vmax.f32 %v1274, 0.0
  %v1307 = vmax.f32 %v1277, 0.0
  %v1308 = vmax.f32 %v1280, 0.0
  %v1309 = vmax.f32 %v1283, 0.0
  %v1310 = vmax.f32 %v1286, 0.0
  %v1311 = vmax.f32 %v1289, 0.0
  %v1312 = vmax.f32 %v1292, 0.0
  %v1313 = vmax.f32 %v1295, 0.0
  %v1314 = vmax.f32 %v1298, 0.0
  %v1315 = vmax.f32 %v1301, 0.0
  %s1316 = scalar_lea.vmem %s3, 80
  %v1317 = vld [vmem:[%s1316] sm:$0xff]
  %v1318 = vld [vmem:[%s1316 + $0x8] sm:$0xff]
  %v1320 = vsel %vm304, %v1303, 0
  %v1323 = vsel %vm304, %v1304, 0
  %v1326 = vsel %vm304, %v1305, 0
  %v1329 = vsel %vm304, %v1306, 0
  %v1332 = vsel %vm304, %v1307, 0
  %v1335 = vsel %vm304, %v1308, 0
  %v1338 = vsel %vm304, %v1309, 0
  %v1341 = vsel %vm304, %v1310, 0
  %v1344 = vsel %vm304, %v1311, 0
  %v1347 = vsel %vm304, %v1312, 0
  %v1350 = vsel %vm304, %v1313, 0
  %v1353 = vsel %vm304, %v1314, 0
  %v1356 = vsel %vm304, %v1315, 0
  %1358 = vmatpush.msra.mxu0 0.0
  %1359 = vmatpush.msra.mxu0 0.0
  %1360 = vmatpush.msra.mxu0 0.0
  %1361 = vmatpush.msra.mxu0 0.0
  %1362 = vmatpush.msra.mxu0 0.0
  %1363 = vmatpush.msra.mxu0 0.0
  %1364 = vmatpush.msra.mxu0 0.0
  %1365 = vmatpush.msra.mxu0 0.0
  %1366 = vmatpush.msra.mxu0 0.0
  %1367 = vmatpush.msra.mxu0 0.0
  %1368 = vmatpush.msra.mxu0 0.0
  %1369 = vmatpush.msra.mxu0 0.0
  %1370 = vmatpush.msra.mxu0 0.0
  %1371 = vmatpush.msra.mxu0 0.0
  %1372 = vmatpush.msra.mxu0 %v1318
  %1373 = vmatpush.msra.mxu0 %v1317
  %1374 = vmatmul.f32.gmra.mxu0 %v1320
  %v1375 = vpop.f32.mrf.mxu0
  %v1376 = vadd.f32 0.0, %v1375
  %1377 = vmatmul.f32.gmra.mxu0 %v1323
  %v1378 = vpop.f32.mrf.mxu0
  %v1379 = vadd.f32 0.0, %v1378
  %1380 = vmatmul.f32.gmra.mxu0 %v1326
  %v1381 = vpop.f32.mrf.mxu0
  %v1382 = vadd.f32 0.0, %v1381
  %1383 = vmatmul.f32.gmra.mxu0 %v1329
  %v1384 = vpop.f32.mrf.mxu0
  %v1385 = vadd.f32 0.0, %v1384
  %1386 = vmatmul.f32.gmra.mxu0 %v1332
  %v1387 = vpop.f32.mrf.mxu0
  %v1388 = vadd.f32 0.0, %v1387
  %1389 = vmatmul.f32.gmra.mxu0 %v1335
  %v1390 = vpop.f32.mrf.mxu0
  %v1391 = vadd.f32 0.0, %v1390
  %1392 = vmatmul.f32.gmra.mxu0 %v1338
  %v1393 = vpop.f32.mrf.mxu0
  %v1394 = vadd.f32 0.0, %v1393
  %1395 = vmatmul.f32.gmra.mxu0 %v1341
  %v1396 = vpop.f32.mrf.mxu0
  %v1397 = vadd.f32 0.0, %v1396
  %1398 = vmatmul.f32.gmra.mxu0 %v1344
  %v1399 = vpop.f32.mrf.mxu0
  %v1400 = vadd.f32 0.0, %v1399
  %1401 = vmatmul.f32.gmra.mxu0 %v1347
  %v1402 = vpop.f32.mrf.mxu0
  %v1403 = vadd.f32 0.0, %v1402
  %1404 = vmatmul.f32.gmra.mxu0 %v1350
  %v1405 = vpop.f32.mrf.mxu0
  %v1406 = vadd.f32 0.0, %v1405
  %1407 = vmatmul.f32.gmra.mxu0 %v1353
  %v1408 = vpop.f32.mrf.mxu0
  %v1409 = vadd.f32 0.0, %v1408
  %1410 = vmatmul.f32.gmra.mxu0 %v1356
  %v1411 = vpop.f32.mrf.mxu0
  %v1412 = vadd.f32 0.0, %v1411
  %1413 = vdwg.mxu0
  %v1414 = vadd.f32 %v1181, %v1376
  %v1415 = vadd.f32 %v1182, %v1379
  %v1416 = vadd.f32 %v1183, %v1382
  %v1417 = vadd.f32 %v1184, %v1385
  %v1418 = vadd.f32 %v1185, %v1388
  %v1419 = vadd.f32 %v1186, %v1391
  %v1420 = vadd.f32 %v1187, %v1394
  %v1421 = vadd.f32 %v1188, %v1397
  %v1422 = vadd.f32 %v1189, %v1400
  %v1423 = vadd.f32 %v1190, %v1403
  %v1424 = vadd.f32 %v1191, %v1406
  %v1425 = vadd.f32 %v1192, %v1409
  %v1426 = vadd.f32 %v1193, %v1412
  %s1427 = scalar_lea.vmem %s0, 624
  %v1428 = vld [vmem:[%s1427] sm:$0xff]
  %v1429 = vld [vmem:[%s1427 + $0x8] sm:$0xff]
  %v1430 = vld [vmem:[%s1427 + $0x10] sm:$0xff]
  %v1431 = vld [vmem:[%s1427 + $0x18] sm:$0xff]
  %v1432 = vld [vmem:[%s1427 + $0x20] sm:$0xff]
  %v1433 = vld [vmem:[%s1427 + $0x28] sm:$0xff]
  %v1434 = vld [vmem:[%s1427 + $0x30] sm:$0xff]
  %v1435 = vld [vmem:[%s1427 + $0x38] sm:$0xff]
  %v1436 = vld [vmem:[%s1427 + $0x40] sm:$0xff]
  %v1437 = vld [vmem:[%s1427 + $0x48] sm:$0xff]
  %v1438 = vld [vmem:[%s1427 + $0x50] sm:$0xff]
  %v1439 = vld [vmem:[%s1427 + $0x58] sm:$0xff]
  %v1440 = vld [vmem:[%s1427 + $0x60] sm:$0xff]
  %v1442 = vsel %vm64, %v1428, 0
  %v1445 = vsel %vm64, %v1429, 0
  %v1448 = vsel %vm64, %v1430, 0
  %v1451 = vsel %vm64, %v1431, 0
  %v1454 = vsel %vm64, %v1432, 0
  %v1457 = vsel %vm64, %v1433, 0
  %v1460 = vsel %vm64, %v1434, 0
  %v1463 = vsel %vm64, %v1435, 0
  %v1466 = vsel %vm64, %v1436, 0
  %v1469 = vsel %vm64, %v1437, 0
  %v1472 = vsel %vm64, %v1438, 0
  %v1475 = vsel %vm64, %v1439, 0
  %v1478 = vsel %vm64, %v1440, 0
  %1480 = vmatpush.msra.mxu0 0.0
  %1481 = vmatpush.msra.mxu0 0.0
  %1482 = vmatpush.msra.mxu0 0.0
  %1483 = vmatpush.msra.mxu0 %v106
  %1484 = vmatpush.msra.mxu0 %v45
  %1485 = vmatpush.msra.mxu0 %v44
  %1486 = vmatpush.msra.mxu0 %v43
  %1487 = vmatpush.msra.mxu0 %v42
  %1488 = vmatpush.msra.mxu0 %v41
  %1489 = vmatpush.msra.mxu0 %v40
  %1490 = vmatpush.msra.mxu0 %v39
  %1491 = vmatpush.msra.mxu0 %v38
  %1492 = vmatpush.msra.mxu0 %v37
  %1493 = vmatpush.msra.mxu0 %v36
  %1494 = vmatpush.msra.mxu0 %v35
  %1495 = vmatpush.msra.mxu0 %v34
  %1496 = vmatmul.f32.gmra.mxu0 %v1442
  %v1497 = vpop.f32.mrf.mxu0
  %v1498 = vadd.f32 %v62, %v1497
  %1499 = vmatmul.f32.gmra.mxu0 %v1445
  %v1500 = vpop.f32.mrf.mxu0
  %v1501 = vadd.f32 %v62, %v1500
  %1502 = vmatmul.f32.gmra.mxu0 %v1448
  %v1503 = vpop.f32.mrf.mxu0
  %v1504 = vadd.f32 %v62, %v1503
  %1505 = vmatmul.f32.gmra.mxu0 %v1451
  %v1506 = vpop.f32.mrf.mxu0
  %v1507 = vadd.f32 %v62, %v1506
  %1508 = vmatmul.f32.gmra.mxu0 %v1454
  %v1509 = vpop.f32.mrf.mxu0
  %v1510 = vadd.f32 %v62, %v1509
  %1511 = vmatmul.f32.gmra.mxu0 %v1457
  %v1512 = vpop.f32.mrf.mxu0
  %v1513 = vadd.f32 %v62, %v1512
  %1514 = vmatmul.f32.gmra.mxu0 %v1460
  %v1515 = vpop.f32.mrf.mxu0
  %v1516 = vadd.f32 %v62, %v1515
  %1517 = vmatmul.f32.gmra.mxu0 %v1463
  %v1518 = vpop.f32.mrf.mxu0
  %v1519 = vadd.f32 %v62, %v1518
  %1520 = vmatmul.f32.gmra.mxu0 %v1466
  %v1521 = vpop.f32.mrf.mxu0
  %v1522 = vadd.f32 %v62, %v1521
  %1523 = vmatmul.f32.gmra.mxu0 %v1469
  %v1524 = vpop.f32.mrf.mxu0
  %v1525 = vadd.f32 %v62, %v1524
  %1526 = vmatmul.f32.gmra.mxu0 %v1472
  %v1527 = vpop.f32.mrf.mxu0
  %v1528 = vadd.f32 %v62, %v1527
  %1529 = vmatmul.f32.gmra.mxu0 %v1475
  %v1530 = vpop.f32.mrf.mxu0
  %v1531 = vadd.f32 %v62, %v1530
  %1532 = vmatmul.f32.gmra.mxu0 %v1478
  %v1533 = vpop.f32.mrf.mxu0
  %v1534 = vadd.f32 %v62, %v1533
  %1535 = vdwg.mxu0
  %v1536 = vmax.f32 %v1498, 0.0
  %v1537 = vmax.f32 %v1501, 0.0
  %v1538 = vmax.f32 %v1504, 0.0
  %v1539 = vmax.f32 %v1507, 0.0
  %v1540 = vmax.f32 %v1510, 0.0
  %v1541 = vmax.f32 %v1513, 0.0
  %v1542 = vmax.f32 %v1516, 0.0
  %v1543 = vmax.f32 %v1519, 0.0
  %v1544 = vmax.f32 %v1522, 0.0
  %v1545 = vmax.f32 %v1525, 0.0
  %v1546 = vmax.f32 %v1528, 0.0
  %v1547 = vmax.f32 %v1531, 0.0
  %v1548 = vmax.f32 %v1534, 0.0
  %s1549 = scalar_lea.vmem %s3, 96
  %v1550 = vld [vmem:[%s1549] sm:$0xff]
  %v1551 = vld [vmem:[%s1549 + $0x8] sm:$0xff]
  %v1553 = vsel %vm304, %v1536, 0
  %v1556 = vsel %vm304, %v1537, 0
  %v1559 = vsel %vm304, %v1538, 0
  %v1562 = vsel %vm304, %v1539, 0
  %v1565 = vsel %vm304, %v1540, 0
  %v1568 = vsel %vm304, %v1541, 0
  %v1571 = vsel %vm304, %v1542, 0
  %v1574 = vsel %vm304, %v1543, 0
  %v1577 = vsel %vm304, %v1544, 0
  %v1580 = vsel %vm304, %v1545, 0
  %v1583 = vsel %vm304, %v1546, 0
  %v1586 = vsel %vm304, %v1547, 0
  %v1589 = vsel %vm304, %v1548, 0
  %1591 = vmatpush.msra.mxu0 0.0
  %1592 = vmatpush.msra.mxu0 0.0
  %1593 = vmatpush.msra.mxu0 0.0
  %1594 = vmatpush.msra.mxu0 0.0
  %1595 = vmatpush.msra.mxu0 0.0
  %1596 = vmatpush.msra.mxu0 0.0
  %1597 = vmatpush.msra.mxu0 0.0
  %1598 = vmatpush.msra.mxu0 0.0
  %1599 = vmatpush.msra.mxu0 0.0
  %1600 = vmatpush.msra.mxu0 0.0
  %1601 = vmatpush.msra.mxu0 0.0
  %1602 = vmatpush.msra.mxu0 0.0
  %1603 = vmatpush.msra.mxu0 0.0
  %1604 = vmatpush.msra.mxu0 0.0
  %1605 = vmatpush.msra.mxu0 %v1551
  %1606 = vmatpush.msra.mxu0 %v1550
  %1607 = vmatmul.f32.gmra.mxu0 %v1553
  %v1608 = vpop.f32.mrf.mxu0
  %v1609 = vadd.f32 0.0, %v1608
  %1610 = vmatmul.f32.gmra.mxu0 %v1556
  %v1611 = vpop.f32.mrf.mxu0
  %v1612 = vadd.f32 0.0, %v1611
  %1613 = vmatmul.f32.gmra.mxu0 %v1559
  %v1614 = vpop.f32.mrf.mxu0
  %v1615 = vadd.f32 0.0, %v1614
  %1616 = vmatmul.f32.gmra.mxu0 %v1562
  %v1617 = vpop.f32.mrf.mxu0
  %v1618 = vadd.f32 0.0, %v1617
  %1619 = vmatmul.f32.gmra.mxu0 %v1565
  %v1620 = vpop.f32.mrf.mxu0
  %v1621 = vadd.f32 0.0, %v1620
  %1622 = vmatmul.f32.gmra.mxu0 %v1568
  %v1623 = vpop.f32.mrf.mxu0
  %v1624 = vadd.f32 0.0, %v1623
  %1625 = vmatmul.f32.gmra.mxu0 %v1571
  %v1626 = vpop.f32.mrf.mxu0
  %v1627 = vadd.f32 0.0, %v1626
  %1628 = vmatmul.f32.gmra.mxu0 %v1574
  %v1629 = vpop.f32.mrf.mxu0
  %v1630 = vadd.f32 0.0, %v1629
  %1631 = vmatmul.f32.gmra.mxu0 %v1577
  %v1632 = vpop.f32.mrf.mxu0
  %v1633 = vadd.f32 0.0, %v1632
  %1634 = vmatmul.f32.gmra.mxu0 %v1580
  %v1635 = vpop.f32.mrf.mxu0
  %v1636 = vadd.f32 0.0, %v1635
  %1637 = vmatmul.f32.gmra.mxu0 %v1583
  %v1638 = vpop.f32.mrf.mxu0
  %v1639 = vadd.f32 0.0, %v1638
  %1640 = vmatmul.f32.gmra.mxu0 %v1586
  %v1641 = vpop.f32.mrf.mxu0
  %v1642 = vadd.f32 0.0, %v1641
  %1643 = vmatmul.f32.gmra.mxu0 %v1589
  %v1644 = vpop.f32.mrf.mxu0
  %v1645 = vadd.f32 0.0, %v1644
  %1646 = vdwg.mxu0
  %v1647 = vadd.f32 %v1414, %v1609
  %v1648 = vadd.f32 %v1415, %v1612
  %v1649 = vadd.f32 %v1416, %v1615
  %v1650 = vadd.f32 %v1417, %v1618
  %v1651 = vadd.f32 %v1418, %v1621
  %v1652 = vadd.f32 %v1419, %v1624
  %v1653 = vadd.f32 %v1420, %v1627
  %v1654 = vadd.f32 %v1421, %v1630
  %v1655 = vadd.f32 %v1422, %v1633
  %v1656 = vadd.f32 %v1423, %v1636
  %v1657 = vadd.f32 %v1424, %v1639
  %v1658 = vadd.f32 %v1425, %v1642
  %v1659 = vadd.f32 %v1426, %v1645
  %s1660 = scalar_lea.vmem %s0, 728
  %v1661 = vld [vmem:[%s1660] sm:$0xff]
  %v1662 = vld [vmem:[%s1660 + $0x8] sm:$0xff]
  %v1663 = vld [vmem:[%s1660 + $0x10] sm:$0xff]
  %v1664 = vld [vmem:[%s1660 + $0x18] sm:$0xff]
  %v1665 = vld [vmem:[%s1660 + $0x20] sm:$0xff]
  %v1666 = vld [vmem:[%s1660 + $0x28] sm:$0xff]
  %v1667 = vld [vmem:[%s1660 + $0x30] sm:$0xff]
  %v1668 = vld [vmem:[%s1660 + $0x38] sm:$0xff]
  %v1669 = vld [vmem:[%s1660 + $0x40] sm:$0xff]
  %v1670 = vld [vmem:[%s1660 + $0x48] sm:$0xff]
  %v1671 = vld [vmem:[%s1660 + $0x50] sm:$0xff]
  %v1672 = vld [vmem:[%s1660 + $0x58] sm:$0xff]
  %v1673 = vld [vmem:[%s1660 + $0x60] sm:$0xff]
  %v1675 = vsel %vm64, %v1661, 0
  %v1678 = vsel %vm64, %v1662, 0
  %v1681 = vsel %vm64, %v1663, 0
  %v1684 = vsel %vm64, %v1664, 0
  %v1687 = vsel %vm64, %v1665, 0
  %v1690 = vsel %vm64, %v1666, 0
  %v1693 = vsel %vm64, %v1667, 0
  %v1696 = vsel %vm64, %v1668, 0
  %v1699 = vsel %vm64, %v1669, 0
  %v1702 = vsel %vm64, %v1670, 0
  %v1705 = vsel %vm64, %v1671, 0
  %v1708 = vsel %vm64, %v1672, 0
  %v1711 = vsel %vm64, %v1673, 0
  %1713 = vmatpush.msra.mxu0 0.0
  %1714 = vmatpush.msra.mxu0 0.0
  %1715 = vmatpush.msra.mxu0 0.0
  %1716 = vmatpush.msra.mxu0 %v106
  %1717 = vmatpush.msra.mxu0 %v45
  %1718 = vmatpush.msra.mxu0 %v44
  %1719 = vmatpush.msra.mxu0 %v43
  %1720 = vmatpush.msra.mxu0 %v42
  %1721 = vmatpush.msra.mxu0 %v41
  %1722 = vmatpush.msra.mxu0 %v40
  %1723 = vmatpush.msra.mxu0 %v39
  %1724 = vmatpush.msra.mxu0 %v38
  %1725 = vmatpush.msra.mxu0 %v37
  %1726 = vmatpush.msra.mxu0 %v36
  %1727 = vmatpush.msra.mxu0 %v35
  %1728 = vmatpush.msra.mxu0 %v34
  %1729 = vmatmul.f32.gmra.mxu0 %v1675
  %v1730 = vpop.f32.mrf.mxu0
  %v1731 = vadd.f32 %v62, %v1730
  %1732 = vmatmul.f32.gmra.mxu0 %v1678
  %v1733 = vpop.f32.mrf.mxu0
  %v1734 = vadd.f32 %v62, %v1733
  %1735 = vmatmul.f32.gmra.mxu0 %v1681
  %v1736 = vpop.f32.mrf.mxu0
  %v1737 = vadd.f32 %v62, %v1736
  %1738 = vmatmul.f32.gmra.mxu0 %v1684
  %v1739 = vpop.f32.mrf.mxu0
  %v1740 = vadd.f32 %v62, %v1739
  %1741 = vmatmul.f32.gmra.mxu0 %v1687
  %v1742 = vpop.f32.mrf.mxu0
  %v1743 = vadd.f32 %v62, %v1742
  %1744 = vmatmul.f32.gmra.mxu0 %v1690
  %v1745 = vpop.f32.mrf.mxu0
  %v1746 = vadd.f32 %v62, %v1745
  %1747 = vmatmul.f32.gmra.mxu0 %v1693
  %v1748 = vpop.f32.mrf.mxu0
  %v1749 = vadd.f32 %v62, %v1748
  %1750 = vmatmul.f32.gmra.mxu0 %v1696
  %v1751 = vpop.f32.mrf.mxu0
  %v1752 = vadd.f32 %v62, %v1751
  %1753 = vmatmul.f32.gmra.mxu0 %v1699
  %v1754 = vpop.f32.mrf.mxu0
  %v1755 = vadd.f32 %v62, %v1754
  %1756 = vmatmul.f32.gmra.mxu0 %v1702
  %v1757 = vpop.f32.mrf.mxu0
  %v1758 = vadd.f32 %v62, %v1757
  %1759 = vmatmul.f32.gmra.mxu0 %v1705
  %v1760 = vpop.f32.mrf.mxu0
  %v1761 = vadd.f32 %v62, %v1760
  %1762 = vmatmul.f32.gmra.mxu0 %v1708
  %v1763 = vpop.f32.mrf.mxu0
  %v1764 = vadd.f32 %v62, %v1763
  %1765 = vmatmul.f32.gmra.mxu0 %v1711
  %v1766 = vpop.f32.mrf.mxu0
  %v1767 = vadd.f32 %v62, %v1766
  %1768 = vdwg.mxu0
  %v1769 = vmax.f32 %v1731, 0.0
  %v1770 = vmax.f32 %v1734, 0.0
  %v1771 = vmax.f32 %v1737, 0.0
  %v1772 = vmax.f32 %v1740, 0.0
  %v1773 = vmax.f32 %v1743, 0.0
  %v1774 = vmax.f32 %v1746, 0.0
  %v1775 = vmax.f32 %v1749, 0.0
  %v1776 = vmax.f32 %v1752, 0.0
  %v1777 = vmax.f32 %v1755, 0.0
  %v1778 = vmax.f32 %v1758, 0.0
  %v1779 = vmax.f32 %v1761, 0.0
  %v1780 = vmax.f32 %v1764, 0.0
  %v1781 = vmax.f32 %v1767, 0.0
  %s1782 = scalar_lea.vmem %s3, 112
  %v1783 = vld [vmem:[%s1782] sm:$0xff]
  %v1784 = vld [vmem:[%s1782 + $0x8] sm:$0xff]
  %v1786 = vsel %vm304, %v1769, 0
  %v1789 = vsel %vm304, %v1770, 0
  %v1792 = vsel %vm304, %v1771, 0
  %v1795 = vsel %vm304, %v1772, 0
  %v1798 = vsel %vm304, %v1773, 0
  %v1801 = vsel %vm304, %v1774, 0
  %v1804 = vsel %vm304, %v1775, 0
  %v1807 = vsel %vm304, %v1776, 0
  %v1810 = vsel %vm304, %v1777, 0
  %v1813 = vsel %vm304, %v1778, 0
  %v1816 = vsel %vm304, %v1779, 0
  %v1819 = vsel %vm304, %v1780, 0
  %v1822 = vsel %vm304, %v1781, 0
  %1824 = vmatpush.msra.mxu0 0.0
  %1825 = vmatpush.msra.mxu0 0.0
  %1826 = vmatpush.msra.mxu0 0.0
  %1827 = vmatpush.msra.mxu0 0.0
  %1828 = vmatpush.msra.mxu0 0.0
  %1829 = vmatpush.msra.mxu0 0.0
  %1830 = vmatpush.msra.mxu0 0.0
  %1831 = vmatpush.msra.mxu0 0.0
  %1832 = vmatpush.msra.mxu0 0.0
  %1833 = vmatpush.msra.mxu0 0.0
  %1834 = vmatpush.msra.mxu0 0.0
  %1835 = vmatpush.msra.mxu0 0.0
  %1836 = vmatpush.msra.mxu0 0.0
  %1837 = vmatpush.msra.mxu0 0.0
  %1838 = vmatpush.msra.mxu0 %v1784
  %1839 = vmatpush.msra.mxu0 %v1783
  %1840 = vmatmul.f32.gmra.mxu0 %v1786
  %v1841 = vpop.f32.mrf.mxu0
  %v1842 = vadd.f32 0.0, %v1841
  %1843 = vmatmul.f32.gmra.mxu0 %v1789
  %v1844 = vpop.f32.mrf.mxu0
  %v1845 = vadd.f32 0.0, %v1844
  %1846 = vmatmul.f32.gmra.mxu0 %v1792
  %v1847 = vpop.f32.mrf.mxu0
  %v1848 = vadd.f32 0.0, %v1847
  %1849 = vmatmul.f32.gmra.mxu0 %v1795
  %v1850 = vpop.f32.mrf.mxu0
  %v1851 = vadd.f32 0.0, %v1850
  %1852 = vmatmul.f32.gmra.mxu0 %v1798
  %v1853 = vpop.f32.mrf.mxu0
  %v1854 = vadd.f32 0.0, %v1853
  %1855 = vmatmul.f32.gmra.mxu0 %v1801
  %v1856 = vpop.f32.mrf.mxu0
  %v1857 = vadd.f32 0.0, %v1856
  %1858 = vmatmul.f32.gmra.mxu0 %v1804
  %v1859 = vpop.f32.mrf.mxu0
  %v1860 = vadd.f32 0.0, %v1859
  %1861 = vmatmul.f32.gmra.mxu0 %v1807
  %v1862 = vpop.f32.mrf.mxu0
  %v1863 = vadd.f32 0.0, %v1862
  %1864 = vmatmul.f32.gmra.mxu0 %v1810
  %v1865 = vpop.f32.mrf.mxu0
  %v1866 = vadd.f32 0.0, %v1865
  %1867 = vmatmul.f32.gmra.mxu0 %v1813
  %v1868 = vpop.f32.mrf.mxu0
  %v1869 = vadd.f32 0.0, %v1868
  %1870 = vmatmul.f32.gmra.mxu0 %v1816
  %v1871 = vpop.f32.mrf.mxu0
  %v1872 = vadd.f32 0.0, %v1871
  %1873 = vmatmul.f32.gmra.mxu0 %v1819
  %v1874 = vpop.f32.mrf.mxu0
  %v1875 = vadd.f32 0.0, %v1874
  %1876 = vmatmul.f32.gmra.mxu0 %v1822
  %v1877 = vpop.f32.mrf.mxu0
  %v1878 = vadd.f32 0.0, %v1877
  %1879 = vdwg.mxu0
  %v1880 = vadd.f32 %v1647, %v1842
  %v1881 = vadd.f32 %v1648, %v1845
  %v1882 = vadd.f32 %v1649, %v1848
  %v1883 = vadd.f32 %v1650, %v1851
  %v1884 = vadd.f32 %v1651, %v1854
  %v1885 = vadd.f32 %v1652, %v1857
  %v1886 = vadd.f32 %v1653, %v1860
  %v1887 = vadd.f32 %v1654, %v1863
  %v1888 = vadd.f32 %v1655, %v1866
  %v1889 = vadd.f32 %v1656, %v1869
  %v1890 = vadd.f32 %v1657, %v1872
  %v1891 = vadd.f32 %v1658, %v1875
  %v1892 = vadd.f32 %v1659, %v1878
  %s1893 = scalar_lea.vmem %s0, 832
  %v1894 = vld [vmem:[%s1893] sm:$0xff]
  %v1895 = vld [vmem:[%s1893 + $0x8] sm:$0xff]
  %v1896 = vld [vmem:[%s1893 + $0x10] sm:$0xff]
  %v1897 = vld [vmem:[%s1893 + $0x18] sm:$0xff]
  %v1898 = vld [vmem:[%s1893 + $0x20] sm:$0xff]
  %v1899 = vld [vmem:[%s1893 + $0x28] sm:$0xff]
  %v1900 = vld [vmem:[%s1893 + $0x30] sm:$0xff]
  %v1901 = vld [vmem:[%s1893 + $0x38] sm:$0xff]
  %v1902 = vld [vmem:[%s1893 + $0x40] sm:$0xff]
  %v1903 = vld [vmem:[%s1893 + $0x48] sm:$0xff]
  %v1904 = vld [vmem:[%s1893 + $0x50] sm:$0xff]
  %v1905 = vld [vmem:[%s1893 + $0x58] sm:$0xff]
  %v1906 = vld [vmem:[%s1893 + $0x60] sm:$0xff]
  %v1908 = vsel %vm64, %v1894, 0
  %v1911 = vsel %vm64, %v1895, 0
  %v1914 = vsel %vm64, %v1896, 0
  %v1917 = vsel %vm64, %v1897, 0
  %v1920 = vsel %vm64, %v1898, 0
  %v1923 = vsel %vm64, %v1899, 0
  %v1926 = vsel %vm64, %v1900, 0
  %v1929 = vsel %vm64, %v1901, 0
  %v1932 = vsel %vm64, %v1902, 0
  %v1935 = vsel %vm64, %v1903, 0
  %v1938 = vsel %vm64, %v1904, 0
  %v1941 = vsel %vm64, %v1905, 0
  %v1944 = vsel %vm64, %v1906, 0
  %1946 = vmatpush.msra.mxu0 0.0
  %1947 = vmatpush.msra.mxu0 0.0
  %1948 = vmatpush.msra.mxu0 0.0
  %1949 = vmatpush.msra.mxu0 %v106
  %1950 = vmatpush.msra.mxu0 %v45
  %1951 = vmatpush.msra.mxu0 %v44
  %1952 = vmatpush.msra.mxu0 %v43
  %1953 = vmatpush.msra.mxu0 %v42
  %1954 = vmatpush.msra.mxu0 %v41
  %1955 = vmatpush.msra.mxu0 %v40
  %1956 = vmatpush.msra.mxu0 %v39
  %1957 = vmatpush.msra.mxu0 %v38
  %1958 = vmatpush.msra.mxu0 %v37
  %1959 = vmatpush.msra.mxu0 %v36
  %1960 = vmatpush.msra.mxu0 %v35
  %1961 = vmatpush.msra.mxu0 %v34
  %1962 = vmatmul.f32.gmra.mxu0 %v1908
  %v1963 = vpop.f32.mrf.mxu0
  %v1964 = vadd.f32 %v62, %v1963
  %1965 = vmatmul.f32.gmra.mxu0 %v1911
  %v1966 = vpop.f32.mrf.mxu0
  %v1967 = vadd.f32 %v62, %v1966
  %1968 = vmatmul.f32.gmra.mxu0 %v1914
  %v1969 = vpop.f32.mrf.mxu0
  %v1970 = vadd.f32 %v62, %v1969
  %1971 = vmatmul.f32.gmra.mxu0 %v1917
  %v1972 = vpop.f32.mrf.mxu0
  %v1973 = vadd.f32 %v62, %v1972
  %1974 = vmatmul.f32.gmra.mxu0 %v1920
  %v1975 = vpop.f32.mrf.mxu0
  %v1976 = vadd.f32 %v62, %v1975
  %1977 = vmatmul.f32.gmra.mxu0 %v1923
  %v1978 = vpop.f32.mrf.mxu0
  %v1979 = vadd.f32 %v62, %v1978
  %1980 = vmatmul.f32.gmra.mxu0 %v1926
  %v1981 = vpop.f32.mrf.mxu0
  %v1982 = vadd.f32 %v62, %v1981
  %1983 = vmatmul.f32.gmra.mxu0 %v1929
  %v1984 = vpop.f32.mrf.mxu0
  %v1985 = vadd.f32 %v62, %v1984
  %1986 = vmatmul.f32.gmra.mxu0 %v1932
  %v1987 = vpop.f32.mrf.mxu0
  %v1988 = vadd.f32 %v62, %v1987
  %1989 = vmatmul.f32.gmra.mxu0 %v1935
  %v1990 = vpop.f32.mrf.mxu0
  %v1991 = vadd.f32 %v62, %v1990
  %1992 = vmatmul.f32.gmra.mxu0 %v1938
  %v1993 = vpop.f32.mrf.mxu0
  %v1994 = vadd.f32 %v62, %v1993
  %1995 = vmatmul.f32.gmra.mxu0 %v1941
  %v1996 = vpop.f32.mrf.mxu0
  %v1997 = vadd.f32 %v62, %v1996
  %1998 = vmatmul.f32.gmra.mxu0 %v1944
  %v1999 = vpop.f32.mrf.mxu0
  %v2000 = vadd.f32 %v62, %v1999
  %2001 = vdwg.mxu0
  %v2002 = vmax.f32 %v1964, 0.0
  %v2003 = vmax.f32 %v1967, 0.0
  %v2004 = vmax.f32 %v1970, 0.0
  %v2005 = vmax.f32 %v1973, 0.0
  %v2006 = vmax.f32 %v1976, 0.0
  %v2007 = vmax.f32 %v1979, 0.0
  %v2008 = vmax.f32 %v1982, 0.0
  %v2009 = vmax.f32 %v1985, 0.0
  %v2010 = vmax.f32 %v1988, 0.0
  %v2011 = vmax.f32 %v1991, 0.0
  %v2012 = vmax.f32 %v1994, 0.0
  %v2013 = vmax.f32 %v1997, 0.0
  %v2014 = vmax.f32 %v2000, 0.0
  %s2015 = scalar_lea.vmem %s3, 128
  %v2016 = vld [vmem:[%s2015] sm:$0xff]
  %v2017 = vld [vmem:[%s2015 + $0x8] sm:$0xff]
  %v2019 = vsel %vm304, %v2002, 0
  %v2022 = vsel %vm304, %v2003, 0
  %v2025 = vsel %vm304, %v2004, 0
  %v2028 = vsel %vm304, %v2005, 0
  %v2031 = vsel %vm304, %v2006, 0
  %v2034 = vsel %vm304, %v2007, 0
  %v2037 = vsel %vm304, %v2008, 0
  %v2040 = vsel %vm304, %v2009, 0
  %v2043 = vsel %vm304, %v2010, 0
  %v2046 = vsel %vm304, %v2011, 0
  %v2049 = vsel %vm304, %v2012, 0
  %v2052 = vsel %vm304, %v2013, 0
  %v2055 = vsel %vm304, %v2014, 0
  %2057 = vmatpush.msra.mxu0 0.0
  %2058 = vmatpush.msra.mxu0 0.0
  %2059 = vmatpush.msra.mxu0 0.0
  %2060 = vmatpush.msra.mxu0 0.0
  %2061 = vmatpush.msra.mxu0 0.0
  %2062 = vmatpush.msra.mxu0 0.0
  %2063 = vmatpush.msra.mxu0 0.0
  %2064 = vmatpush.msra.mxu0 0.0
  %2065 = vmatpush.msra.mxu0 0.0
  %2066 = vmatpush.msra.mxu0 0.0
  %2067 = vmatpush.msra.mxu0 0.0
  %2068 = vmatpush.msra.mxu0 0.0
  %2069 = vmatpush.msra.mxu0 0.0
  %2070 = vmatpush.msra.mxu0 0.0
  %2071 = vmatpush.msra.mxu0 %v2017
  %2072 = vmatpush.msra.mxu0 %v2016
  %2073 = vmatmul.f32.gmra.mxu0 %v2019
  %v2074 = vpop.f32.mrf.mxu0
  %v2075 = vadd.f32 0.0, %v2074
  %2076 = vmatmul.f32.gmra.mxu0 %v2022
  %v2077 = vpop.f32.mrf.mxu0
  %v2078 = vadd.f32 0.0, %v2077
  %2079 = vmatmul.f32.gmra.mxu0 %v2025
  %v2080 = vpop.f32.mrf.mxu0
  %v2081 = vadd.f32 0.0, %v2080
  %2082 = vmatmul.f32.gmra.mxu0 %v2028
  %v2083 = vpop.f32.mrf.mxu0
  %v2084 = vadd.f32 0.0, %v2083
  %2085 = vmatmul.f32.gmra.mxu0 %v2031
  %v2086 = vpop.f32.mrf.mxu0
  %v2087 = vadd.f32 0.0, %v2086
  %2088 = vmatmul.f32.gmra.mxu0 %v2034
  %v2089 = vpop.f32.mrf.mxu0
  %v2090 = vadd.f32 0.0, %v2089
  %2091 = vmatmul.f32.gmra.mxu0 %v2037
  %v2092 = vpop.f32.mrf.mxu0
  %v2093 = vadd.f32 0.0, %v2092
  %2094 = vmatmul.f32.gmra.mxu0 %v2040
  %v2095 = vpop.f32.mrf.mxu0
  %v2096 = vadd.f32 0.0, %v2095
  %2097 = vmatmul.f32.gmra.mxu0 %v2043
  %v2098 = vpop.f32.mrf.mxu0
  %v2099 = vadd.f32 0.0, %v2098
  %2100 = vmatmul.f32.gmra.mxu0 %v2046
  %v2101 = vpop.f32.mrf.mxu0
  %v2102 = vadd.f32 0.0, %v2101
  %2103 = vmatmul.f32.gmra.mxu0 %v2049
  %v2104 = vpop.f32.mrf.mxu0
  %v2105 = vadd.f32 0.0, %v2104
  %2106 = vmatmul.f32.gmra.mxu0 %v2052
  %v2107 = vpop.f32.mrf.mxu0
  %v2108 = vadd.f32 0.0, %v2107
  %2109 = vmatmul.f32.gmra.mxu0 %v2055
  %v2110 = vpop.f32.mrf.mxu0
  %v2111 = vadd.f32 0.0, %v2110
  %2112 = vdwg.mxu0
  %v2113 = vadd.f32 %v1880, %v2075
  %v2114 = vadd.f32 %v1881, %v2078
  %v2115 = vadd.f32 %v1882, %v2081
  %v2116 = vadd.f32 %v1883, %v2084
  %v2117 = vadd.f32 %v1884, %v2087
  %v2118 = vadd.f32 %v1885, %v2090
  %v2119 = vadd.f32 %v1886, %v2093
  %v2120 = vadd.f32 %v1887, %v2096
  %v2121 = vadd.f32 %v1888, %v2099
  %v2122 = vadd.f32 %v1889, %v2102
  %v2123 = vadd.f32 %v1890, %v2105
  %v2124 = vadd.f32 %v1891, %v2108
  %v2125 = vadd.f32 %v1892, %v2111
  %s2126 = scalar_lea.vmem %s0, 936
  %v2127 = vld [vmem:[%s2126] sm:$0xff]
  %v2128 = vld [vmem:[%s2126 + $0x8] sm:$0xff]
  %v2129 = vld [vmem:[%s2126 + $0x10] sm:$0xff]
  %v2130 = vld [vmem:[%s2126 + $0x18] sm:$0xff]
  %v2131 = vld [vmem:[%s2126 + $0x20] sm:$0xff]
  %v2132 = vld [vmem:[%s2126 + $0x28] sm:$0xff]
  %v2133 = vld [vmem:[%s2126 + $0x30] sm:$0xff]
  %v2134 = vld [vmem:[%s2126 + $0x38] sm:$0xff]
  %v2135 = vld [vmem:[%s2126 + $0x40] sm:$0xff]
  %v2136 = vld [vmem:[%s2126 + $0x48] sm:$0xff]
  %v2137 = vld [vmem:[%s2126 + $0x50] sm:$0xff]
  %v2138 = vld [vmem:[%s2126 + $0x58] sm:$0xff]
  %v2139 = vld [vmem:[%s2126 + $0x60] sm:$0xff]
  %v2141 = vsel %vm64, %v2127, 0
  %v2144 = vsel %vm64, %v2128, 0
  %v2147 = vsel %vm64, %v2129, 0
  %v2150 = vsel %vm64, %v2130, 0
  %v2153 = vsel %vm64, %v2131, 0
  %v2156 = vsel %vm64, %v2132, 0
  %v2159 = vsel %vm64, %v2133, 0
  %v2162 = vsel %vm64, %v2134, 0
  %v2165 = vsel %vm64, %v2135, 0
  %v2168 = vsel %vm64, %v2136, 0
  %v2171 = vsel %vm64, %v2137, 0
  %v2174 = vsel %vm64, %v2138, 0
  %v2177 = vsel %vm64, %v2139, 0
  %2179 = vmatpush.msra.mxu0 0.0
  %2180 = vmatpush.msra.mxu0 0.0
  %2181 = vmatpush.msra.mxu0 0.0
  %2182 = vmatpush.msra.mxu0 %v106
  %2183 = vmatpush.msra.mxu0 %v45
  %2184 = vmatpush.msra.mxu0 %v44
  %2185 = vmatpush.msra.mxu0 %v43
  %2186 = vmatpush.msra.mxu0 %v42
  %2187 = vmatpush.msra.mxu0 %v41
  %2188 = vmatpush.msra.mxu0 %v40
  %2189 = vmatpush.msra.mxu0 %v39
  %2190 = vmatpush.msra.mxu0 %v38
  %2191 = vmatpush.msra.mxu0 %v37
  %2192 = vmatpush.msra.mxu0 %v36
  %2193 = vmatpush.msra.mxu0 %v35
  %2194 = vmatpush.msra.mxu0 %v34
  %2195 = vmatmul.f32.gmra.mxu0 %v2141
  %v2196 = vpop.f32.mrf.mxu0
  %v2197 = vadd.f32 %v62, %v2196
  %2198 = vmatmul.f32.gmra.mxu0 %v2144
  %v2199 = vpop.f32.mrf.mxu0
  %v2200 = vadd.f32 %v62, %v2199
  %2201 = vmatmul.f32.gmra.mxu0 %v2147
  %v2202 = vpop.f32.mrf.mxu0
  %v2203 = vadd.f32 %v62, %v2202
  %2204 = vmatmul.f32.gmra.mxu0 %v2150
  %v2205 = vpop.f32.mrf.mxu0
  %v2206 = vadd.f32 %v62, %v2205
  %2207 = vmatmul.f32.gmra.mxu0 %v2153
  %v2208 = vpop.f32.mrf.mxu0
  %v2209 = vadd.f32 %v62, %v2208
  %2210 = vmatmul.f32.gmra.mxu0 %v2156
  %v2211 = vpop.f32.mrf.mxu0
  %v2212 = vadd.f32 %v62, %v2211
  %2213 = vmatmul.f32.gmra.mxu0 %v2159
  %v2214 = vpop.f32.mrf.mxu0
  %v2215 = vadd.f32 %v62, %v2214
  %2216 = vmatmul.f32.gmra.mxu0 %v2162
  %v2217 = vpop.f32.mrf.mxu0
  %v2218 = vadd.f32 %v62, %v2217
  %2219 = vmatmul.f32.gmra.mxu0 %v2165
  %v2220 = vpop.f32.mrf.mxu0
  %v2221 = vadd.f32 %v62, %v2220
  %2222 = vmatmul.f32.gmra.mxu0 %v2168
  %v2223 = vpop.f32.mrf.mxu0
  %v2224 = vadd.f32 %v62, %v2223
  %2225 = vmatmul.f32.gmra.mxu0 %v2171
  %v2226 = vpop.f32.mrf.mxu0
  %v2227 = vadd.f32 %v62, %v2226
  %2228 = vmatmul.f32.gmra.mxu0 %v2174
  %v2229 = vpop.f32.mrf.mxu0
  %v2230 = vadd.f32 %v62, %v2229
  %2231 = vmatmul.f32.gmra.mxu0 %v2177
  %v2232 = vpop.f32.mrf.mxu0
  %v2233 = vadd.f32 %v62, %v2232
  %2234 = vdwg.mxu0
  %v2235 = vmax.f32 %v2197, 0.0
  %v2236 = vmax.f32 %v2200, 0.0
  %v2237 = vmax.f32 %v2203, 0.0
  %v2238 = vmax.f32 %v2206, 0.0
  %v2239 = vmax.f32 %v2209, 0.0
  %v2240 = vmax.f32 %v2212, 0.0
  %v2241 = vmax.f32 %v2215, 0.0
  %v2242 = vmax.f32 %v2218, 0.0
  %v2243 = vmax.f32 %v2221, 0.0
  %v2244 = vmax.f32 %v2224, 0.0
  %v2245 = vmax.f32 %v2227, 0.0
  %v2246 = vmax.f32 %v2230, 0.0
  %v2247 = vmax.f32 %v2233, 0.0
  %s2248 = scalar_lea.vmem %s3, 144
  %v2249 = vld [vmem:[%s2248] sm:$0xff]
  %v2250 = vld [vmem:[%s2248 + $0x8] sm:$0xff]
  %v2252 = vsel %vm304, %v2235, 0
  %v2255 = vsel %vm304, %v2236, 0
  %v2258 = vsel %vm304, %v2237, 0
  %v2261 = vsel %vm304, %v2238, 0
  %v2264 = vsel %vm304, %v2239, 0
  %v2267 = vsel %vm304, %v2240, 0
  %v2270 = vsel %vm304, %v2241, 0
  %v2273 = vsel %vm304, %v2242, 0
  %v2276 = vsel %vm304, %v2243, 0
  %v2279 = vsel %vm304, %v2244, 0
  %v2282 = vsel %vm304, %v2245, 0
  %v2285 = vsel %vm304, %v2246, 0
  %v2288 = vsel %vm304, %v2247, 0
  %2290 = vmatpush.msra.mxu0 0.0
  %2291 = vmatpush.msra.mxu0 0.0
  %2292 = vmatpush.msra.mxu0 0.0
  %2293 = vmatpush.msra.mxu0 0.0
  %2294 = vmatpush.msra.mxu0 0.0
  %2295 = vmatpush.msra.mxu0 0.0
  %2296 = vmatpush.msra.mxu0 0.0
  %2297 = vmatpush.msra.mxu0 0.0
  %2298 = vmatpush.msra.mxu0 0.0
  %2299 = vmatpush.msra.mxu0 0.0
  %2300 = vmatpush.msra.mxu0 0.0
  %2301 = vmatpush.msra.mxu0 0.0
  %2302 = vmatpush.msra.mxu0 0.0
  %2303 = vmatpush.msra.mxu0 0.0
  %2304 = vmatpush.msra.mxu0 %v2250
  %2305 = vmatpush.msra.mxu0 %v2249
  %2306 = vmatmul.f32.gmra.mxu0 %v2252
  %v2307 = vpop.f32.mrf.mxu0
  %v2308 = vadd.f32 0.0, %v2307
  %2309 = vmatmul.f32.gmra.mxu0 %v2255
  %v2310 = vpop.f32.mrf.mxu0
  %v2311 = vadd.f32 0.0, %v2310
  %2312 = vmatmul.f32.gmra.mxu0 %v2258
  %v2313 = vpop.f32.mrf.mxu0
  %v2314 = vadd.f32 0.0, %v2313
  %2315 = vmatmul.f32.gmra.mxu0 %v2261
  %v2316 = vpop.f32.mrf.mxu0
  %v2317 = vadd.f32 0.0, %v2316
  %2318 = vmatmul.f32.gmra.mxu0 %v2264
  %v2319 = vpop.f32.mrf.mxu0
  %v2320 = vadd.f32 0.0, %v2319
  %2321 = vmatmul.f32.gmra.mxu0 %v2267
  %v2322 = vpop.f32.mrf.mxu0
  %v2323 = vadd.f32 0.0, %v2322
  %2324 = vmatmul.f32.gmra.mxu0 %v2270
  %v2325 = vpop.f32.mrf.mxu0
  %v2326 = vadd.f32 0.0, %v2325
  %2327 = vmatmul.f32.gmra.mxu0 %v2273
  %v2328 = vpop.f32.mrf.mxu0
  %v2329 = vadd.f32 0.0, %v2328
  %2330 = vmatmul.f32.gmra.mxu0 %v2276
  %v2331 = vpop.f32.mrf.mxu0
  %v2332 = vadd.f32 0.0, %v2331
  %2333 = vmatmul.f32.gmra.mxu0 %v2279
  %v2334 = vpop.f32.mrf.mxu0
  %v2335 = vadd.f32 0.0, %v2334
  %2336 = vmatmul.f32.gmra.mxu0 %v2282
  %v2337 = vpop.f32.mrf.mxu0
  %v2338 = vadd.f32 0.0, %v2337
  %2339 = vmatmul.f32.gmra.mxu0 %v2285
  %v2340 = vpop.f32.mrf.mxu0
  %v2341 = vadd.f32 0.0, %v2340
  %2342 = vmatmul.f32.gmra.mxu0 %v2288
  %v2343 = vpop.f32.mrf.mxu0
  %v2344 = vadd.f32 0.0, %v2343
  %2345 = vdwg.mxu0
  %v2346 = vadd.f32 %v2113, %v2308
  %v2347 = vadd.f32 %v2114, %v2311
  %v2348 = vadd.f32 %v2115, %v2314
  %v2349 = vadd.f32 %v2116, %v2317
  %v2350 = vadd.f32 %v2117, %v2320
  %v2351 = vadd.f32 %v2118, %v2323
  %v2352 = vadd.f32 %v2119, %v2326
  %v2353 = vadd.f32 %v2120, %v2329
  %v2354 = vadd.f32 %v2121, %v2332
  %v2355 = vadd.f32 %v2122, %v2335
  %v2356 = vadd.f32 %v2123, %v2338
  %v2357 = vadd.f32 %v2124, %v2341
  %v2358 = vadd.f32 %v2125, %v2344
  %s2359 = scalar_lea.vmem %s0, 1040
  %v2360 = vld [vmem:[%s2359] sm:$0xff]
  %v2361 = vld [vmem:[%s2359 + $0x8] sm:$0xff]
  %v2362 = vld [vmem:[%s2359 + $0x10] sm:$0xff]
  %v2363 = vld [vmem:[%s2359 + $0x18] sm:$0xff]
  %v2364 = vld [vmem:[%s2359 + $0x20] sm:$0xff]
  %v2365 = vld [vmem:[%s2359 + $0x28] sm:$0xff]
  %v2366 = vld [vmem:[%s2359 + $0x30] sm:$0xff]
  %v2367 = vld [vmem:[%s2359 + $0x38] sm:$0xff]
  %v2368 = vld [vmem:[%s2359 + $0x40] sm:$0xff]
  %v2369 = vld [vmem:[%s2359 + $0x48] sm:$0xff]
  %v2370 = vld [vmem:[%s2359 + $0x50] sm:$0xff]
  %v2371 = vld [vmem:[%s2359 + $0x58] sm:$0xff]
  %v2372 = vld [vmem:[%s2359 + $0x60] sm:$0xff]
  %v2374 = vsel %vm64, %v2360, 0
  %v2377 = vsel %vm64, %v2361, 0
  %v2380 = vsel %vm64, %v2362, 0
  %v2383 = vsel %vm64, %v2363, 0
  %v2386 = vsel %vm64, %v2364, 0
  %v2389 = vsel %vm64, %v2365, 0
  %v2392 = vsel %vm64, %v2366, 0
  %v2395 = vsel %vm64, %v2367, 0
  %v2398 = vsel %vm64, %v2368, 0
  %v2401 = vsel %vm64, %v2369, 0
  %v2404 = vsel %vm64, %v2370, 0
  %v2407 = vsel %vm64, %v2371, 0
  %v2410 = vsel %vm64, %v2372, 0
  %2412 = vmatpush.msra.mxu0 0.0
  %2413 = vmatpush.msra.mxu0 0.0
  %2414 = vmatpush.msra.mxu0 0.0
  %2415 = vmatpush.msra.mxu0 %v106
  %2416 = vmatpush.msra.mxu0 %v45
  %2417 = vmatpush.msra.mxu0 %v44
  %2418 = vmatpush.msra.mxu0 %v43
  %2419 = vmatpush.msra.mxu0 %v42
  %2420 = vmatpush.msra.mxu0 %v41
  %2421 = vmatpush.msra.mxu0 %v40
  %2422 = vmatpush.msra.mxu0 %v39
  %2423 = vmatpush.msra.mxu0 %v38
  %2424 = vmatpush.msra.mxu0 %v37
  %2425 = vmatpush.msra.mxu0 %v36
  %2426 = vmatpush.msra.mxu0 %v35
  %2427 = vmatpush.msra.mxu0 %v34
  %2428 = vmatmul.f32.gmra.mxu0 %v2374
  %v2429 = vpop.f32.mrf.mxu0
  %v2430 = vadd.f32 %v62, %v2429
  %2431 = vmatmul.f32.gmra.mxu0 %v2377
  %v2432 = vpop.f32.mrf.mxu0
  %v2433 = vadd.f32 %v62, %v2432
  %2434 = vmatmul.f32.gmra.mxu0 %v2380
  %v2435 = vpop.f32.mrf.mxu0
  %v2436 = vadd.f32 %v62, %v2435
  %2437 = vmatmul.f32.gmra.mxu0 %v2383
  %v2438 = vpop.f32.mrf.mxu0
  %v2439 = vadd.f32 %v62, %v2438
  %2440 = vmatmul.f32.gmra.mxu0 %v2386
  %v2441 = vpop.f32.mrf.mxu0
  %v2442 = vadd.f32 %v62, %v2441
  %2443 = vmatmul.f32.gmra.mxu0 %v2389
  %v2444 = vpop.f32.mrf.mxu0
  %v2445 = vadd.f32 %v62, %v2444
  %2446 = vmatmul.f32.gmra.mxu0 %v2392
  %v2447 = vpop.f32.mrf.mxu0
  %v2448 = vadd.f32 %v62, %v2447
  %2449 = vmatmul.f32.gmra.mxu0 %v2395
  %v2450 = vpop.f32.mrf.mxu0
  %v2451 = vadd.f32 %v62, %v2450
  %2452 = vmatmul.f32.gmra.mxu0 %v2398
  %v2453 = vpop.f32.mrf.mxu0
  %v2454 = vadd.f32 %v62, %v2453
  %2455 = vmatmul.f32.gmra.mxu0 %v2401
  %v2456 = vpop.f32.mrf.mxu0
  %v2457 = vadd.f32 %v62, %v2456
  %2458 = vmatmul.f32.gmra.mxu0 %v2404
  %v2459 = vpop.f32.mrf.mxu0
  %v2460 = vadd.f32 %v62, %v2459
  %2461 = vmatmul.f32.gmra.mxu0 %v2407
  %v2462 = vpop.f32.mrf.mxu0
  %v2463 = vadd.f32 %v62, %v2462
  %2464 = vmatmul.f32.gmra.mxu0 %v2410
  %v2465 = vpop.f32.mrf.mxu0
  %v2466 = vadd.f32 %v62, %v2465
  %2467 = vdwg.mxu0
  %v2468 = vmax.f32 %v2430, 0.0
  %v2469 = vmax.f32 %v2433, 0.0
  %v2470 = vmax.f32 %v2436, 0.0
  %v2471 = vmax.f32 %v2439, 0.0
  %v2472 = vmax.f32 %v2442, 0.0
  %v2473 = vmax.f32 %v2445, 0.0
  %v2474 = vmax.f32 %v2448, 0.0
  %v2475 = vmax.f32 %v2451, 0.0
  %v2476 = vmax.f32 %v2454, 0.0
  %v2477 = vmax.f32 %v2457, 0.0
  %v2478 = vmax.f32 %v2460, 0.0
  %v2479 = vmax.f32 %v2463, 0.0
  %v2480 = vmax.f32 %v2466, 0.0
  %s2481 = scalar_lea.vmem %s3, 160
  %v2482 = vld [vmem:[%s2481] sm:$0xff]
  %v2483 = vld [vmem:[%s2481 + $0x8] sm:$0xff]
  %v2485 = vsel %vm304, %v2468, 0
  %v2488 = vsel %vm304, %v2469, 0
  %v2491 = vsel %vm304, %v2470, 0
  %v2494 = vsel %vm304, %v2471, 0
  %v2497 = vsel %vm304, %v2472, 0
  %v2500 = vsel %vm304, %v2473, 0
  %v2503 = vsel %vm304, %v2474, 0
  %v2506 = vsel %vm304, %v2475, 0
  %v2509 = vsel %vm304, %v2476, 0
  %v2512 = vsel %vm304, %v2477, 0
  %v2515 = vsel %vm304, %v2478, 0
  %v2518 = vsel %vm304, %v2479, 0
  %v2521 = vsel %vm304, %v2480, 0
  %2523 = vmatpush.msra.mxu0 0.0
  %2524 = vmatpush.msra.mxu0 0.0
  %2525 = vmatpush.msra.mxu0 0.0
  %2526 = vmatpush.msra.mxu0 0.0
  %2527 = vmatpush.msra.mxu0 0.0
  %2528 = vmatpush.msra.mxu0 0.0
  %2529 = vmatpush.msra.mxu0 0.0
  %2530 = vmatpush.msra.mxu0 0.0
  %2531 = vmatpush.msra.mxu0 0.0
  %2532 = vmatpush.msra.mxu0 0.0
  %2533 = vmatpush.msra.mxu0 0.0
  %2534 = vmatpush.msra.mxu0 0.0
  %2535 = vmatpush.msra.mxu0 0.0
  %2536 = vmatpush.msra.mxu0 0.0
  %2537 = vmatpush.msra.mxu0 %v2483
  %2538 = vmatpush.msra.mxu0 %v2482
  %2539 = vmatmul.f32.gmra.mxu0 %v2485
  %v2540 = vpop.f32.mrf.mxu0
  %v2541 = vadd.f32 0.0, %v2540
  %2542 = vmatmul.f32.gmra.mxu0 %v2488
  %v2543 = vpop.f32.mrf.mxu0
  %v2544 = vadd.f32 0.0, %v2543
  %2545 = vmatmul.f32.gmra.mxu0 %v2491
  %v2546 = vpop.f32.mrf.mxu0
  %v2547 = vadd.f32 0.0, %v2546
  %2548 = vmatmul.f32.gmra.mxu0 %v2494
  %v2549 = vpop.f32.mrf.mxu0
  %v2550 = vadd.f32 0.0, %v2549
  %2551 = vmatmul.f32.gmra.mxu0 %v2497
  %v2552 = vpop.f32.mrf.mxu0
  %v2553 = vadd.f32 0.0, %v2552
  %2554 = vmatmul.f32.gmra.mxu0 %v2500
  %v2555 = vpop.f32.mrf.mxu0
  %v2556 = vadd.f32 0.0, %v2555
  %2557 = vmatmul.f32.gmra.mxu0 %v2503
  %v2558 = vpop.f32.mrf.mxu0
  %v2559 = vadd.f32 0.0, %v2558
  %2560 = vmatmul.f32.gmra.mxu0 %v2506
  %v2561 = vpop.f32.mrf.mxu0
  %v2562 = vadd.f32 0.0, %v2561
  %2563 = vmatmul.f32.gmra.mxu0 %v2509
  %v2564 = vpop.f32.mrf.mxu0
  %v2565 = vadd.f32 0.0, %v2564
  %2566 = vmatmul.f32.gmra.mxu0 %v2512
  %v2567 = vpop.f32.mrf.mxu0
  %v2568 = vadd.f32 0.0, %v2567
  %2569 = vmatmul.f32.gmra.mxu0 %v2515
  %v2570 = vpop.f32.mrf.mxu0
  %v2571 = vadd.f32 0.0, %v2570
  %2572 = vmatmul.f32.gmra.mxu0 %v2518
  %v2573 = vpop.f32.mrf.mxu0
  %v2574 = vadd.f32 0.0, %v2573
  %2575 = vmatmul.f32.gmra.mxu0 %v2521
  %v2576 = vpop.f32.mrf.mxu0
  %v2577 = vadd.f32 0.0, %v2576
  %2578 = vdwg.mxu0
  %v2579 = vadd.f32 %v2346, %v2541
  %v2580 = vadd.f32 %v2347, %v2544
  %v2581 = vadd.f32 %v2348, %v2547
  %v2582 = vadd.f32 %v2349, %v2550
  %v2583 = vadd.f32 %v2350, %v2553
  %v2584 = vadd.f32 %v2351, %v2556
  %v2585 = vadd.f32 %v2352, %v2559
  %v2586 = vadd.f32 %v2353, %v2562
  %v2587 = vadd.f32 %v2354, %v2565
  %v2588 = vadd.f32 %v2355, %v2568
  %v2589 = vadd.f32 %v2356, %v2571
  %v2590 = vadd.f32 %v2357, %v2574
  %v2591 = vadd.f32 %v2358, %v2577
  %s2592 = scalar_lea.vmem %s0, 1144
  %v2593 = vld [vmem:[%s2592] sm:$0xff]
  %v2594 = vld [vmem:[%s2592 + $0x8] sm:$0xff]
  %v2595 = vld [vmem:[%s2592 + $0x10] sm:$0xff]
  %v2596 = vld [vmem:[%s2592 + $0x18] sm:$0xff]
  %v2597 = vld [vmem:[%s2592 + $0x20] sm:$0xff]
  %v2598 = vld [vmem:[%s2592 + $0x28] sm:$0xff]
  %v2599 = vld [vmem:[%s2592 + $0x30] sm:$0xff]
  %v2600 = vld [vmem:[%s2592 + $0x38] sm:$0xff]
  %v2601 = vld [vmem:[%s2592 + $0x40] sm:$0xff]
  %v2602 = vld [vmem:[%s2592 + $0x48] sm:$0xff]
  %v2603 = vld [vmem:[%s2592 + $0x50] sm:$0xff]
  %v2604 = vld [vmem:[%s2592 + $0x58] sm:$0xff]
  %v2605 = vld [vmem:[%s2592 + $0x60] sm:$0xff]
  %v2607 = vsel %vm64, %v2593, 0
  %v2610 = vsel %vm64, %v2594, 0
  %v2613 = vsel %vm64, %v2595, 0
  %v2616 = vsel %vm64, %v2596, 0
  %v2619 = vsel %vm64, %v2597, 0
  %v2622 = vsel %vm64, %v2598, 0
  %v2625 = vsel %vm64, %v2599, 0
  %v2628 = vsel %vm64, %v2600, 0
  %v2631 = vsel %vm64, %v2601, 0
  %v2634 = vsel %vm64, %v2602, 0
  %v2637 = vsel %vm64, %v2603, 0
  %v2640 = vsel %vm64, %v2604, 0
  %v2643 = vsel %vm64, %v2605, 0
  %2645 = vmatpush.msra.mxu0 0.0
  %2646 = vmatpush.msra.mxu0 0.0
  %2647 = vmatpush.msra.mxu0 0.0
  %2648 = vmatpush.msra.mxu0 %v106
  %2649 = vmatpush.msra.mxu0 %v45
  %2650 = vmatpush.msra.mxu0 %v44
  %2651 = vmatpush.msra.mxu0 %v43
  %2652 = vmatpush.msra.mxu0 %v42
  %2653 = vmatpush.msra.mxu0 %v41
  %2654 = vmatpush.msra.mxu0 %v40
  %2655 = vmatpush.msra.mxu0 %v39
  %2656 = vmatpush.msra.mxu0 %v38
  %2657 = vmatpush.msra.mxu0 %v37
  %2658 = vmatpush.msra.mxu0 %v36
  %2659 = vmatpush.msra.mxu0 %v35
  %2660 = vmatpush.msra.mxu0 %v34
  %2661 = vmatmul.f32.gmra.mxu0 %v2607
  %v2662 = vpop.f32.mrf.mxu0
  %v2663 = vadd.f32 %v62, %v2662
  %2664 = vmatmul.f32.gmra.mxu0 %v2610
  %v2665 = vpop.f32.mrf.mxu0
  %v2666 = vadd.f32 %v62, %v2665
  %2667 = vmatmul.f32.gmra.mxu0 %v2613
  %v2668 = vpop.f32.mrf.mxu0
  %v2669 = vadd.f32 %v62, %v2668
  %2670 = vmatmul.f32.gmra.mxu0 %v2616
  %v2671 = vpop.f32.mrf.mxu0
  %v2672 = vadd.f32 %v62, %v2671
  %2673 = vmatmul.f32.gmra.mxu0 %v2619
  %v2674 = vpop.f32.mrf.mxu0
  %v2675 = vadd.f32 %v62, %v2674
  %2676 = vmatmul.f32.gmra.mxu0 %v2622
  %v2677 = vpop.f32.mrf.mxu0
  %v2678 = vadd.f32 %v62, %v2677
  %2679 = vmatmul.f32.gmra.mxu0 %v2625
  %v2680 = vpop.f32.mrf.mxu0
  %v2681 = vadd.f32 %v62, %v2680
  %2682 = vmatmul.f32.gmra.mxu0 %v2628
  %v2683 = vpop.f32.mrf.mxu0
  %v2684 = vadd.f32 %v62, %v2683
  %2685 = vmatmul.f32.gmra.mxu0 %v2631
  %v2686 = vpop.f32.mrf.mxu0
  %v2687 = vadd.f32 %v62, %v2686
  %2688 = vmatmul.f32.gmra.mxu0 %v2634
  %v2689 = vpop.f32.mrf.mxu0
  %v2690 = vadd.f32 %v62, %v2689
  %2691 = vmatmul.f32.gmra.mxu0 %v2637
  %v2692 = vpop.f32.mrf.mxu0
  %v2693 = vadd.f32 %v62, %v2692
  %2694 = vmatmul.f32.gmra.mxu0 %v2640
  %v2695 = vpop.f32.mrf.mxu0
  %v2696 = vadd.f32 %v62, %v2695
  %2697 = vmatmul.f32.gmra.mxu0 %v2643
  %v2698 = vpop.f32.mrf.mxu0
  %v2699 = vadd.f32 %v62, %v2698
  %2700 = vdwg.mxu0
  %v2701 = vmax.f32 %v2663, 0.0
  %v2702 = vmax.f32 %v2666, 0.0
  %v2703 = vmax.f32 %v2669, 0.0
  %v2704 = vmax.f32 %v2672, 0.0
  %v2705 = vmax.f32 %v2675, 0.0
  %v2706 = vmax.f32 %v2678, 0.0
  %v2707 = vmax.f32 %v2681, 0.0
  %v2708 = vmax.f32 %v2684, 0.0
  %v2709 = vmax.f32 %v2687, 0.0
  %v2710 = vmax.f32 %v2690, 0.0
  %v2711 = vmax.f32 %v2693, 0.0
  %v2712 = vmax.f32 %v2696, 0.0
  %v2713 = vmax.f32 %v2699, 0.0
  %s2714 = scalar_lea.vmem %s3, 176
  %v2715 = vld [vmem:[%s2714] sm:$0xff]
  %v2716 = vld [vmem:[%s2714 + $0x8] sm:$0xff]
  %v2718 = vsel %vm304, %v2701, 0
  %v2721 = vsel %vm304, %v2702, 0
  %v2724 = vsel %vm304, %v2703, 0
  %v2727 = vsel %vm304, %v2704, 0
  %v2730 = vsel %vm304, %v2705, 0
  %v2733 = vsel %vm304, %v2706, 0
  %v2736 = vsel %vm304, %v2707, 0
  %v2739 = vsel %vm304, %v2708, 0
  %v2742 = vsel %vm304, %v2709, 0
  %v2745 = vsel %vm304, %v2710, 0
  %v2748 = vsel %vm304, %v2711, 0
  %v2751 = vsel %vm304, %v2712, 0
  %v2754 = vsel %vm304, %v2713, 0
  %2756 = vmatpush.msra.mxu0 0.0
  %2757 = vmatpush.msra.mxu0 0.0
  %2758 = vmatpush.msra.mxu0 0.0
  %2759 = vmatpush.msra.mxu0 0.0
  %2760 = vmatpush.msra.mxu0 0.0
  %2761 = vmatpush.msra.mxu0 0.0
  %2762 = vmatpush.msra.mxu0 0.0
  %2763 = vmatpush.msra.mxu0 0.0
  %2764 = vmatpush.msra.mxu0 0.0
  %2765 = vmatpush.msra.mxu0 0.0
  %2766 = vmatpush.msra.mxu0 0.0
  %2767 = vmatpush.msra.mxu0 0.0
  %2768 = vmatpush.msra.mxu0 0.0
  %2769 = vmatpush.msra.mxu0 0.0
  %2770 = vmatpush.msra.mxu0 %v2716
  %2771 = vmatpush.msra.mxu0 %v2715
  %2772 = vmatmul.f32.gmra.mxu0 %v2718
  %v2773 = vpop.f32.mrf.mxu0
  %v2774 = vadd.f32 0.0, %v2773
  %2775 = vmatmul.f32.gmra.mxu0 %v2721
  %v2776 = vpop.f32.mrf.mxu0
  %v2777 = vadd.f32 0.0, %v2776
  %2778 = vmatmul.f32.gmra.mxu0 %v2724
  %v2779 = vpop.f32.mrf.mxu0
  %v2780 = vadd.f32 0.0, %v2779
  %2781 = vmatmul.f32.gmra.mxu0 %v2727
  %v2782 = vpop.f32.mrf.mxu0
  %v2783 = vadd.f32 0.0, %v2782
  %2784 = vmatmul.f32.gmra.mxu0 %v2730
  %v2785 = vpop.f32.mrf.mxu0
  %v2786 = vadd.f32 0.0, %v2785
  %2787 = vmatmul.f32.gmra.mxu0 %v2733
  %v2788 = vpop.f32.mrf.mxu0
  %v2789 = vadd.f32 0.0, %v2788
  %2790 = vmatmul.f32.gmra.mxu0 %v2736
  %v2791 = vpop.f32.mrf.mxu0
  %v2792 = vadd.f32 0.0, %v2791
  %2793 = vmatmul.f32.gmra.mxu0 %v2739
  %v2794 = vpop.f32.mrf.mxu0
  %v2795 = vadd.f32 0.0, %v2794
  %2796 = vmatmul.f32.gmra.mxu0 %v2742
  %v2797 = vpop.f32.mrf.mxu0
  %v2798 = vadd.f32 0.0, %v2797
  %2799 = vmatmul.f32.gmra.mxu0 %v2745
  %v2800 = vpop.f32.mrf.mxu0
  %v2801 = vadd.f32 0.0, %v2800
  %2802 = vmatmul.f32.gmra.mxu0 %v2748
  %v2803 = vpop.f32.mrf.mxu0
  %v2804 = vadd.f32 0.0, %v2803
  %2805 = vmatmul.f32.gmra.mxu0 %v2751
  %v2806 = vpop.f32.mrf.mxu0
  %v2807 = vadd.f32 0.0, %v2806
  %2808 = vmatmul.f32.gmra.mxu0 %v2754
  %v2809 = vpop.f32.mrf.mxu0
  %v2810 = vadd.f32 0.0, %v2809
  %2811 = vdwg.mxu0
  %v2812 = vadd.f32 %v2579, %v2774
  %v2813 = vadd.f32 %v2580, %v2777
  %v2814 = vadd.f32 %v2581, %v2780
  %v2815 = vadd.f32 %v2582, %v2783
  %v2816 = vadd.f32 %v2583, %v2786
  %v2817 = vadd.f32 %v2584, %v2789
  %v2818 = vadd.f32 %v2585, %v2792
  %v2819 = vadd.f32 %v2586, %v2795
  %v2820 = vadd.f32 %v2587, %v2798
  %v2821 = vadd.f32 %v2588, %v2801
  %v2822 = vadd.f32 %v2589, %v2804
  %v2823 = vadd.f32 %v2590, %v2807
  %v2824 = vadd.f32 %v2591, %v2810
  %s2825 = scalar_lea.vmem %s0, 1248
  %v2826 = vld [vmem:[%s2825] sm:$0xff]
  %v2827 = vld [vmem:[%s2825 + $0x8] sm:$0xff]
  %v2828 = vld [vmem:[%s2825 + $0x10] sm:$0xff]
  %v2829 = vld [vmem:[%s2825 + $0x18] sm:$0xff]
  %v2830 = vld [vmem:[%s2825 + $0x20] sm:$0xff]
  %v2831 = vld [vmem:[%s2825 + $0x28] sm:$0xff]
  %v2832 = vld [vmem:[%s2825 + $0x30] sm:$0xff]
  %v2833 = vld [vmem:[%s2825 + $0x38] sm:$0xff]
  %v2834 = vld [vmem:[%s2825 + $0x40] sm:$0xff]
  %v2835 = vld [vmem:[%s2825 + $0x48] sm:$0xff]
  %v2836 = vld [vmem:[%s2825 + $0x50] sm:$0xff]
  %v2837 = vld [vmem:[%s2825 + $0x58] sm:$0xff]
  %v2838 = vld [vmem:[%s2825 + $0x60] sm:$0xff]
  %v2840 = vsel %vm64, %v2826, 0
  %v2843 = vsel %vm64, %v2827, 0
  %v2846 = vsel %vm64, %v2828, 0
  %v2849 = vsel %vm64, %v2829, 0
  %v2852 = vsel %vm64, %v2830, 0
  %v2855 = vsel %vm64, %v2831, 0
  %v2858 = vsel %vm64, %v2832, 0
  %v2861 = vsel %vm64, %v2833, 0
  %v2864 = vsel %vm64, %v2834, 0
  %v2867 = vsel %vm64, %v2835, 0
  %v2870 = vsel %vm64, %v2836, 0
  %v2873 = vsel %vm64, %v2837, 0
  %v2876 = vsel %vm64, %v2838, 0
  %2878 = vmatpush.msra.mxu0 0.0
  %2879 = vmatpush.msra.mxu0 0.0
  %2880 = vmatpush.msra.mxu0 0.0
  %2881 = vmatpush.msra.mxu0 %v106
  %2882 = vmatpush.msra.mxu0 %v45
  %2883 = vmatpush.msra.mxu0 %v44
  %2884 = vmatpush.msra.mxu0 %v43
  %2885 = vmatpush.msra.mxu0 %v42
  %2886 = vmatpush.msra.mxu0 %v41
  %2887 = vmatpush.msra.mxu0 %v40
  %2888 = vmatpush.msra.mxu0 %v39
  %2889 = vmatpush.msra.mxu0 %v38
  %2890 = vmatpush.msra.mxu0 %v37
  %2891 = vmatpush.msra.mxu0 %v36
  %2892 = vmatpush.msra.mxu0 %v35
  %2893 = vmatpush.msra.mxu0 %v34
  %2894 = vmatmul.f32.gmra.mxu0 %v2840
  %v2895 = vpop.f32.mrf.mxu0
  %v2896 = vadd.f32 %v62, %v2895
  %2897 = vmatmul.f32.gmra.mxu0 %v2843
  %v2898 = vpop.f32.mrf.mxu0
  %v2899 = vadd.f32 %v62, %v2898
  %2900 = vmatmul.f32.gmra.mxu0 %v2846
  %v2901 = vpop.f32.mrf.mxu0
  %v2902 = vadd.f32 %v62, %v2901
  %2903 = vmatmul.f32.gmra.mxu0 %v2849
  %v2904 = vpop.f32.mrf.mxu0
  %v2905 = vadd.f32 %v62, %v2904
  %2906 = vmatmul.f32.gmra.mxu0 %v2852
  %v2907 = vpop.f32.mrf.mxu0
  %v2908 = vadd.f32 %v62, %v2907
  %2909 = vmatmul.f32.gmra.mxu0 %v2855
  %v2910 = vpop.f32.mrf.mxu0
  %v2911 = vadd.f32 %v62, %v2910
  %2912 = vmatmul.f32.gmra.mxu0 %v2858
  %v2913 = vpop.f32.mrf.mxu0
  %v2914 = vadd.f32 %v62, %v2913
  %2915 = vmatmul.f32.gmra.mxu0 %v2861
  %v2916 = vpop.f32.mrf.mxu0
  %v2917 = vadd.f32 %v62, %v2916
  %2918 = vmatmul.f32.gmra.mxu0 %v2864
  %v2919 = vpop.f32.mrf.mxu0
  %v2920 = vadd.f32 %v62, %v2919
  %2921 = vmatmul.f32.gmra.mxu0 %v2867
  %v2922 = vpop.f32.mrf.mxu0
  %v2923 = vadd.f32 %v62, %v2922
  %2924 = vmatmul.f32.gmra.mxu0 %v2870
  %v2925 = vpop.f32.mrf.mxu0
  %v2926 = vadd.f32 %v62, %v2925
  %2927 = vmatmul.f32.gmra.mxu0 %v2873
  %v2928 = vpop.f32.mrf.mxu0
  %v2929 = vadd.f32 %v62, %v2928
  %2930 = vmatmul.f32.gmra.mxu0 %v2876
  %v2931 = vpop.f32.mrf.mxu0
  %v2932 = vadd.f32 %v62, %v2931
  %2933 = vdwg.mxu0
  %v2934 = vmax.f32 %v2896, 0.0
  %v2935 = vmax.f32 %v2899, 0.0
  %v2936 = vmax.f32 %v2902, 0.0
  %v2937 = vmax.f32 %v2905, 0.0
  %v2938 = vmax.f32 %v2908, 0.0
  %v2939 = vmax.f32 %v2911, 0.0
  %v2940 = vmax.f32 %v2914, 0.0
  %v2941 = vmax.f32 %v2917, 0.0
  %v2942 = vmax.f32 %v2920, 0.0
  %v2943 = vmax.f32 %v2923, 0.0
  %v2944 = vmax.f32 %v2926, 0.0
  %v2945 = vmax.f32 %v2929, 0.0
  %v2946 = vmax.f32 %v2932, 0.0
  %s2947 = scalar_lea.vmem %s3, 192
  %v2948 = vld [vmem:[%s2947] sm:$0xff]
  %v2949 = vld [vmem:[%s2947 + $0x8] sm:$0xff]
  %v2951 = vsel %vm304, %v2934, 0
  %v2954 = vsel %vm304, %v2935, 0
  %v2957 = vsel %vm304, %v2936, 0
  %v2960 = vsel %vm304, %v2937, 0
  %v2963 = vsel %vm304, %v2938, 0
  %v2966 = vsel %vm304, %v2939, 0
  %v2969 = vsel %vm304, %v2940, 0
  %v2972 = vsel %vm304, %v2941, 0
  %v2975 = vsel %vm304, %v2942, 0
  %v2978 = vsel %vm304, %v2943, 0
  %v2981 = vsel %vm304, %v2944, 0
  %v2984 = vsel %vm304, %v2945, 0
  %v2987 = vsel %vm304, %v2946, 0
  %2989 = vmatpush.msra.mxu0 0.0
  %2990 = vmatpush.msra.mxu0 0.0
  %2991 = vmatpush.msra.mxu0 0.0
  %2992 = vmatpush.msra.mxu0 0.0
  %2993 = vmatpush.msra.mxu0 0.0
  %2994 = vmatpush.msra.mxu0 0.0
  %2995 = vmatpush.msra.mxu0 0.0
  %2996 = vmatpush.msra.mxu0 0.0
  %2997 = vmatpush.msra.mxu0 0.0
  %2998 = vmatpush.msra.mxu0 0.0
  %2999 = vmatpush.msra.mxu0 0.0
  %3000 = vmatpush.msra.mxu0 0.0
  %3001 = vmatpush.msra.mxu0 0.0
  %3002 = vmatpush.msra.mxu0 0.0
  %3003 = vmatpush.msra.mxu0 %v2949
  %3004 = vmatpush.msra.mxu0 %v2948
  %3005 = vmatmul.f32.gmra.mxu0 %v2951
  %v3006 = vpop.f32.mrf.mxu0
  %v3007 = vadd.f32 0.0, %v3006
  %3008 = vmatmul.f32.gmra.mxu0 %v2954
  %v3009 = vpop.f32.mrf.mxu0
  %v3010 = vadd.f32 0.0, %v3009
  %3011 = vmatmul.f32.gmra.mxu0 %v2957
  %v3012 = vpop.f32.mrf.mxu0
  %v3013 = vadd.f32 0.0, %v3012
  %3014 = vmatmul.f32.gmra.mxu0 %v2960
  %v3015 = vpop.f32.mrf.mxu0
  %v3016 = vadd.f32 0.0, %v3015
  %3017 = vmatmul.f32.gmra.mxu0 %v2963
  %v3018 = vpop.f32.mrf.mxu0
  %v3019 = vadd.f32 0.0, %v3018
  %3020 = vmatmul.f32.gmra.mxu0 %v2966
  %v3021 = vpop.f32.mrf.mxu0
  %v3022 = vadd.f32 0.0, %v3021
  %3023 = vmatmul.f32.gmra.mxu0 %v2969
  %v3024 = vpop.f32.mrf.mxu0
  %v3025 = vadd.f32 0.0, %v3024
  %3026 = vmatmul.f32.gmra.mxu0 %v2972
  %v3027 = vpop.f32.mrf.mxu0
  %v3028 = vadd.f32 0.0, %v3027
  %3029 = vmatmul.f32.gmra.mxu0 %v2975
  %v3030 = vpop.f32.mrf.mxu0
  %v3031 = vadd.f32 0.0, %v3030
  %3032 = vmatmul.f32.gmra.mxu0 %v2978
  %v3033 = vpop.f32.mrf.mxu0
  %v3034 = vadd.f32 0.0, %v3033
  %3035 = vmatmul.f32.gmra.mxu0 %v2981
  %v3036 = vpop.f32.mrf.mxu0
  %v3037 = vadd.f32 0.0, %v3036
  %3038 = vmatmul.f32.gmra.mxu0 %v2984
  %v3039 = vpop.f32.mrf.mxu0
  %v3040 = vadd.f32 0.0, %v3039
  %3041 = vmatmul.f32.gmra.mxu0 %v2987
  %v3042 = vpop.f32.mrf.mxu0
  %v3043 = vadd.f32 0.0, %v3042
  %3044 = vdwg.mxu0
  %v3045 = vadd.f32 %v2812, %v3007
  %v3046 = vadd.f32 %v2813, %v3010
  %v3047 = vadd.f32 %v2814, %v3013
  %v3048 = vadd.f32 %v2815, %v3016
  %v3049 = vadd.f32 %v2816, %v3019
  %v3050 = vadd.f32 %v2817, %v3022
  %v3051 = vadd.f32 %v2818, %v3025
  %v3052 = vadd.f32 %v2819, %v3028
  %v3053 = vadd.f32 %v2820, %v3031
  %v3054 = vadd.f32 %v2821, %v3034
  %v3055 = vadd.f32 %v2822, %v3037
  %v3056 = vadd.f32 %v2823, %v3040
  %v3057 = vadd.f32 %v2824, %v3043
  %s3058 = scalar_lea.vmem %s0, 1352
  %v3059 = vld [vmem:[%s3058] sm:$0xff]
  %v3060 = vld [vmem:[%s3058 + $0x8] sm:$0xff]
  %v3061 = vld [vmem:[%s3058 + $0x10] sm:$0xff]
  %v3062 = vld [vmem:[%s3058 + $0x18] sm:$0xff]
  %v3063 = vld [vmem:[%s3058 + $0x20] sm:$0xff]
  %v3064 = vld [vmem:[%s3058 + $0x28] sm:$0xff]
  %v3065 = vld [vmem:[%s3058 + $0x30] sm:$0xff]
  %v3066 = vld [vmem:[%s3058 + $0x38] sm:$0xff]
  %v3067 = vld [vmem:[%s3058 + $0x40] sm:$0xff]
  %v3068 = vld [vmem:[%s3058 + $0x48] sm:$0xff]
  %v3069 = vld [vmem:[%s3058 + $0x50] sm:$0xff]
  %v3070 = vld [vmem:[%s3058 + $0x58] sm:$0xff]
  %v3071 = vld [vmem:[%s3058 + $0x60] sm:$0xff]
  %v3073 = vsel %vm64, %v3059, 0
  %v3076 = vsel %vm64, %v3060, 0
  %v3079 = vsel %vm64, %v3061, 0
  %v3082 = vsel %vm64, %v3062, 0
  %v3085 = vsel %vm64, %v3063, 0
  %v3088 = vsel %vm64, %v3064, 0
  %v3091 = vsel %vm64, %v3065, 0
  %v3094 = vsel %vm64, %v3066, 0
  %v3097 = vsel %vm64, %v3067, 0
  %v3100 = vsel %vm64, %v3068, 0
  %v3103 = vsel %vm64, %v3069, 0
  %v3106 = vsel %vm64, %v3070, 0
  %v3109 = vsel %vm64, %v3071, 0
  %3111 = vmatpush.msra.mxu0 0.0
  %3112 = vmatpush.msra.mxu0 0.0
  %3113 = vmatpush.msra.mxu0 0.0
  %3114 = vmatpush.msra.mxu0 %v106
  %3115 = vmatpush.msra.mxu0 %v45
  %3116 = vmatpush.msra.mxu0 %v44
  %3117 = vmatpush.msra.mxu0 %v43
  %3118 = vmatpush.msra.mxu0 %v42
  %3119 = vmatpush.msra.mxu0 %v41
  %3120 = vmatpush.msra.mxu0 %v40
  %3121 = vmatpush.msra.mxu0 %v39
  %3122 = vmatpush.msra.mxu0 %v38
  %3123 = vmatpush.msra.mxu0 %v37
  %3124 = vmatpush.msra.mxu0 %v36
  %3125 = vmatpush.msra.mxu0 %v35
  %3126 = vmatpush.msra.mxu0 %v34
  %3127 = vmatmul.f32.gmra.mxu0 %v3073
  %v3128 = vpop.f32.mrf.mxu0
  %v3129 = vadd.f32 %v62, %v3128
  %3130 = vmatmul.f32.gmra.mxu0 %v3076
  %v3131 = vpop.f32.mrf.mxu0
  %v3132 = vadd.f32 %v62, %v3131
  %3133 = vmatmul.f32.gmra.mxu0 %v3079
  %v3134 = vpop.f32.mrf.mxu0
  %v3135 = vadd.f32 %v62, %v3134
  %3136 = vmatmul.f32.gmra.mxu0 %v3082
  %v3137 = vpop.f32.mrf.mxu0
  %v3138 = vadd.f32 %v62, %v3137
  %3139 = vmatmul.f32.gmra.mxu0 %v3085
  %v3140 = vpop.f32.mrf.mxu0
  %v3141 = vadd.f32 %v62, %v3140
  %3142 = vmatmul.f32.gmra.mxu0 %v3088
  %v3143 = vpop.f32.mrf.mxu0
  %v3144 = vadd.f32 %v62, %v3143
  %3145 = vmatmul.f32.gmra.mxu0 %v3091
  %v3146 = vpop.f32.mrf.mxu0
  %v3147 = vadd.f32 %v62, %v3146
  %3148 = vmatmul.f32.gmra.mxu0 %v3094
  %v3149 = vpop.f32.mrf.mxu0
  %v3150 = vadd.f32 %v62, %v3149
  %3151 = vmatmul.f32.gmra.mxu0 %v3097
  %v3152 = vpop.f32.mrf.mxu0
  %v3153 = vadd.f32 %v62, %v3152
  %3154 = vmatmul.f32.gmra.mxu0 %v3100
  %v3155 = vpop.f32.mrf.mxu0
  %v3156 = vadd.f32 %v62, %v3155
  %3157 = vmatmul.f32.gmra.mxu0 %v3103
  %v3158 = vpop.f32.mrf.mxu0
  %v3159 = vadd.f32 %v62, %v3158
  %3160 = vmatmul.f32.gmra.mxu0 %v3106
  %v3161 = vpop.f32.mrf.mxu0
  %v3162 = vadd.f32 %v62, %v3161
  %3163 = vmatmul.f32.gmra.mxu0 %v3109
  %v3164 = vpop.f32.mrf.mxu0
  %v3165 = vadd.f32 %v62, %v3164
  %3166 = vdwg.mxu0
  %v3167 = vmax.f32 %v3129, 0.0
  %v3168 = vmax.f32 %v3132, 0.0
  %v3169 = vmax.f32 %v3135, 0.0
  %v3170 = vmax.f32 %v3138, 0.0
  %v3171 = vmax.f32 %v3141, 0.0
  %v3172 = vmax.f32 %v3144, 0.0
  %v3173 = vmax.f32 %v3147, 0.0
  %v3174 = vmax.f32 %v3150, 0.0
  %v3175 = vmax.f32 %v3153, 0.0
  %v3176 = vmax.f32 %v3156, 0.0
  %v3177 = vmax.f32 %v3159, 0.0
  %v3178 = vmax.f32 %v3162, 0.0
  %v3179 = vmax.f32 %v3165, 0.0
  %s3180 = scalar_lea.vmem %s3, 208
  %v3181 = vld [vmem:[%s3180] sm:$0xff]
  %v3182 = vld [vmem:[%s3180 + $0x8] sm:$0xff]
  %v3184 = vsel %vm304, %v3167, 0
  %v3187 = vsel %vm304, %v3168, 0
  %v3190 = vsel %vm304, %v3169, 0
  %v3193 = vsel %vm304, %v3170, 0
  %v3196 = vsel %vm304, %v3171, 0
  %v3199 = vsel %vm304, %v3172, 0
  %v3202 = vsel %vm304, %v3173, 0
  %v3205 = vsel %vm304, %v3174, 0
  %v3208 = vsel %vm304, %v3175, 0
  %v3211 = vsel %vm304, %v3176, 0
  %v3214 = vsel %vm304, %v3177, 0
  %v3217 = vsel %vm304, %v3178, 0
  %v3220 = vsel %vm304, %v3179, 0
  %3222 = vmatpush.msra.mxu0 0.0
  %3223 = vmatpush.msra.mxu0 0.0
  %3224 = vmatpush.msra.mxu0 0.0
  %3225 = vmatpush.msra.mxu0 0.0
  %3226 = vmatpush.msra.mxu0 0.0
  %3227 = vmatpush.msra.mxu0 0.0
  %3228 = vmatpush.msra.mxu0 0.0
  %3229 = vmatpush.msra.mxu0 0.0
  %3230 = vmatpush.msra.mxu0 0.0
  %3231 = vmatpush.msra.mxu0 0.0
  %3232 = vmatpush.msra.mxu0 0.0
  %3233 = vmatpush.msra.mxu0 0.0
  %3234 = vmatpush.msra.mxu0 0.0
  %3235 = vmatpush.msra.mxu0 0.0
  %3236 = vmatpush.msra.mxu0 %v3182
  %3237 = vmatpush.msra.mxu0 %v3181
  %3238 = vmatmul.f32.gmra.mxu0 %v3184
  %v3239 = vpop.f32.mrf.mxu0
  %v3240 = vadd.f32 0.0, %v3239
  %3241 = vmatmul.f32.gmra.mxu0 %v3187
  %v3242 = vpop.f32.mrf.mxu0
  %v3243 = vadd.f32 0.0, %v3242
  %3244 = vmatmul.f32.gmra.mxu0 %v3190
  %v3245 = vpop.f32.mrf.mxu0
  %v3246 = vadd.f32 0.0, %v3245
  %3247 = vmatmul.f32.gmra.mxu0 %v3193
  %v3248 = vpop.f32.mrf.mxu0
  %v3249 = vadd.f32 0.0, %v3248
  %3250 = vmatmul.f32.gmra.mxu0 %v3196
  %v3251 = vpop.f32.mrf.mxu0
  %v3252 = vadd.f32 0.0, %v3251
  %3253 = vmatmul.f32.gmra.mxu0 %v3199
  %v3254 = vpop.f32.mrf.mxu0
  %v3255 = vadd.f32 0.0, %v3254
  %3256 = vmatmul.f32.gmra.mxu0 %v3202
  %v3257 = vpop.f32.mrf.mxu0
  %v3258 = vadd.f32 0.0, %v3257
  %3259 = vmatmul.f32.gmra.mxu0 %v3205
  %v3260 = vpop.f32.mrf.mxu0
  %v3261 = vadd.f32 0.0, %v3260
  %3262 = vmatmul.f32.gmra.mxu0 %v3208
  %v3263 = vpop.f32.mrf.mxu0
  %v3264 = vadd.f32 0.0, %v3263
  %3265 = vmatmul.f32.gmra.mxu0 %v3211
  %v3266 = vpop.f32.mrf.mxu0
  %v3267 = vadd.f32 0.0, %v3266
  %3268 = vmatmul.f32.gmra.mxu0 %v3214
  %v3269 = vpop.f32.mrf.mxu0
  %v3270 = vadd.f32 0.0, %v3269
  %3271 = vmatmul.f32.gmra.mxu0 %v3217
  %v3272 = vpop.f32.mrf.mxu0
  %v3273 = vadd.f32 0.0, %v3272
  %3274 = vmatmul.f32.gmra.mxu0 %v3220
  %v3275 = vpop.f32.mrf.mxu0
  %v3276 = vadd.f32 0.0, %v3275
  %3277 = vdwg.mxu0
  %v3278 = vadd.f32 %v3045, %v3240
  %v3279 = vadd.f32 %v3046, %v3243
  %v3280 = vadd.f32 %v3047, %v3246
  %v3281 = vadd.f32 %v3048, %v3249
  %v3282 = vadd.f32 %v3049, %v3252
  %v3283 = vadd.f32 %v3050, %v3255
  %v3284 = vadd.f32 %v3051, %v3258
  %v3285 = vadd.f32 %v3052, %v3261
  %v3286 = vadd.f32 %v3053, %v3264
  %v3287 = vadd.f32 %v3054, %v3267
  %v3288 = vadd.f32 %v3055, %v3270
  %v3289 = vadd.f32 %v3056, %v3273
  %v3290 = vadd.f32 %v3057, %v3276
  %s3291 = scalar_lea.vmem %s0, 1456
  %v3292 = vld [vmem:[%s3291] sm:$0xff]
  %v3293 = vld [vmem:[%s3291 + $0x8] sm:$0xff]
  %v3294 = vld [vmem:[%s3291 + $0x10] sm:$0xff]
  %v3295 = vld [vmem:[%s3291 + $0x18] sm:$0xff]
  %v3296 = vld [vmem:[%s3291 + $0x20] sm:$0xff]
  %v3297 = vld [vmem:[%s3291 + $0x28] sm:$0xff]
  %v3298 = vld [vmem:[%s3291 + $0x30] sm:$0xff]
  %v3299 = vld [vmem:[%s3291 + $0x38] sm:$0xff]
  %v3300 = vld [vmem:[%s3291 + $0x40] sm:$0xff]
  %v3301 = vld [vmem:[%s3291 + $0x48] sm:$0xff]
  %v3302 = vld [vmem:[%s3291 + $0x50] sm:$0xff]
  %v3303 = vld [vmem:[%s3291 + $0x58] sm:$0xff]
  %v3304 = vld [vmem:[%s3291 + $0x60] sm:$0xff]
  %v3306 = vsel %vm64, %v3292, 0
  %v3309 = vsel %vm64, %v3293, 0
  %v3312 = vsel %vm64, %v3294, 0
  %v3315 = vsel %vm64, %v3295, 0
  %v3318 = vsel %vm64, %v3296, 0
  %v3321 = vsel %vm64, %v3297, 0
  %v3324 = vsel %vm64, %v3298, 0
  %v3327 = vsel %vm64, %v3299, 0
  %v3330 = vsel %vm64, %v3300, 0
  %v3333 = vsel %vm64, %v3301, 0
  %v3336 = vsel %vm64, %v3302, 0
  %v3339 = vsel %vm64, %v3303, 0
  %v3342 = vsel %vm64, %v3304, 0
  %3344 = vmatpush.msra.mxu0 0.0
  %3345 = vmatpush.msra.mxu0 0.0
  %3346 = vmatpush.msra.mxu0 0.0
  %3347 = vmatpush.msra.mxu0 %v106
  %3348 = vmatpush.msra.mxu0 %v45
  %3349 = vmatpush.msra.mxu0 %v44
  %3350 = vmatpush.msra.mxu0 %v43
  %3351 = vmatpush.msra.mxu0 %v42
  %3352 = vmatpush.msra.mxu0 %v41
  %3353 = vmatpush.msra.mxu0 %v40
  %3354 = vmatpush.msra.mxu0 %v39
  %3355 = vmatpush.msra.mxu0 %v38
  %3356 = vmatpush.msra.mxu0 %v37
  %3357 = vmatpush.msra.mxu0 %v36
  %3358 = vmatpush.msra.mxu0 %v35
  %3359 = vmatpush.msra.mxu0 %v34
  %3360 = vmatmul.f32.gmra.mxu0 %v3306
  %v3361 = vpop.f32.mrf.mxu0
  %v3362 = vadd.f32 %v62, %v3361
  %3363 = vmatmul.f32.gmra.mxu0 %v3309
  %v3364 = vpop.f32.mrf.mxu0
  %v3365 = vadd.f32 %v62, %v3364
  %3366 = vmatmul.f32.gmra.mxu0 %v3312
  %v3367 = vpop.f32.mrf.mxu0
  %v3368 = vadd.f32 %v62, %v3367
  %3369 = vmatmul.f32.gmra.mxu0 %v3315
  %v3370 = vpop.f32.mrf.mxu0
  %v3371 = vadd.f32 %v62, %v3370
  %3372 = vmatmul.f32.gmra.mxu0 %v3318
  %v3373 = vpop.f32.mrf.mxu0
  %v3374 = vadd.f32 %v62, %v3373
  %3375 = vmatmul.f32.gmra.mxu0 %v3321
  %v3376 = vpop.f32.mrf.mxu0
  %v3377 = vadd.f32 %v62, %v3376
  %3378 = vmatmul.f32.gmra.mxu0 %v3324
  %v3379 = vpop.f32.mrf.mxu0
  %v3380 = vadd.f32 %v62, %v3379
  %3381 = vmatmul.f32.gmra.mxu0 %v3327
  %v3382 = vpop.f32.mrf.mxu0
  %v3383 = vadd.f32 %v62, %v3382
  %3384 = vmatmul.f32.gmra.mxu0 %v3330
  %v3385 = vpop.f32.mrf.mxu0
  %v3386 = vadd.f32 %v62, %v3385
  %3387 = vmatmul.f32.gmra.mxu0 %v3333
  %v3388 = vpop.f32.mrf.mxu0
  %v3389 = vadd.f32 %v62, %v3388
  %3390 = vmatmul.f32.gmra.mxu0 %v3336
  %v3391 = vpop.f32.mrf.mxu0
  %v3392 = vadd.f32 %v62, %v3391
  %3393 = vmatmul.f32.gmra.mxu0 %v3339
  %v3394 = vpop.f32.mrf.mxu0
  %v3395 = vadd.f32 %v62, %v3394
  %3396 = vmatmul.f32.gmra.mxu0 %v3342
  %v3397 = vpop.f32.mrf.mxu0
  %v3398 = vadd.f32 %v62, %v3397
  %3399 = vdwg.mxu0
  %v3400 = vmax.f32 %v3362, 0.0
  %v3401 = vmax.f32 %v3365, 0.0
  %v3402 = vmax.f32 %v3368, 0.0
  %v3403 = vmax.f32 %v3371, 0.0
  %v3404 = vmax.f32 %v3374, 0.0
  %v3405 = vmax.f32 %v3377, 0.0
  %v3406 = vmax.f32 %v3380, 0.0
  %v3407 = vmax.f32 %v3383, 0.0
  %v3408 = vmax.f32 %v3386, 0.0
  %v3409 = vmax.f32 %v3389, 0.0
  %v3410 = vmax.f32 %v3392, 0.0
  %v3411 = vmax.f32 %v3395, 0.0
  %v3412 = vmax.f32 %v3398, 0.0
  %s3413 = scalar_lea.vmem %s3, 224
  %v3414 = vld [vmem:[%s3413] sm:$0xff]
  %v3415 = vld [vmem:[%s3413 + $0x8] sm:$0xff]
  %v3417 = vsel %vm304, %v3400, 0
  %v3420 = vsel %vm304, %v3401, 0
  %v3423 = vsel %vm304, %v3402, 0
  %v3426 = vsel %vm304, %v3403, 0
  %v3429 = vsel %vm304, %v3404, 0
  %v3432 = vsel %vm304, %v3405, 0
  %v3435 = vsel %vm304, %v3406, 0
  %v3438 = vsel %vm304, %v3407, 0
  %v3441 = vsel %vm304, %v3408, 0
  %v3444 = vsel %vm304, %v3409, 0
  %v3447 = vsel %vm304, %v3410, 0
  %v3450 = vsel %vm304, %v3411, 0
  %v3453 = vsel %vm304, %v3412, 0
  %3455 = vmatpush.msra.mxu0 0.0
  %3456 = vmatpush.msra.mxu0 0.0
  %3457 = vmatpush.msra.mxu0 0.0
  %3458 = vmatpush.msra.mxu0 0.0
  %3459 = vmatpush.msra.mxu0 0.0
  %3460 = vmatpush.msra.mxu0 0.0
  %3461 = vmatpush.msra.mxu0 0.0
  %3462 = vmatpush.msra.mxu0 0.0
  %3463 = vmatpush.msra.mxu0 0.0
  %3464 = vmatpush.msra.mxu0 0.0
  %3465 = vmatpush.msra.mxu0 0.0
  %3466 = vmatpush.msra.mxu0 0.0
  %3467 = vmatpush.msra.mxu0 0.0
  %3468 = vmatpush.msra.mxu0 0.0
  %3469 = vmatpush.msra.mxu0 %v3415
  %3470 = vmatpush.msra.mxu0 %v3414
  %3471 = vmatmul.f32.gmra.mxu0 %v3417
  %v3472 = vpop.f32.mrf.mxu0
  %v3473 = vadd.f32 0.0, %v3472
  %3474 = vmatmul.f32.gmra.mxu0 %v3420
  %v3475 = vpop.f32.mrf.mxu0
  %v3476 = vadd.f32 0.0, %v3475
  %3477 = vmatmul.f32.gmra.mxu0 %v3423
  %v3478 = vpop.f32.mrf.mxu0
  %v3479 = vadd.f32 0.0, %v3478
  %3480 = vmatmul.f32.gmra.mxu0 %v3426
  %v3481 = vpop.f32.mrf.mxu0
  %v3482 = vadd.f32 0.0, %v3481
  %3483 = vmatmul.f32.gmra.mxu0 %v3429
  %v3484 = vpop.f32.mrf.mxu0
  %v3485 = vadd.f32 0.0, %v3484
  %3486 = vmatmul.f32.gmra.mxu0 %v3432
  %v3487 = vpop.f32.mrf.mxu0
  %v3488 = vadd.f32 0.0, %v3487
  %3489 = vmatmul.f32.gmra.mxu0 %v3435
  %v3490 = vpop.f32.mrf.mxu0
  %v3491 = vadd.f32 0.0, %v3490
  %3492 = vmatmul.f32.gmra.mxu0 %v3438
  %v3493 = vpop.f32.mrf.mxu0
  %v3494 = vadd.f32 0.0, %v3493
  %3495 = vmatmul.f32.gmra.mxu0 %v3441
  %v3496 = vpop.f32.mrf.mxu0
  %v3497 = vadd.f32 0.0, %v3496
  %3498 = vmatmul.f32.gmra.mxu0 %v3444
  %v3499 = vpop.f32.mrf.mxu0
  %v3500 = vadd.f32 0.0, %v3499
  %3501 = vmatmul.f32.gmra.mxu0 %v3447
  %v3502 = vpop.f32.mrf.mxu0
  %v3503 = vadd.f32 0.0, %v3502
  %3504 = vmatmul.f32.gmra.mxu0 %v3450
  %v3505 = vpop.f32.mrf.mxu0
  %v3506 = vadd.f32 0.0, %v3505
  %3507 = vmatmul.f32.gmra.mxu0 %v3453
  %v3508 = vpop.f32.mrf.mxu0
  %v3509 = vadd.f32 0.0, %v3508
  %3510 = vdwg.mxu0
  %v3511 = vadd.f32 %v3278, %v3473
  %v3512 = vadd.f32 %v3279, %v3476
  %v3513 = vadd.f32 %v3280, %v3479
  %v3514 = vadd.f32 %v3281, %v3482
  %v3515 = vadd.f32 %v3282, %v3485
  %v3516 = vadd.f32 %v3283, %v3488
  %v3517 = vadd.f32 %v3284, %v3491
  %v3518 = vadd.f32 %v3285, %v3494
  %v3519 = vadd.f32 %v3286, %v3497
  %v3520 = vadd.f32 %v3287, %v3500
  %v3521 = vadd.f32 %v3288, %v3503
  %v3522 = vadd.f32 %v3289, %v3506
  %v3523 = vadd.f32 %v3290, %v3509
  %s3524 = scalar_lea.vmem %s0, 1560
  %v3525 = vld [vmem:[%s3524] sm:$0xff]
  %v3526 = vld [vmem:[%s3524 + $0x8] sm:$0xff]
  %v3527 = vld [vmem:[%s3524 + $0x10] sm:$0xff]
  %v3528 = vld [vmem:[%s3524 + $0x18] sm:$0xff]
  %v3529 = vld [vmem:[%s3524 + $0x20] sm:$0xff]
  %v3530 = vld [vmem:[%s3524 + $0x28] sm:$0xff]
  %v3531 = vld [vmem:[%s3524 + $0x30] sm:$0xff]
  %v3532 = vld [vmem:[%s3524 + $0x38] sm:$0xff]
  %v3533 = vld [vmem:[%s3524 + $0x40] sm:$0xff]
  %v3534 = vld [vmem:[%s3524 + $0x48] sm:$0xff]
  %v3535 = vld [vmem:[%s3524 + $0x50] sm:$0xff]
  %v3536 = vld [vmem:[%s3524 + $0x58] sm:$0xff]
  %v3537 = vld [vmem:[%s3524 + $0x60] sm:$0xff]
  %v3539 = vsel %vm64, %v3525, 0
  %v3542 = vsel %vm64, %v3526, 0
  %v3545 = vsel %vm64, %v3527, 0
  %v3548 = vsel %vm64, %v3528, 0
  %v3551 = vsel %vm64, %v3529, 0
  %v3554 = vsel %vm64, %v3530, 0
  %v3557 = vsel %vm64, %v3531, 0
  %v3560 = vsel %vm64, %v3532, 0
  %v3563 = vsel %vm64, %v3533, 0
  %v3566 = vsel %vm64, %v3534, 0
  %v3569 = vsel %vm64, %v3535, 0
  %v3572 = vsel %vm64, %v3536, 0
  %v3575 = vsel %vm64, %v3537, 0
  %3577 = vmatpush.msra.mxu0 0.0
  %3578 = vmatpush.msra.mxu0 0.0
  %3579 = vmatpush.msra.mxu0 0.0
  %3580 = vmatpush.msra.mxu0 %v106
  %3581 = vmatpush.msra.mxu0 %v45
  %3582 = vmatpush.msra.mxu0 %v44
  %3583 = vmatpush.msra.mxu0 %v43
  %3584 = vmatpush.msra.mxu0 %v42
  %3585 = vmatpush.msra.mxu0 %v41
  %3586 = vmatpush.msra.mxu0 %v40
  %3587 = vmatpush.msra.mxu0 %v39
  %3588 = vmatpush.msra.mxu0 %v38
  %3589 = vmatpush.msra.mxu0 %v37
  %3590 = vmatpush.msra.mxu0 %v36
  %3591 = vmatpush.msra.mxu0 %v35
  %3592 = vmatpush.msra.mxu0 %v34
  %3593 = vmatmul.f32.gmra.mxu0 %v3539
  %v3594 = vpop.f32.mrf.mxu0
  %v3595 = vadd.f32 %v62, %v3594
  %3596 = vmatmul.f32.gmra.mxu0 %v3542
  %v3597 = vpop.f32.mrf.mxu0
  %v3598 = vadd.f32 %v62, %v3597
  %3599 = vmatmul.f32.gmra.mxu0 %v3545
  %v3600 = vpop.f32.mrf.mxu0
  %v3601 = vadd.f32 %v62, %v3600
  %3602 = vmatmul.f32.gmra.mxu0 %v3548
  %v3603 = vpop.f32.mrf.mxu0
  %v3604 = vadd.f32 %v62, %v3603
  %3605 = vmatmul.f32.gmra.mxu0 %v3551
  %v3606 = vpop.f32.mrf.mxu0
  %v3607 = vadd.f32 %v62, %v3606
  %3608 = vmatmul.f32.gmra.mxu0 %v3554
  %v3609 = vpop.f32.mrf.mxu0
  %v3610 = vadd.f32 %v62, %v3609
  %3611 = vmatmul.f32.gmra.mxu0 %v3557
  %v3612 = vpop.f32.mrf.mxu0
  %v3613 = vadd.f32 %v62, %v3612
  %3614 = vmatmul.f32.gmra.mxu0 %v3560
  %v3615 = vpop.f32.mrf.mxu0
  %v3616 = vadd.f32 %v62, %v3615
  %3617 = vmatmul.f32.gmra.mxu0 %v3563
  %v3618 = vpop.f32.mrf.mxu0
  %v3619 = vadd.f32 %v62, %v3618
  %3620 = vmatmul.f32.gmra.mxu0 %v3566
  %v3621 = vpop.f32.mrf.mxu0
  %v3622 = vadd.f32 %v62, %v3621
  %3623 = vmatmul.f32.gmra.mxu0 %v3569
  %v3624 = vpop.f32.mrf.mxu0
  %v3625 = vadd.f32 %v62, %v3624
  %3626 = vmatmul.f32.gmra.mxu0 %v3572
  %v3627 = vpop.f32.mrf.mxu0
  %v3628 = vadd.f32 %v62, %v3627
  %3629 = vmatmul.f32.gmra.mxu0 %v3575
  %v3630 = vpop.f32.mrf.mxu0
  %v3631 = vadd.f32 %v62, %v3630
  %3632 = vdwg.mxu0
  %v3633 = vmax.f32 %v3595, 0.0
  %v3634 = vmax.f32 %v3598, 0.0
  %v3635 = vmax.f32 %v3601, 0.0
  %v3636 = vmax.f32 %v3604, 0.0
  %v3637 = vmax.f32 %v3607, 0.0
  %v3638 = vmax.f32 %v3610, 0.0
  %v3639 = vmax.f32 %v3613, 0.0
  %v3640 = vmax.f32 %v3616, 0.0
  %v3641 = vmax.f32 %v3619, 0.0
  %v3642 = vmax.f32 %v3622, 0.0
  %v3643 = vmax.f32 %v3625, 0.0
  %v3644 = vmax.f32 %v3628, 0.0
  %v3645 = vmax.f32 %v3631, 0.0
  %s3646 = scalar_lea.vmem %s3, 240
  %v3647 = vld [vmem:[%s3646] sm:$0xff]
  %v3648 = vld [vmem:[%s3646 + $0x8] sm:$0xff]
  %v3650 = vsel %vm304, %v3633, 0
  %v3653 = vsel %vm304, %v3634, 0
  %v3656 = vsel %vm304, %v3635, 0
  %v3659 = vsel %vm304, %v3636, 0
  %v3662 = vsel %vm304, %v3637, 0
  %v3665 = vsel %vm304, %v3638, 0
  %v3668 = vsel %vm304, %v3639, 0
  %v3671 = vsel %vm304, %v3640, 0
  %v3674 = vsel %vm304, %v3641, 0
  %v3677 = vsel %vm304, %v3642, 0
  %v3680 = vsel %vm304, %v3643, 0
  %v3683 = vsel %vm304, %v3644, 0
  %v3686 = vsel %vm304, %v3645, 0
  %3688 = vmatpush.msra.mxu0 0.0
  %3689 = vmatpush.msra.mxu0 0.0
  %3690 = vmatpush.msra.mxu0 0.0
  %3691 = vmatpush.msra.mxu0 0.0
  %3692 = vmatpush.msra.mxu0 0.0
  %3693 = vmatpush.msra.mxu0 0.0
  %3694 = vmatpush.msra.mxu0 0.0
  %3695 = vmatpush.msra.mxu0 0.0
  %3696 = vmatpush.msra.mxu0 0.0
  %3697 = vmatpush.msra.mxu0 0.0
  %3698 = vmatpush.msra.mxu0 0.0
  %3699 = vmatpush.msra.mxu0 0.0
  %3700 = vmatpush.msra.mxu0 0.0
  %3701 = vmatpush.msra.mxu0 0.0
  %3702 = vmatpush.msra.mxu0 %v3648
  %3703 = vmatpush.msra.mxu0 %v3647
  %3704 = vmatmul.f32.gmra.mxu0 %v3650
  %v3705 = vpop.f32.mrf.mxu0
  %v3706 = vadd.f32 0.0, %v3705
  %3707 = vmatmul.f32.gmra.mxu0 %v3653
  %v3708 = vpop.f32.mrf.mxu0
  %v3709 = vadd.f32 0.0, %v3708
  %3710 = vmatmul.f32.gmra.mxu0 %v3656
  %v3711 = vpop.f32.mrf.mxu0
  %v3712 = vadd.f32 0.0, %v3711
  %3713 = vmatmul.f32.gmra.mxu0 %v3659
  %v3714 = vpop.f32.mrf.mxu0
  %v3715 = vadd.f32 0.0, %v3714
  %3716 = vmatmul.f32.gmra.mxu0 %v3662
  %v3717 = vpop.f32.mrf.mxu0
  %v3718 = vadd.f32 0.0, %v3717
  %3719 = vmatmul.f32.gmra.mxu0 %v3665
  %v3720 = vpop.f32.mrf.mxu0
  %v3721 = vadd.f32 0.0, %v3720
  %3722 = vmatmul.f32.gmra.mxu0 %v3668
  %v3723 = vpop.f32.mrf.mxu0
  %v3724 = vadd.f32 0.0, %v3723
  %3725 = vmatmul.f32.gmra.mxu0 %v3671
  %v3726 = vpop.f32.mrf.mxu0
  %v3727 = vadd.f32 0.0, %v3726
  %3728 = vmatmul.f32.gmra.mxu0 %v3674
  %v3729 = vpop.f32.mrf.mxu0
  %v3730 = vadd.f32 0.0, %v3729
  %3731 = vmatmul.f32.gmra.mxu0 %v3677
  %v3732 = vpop.f32.mrf.mxu0
  %v3733 = vadd.f32 0.0, %v3732
  %3734 = vmatmul.f32.gmra.mxu0 %v3680
  %v3735 = vpop.f32.mrf.mxu0
  %v3736 = vadd.f32 0.0, %v3735
  %3737 = vmatmul.f32.gmra.mxu0 %v3683
  %v3738 = vpop.f32.mrf.mxu0
  %v3739 = vadd.f32 0.0, %v3738
  %3740 = vmatmul.f32.gmra.mxu0 %v3686
  %v3741 = vpop.f32.mrf.mxu0
  %v3742 = vadd.f32 0.0, %v3741
  %3743 = vdwg.mxu0
  %v3744 = vadd.f32 %v3511, %v3706
  %v3745 = vadd.f32 %v3512, %v3709
  %v3746 = vadd.f32 %v3513, %v3712
  %v3747 = vadd.f32 %v3514, %v3715
  %v3748 = vadd.f32 %v3515, %v3718
  %v3749 = vadd.f32 %v3516, %v3721
  %v3750 = vadd.f32 %v3517, %v3724
  %v3751 = vadd.f32 %v3518, %v3727
  %v3752 = vadd.f32 %v3519, %v3730
  %v3753 = vadd.f32 %v3520, %v3733
  %v3754 = vadd.f32 %v3521, %v3736
  %v3755 = vadd.f32 %v3522, %v3739
  %v3756 = vadd.f32 %v3523, %v3742
  %s3757 = scalar_lea.vmem %s0, 1664
  %v3758 = vld [vmem:[%s3757] sm:$0xff]
  %v3759 = vld [vmem:[%s3757 + $0x8] sm:$0xff]
  %v3760 = vld [vmem:[%s3757 + $0x10] sm:$0xff]
  %v3761 = vld [vmem:[%s3757 + $0x18] sm:$0xff]
  %v3762 = vld [vmem:[%s3757 + $0x20] sm:$0xff]
  %v3763 = vld [vmem:[%s3757 + $0x28] sm:$0xff]
  %v3764 = vld [vmem:[%s3757 + $0x30] sm:$0xff]
  %v3765 = vld [vmem:[%s3757 + $0x38] sm:$0xff]
  %v3766 = vld [vmem:[%s3757 + $0x40] sm:$0xff]
  %v3767 = vld [vmem:[%s3757 + $0x48] sm:$0xff]
  %v3768 = vld [vmem:[%s3757 + $0x50] sm:$0xff]
  %v3769 = vld [vmem:[%s3757 + $0x58] sm:$0xff]
  %v3770 = vld [vmem:[%s3757 + $0x60] sm:$0xff]
  %v3772 = vsel %vm64, %v3758, 0
  %v3775 = vsel %vm64, %v3759, 0
  %v3778 = vsel %vm64, %v3760, 0
  %v3781 = vsel %vm64, %v3761, 0
  %v3784 = vsel %vm64, %v3762, 0
  %v3787 = vsel %vm64, %v3763, 0
  %v3790 = vsel %vm64, %v3764, 0
  %v3793 = vsel %vm64, %v3765, 0
  %v3796 = vsel %vm64, %v3766, 0
  %v3799 = vsel %vm64, %v3767, 0
  %v3802 = vsel %vm64, %v3768, 0
  %v3805 = vsel %vm64, %v3769, 0
  %v3808 = vsel %vm64, %v3770, 0
  %3810 = vmatpush.msra.mxu0 0.0
  %3811 = vmatpush.msra.mxu0 0.0
  %3812 = vmatpush.msra.mxu0 0.0
  %3813 = vmatpush.msra.mxu0 %v106
  %3814 = vmatpush.msra.mxu0 %v45
  %3815 = vmatpush.msra.mxu0 %v44
  %3816 = vmatpush.msra.mxu0 %v43
  %3817 = vmatpush.msra.mxu0 %v42
  %3818 = vmatpush.msra.mxu0 %v41
  %3819 = vmatpush.msra.mxu0 %v40
  %3820 = vmatpush.msra.mxu0 %v39
  %3821 = vmatpush.msra.mxu0 %v38
  %3822 = vmatpush.msra.mxu0 %v37
  %3823 = vmatpush.msra.mxu0 %v36
  %3824 = vmatpush.msra.mxu0 %v35
  %3825 = vmatpush.msra.mxu0 %v34
  %3826 = vmatmul.f32.gmra.mxu0 %v3772
  %v3827 = vpop.f32.mrf.mxu0
  %v3828 = vadd.f32 %v62, %v3827
  %3829 = vmatmul.f32.gmra.mxu0 %v3775
  %v3830 = vpop.f32.mrf.mxu0
  %v3831 = vadd.f32 %v62, %v3830
  %3832 = vmatmul.f32.gmra.mxu0 %v3778
  %v3833 = vpop.f32.mrf.mxu0
  %v3834 = vadd.f32 %v62, %v3833
  %3835 = vmatmul.f32.gmra.mxu0 %v3781
  %v3836 = vpop.f32.mrf.mxu0
  %v3837 = vadd.f32 %v62, %v3836
  %3838 = vmatmul.f32.gmra.mxu0 %v3784
  %v3839 = vpop.f32.mrf.mxu0
  %v3840 = vadd.f32 %v62, %v3839
  %3841 = vmatmul.f32.gmra.mxu0 %v3787
  %v3842 = vpop.f32.mrf.mxu0
  %v3843 = vadd.f32 %v62, %v3842
  %3844 = vmatmul.f32.gmra.mxu0 %v3790
  %v3845 = vpop.f32.mrf.mxu0
  %v3846 = vadd.f32 %v62, %v3845
  %3847 = vmatmul.f32.gmra.mxu0 %v3793
  %v3848 = vpop.f32.mrf.mxu0
  %v3849 = vadd.f32 %v62, %v3848
  %3850 = vmatmul.f32.gmra.mxu0 %v3796
  %v3851 = vpop.f32.mrf.mxu0
  %v3852 = vadd.f32 %v62, %v3851
  %3853 = vmatmul.f32.gmra.mxu0 %v3799
  %v3854 = vpop.f32.mrf.mxu0
  %v3855 = vadd.f32 %v62, %v3854
  %3856 = vmatmul.f32.gmra.mxu0 %v3802
  %v3857 = vpop.f32.mrf.mxu0
  %v3858 = vadd.f32 %v62, %v3857
  %3859 = vmatmul.f32.gmra.mxu0 %v3805
  %v3860 = vpop.f32.mrf.mxu0
  %v3861 = vadd.f32 %v62, %v3860
  %3862 = vmatmul.f32.gmra.mxu0 %v3808
  %v3863 = vpop.f32.mrf.mxu0
  %v3864 = vadd.f32 %v62, %v3863
  %3865 = vdwg.mxu0
  %v3866 = vmax.f32 %v3828, 0.0
  %v3867 = vmax.f32 %v3831, 0.0
  %v3868 = vmax.f32 %v3834, 0.0
  %v3869 = vmax.f32 %v3837, 0.0
  %v3870 = vmax.f32 %v3840, 0.0
  %v3871 = vmax.f32 %v3843, 0.0
  %v3872 = vmax.f32 %v3846, 0.0
  %v3873 = vmax.f32 %v3849, 0.0
  %v3874 = vmax.f32 %v3852, 0.0
  %v3875 = vmax.f32 %v3855, 0.0
  %v3876 = vmax.f32 %v3858, 0.0
  %v3877 = vmax.f32 %v3861, 0.0
  %v3878 = vmax.f32 %v3864, 0.0
  %s3879 = scalar_lea.vmem %s3, 256
  %v3880 = vld [vmem:[%s3879] sm:$0xff]
  %v3881 = vld [vmem:[%s3879 + $0x8] sm:$0xff]
  %v3883 = vsel %vm304, %v3866, 0
  %v3886 = vsel %vm304, %v3867, 0
  %v3889 = vsel %vm304, %v3868, 0
  %v3892 = vsel %vm304, %v3869, 0
  %v3895 = vsel %vm304, %v3870, 0
  %v3898 = vsel %vm304, %v3871, 0
  %v3901 = vsel %vm304, %v3872, 0
  %v3904 = vsel %vm304, %v3873, 0
  %v3907 = vsel %vm304, %v3874, 0
  %v3910 = vsel %vm304, %v3875, 0
  %v3913 = vsel %vm304, %v3876, 0
  %v3916 = vsel %vm304, %v3877, 0
  %v3919 = vsel %vm304, %v3878, 0
  %3921 = vmatpush.msra.mxu0 0.0
  %3922 = vmatpush.msra.mxu0 0.0
  %3923 = vmatpush.msra.mxu0 0.0
  %3924 = vmatpush.msra.mxu0 0.0
  %3925 = vmatpush.msra.mxu0 0.0
  %3926 = vmatpush.msra.mxu0 0.0
  %3927 = vmatpush.msra.mxu0 0.0
  %3928 = vmatpush.msra.mxu0 0.0
  %3929 = vmatpush.msra.mxu0 0.0
  %3930 = vmatpush.msra.mxu0 0.0
  %3931 = vmatpush.msra.mxu0 0.0
  %3932 = vmatpush.msra.mxu0 0.0
  %3933 = vmatpush.msra.mxu0 0.0
  %3934 = vmatpush.msra.mxu0 0.0
  %3935 = vmatpush.msra.mxu0 %v3881
  %3936 = vmatpush.msra.mxu0 %v3880
  %3937 = vmatmul.f32.gmra.mxu0 %v3883
  %v3938 = vpop.f32.mrf.mxu0
  %v3939 = vadd.f32 0.0, %v3938
  %3940 = vmatmul.f32.gmra.mxu0 %v3886
  %v3941 = vpop.f32.mrf.mxu0
  %v3942 = vadd.f32 0.0, %v3941
  %3943 = vmatmul.f32.gmra.mxu0 %v3889
  %v3944 = vpop.f32.mrf.mxu0
  %v3945 = vadd.f32 0.0, %v3944
  %3946 = vmatmul.f32.gmra.mxu0 %v3892
  %v3947 = vpop.f32.mrf.mxu0
  %v3948 = vadd.f32 0.0, %v3947
  %3949 = vmatmul.f32.gmra.mxu0 %v3895
  %v3950 = vpop.f32.mrf.mxu0
  %v3951 = vadd.f32 0.0, %v3950
  %3952 = vmatmul.f32.gmra.mxu0 %v3898
  %v3953 = vpop.f32.mrf.mxu0
  %v3954 = vadd.f32 0.0, %v3953
  %3955 = vmatmul.f32.gmra.mxu0 %v3901
  %v3956 = vpop.f32.mrf.mxu0
  %v3957 = vadd.f32 0.0, %v3956
  %3958 = vmatmul.f32.gmra.mxu0 %v3904
  %v3959 = vpop.f32.mrf.mxu0
  %v3960 = vadd.f32 0.0, %v3959
  %3961 = vmatmul.f32.gmra.mxu0 %v3907
  %v3962 = vpop.f32.mrf.mxu0
  %v3963 = vadd.f32 0.0, %v3962
  %3964 = vmatmul.f32.gmra.mxu0 %v3910
  %v3965 = vpop.f32.mrf.mxu0
  %v3966 = vadd.f32 0.0, %v3965
  %3967 = vmatmul.f32.gmra.mxu0 %v3913
  %v3968 = vpop.f32.mrf.mxu0
  %v3969 = vadd.f32 0.0, %v3968
  %3970 = vmatmul.f32.gmra.mxu0 %v3916
  %v3971 = vpop.f32.mrf.mxu0
  %v3972 = vadd.f32 0.0, %v3971
  %3973 = vmatmul.f32.gmra.mxu0 %v3919
  %v3974 = vpop.f32.mrf.mxu0
  %v3975 = vadd.f32 0.0, %v3974
  %3976 = vdwg.mxu0
  %v3977 = vadd.f32 %v3744, %v3939
  %v3978 = vadd.f32 %v3745, %v3942
  %v3979 = vadd.f32 %v3746, %v3945
  %v3980 = vadd.f32 %v3747, %v3948
  %v3981 = vadd.f32 %v3748, %v3951
  %v3982 = vadd.f32 %v3749, %v3954
  %v3983 = vadd.f32 %v3750, %v3957
  %v3984 = vadd.f32 %v3751, %v3960
  %v3985 = vadd.f32 %v3752, %v3963
  %v3986 = vadd.f32 %v3753, %v3966
  %v3987 = vadd.f32 %v3754, %v3969
  %v3988 = vadd.f32 %v3755, %v3972
  %v3989 = vadd.f32 %v3756, %v3975
  %s3990 = scalar_lea.vmem %s0, 1768
  %v3991 = vld [vmem:[%s3990] sm:$0xff]
  %v3992 = vld [vmem:[%s3990 + $0x8] sm:$0xff]
  %v3993 = vld [vmem:[%s3990 + $0x10] sm:$0xff]
  %v3994 = vld [vmem:[%s3990 + $0x18] sm:$0xff]
  %v3995 = vld [vmem:[%s3990 + $0x20] sm:$0xff]
  %v3996 = vld [vmem:[%s3990 + $0x28] sm:$0xff]
  %v3997 = vld [vmem:[%s3990 + $0x30] sm:$0xff]
  %v3998 = vld [vmem:[%s3990 + $0x38] sm:$0xff]
  %v3999 = vld [vmem:[%s3990 + $0x40] sm:$0xff]
  %v4000 = vld [vmem:[%s3990 + $0x48] sm:$0xff]
  %v4001 = vld [vmem:[%s3990 + $0x50] sm:$0xff]
  %v4002 = vld [vmem:[%s3990 + $0x58] sm:$0xff]
  %v4003 = vld [vmem:[%s3990 + $0x60] sm:$0xff]
  %v4005 = vsel %vm64, %v3991, 0
  %v4008 = vsel %vm64, %v3992, 0
  %v4011 = vsel %vm64, %v3993, 0
  %v4014 = vsel %vm64, %v3994, 0
  %v4017 = vsel %vm64, %v3995, 0
  %v4020 = vsel %vm64, %v3996, 0
  %v4023 = vsel %vm64, %v3997, 0
  %v4026 = vsel %vm64, %v3998, 0
  %v4029 = vsel %vm64, %v3999, 0
  %v4032 = vsel %vm64, %v4000, 0
  %v4035 = vsel %vm64, %v4001, 0
  %v4038 = vsel %vm64, %v4002, 0
  %v4041 = vsel %vm64, %v4003, 0
  %4043 = vmatpush.msra.mxu0 0.0
  %4044 = vmatpush.msra.mxu0 0.0
  %4045 = vmatpush.msra.mxu0 0.0
  %4046 = vmatpush.msra.mxu0 %v106
  %4047 = vmatpush.msra.mxu0 %v45
  %4048 = vmatpush.msra.mxu0 %v44
  %4049 = vmatpush.msra.mxu0 %v43
  %4050 = vmatpush.msra.mxu0 %v42
  %4051 = vmatpush.msra.mxu0 %v41
  %4052 = vmatpush.msra.mxu0 %v40
  %4053 = vmatpush.msra.mxu0 %v39
  %4054 = vmatpush.msra.mxu0 %v38
  %4055 = vmatpush.msra.mxu0 %v37
  %4056 = vmatpush.msra.mxu0 %v36
  %4057 = vmatpush.msra.mxu0 %v35
  %4058 = vmatpush.msra.mxu0 %v34
  %4059 = vmatmul.f32.gmra.mxu0 %v4005
  %v4060 = vpop.f32.mrf.mxu0
  %v4061 = vadd.f32 %v62, %v4060
  %4062 = vmatmul.f32.gmra.mxu0 %v4008
  %v4063 = vpop.f32.mrf.mxu0
  %v4064 = vadd.f32 %v62, %v4063
  %4065 = vmatmul.f32.gmra.mxu0 %v4011
  %v4066 = vpop.f32.mrf.mxu0
  %v4067 = vadd.f32 %v62, %v4066
  %4068 = vmatmul.f32.gmra.mxu0 %v4014
  %v4069 = vpop.f32.mrf.mxu0
  %v4070 = vadd.f32 %v62, %v4069
  %4071 = vmatmul.f32.gmra.mxu0 %v4017
  %v4072 = vpop.f32.mrf.mxu0
  %v4073 = vadd.f32 %v62, %v4072
  %4074 = vmatmul.f32.gmra.mxu0 %v4020
  %v4075 = vpop.f32.mrf.mxu0
  %v4076 = vadd.f32 %v62, %v4075
  %4077 = vmatmul.f32.gmra.mxu0 %v4023
  %v4078 = vpop.f32.mrf.mxu0
  %v4079 = vadd.f32 %v62, %v4078
  %4080 = vmatmul.f32.gmra.mxu0 %v4026
  %v4081 = vpop.f32.mrf.mxu0
  %v4082 = vadd.f32 %v62, %v4081
  %4083 = vmatmul.f32.gmra.mxu0 %v4029
  %v4084 = vpop.f32.mrf.mxu0
  %v4085 = vadd.f32 %v62, %v4084
  %4086 = vmatmul.f32.gmra.mxu0 %v4032
  %v4087 = vpop.f32.mrf.mxu0
  %v4088 = vadd.f32 %v62, %v4087
  %4089 = vmatmul.f32.gmra.mxu0 %v4035
  %v4090 = vpop.f32.mrf.mxu0
  %v4091 = vadd.f32 %v62, %v4090
  %4092 = vmatmul.f32.gmra.mxu0 %v4038
  %v4093 = vpop.f32.mrf.mxu0
  %v4094 = vadd.f32 %v62, %v4093
  %4095 = vmatmul.f32.gmra.mxu0 %v4041
  %v4096 = vpop.f32.mrf.mxu0
  %v4097 = vadd.f32 %v62, %v4096
  %4098 = vdwg.mxu0
  %v4099 = vmax.f32 %v4061, 0.0
  %v4100 = vmax.f32 %v4064, 0.0
  %v4101 = vmax.f32 %v4067, 0.0
  %v4102 = vmax.f32 %v4070, 0.0
  %v4103 = vmax.f32 %v4073, 0.0
  %v4104 = vmax.f32 %v4076, 0.0
  %v4105 = vmax.f32 %v4079, 0.0
  %v4106 = vmax.f32 %v4082, 0.0
  %v4107 = vmax.f32 %v4085, 0.0
  %v4108 = vmax.f32 %v4088, 0.0
  %v4109 = vmax.f32 %v4091, 0.0
  %v4110 = vmax.f32 %v4094, 0.0
  %v4111 = vmax.f32 %v4097, 0.0
  %s4112 = scalar_lea.vmem %s3, 272
  %v4113 = vld [vmem:[%s4112] sm:$0xff]
  %v4114 = vld [vmem:[%s4112 + $0x8] sm:$0xff]
  %v4116 = vsel %vm304, %v4099, 0
  %v4119 = vsel %vm304, %v4100, 0
  %v4122 = vsel %vm304, %v4101, 0
  %v4125 = vsel %vm304, %v4102, 0
  %v4128 = vsel %vm304, %v4103, 0
  %v4131 = vsel %vm304, %v4104, 0
  %v4134 = vsel %vm304, %v4105, 0
  %v4137 = vsel %vm304, %v4106, 0
  %v4140 = vsel %vm304, %v4107, 0
  %v4143 = vsel %vm304, %v4108, 0
  %v4146 = vsel %vm304, %v4109, 0
  %v4149 = vsel %vm304, %v4110, 0
  %v4152 = vsel %vm304, %v4111, 0
  %4154 = vmatpush.msra.mxu0 0.0
  %4155 = vmatpush.msra.mxu0 0.0
  %4156 = vmatpush.msra.mxu0 0.0
  %4157 = vmatpush.msra.mxu0 0.0
  %4158 = vmatpush.msra.mxu0 0.0
  %4159 = vmatpush.msra.mxu0 0.0
  %4160 = vmatpush.msra.mxu0 0.0
  %4161 = vmatpush.msra.mxu0 0.0
  %4162 = vmatpush.msra.mxu0 0.0
  %4163 = vmatpush.msra.mxu0 0.0
  %4164 = vmatpush.msra.mxu0 0.0
  %4165 = vmatpush.msra.mxu0 0.0
  %4166 = vmatpush.msra.mxu0 0.0
  %4167 = vmatpush.msra.mxu0 0.0
  %4168 = vmatpush.msra.mxu0 %v4114
  %4169 = vmatpush.msra.mxu0 %v4113
  %4170 = vmatmul.f32.gmra.mxu0 %v4116
  %v4171 = vpop.f32.mrf.mxu0
  %v4172 = vadd.f32 0.0, %v4171
  %4173 = vmatmul.f32.gmra.mxu0 %v4119
  %v4174 = vpop.f32.mrf.mxu0
  %v4175 = vadd.f32 0.0, %v4174
  %4176 = vmatmul.f32.gmra.mxu0 %v4122
  %v4177 = vpop.f32.mrf.mxu0
  %v4178 = vadd.f32 0.0, %v4177
  %4179 = vmatmul.f32.gmra.mxu0 %v4125
  %v4180 = vpop.f32.mrf.mxu0
  %v4181 = vadd.f32 0.0, %v4180
  %4182 = vmatmul.f32.gmra.mxu0 %v4128
  %v4183 = vpop.f32.mrf.mxu0
  %v4184 = vadd.f32 0.0, %v4183
  %4185 = vmatmul.f32.gmra.mxu0 %v4131
  %v4186 = vpop.f32.mrf.mxu0
  %v4187 = vadd.f32 0.0, %v4186
  %4188 = vmatmul.f32.gmra.mxu0 %v4134
  %v4189 = vpop.f32.mrf.mxu0
  %v4190 = vadd.f32 0.0, %v4189
  %4191 = vmatmul.f32.gmra.mxu0 %v4137
  %v4192 = vpop.f32.mrf.mxu0
  %v4193 = vadd.f32 0.0, %v4192
  %4194 = vmatmul.f32.gmra.mxu0 %v4140
  %v4195 = vpop.f32.mrf.mxu0
  %v4196 = vadd.f32 0.0, %v4195
  %4197 = vmatmul.f32.gmra.mxu0 %v4143
  %v4198 = vpop.f32.mrf.mxu0
  %v4199 = vadd.f32 0.0, %v4198
  %4200 = vmatmul.f32.gmra.mxu0 %v4146
  %v4201 = vpop.f32.mrf.mxu0
  %v4202 = vadd.f32 0.0, %v4201
  %4203 = vmatmul.f32.gmra.mxu0 %v4149
  %v4204 = vpop.f32.mrf.mxu0
  %v4205 = vadd.f32 0.0, %v4204
  %4206 = vmatmul.f32.gmra.mxu0 %v4152
  %v4207 = vpop.f32.mrf.mxu0
  %v4208 = vadd.f32 0.0, %v4207
  %4209 = vdwg.mxu0
  %v4210 = vadd.f32 %v3977, %v4172
  %v4211 = vadd.f32 %v3978, %v4175
  %v4212 = vadd.f32 %v3979, %v4178
  %v4213 = vadd.f32 %v3980, %v4181
  %v4214 = vadd.f32 %v3981, %v4184
  %v4215 = vadd.f32 %v3982, %v4187
  %v4216 = vadd.f32 %v3983, %v4190
  %v4217 = vadd.f32 %v3984, %v4193
  %v4218 = vadd.f32 %v3985, %v4196
  %v4219 = vadd.f32 %v3986, %v4199
  %v4220 = vadd.f32 %v3987, %v4202
  %v4221 = vadd.f32 %v3988, %v4205
  %v4222 = vadd.f32 %v3989, %v4208
  %s4223 = scalar_lea.vmem %s0, 1872
  %v4224 = vld [vmem:[%s4223] sm:$0xff]
  %v4225 = vld [vmem:[%s4223 + $0x8] sm:$0xff]
  %v4226 = vld [vmem:[%s4223 + $0x10] sm:$0xff]
  %v4227 = vld [vmem:[%s4223 + $0x18] sm:$0xff]
  %v4228 = vld [vmem:[%s4223 + $0x20] sm:$0xff]
  %v4229 = vld [vmem:[%s4223 + $0x28] sm:$0xff]
  %v4230 = vld [vmem:[%s4223 + $0x30] sm:$0xff]
  %v4231 = vld [vmem:[%s4223 + $0x38] sm:$0xff]
  %v4232 = vld [vmem:[%s4223 + $0x40] sm:$0xff]
  %v4233 = vld [vmem:[%s4223 + $0x48] sm:$0xff]
  %v4234 = vld [vmem:[%s4223 + $0x50] sm:$0xff]
  %v4235 = vld [vmem:[%s4223 + $0x58] sm:$0xff]
  %v4236 = vld [vmem:[%s4223 + $0x60] sm:$0xff]
  %v4238 = vsel %vm64, %v4224, 0
  %v4241 = vsel %vm64, %v4225, 0
  %v4244 = vsel %vm64, %v4226, 0
  %v4247 = vsel %vm64, %v4227, 0
  %v4250 = vsel %vm64, %v4228, 0
  %v4253 = vsel %vm64, %v4229, 0
  %v4256 = vsel %vm64, %v4230, 0
  %v4259 = vsel %vm64, %v4231, 0
  %v4262 = vsel %vm64, %v4232, 0
  %v4265 = vsel %vm64, %v4233, 0
  %v4268 = vsel %vm64, %v4234, 0
  %v4271 = vsel %vm64, %v4235, 0
  %v4274 = vsel %vm64, %v4236, 0
  %4276 = vmatpush.msra.mxu0 0.0
  %4277 = vmatpush.msra.mxu0 0.0
  %4278 = vmatpush.msra.mxu0 0.0
  %4279 = vmatpush.msra.mxu0 %v106
  %4280 = vmatpush.msra.mxu0 %v45
  %4281 = vmatpush.msra.mxu0 %v44
  %4282 = vmatpush.msra.mxu0 %v43
  %4283 = vmatpush.msra.mxu0 %v42
  %4284 = vmatpush.msra.mxu0 %v41
  %4285 = vmatpush.msra.mxu0 %v40
  %4286 = vmatpush.msra.mxu0 %v39
  %4287 = vmatpush.msra.mxu0 %v38
  %4288 = vmatpush.msra.mxu0 %v37
  %4289 = vmatpush.msra.mxu0 %v36
  %4290 = vmatpush.msra.mxu0 %v35
  %4291 = vmatpush.msra.mxu0 %v34
  %4292 = vmatmul.f32.gmra.mxu0 %v4238
  %v4293 = vpop.f32.mrf.mxu0
  %v4294 = vadd.f32 %v62, %v4293
  %4295 = vmatmul.f32.gmra.mxu0 %v4241
  %v4296 = vpop.f32.mrf.mxu0
  %v4297 = vadd.f32 %v62, %v4296
  %4298 = vmatmul.f32.gmra.mxu0 %v4244
  %v4299 = vpop.f32.mrf.mxu0
  %v4300 = vadd.f32 %v62, %v4299
  %4301 = vmatmul.f32.gmra.mxu0 %v4247
  %v4302 = vpop.f32.mrf.mxu0
  %v4303 = vadd.f32 %v62, %v4302
  %4304 = vmatmul.f32.gmra.mxu0 %v4250
  %v4305 = vpop.f32.mrf.mxu0
  %v4306 = vadd.f32 %v62, %v4305
  %4307 = vmatmul.f32.gmra.mxu0 %v4253
  %v4308 = vpop.f32.mrf.mxu0
  %v4309 = vadd.f32 %v62, %v4308
  %4310 = vmatmul.f32.gmra.mxu0 %v4256
  %v4311 = vpop.f32.mrf.mxu0
  %v4312 = vadd.f32 %v62, %v4311
  %4313 = vmatmul.f32.gmra.mxu0 %v4259
  %v4314 = vpop.f32.mrf.mxu0
  %v4315 = vadd.f32 %v62, %v4314
  %4316 = vmatmul.f32.gmra.mxu0 %v4262
  %v4317 = vpop.f32.mrf.mxu0
  %v4318 = vadd.f32 %v62, %v4317
  %4319 = vmatmul.f32.gmra.mxu0 %v4265
  %v4320 = vpop.f32.mrf.mxu0
  %v4321 = vadd.f32 %v62, %v4320
  %4322 = vmatmul.f32.gmra.mxu0 %v4268
  %v4323 = vpop.f32.mrf.mxu0
  %v4324 = vadd.f32 %v62, %v4323
  %4325 = vmatmul.f32.gmra.mxu0 %v4271
  %v4326 = vpop.f32.mrf.mxu0
  %v4327 = vadd.f32 %v62, %v4326
  %4328 = vmatmul.f32.gmra.mxu0 %v4274
  %v4329 = vpop.f32.mrf.mxu0
  %v4330 = vadd.f32 %v62, %v4329
  %4331 = vdwg.mxu0
  %v4332 = vmax.f32 %v4294, 0.0
  %v4333 = vmax.f32 %v4297, 0.0
  %v4334 = vmax.f32 %v4300, 0.0
  %v4335 = vmax.f32 %v4303, 0.0
  %v4336 = vmax.f32 %v4306, 0.0
  %v4337 = vmax.f32 %v4309, 0.0
  %v4338 = vmax.f32 %v4312, 0.0
  %v4339 = vmax.f32 %v4315, 0.0
  %v4340 = vmax.f32 %v4318, 0.0
  %v4341 = vmax.f32 %v4321, 0.0
  %v4342 = vmax.f32 %v4324, 0.0
  %v4343 = vmax.f32 %v4327, 0.0
  %v4344 = vmax.f32 %v4330, 0.0
  %s4345 = scalar_lea.vmem %s3, 288
  %v4346 = vld [vmem:[%s4345] sm:$0xff]
  %v4347 = vld [vmem:[%s4345 + $0x8] sm:$0xff]
  %v4349 = vsel %vm304, %v4332, 0
  %v4352 = vsel %vm304, %v4333, 0
  %v4355 = vsel %vm304, %v4334, 0
  %v4358 = vsel %vm304, %v4335, 0
  %v4361 = vsel %vm304, %v4336, 0
  %v4364 = vsel %vm304, %v4337, 0
  %v4367 = vsel %vm304, %v4338, 0
  %v4370 = vsel %vm304, %v4339, 0
  %v4373 = vsel %vm304, %v4340, 0
  %v4376 = vsel %vm304, %v4341, 0
  %v4379 = vsel %vm304, %v4342, 0
  %v4382 = vsel %vm304, %v4343, 0
  %v4385 = vsel %vm304, %v4344, 0
  %4387 = vmatpush.msra.mxu0 0.0
  %4388 = vmatpush.msra.mxu0 0.0
  %4389 = vmatpush.msra.mxu0 0.0
  %4390 = vmatpush.msra.mxu0 0.0
  %4391 = vmatpush.msra.mxu0 0.0
  %4392 = vmatpush.msra.mxu0 0.0
  %4393 = vmatpush.msra.mxu0 0.0
  %4394 = vmatpush.msra.mxu0 0.0
  %4395 = vmatpush.msra.mxu0 0.0
  %4396 = vmatpush.msra.mxu0 0.0
  %4397 = vmatpush.msra.mxu0 0.0
  %4398 = vmatpush.msra.mxu0 0.0
  %4399 = vmatpush.msra.mxu0 0.0
  %4400 = vmatpush.msra.mxu0 0.0
  %4401 = vmatpush.msra.mxu0 %v4347
  %4402 = vmatpush.msra.mxu0 %v4346
  %4403 = vmatmul.f32.gmra.mxu0 %v4349
  %v4404 = vpop.f32.mrf.mxu0
  %v4405 = vadd.f32 0.0, %v4404
  %4406 = vmatmul.f32.gmra.mxu0 %v4352
  %v4407 = vpop.f32.mrf.mxu0
  %v4408 = vadd.f32 0.0, %v4407
  %4409 = vmatmul.f32.gmra.mxu0 %v4355
  %v4410 = vpop.f32.mrf.mxu0
  %v4411 = vadd.f32 0.0, %v4410
  %4412 = vmatmul.f32.gmra.mxu0 %v4358
  %v4413 = vpop.f32.mrf.mxu0
  %v4414 = vadd.f32 0.0, %v4413
  %4415 = vmatmul.f32.gmra.mxu0 %v4361
  %v4416 = vpop.f32.mrf.mxu0
  %v4417 = vadd.f32 0.0, %v4416
  %4418 = vmatmul.f32.gmra.mxu0 %v4364
  %v4419 = vpop.f32.mrf.mxu0
  %v4420 = vadd.f32 0.0, %v4419
  %4421 = vmatmul.f32.gmra.mxu0 %v4367
  %v4422 = vpop.f32.mrf.mxu0
  %v4423 = vadd.f32 0.0, %v4422
  %4424 = vmatmul.f32.gmra.mxu0 %v4370
  %v4425 = vpop.f32.mrf.mxu0
  %v4426 = vadd.f32 0.0, %v4425
  %4427 = vmatmul.f32.gmra.mxu0 %v4373
  %v4428 = vpop.f32.mrf.mxu0
  %v4429 = vadd.f32 0.0, %v4428
  %4430 = vmatmul.f32.gmra.mxu0 %v4376
  %v4431 = vpop.f32.mrf.mxu0
  %v4432 = vadd.f32 0.0, %v4431
  %4433 = vmatmul.f32.gmra.mxu0 %v4379
  %v4434 = vpop.f32.mrf.mxu0
  %v4435 = vadd.f32 0.0, %v4434
  %4436 = vmatmul.f32.gmra.mxu0 %v4382
  %v4437 = vpop.f32.mrf.mxu0
  %v4438 = vadd.f32 0.0, %v4437
  %4439 = vmatmul.f32.gmra.mxu0 %v4385
  %v4440 = vpop.f32.mrf.mxu0
  %v4441 = vadd.f32 0.0, %v4440
  %4442 = vdwg.mxu0
  %v4443 = vadd.f32 %v4210, %v4405
  %v4444 = vadd.f32 %v4211, %v4408
  %v4445 = vadd.f32 %v4212, %v4411
  %v4446 = vadd.f32 %v4213, %v4414
  %v4447 = vadd.f32 %v4214, %v4417
  %v4448 = vadd.f32 %v4215, %v4420
  %v4449 = vadd.f32 %v4216, %v4423
  %v4450 = vadd.f32 %v4217, %v4426
  %v4451 = vadd.f32 %v4218, %v4429
  %v4452 = vadd.f32 %v4219, %v4432
  %v4453 = vadd.f32 %v4220, %v4435
  %v4454 = vadd.f32 %v4221, %v4438
  %v4455 = vadd.f32 %v4222, %v4441
  %s4456 = scalar_lea.vmem %s0, 1976
  %v4457 = vld [vmem:[%s4456] sm:$0xff]
  %v4458 = vld [vmem:[%s4456 + $0x8] sm:$0xff]
  %v4459 = vld [vmem:[%s4456 + $0x10] sm:$0xff]
  %v4460 = vld [vmem:[%s4456 + $0x18] sm:$0xff]
  %v4461 = vld [vmem:[%s4456 + $0x20] sm:$0xff]
  %v4462 = vld [vmem:[%s4456 + $0x28] sm:$0xff]
  %v4463 = vld [vmem:[%s4456 + $0x30] sm:$0xff]
  %v4464 = vld [vmem:[%s4456 + $0x38] sm:$0xff]
  %v4465 = vld [vmem:[%s4456 + $0x40] sm:$0xff]
  %v4466 = vld [vmem:[%s4456 + $0x48] sm:$0xff]
  %v4467 = vld [vmem:[%s4456 + $0x50] sm:$0xff]
  %v4468 = vld [vmem:[%s4456 + $0x58] sm:$0xff]
  %v4469 = vld [vmem:[%s4456 + $0x60] sm:$0xff]
  %v4471 = vsel %vm64, %v4457, 0
  %v4474 = vsel %vm64, %v4458, 0
  %v4477 = vsel %vm64, %v4459, 0
  %v4480 = vsel %vm64, %v4460, 0
  %v4483 = vsel %vm64, %v4461, 0
  %v4486 = vsel %vm64, %v4462, 0
  %v4489 = vsel %vm64, %v4463, 0
  %v4492 = vsel %vm64, %v4464, 0
  %v4495 = vsel %vm64, %v4465, 0
  %v4498 = vsel %vm64, %v4466, 0
  %v4501 = vsel %vm64, %v4467, 0
  %v4504 = vsel %vm64, %v4468, 0
  %v4507 = vsel %vm64, %v4469, 0
  %4509 = vmatpush.msra.mxu0 0.0
  %4510 = vmatpush.msra.mxu0 0.0
  %4511 = vmatpush.msra.mxu0 0.0
  %4512 = vmatpush.msra.mxu0 %v106
  %4513 = vmatpush.msra.mxu0 %v45
  %4514 = vmatpush.msra.mxu0 %v44
  %4515 = vmatpush.msra.mxu0 %v43
  %4516 = vmatpush.msra.mxu0 %v42
  %4517 = vmatpush.msra.mxu0 %v41
  %4518 = vmatpush.msra.mxu0 %v40
  %4519 = vmatpush.msra.mxu0 %v39
  %4520 = vmatpush.msra.mxu0 %v38
  %4521 = vmatpush.msra.mxu0 %v37
  %4522 = vmatpush.msra.mxu0 %v36
  %4523 = vmatpush.msra.mxu0 %v35
  %4524 = vmatpush.msra.mxu0 %v34
  %4525 = vmatmul.f32.gmra.mxu0 %v4471
  %v4526 = vpop.f32.mrf.mxu0
  %v4527 = vadd.f32 %v62, %v4526
  %4528 = vmatmul.f32.gmra.mxu0 %v4474
  %v4529 = vpop.f32.mrf.mxu0
  %v4530 = vadd.f32 %v62, %v4529
  %4531 = vmatmul.f32.gmra.mxu0 %v4477
  %v4532 = vpop.f32.mrf.mxu0
  %v4533 = vadd.f32 %v62, %v4532
  %4534 = vmatmul.f32.gmra.mxu0 %v4480
  %v4535 = vpop.f32.mrf.mxu0
  %v4536 = vadd.f32 %v62, %v4535
  %4537 = vmatmul.f32.gmra.mxu0 %v4483
  %v4538 = vpop.f32.mrf.mxu0
  %v4539 = vadd.f32 %v62, %v4538
  %4540 = vmatmul.f32.gmra.mxu0 %v4486
  %v4541 = vpop.f32.mrf.mxu0
  %v4542 = vadd.f32 %v62, %v4541
  %4543 = vmatmul.f32.gmra.mxu0 %v4489
  %v4544 = vpop.f32.mrf.mxu0
  %v4545 = vadd.f32 %v62, %v4544
  %4546 = vmatmul.f32.gmra.mxu0 %v4492
  %v4547 = vpop.f32.mrf.mxu0
  %v4548 = vadd.f32 %v62, %v4547
  %4549 = vmatmul.f32.gmra.mxu0 %v4495
  %v4550 = vpop.f32.mrf.mxu0
  %v4551 = vadd.f32 %v62, %v4550
  %4552 = vmatmul.f32.gmra.mxu0 %v4498
  %v4553 = vpop.f32.mrf.mxu0
  %v4554 = vadd.f32 %v62, %v4553
  %4555 = vmatmul.f32.gmra.mxu0 %v4501
  %v4556 = vpop.f32.mrf.mxu0
  %v4557 = vadd.f32 %v62, %v4556
  %4558 = vmatmul.f32.gmra.mxu0 %v4504
  %v4559 = vpop.f32.mrf.mxu0
  %v4560 = vadd.f32 %v62, %v4559
  %4561 = vmatmul.f32.gmra.mxu0 %v4507
  %v4562 = vpop.f32.mrf.mxu0
  %v4563 = vadd.f32 %v62, %v4562
  %4564 = vdwg.mxu0
  %v4565 = vmax.f32 %v4527, 0.0
  %v4566 = vmax.f32 %v4530, 0.0
  %v4567 = vmax.f32 %v4533, 0.0
  %v4568 = vmax.f32 %v4536, 0.0
  %v4569 = vmax.f32 %v4539, 0.0
  %v4570 = vmax.f32 %v4542, 0.0
  %v4571 = vmax.f32 %v4545, 0.0
  %v4572 = vmax.f32 %v4548, 0.0
  %v4573 = vmax.f32 %v4551, 0.0
  %v4574 = vmax.f32 %v4554, 0.0
  %v4575 = vmax.f32 %v4557, 0.0
  %v4576 = vmax.f32 %v4560, 0.0
  %v4577 = vmax.f32 %v4563, 0.0
  %s4578 = scalar_lea.vmem %s3, 304
  %v4579 = vld [vmem:[%s4578] sm:$0xff]
  %v4580 = vld [vmem:[%s4578 + $0x8] sm:$0xff]
  %v4582 = vsel %vm304, %v4565, 0
  %v4585 = vsel %vm304, %v4566, 0
  %v4588 = vsel %vm304, %v4567, 0
  %v4591 = vsel %vm304, %v4568, 0
  %v4594 = vsel %vm304, %v4569, 0
  %v4597 = vsel %vm304, %v4570, 0
  %v4600 = vsel %vm304, %v4571, 0
  %v4603 = vsel %vm304, %v4572, 0
  %v4606 = vsel %vm304, %v4573, 0
  %v4609 = vsel %vm304, %v4574, 0
  %v4612 = vsel %vm304, %v4575, 0
  %v4615 = vsel %vm304, %v4576, 0
  %v4618 = vsel %vm304, %v4577, 0
  %4620 = vmatpush.msra.mxu0 0.0
  %4621 = vmatpush.msra.mxu0 0.0
  %4622 = vmatpush.msra.mxu0 0.0
  %4623 = vmatpush.msra.mxu0 0.0
  %4624 = vmatpush.msra.mxu0 0.0
  %4625 = vmatpush.msra.mxu0 0.0
  %4626 = vmatpush.msra.mxu0 0.0
  %4627 = vmatpush.msra.mxu0 0.0
  %4628 = vmatpush.msra.mxu0 0.0
  %4629 = vmatpush.msra.mxu0 0.0
  %4630 = vmatpush.msra.mxu0 0.0
  %4631 = vmatpush.msra.mxu0 0.0
  %4632 = vmatpush.msra.mxu0 0.0
  %4633 = vmatpush.msra.mxu0 0.0
  %4634 = vmatpush.msra.mxu0 %v4580
  %4635 = vmatpush.msra.mxu0 %v4579
  %4636 = vmatmul.f32.gmra.mxu0 %v4582
  %v4637 = vpop.f32.mrf.mxu0
  %v4638 = vadd.f32 0.0, %v4637
  %4639 = vmatmul.f32.gmra.mxu0 %v4585
  %v4640 = vpop.f32.mrf.mxu0
  %v4641 = vadd.f32 0.0, %v4640
  %4642 = vmatmul.f32.gmra.mxu0 %v4588
  %v4643 = vpop.f32.mrf.mxu0
  %v4644 = vadd.f32 0.0, %v4643
  %4645 = vmatmul.f32.gmra.mxu0 %v4591
  %v4646 = vpop.f32.mrf.mxu0
  %v4647 = vadd.f32 0.0, %v4646
  %4648 = vmatmul.f32.gmra.mxu0 %v4594
  %v4649 = vpop.f32.mrf.mxu0
  %v4650 = vadd.f32 0.0, %v4649
  %4651 = vmatmul.f32.gmra.mxu0 %v4597
  %v4652 = vpop.f32.mrf.mxu0
  %v4653 = vadd.f32 0.0, %v4652
  %4654 = vmatmul.f32.gmra.mxu0 %v4600
  %v4655 = vpop.f32.mrf.mxu0
  %v4656 = vadd.f32 0.0, %v4655
  %4657 = vmatmul.f32.gmra.mxu0 %v4603
  %v4658 = vpop.f32.mrf.mxu0
  %v4659 = vadd.f32 0.0, %v4658
  %4660 = vmatmul.f32.gmra.mxu0 %v4606
  %v4661 = vpop.f32.mrf.mxu0
  %v4662 = vadd.f32 0.0, %v4661
  %4663 = vmatmul.f32.gmra.mxu0 %v4609
  %v4664 = vpop.f32.mrf.mxu0
  %v4665 = vadd.f32 0.0, %v4664
  %4666 = vmatmul.f32.gmra.mxu0 %v4612
  %v4667 = vpop.f32.mrf.mxu0
  %v4668 = vadd.f32 0.0, %v4667
  %4669 = vmatmul.f32.gmra.mxu0 %v4615
  %v4670 = vpop.f32.mrf.mxu0
  %v4671 = vadd.f32 0.0, %v4670
  %4672 = vmatmul.f32.gmra.mxu0 %v4618
  %v4673 = vpop.f32.mrf.mxu0
  %v4674 = vadd.f32 0.0, %v4673
  %4675 = vdwg.mxu0
  %v4676 = vadd.f32 %v4443, %v4638
  %v4677 = vadd.f32 %v4444, %v4641
  %v4678 = vadd.f32 %v4445, %v4644
  %v4679 = vadd.f32 %v4446, %v4647
  %v4680 = vadd.f32 %v4447, %v4650
  %v4681 = vadd.f32 %v4448, %v4653
  %v4682 = vadd.f32 %v4449, %v4656
  %v4683 = vadd.f32 %v4450, %v4659
  %v4684 = vadd.f32 %v4451, %v4662
  %v4685 = vadd.f32 %v4452, %v4665
  %v4686 = vadd.f32 %v4453, %v4668
  %v4687 = vadd.f32 %v4454, %v4671
  %v4688 = vadd.f32 %v4455, %v4674
  %s4689 = scalar_lea.vmem %s0, 2080
  %v4690 = vld [vmem:[%s4689] sm:$0xff]
  %v4691 = vld [vmem:[%s4689 + $0x8] sm:$0xff]
  %v4692 = vld [vmem:[%s4689 + $0x10] sm:$0xff]
  %v4693 = vld [vmem:[%s4689 + $0x18] sm:$0xff]
  %v4694 = vld [vmem:[%s4689 + $0x20] sm:$0xff]
  %v4695 = vld [vmem:[%s4689 + $0x28] sm:$0xff]
  %v4696 = vld [vmem:[%s4689 + $0x30] sm:$0xff]
  %v4697 = vld [vmem:[%s4689 + $0x38] sm:$0xff]
  %v4698 = vld [vmem:[%s4689 + $0x40] sm:$0xff]
  %v4699 = vld [vmem:[%s4689 + $0x48] sm:$0xff]
  %v4700 = vld [vmem:[%s4689 + $0x50] sm:$0xff]
  %v4701 = vld [vmem:[%s4689 + $0x58] sm:$0xff]
  %v4702 = vld [vmem:[%s4689 + $0x60] sm:$0xff]
  %v4704 = vsel %vm64, %v4690, 0
  %v4707 = vsel %vm64, %v4691, 0
  %v4710 = vsel %vm64, %v4692, 0
  %v4713 = vsel %vm64, %v4693, 0
  %v4716 = vsel %vm64, %v4694, 0
  %v4719 = vsel %vm64, %v4695, 0
  %v4722 = vsel %vm64, %v4696, 0
  %v4725 = vsel %vm64, %v4697, 0
  %v4728 = vsel %vm64, %v4698, 0
  %v4731 = vsel %vm64, %v4699, 0
  %v4734 = vsel %vm64, %v4700, 0
  %v4737 = vsel %vm64, %v4701, 0
  %v4740 = vsel %vm64, %v4702, 0
  %4742 = vmatpush.msra.mxu0 0.0
  %4743 = vmatpush.msra.mxu0 0.0
  %4744 = vmatpush.msra.mxu0 0.0
  %4745 = vmatpush.msra.mxu0 %v106
  %4746 = vmatpush.msra.mxu0 %v45
  %4747 = vmatpush.msra.mxu0 %v44
  %4748 = vmatpush.msra.mxu0 %v43
  %4749 = vmatpush.msra.mxu0 %v42
  %4750 = vmatpush.msra.mxu0 %v41
  %4751 = vmatpush.msra.mxu0 %v40
  %4752 = vmatpush.msra.mxu0 %v39
  %4753 = vmatpush.msra.mxu0 %v38
  %4754 = vmatpush.msra.mxu0 %v37
  %4755 = vmatpush.msra.mxu0 %v36
  %4756 = vmatpush.msra.mxu0 %v35
  %4757 = vmatpush.msra.mxu0 %v34
  %4758 = vmatmul.f32.gmra.mxu0 %v4704
  %v4759 = vpop.f32.mrf.mxu0
  %v4760 = vadd.f32 %v62, %v4759
  %4761 = vmatmul.f32.gmra.mxu0 %v4707
  %v4762 = vpop.f32.mrf.mxu0
  %v4763 = vadd.f32 %v62, %v4762
  %4764 = vmatmul.f32.gmra.mxu0 %v4710
  %v4765 = vpop.f32.mrf.mxu0
  %v4766 = vadd.f32 %v62, %v4765
  %4767 = vmatmul.f32.gmra.mxu0 %v4713
  %v4768 = vpop.f32.mrf.mxu0
  %v4769 = vadd.f32 %v62, %v4768
  %4770 = vmatmul.f32.gmra.mxu0 %v4716
  %v4771 = vpop.f32.mrf.mxu0
  %v4772 = vadd.f32 %v62, %v4771
  %4773 = vmatmul.f32.gmra.mxu0 %v4719
  %v4774 = vpop.f32.mrf.mxu0
  %v4775 = vadd.f32 %v62, %v4774
  %4776 = vmatmul.f32.gmra.mxu0 %v4722
  %v4777 = vpop.f32.mrf.mxu0
  %v4778 = vadd.f32 %v62, %v4777
  %4779 = vmatmul.f32.gmra.mxu0 %v4725
  %v4780 = vpop.f32.mrf.mxu0
  %v4781 = vadd.f32 %v62, %v4780
  %4782 = vmatmul.f32.gmra.mxu0 %v4728
  %v4783 = vpop.f32.mrf.mxu0
  %v4784 = vadd.f32 %v62, %v4783
  %4785 = vmatmul.f32.gmra.mxu0 %v4731
  %v4786 = vpop.f32.mrf.mxu0
  %v4787 = vadd.f32 %v62, %v4786
  %4788 = vmatmul.f32.gmra.mxu0 %v4734
  %v4789 = vpop.f32.mrf.mxu0
  %v4790 = vadd.f32 %v62, %v4789
  %4791 = vmatmul.f32.gmra.mxu0 %v4737
  %v4792 = vpop.f32.mrf.mxu0
  %v4793 = vadd.f32 %v62, %v4792
  %4794 = vmatmul.f32.gmra.mxu0 %v4740
  %v4795 = vpop.f32.mrf.mxu0
  %v4796 = vadd.f32 %v62, %v4795
  %4797 = vdwg.mxu0
  %v4798 = vmax.f32 %v4760, 0.0
  %v4799 = vmax.f32 %v4763, 0.0
  %v4800 = vmax.f32 %v4766, 0.0
  %v4801 = vmax.f32 %v4769, 0.0
  %v4802 = vmax.f32 %v4772, 0.0
  %v4803 = vmax.f32 %v4775, 0.0
  %v4804 = vmax.f32 %v4778, 0.0
  %v4805 = vmax.f32 %v4781, 0.0
  %v4806 = vmax.f32 %v4784, 0.0
  %v4807 = vmax.f32 %v4787, 0.0
  %v4808 = vmax.f32 %v4790, 0.0
  %v4809 = vmax.f32 %v4793, 0.0
  %v4810 = vmax.f32 %v4796, 0.0
  %s4811 = scalar_lea.vmem %s3, 320
  %v4812 = vld [vmem:[%s4811] sm:$0xff]
  %v4813 = vld [vmem:[%s4811 + $0x8] sm:$0xff]
  %v4815 = vsel %vm304, %v4798, 0
  %v4818 = vsel %vm304, %v4799, 0
  %v4821 = vsel %vm304, %v4800, 0
  %v4824 = vsel %vm304, %v4801, 0
  %v4827 = vsel %vm304, %v4802, 0
  %v4830 = vsel %vm304, %v4803, 0
  %v4833 = vsel %vm304, %v4804, 0
  %v4836 = vsel %vm304, %v4805, 0
  %v4839 = vsel %vm304, %v4806, 0
  %v4842 = vsel %vm304, %v4807, 0
  %v4845 = vsel %vm304, %v4808, 0
  %v4848 = vsel %vm304, %v4809, 0
  %v4851 = vsel %vm304, %v4810, 0
  %4853 = vmatpush.msra.mxu0 0.0
  %4854 = vmatpush.msra.mxu0 0.0
  %4855 = vmatpush.msra.mxu0 0.0
  %4856 = vmatpush.msra.mxu0 0.0
  %4857 = vmatpush.msra.mxu0 0.0
  %4858 = vmatpush.msra.mxu0 0.0
  %4859 = vmatpush.msra.mxu0 0.0
  %4860 = vmatpush.msra.mxu0 0.0
  %4861 = vmatpush.msra.mxu0 0.0
  %4862 = vmatpush.msra.mxu0 0.0
  %4863 = vmatpush.msra.mxu0 0.0
  %4864 = vmatpush.msra.mxu0 0.0
  %4865 = vmatpush.msra.mxu0 0.0
  %4866 = vmatpush.msra.mxu0 0.0
  %4867 = vmatpush.msra.mxu0 %v4813
  %4868 = vmatpush.msra.mxu0 %v4812
  %4869 = vmatmul.f32.gmra.mxu0 %v4815
  %v4870 = vpop.f32.mrf.mxu0
  %v4871 = vadd.f32 0.0, %v4870
  %4872 = vmatmul.f32.gmra.mxu0 %v4818
  %v4873 = vpop.f32.mrf.mxu0
  %v4874 = vadd.f32 0.0, %v4873
  %4875 = vmatmul.f32.gmra.mxu0 %v4821
  %v4876 = vpop.f32.mrf.mxu0
  %v4877 = vadd.f32 0.0, %v4876
  %4878 = vmatmul.f32.gmra.mxu0 %v4824
  %v4879 = vpop.f32.mrf.mxu0
  %v4880 = vadd.f32 0.0, %v4879
  %4881 = vmatmul.f32.gmra.mxu0 %v4827
  %v4882 = vpop.f32.mrf.mxu0
  %v4883 = vadd.f32 0.0, %v4882
  %4884 = vmatmul.f32.gmra.mxu0 %v4830
  %v4885 = vpop.f32.mrf.mxu0
  %v4886 = vadd.f32 0.0, %v4885
  %4887 = vmatmul.f32.gmra.mxu0 %v4833
  %v4888 = vpop.f32.mrf.mxu0
  %v4889 = vadd.f32 0.0, %v4888
  %4890 = vmatmul.f32.gmra.mxu0 %v4836
  %v4891 = vpop.f32.mrf.mxu0
  %v4892 = vadd.f32 0.0, %v4891
  %4893 = vmatmul.f32.gmra.mxu0 %v4839
  %v4894 = vpop.f32.mrf.mxu0
  %v4895 = vadd.f32 0.0, %v4894
  %4896 = vmatmul.f32.gmra.mxu0 %v4842
  %v4897 = vpop.f32.mrf.mxu0
  %v4898 = vadd.f32 0.0, %v4897
  %4899 = vmatmul.f32.gmra.mxu0 %v4845
  %v4900 = vpop.f32.mrf.mxu0
  %v4901 = vadd.f32 0.0, %v4900
  %4902 = vmatmul.f32.gmra.mxu0 %v4848
  %v4903 = vpop.f32.mrf.mxu0
  %v4904 = vadd.f32 0.0, %v4903
  %4905 = vmatmul.f32.gmra.mxu0 %v4851
  %v4906 = vpop.f32.mrf.mxu0
  %v4907 = vadd.f32 0.0, %v4906
  %4908 = vdwg.mxu0
  %v4909 = vadd.f32 %v4676, %v4871
  %v4910 = vadd.f32 %v4677, %v4874
  %v4911 = vadd.f32 %v4678, %v4877
  %v4912 = vadd.f32 %v4679, %v4880
  %v4913 = vadd.f32 %v4680, %v4883
  %v4914 = vadd.f32 %v4681, %v4886
  %v4915 = vadd.f32 %v4682, %v4889
  %v4916 = vadd.f32 %v4683, %v4892
  %v4917 = vadd.f32 %v4684, %v4895
  %v4918 = vadd.f32 %v4685, %v4898
  %v4919 = vadd.f32 %v4686, %v4901
  %v4920 = vadd.f32 %v4687, %v4904
  %v4921 = vadd.f32 %v4688, %v4907
  %s4922 = scalar_lea.vmem %s0, 2184
  %v4923 = vld [vmem:[%s4922] sm:$0xff]
  %v4924 = vld [vmem:[%s4922 + $0x8] sm:$0xff]
  %v4925 = vld [vmem:[%s4922 + $0x10] sm:$0xff]
  %v4926 = vld [vmem:[%s4922 + $0x18] sm:$0xff]
  %v4927 = vld [vmem:[%s4922 + $0x20] sm:$0xff]
  %v4928 = vld [vmem:[%s4922 + $0x28] sm:$0xff]
  %v4929 = vld [vmem:[%s4922 + $0x30] sm:$0xff]
  %v4930 = vld [vmem:[%s4922 + $0x38] sm:$0xff]
  %v4931 = vld [vmem:[%s4922 + $0x40] sm:$0xff]
  %v4932 = vld [vmem:[%s4922 + $0x48] sm:$0xff]
  %v4933 = vld [vmem:[%s4922 + $0x50] sm:$0xff]
  %v4934 = vld [vmem:[%s4922 + $0x58] sm:$0xff]
  %v4935 = vld [vmem:[%s4922 + $0x60] sm:$0xff]
  %v4937 = vsel %vm64, %v4923, 0
  %v4940 = vsel %vm64, %v4924, 0
  %v4943 = vsel %vm64, %v4925, 0
  %v4946 = vsel %vm64, %v4926, 0
  %v4949 = vsel %vm64, %v4927, 0
  %v4952 = vsel %vm64, %v4928, 0
  %v4955 = vsel %vm64, %v4929, 0
  %v4958 = vsel %vm64, %v4930, 0
  %v4961 = vsel %vm64, %v4931, 0
  %v4964 = vsel %vm64, %v4932, 0
  %v4967 = vsel %vm64, %v4933, 0
  %v4970 = vsel %vm64, %v4934, 0
  %v4973 = vsel %vm64, %v4935, 0
  %4975 = vmatpush.msra.mxu0 0.0
  %4976 = vmatpush.msra.mxu0 0.0
  %4977 = vmatpush.msra.mxu0 0.0
  %4978 = vmatpush.msra.mxu0 %v106
  %4979 = vmatpush.msra.mxu0 %v45
  %4980 = vmatpush.msra.mxu0 %v44
  %4981 = vmatpush.msra.mxu0 %v43
  %4982 = vmatpush.msra.mxu0 %v42
  %4983 = vmatpush.msra.mxu0 %v41
  %4984 = vmatpush.msra.mxu0 %v40
  %4985 = vmatpush.msra.mxu0 %v39
  %4986 = vmatpush.msra.mxu0 %v38
  %4987 = vmatpush.msra.mxu0 %v37
  %4988 = vmatpush.msra.mxu0 %v36
  %4989 = vmatpush.msra.mxu0 %v35
  %4990 = vmatpush.msra.mxu0 %v34
  %4991 = vmatmul.f32.gmra.mxu0 %v4937
  %v4992 = vpop.f32.mrf.mxu0
  %v4993 = vadd.f32 %v62, %v4992
  %4994 = vmatmul.f32.gmra.mxu0 %v4940
  %v4995 = vpop.f32.mrf.mxu0
  %v4996 = vadd.f32 %v62, %v4995
  %4997 = vmatmul.f32.gmra.mxu0 %v4943
  %v4998 = vpop.f32.mrf.mxu0
  %v4999 = vadd.f32 %v62, %v4998
  %5000 = vmatmul.f32.gmra.mxu0 %v4946
  %v5001 = vpop.f32.mrf.mxu0
  %v5002 = vadd.f32 %v62, %v5001
  %5003 = vmatmul.f32.gmra.mxu0 %v4949
  %v5004 = vpop.f32.mrf.mxu0
  %v5005 = vadd.f32 %v62, %v5004
  %5006 = vmatmul.f32.gmra.mxu0 %v4952
  %v5007 = vpop.f32.mrf.mxu0
  %v5008 = vadd.f32 %v62, %v5007
  %5009 = vmatmul.f32.gmra.mxu0 %v4955
  %v5010 = vpop.f32.mrf.mxu0
  %v5011 = vadd.f32 %v62, %v5010
  %5012 = vmatmul.f32.gmra.mxu0 %v4958
  %v5013 = vpop.f32.mrf.mxu0
  %v5014 = vadd.f32 %v62, %v5013
  %5015 = vmatmul.f32.gmra.mxu0 %v4961
  %v5016 = vpop.f32.mrf.mxu0
  %v5017 = vadd.f32 %v62, %v5016
  %5018 = vmatmul.f32.gmra.mxu0 %v4964
  %v5019 = vpop.f32.mrf.mxu0
  %v5020 = vadd.f32 %v62, %v5019
  %5021 = vmatmul.f32.gmra.mxu0 %v4967
  %v5022 = vpop.f32.mrf.mxu0
  %v5023 = vadd.f32 %v62, %v5022
  %5024 = vmatmul.f32.gmra.mxu0 %v4970
  %v5025 = vpop.f32.mrf.mxu0
  %v5026 = vadd.f32 %v62, %v5025
  %5027 = vmatmul.f32.gmra.mxu0 %v4973
  %v5028 = vpop.f32.mrf.mxu0
  %v5029 = vadd.f32 %v62, %v5028
  %5030 = vdwg.mxu0
  %v5031 = vmax.f32 %v4993, 0.0
  %v5032 = vmax.f32 %v4996, 0.0
  %v5033 = vmax.f32 %v4999, 0.0
  %v5034 = vmax.f32 %v5002, 0.0
  %v5035 = vmax.f32 %v5005, 0.0
  %v5036 = vmax.f32 %v5008, 0.0
  %v5037 = vmax.f32 %v5011, 0.0
  %v5038 = vmax.f32 %v5014, 0.0
  %v5039 = vmax.f32 %v5017, 0.0
  %v5040 = vmax.f32 %v5020, 0.0
  %v5041 = vmax.f32 %v5023, 0.0
  %v5042 = vmax.f32 %v5026, 0.0
  %v5043 = vmax.f32 %v5029, 0.0
  %s5044 = scalar_lea.vmem %s3, 336
  %v5045 = vld [vmem:[%s5044] sm:$0xff]
  %v5046 = vld [vmem:[%s5044 + $0x8] sm:$0xff]
  %v5048 = vsel %vm304, %v5031, 0
  %v5051 = vsel %vm304, %v5032, 0
  %v5054 = vsel %vm304, %v5033, 0
  %v5057 = vsel %vm304, %v5034, 0
  %v5060 = vsel %vm304, %v5035, 0
  %v5063 = vsel %vm304, %v5036, 0
  %v5066 = vsel %vm304, %v5037, 0
  %v5069 = vsel %vm304, %v5038, 0
  %v5072 = vsel %vm304, %v5039, 0
  %v5075 = vsel %vm304, %v5040, 0
  %v5078 = vsel %vm304, %v5041, 0
  %v5081 = vsel %vm304, %v5042, 0
  %v5084 = vsel %vm304, %v5043, 0
  %5086 = vmatpush.msra.mxu0 0.0
  %5087 = vmatpush.msra.mxu0 0.0
  %5088 = vmatpush.msra.mxu0 0.0
  %5089 = vmatpush.msra.mxu0 0.0
  %5090 = vmatpush.msra.mxu0 0.0
  %5091 = vmatpush.msra.mxu0 0.0
  %5092 = vmatpush.msra.mxu0 0.0
  %5093 = vmatpush.msra.mxu0 0.0
  %5094 = vmatpush.msra.mxu0 0.0
  %5095 = vmatpush.msra.mxu0 0.0
  %5096 = vmatpush.msra.mxu0 0.0
  %5097 = vmatpush.msra.mxu0 0.0
  %5098 = vmatpush.msra.mxu0 0.0
  %5099 = vmatpush.msra.mxu0 0.0
  %5100 = vmatpush.msra.mxu0 %v5046
  %5101 = vmatpush.msra.mxu0 %v5045
  %5102 = vmatmul.f32.gmra.mxu0 %v5048
  %v5103 = vpop.f32.mrf.mxu0
  %v5104 = vadd.f32 0.0, %v5103
  %5105 = vmatmul.f32.gmra.mxu0 %v5051
  %v5106 = vpop.f32.mrf.mxu0
  %v5107 = vadd.f32 0.0, %v5106
  %5108 = vmatmul.f32.gmra.mxu0 %v5054
  %v5109 = vpop.f32.mrf.mxu0
  %v5110 = vadd.f32 0.0, %v5109
  %5111 = vmatmul.f32.gmra.mxu0 %v5057
  %v5112 = vpop.f32.mrf.mxu0
  %v5113 = vadd.f32 0.0, %v5112
  %5114 = vmatmul.f32.gmra.mxu0 %v5060
  %v5115 = vpop.f32.mrf.mxu0
  %v5116 = vadd.f32 0.0, %v5115
  %5117 = vmatmul.f32.gmra.mxu0 %v5063
  %v5118 = vpop.f32.mrf.mxu0
  %v5119 = vadd.f32 0.0, %v5118
  %5120 = vmatmul.f32.gmra.mxu0 %v5066
  %v5121 = vpop.f32.mrf.mxu0
  %v5122 = vadd.f32 0.0, %v5121
  %5123 = vmatmul.f32.gmra.mxu0 %v5069
  %v5124 = vpop.f32.mrf.mxu0
  %v5125 = vadd.f32 0.0, %v5124
  %5126 = vmatmul.f32.gmra.mxu0 %v5072
  %v5127 = vpop.f32.mrf.mxu0
  %v5128 = vadd.f32 0.0, %v5127
  %5129 = vmatmul.f32.gmra.mxu0 %v5075
  %v5130 = vpop.f32.mrf.mxu0
  %v5131 = vadd.f32 0.0, %v5130
  %5132 = vmatmul.f32.gmra.mxu0 %v5078
  %v5133 = vpop.f32.mrf.mxu0
  %v5134 = vadd.f32 0.0, %v5133
  %5135 = vmatmul.f32.gmra.mxu0 %v5081
  %v5136 = vpop.f32.mrf.mxu0
  %v5137 = vadd.f32 0.0, %v5136
  %5138 = vmatmul.f32.gmra.mxu0 %v5084
  %v5139 = vpop.f32.mrf.mxu0
  %v5140 = vadd.f32 0.0, %v5139
  %5141 = vdwg.mxu0
  %v5142 = vadd.f32 %v4909, %v5104
  %v5143 = vadd.f32 %v4910, %v5107
  %v5144 = vadd.f32 %v4911, %v5110
  %v5145 = vadd.f32 %v4912, %v5113
  %v5146 = vadd.f32 %v4913, %v5116
  %v5147 = vadd.f32 %v4914, %v5119
  %v5148 = vadd.f32 %v4915, %v5122
  %v5149 = vadd.f32 %v4916, %v5125
  %v5150 = vadd.f32 %v4917, %v5128
  %v5151 = vadd.f32 %v4918, %v5131
  %v5152 = vadd.f32 %v4919, %v5134
  %v5153 = vadd.f32 %v4920, %v5137
  %v5154 = vadd.f32 %v4921, %v5140
  %s5155 = scalar_lea.vmem %s0, 2288
  %v5156 = vld [vmem:[%s5155] sm:$0xff]
  %v5157 = vld [vmem:[%s5155 + $0x8] sm:$0xff]
  %v5158 = vld [vmem:[%s5155 + $0x10] sm:$0xff]
  %v5159 = vld [vmem:[%s5155 + $0x18] sm:$0xff]
  %v5160 = vld [vmem:[%s5155 + $0x20] sm:$0xff]
  %v5161 = vld [vmem:[%s5155 + $0x28] sm:$0xff]
  %v5162 = vld [vmem:[%s5155 + $0x30] sm:$0xff]
  %v5163 = vld [vmem:[%s5155 + $0x38] sm:$0xff]
  %v5164 = vld [vmem:[%s5155 + $0x40] sm:$0xff]
  %v5165 = vld [vmem:[%s5155 + $0x48] sm:$0xff]
  %v5166 = vld [vmem:[%s5155 + $0x50] sm:$0xff]
  %v5167 = vld [vmem:[%s5155 + $0x58] sm:$0xff]
  %v5168 = vld [vmem:[%s5155 + $0x60] sm:$0xff]
  %v5170 = vsel %vm64, %v5156, 0
  %v5173 = vsel %vm64, %v5157, 0
  %v5176 = vsel %vm64, %v5158, 0
  %v5179 = vsel %vm64, %v5159, 0
  %v5182 = vsel %vm64, %v5160, 0
  %v5185 = vsel %vm64, %v5161, 0
  %v5188 = vsel %vm64, %v5162, 0
  %v5191 = vsel %vm64, %v5163, 0
  %v5194 = vsel %vm64, %v5164, 0
  %v5197 = vsel %vm64, %v5165, 0
  %v5200 = vsel %vm64, %v5166, 0
  %v5203 = vsel %vm64, %v5167, 0
  %v5206 = vsel %vm64, %v5168, 0
  %5208 = vmatpush.msra.mxu0 0.0
  %5209 = vmatpush.msra.mxu0 0.0
  %5210 = vmatpush.msra.mxu0 0.0
  %5211 = vmatpush.msra.mxu0 %v106
  %5212 = vmatpush.msra.mxu0 %v45
  %5213 = vmatpush.msra.mxu0 %v44
  %5214 = vmatpush.msra.mxu0 %v43
  %5215 = vmatpush.msra.mxu0 %v42
  %5216 = vmatpush.msra.mxu0 %v41
  %5217 = vmatpush.msra.mxu0 %v40
  %5218 = vmatpush.msra.mxu0 %v39
  %5219 = vmatpush.msra.mxu0 %v38
  %5220 = vmatpush.msra.mxu0 %v37
  %5221 = vmatpush.msra.mxu0 %v36
  %5222 = vmatpush.msra.mxu0 %v35
  %5223 = vmatpush.msra.mxu0 %v34
  %5224 = vmatmul.f32.gmra.mxu0 %v5170
  %v5225 = vpop.f32.mrf.mxu0
  %v5226 = vadd.f32 %v62, %v5225
  %5227 = vmatmul.f32.gmra.mxu0 %v5173
  %v5228 = vpop.f32.mrf.mxu0
  %v5229 = vadd.f32 %v62, %v5228
  %5230 = vmatmul.f32.gmra.mxu0 %v5176
  %v5231 = vpop.f32.mrf.mxu0
  %v5232 = vadd.f32 %v62, %v5231
  %5233 = vmatmul.f32.gmra.mxu0 %v5179
  %v5234 = vpop.f32.mrf.mxu0
  %v5235 = vadd.f32 %v62, %v5234
  %5236 = vmatmul.f32.gmra.mxu0 %v5182
  %v5237 = vpop.f32.mrf.mxu0
  %v5238 = vadd.f32 %v62, %v5237
  %5239 = vmatmul.f32.gmra.mxu0 %v5185
  %v5240 = vpop.f32.mrf.mxu0
  %v5241 = vadd.f32 %v62, %v5240
  %5242 = vmatmul.f32.gmra.mxu0 %v5188
  %v5243 = vpop.f32.mrf.mxu0
  %v5244 = vadd.f32 %v62, %v5243
  %5245 = vmatmul.f32.gmra.mxu0 %v5191
  %v5246 = vpop.f32.mrf.mxu0
  %v5247 = vadd.f32 %v62, %v5246
  %5248 = vmatmul.f32.gmra.mxu0 %v5194
  %v5249 = vpop.f32.mrf.mxu0
  %v5250 = vadd.f32 %v62, %v5249
  %5251 = vmatmul.f32.gmra.mxu0 %v5197
  %v5252 = vpop.f32.mrf.mxu0
  %v5253 = vadd.f32 %v62, %v5252
  %5254 = vmatmul.f32.gmra.mxu0 %v5200
  %v5255 = vpop.f32.mrf.mxu0
  %v5256 = vadd.f32 %v62, %v5255
  %5257 = vmatmul.f32.gmra.mxu0 %v5203
  %v5258 = vpop.f32.mrf.mxu0
  %v5259 = vadd.f32 %v62, %v5258
  %5260 = vmatmul.f32.gmra.mxu0 %v5206
  %v5261 = vpop.f32.mrf.mxu0
  %v5262 = vadd.f32 %v62, %v5261
  %5263 = vdwg.mxu0
  %v5264 = vmax.f32 %v5226, 0.0
  %v5265 = vmax.f32 %v5229, 0.0
  %v5266 = vmax.f32 %v5232, 0.0
  %v5267 = vmax.f32 %v5235, 0.0
  %v5268 = vmax.f32 %v5238, 0.0
  %v5269 = vmax.f32 %v5241, 0.0
  %v5270 = vmax.f32 %v5244, 0.0
  %v5271 = vmax.f32 %v5247, 0.0
  %v5272 = vmax.f32 %v5250, 0.0
  %v5273 = vmax.f32 %v5253, 0.0
  %v5274 = vmax.f32 %v5256, 0.0
  %v5275 = vmax.f32 %v5259, 0.0
  %v5276 = vmax.f32 %v5262, 0.0
  %s5277 = scalar_lea.vmem %s3, 352
  %v5278 = vld [vmem:[%s5277] sm:$0xff]
  %v5279 = vld [vmem:[%s5277 + $0x8] sm:$0xff]
  %v5281 = vsel %vm304, %v5264, 0
  %v5284 = vsel %vm304, %v5265, 0
  %v5287 = vsel %vm304, %v5266, 0
  %v5290 = vsel %vm304, %v5267, 0
  %v5293 = vsel %vm304, %v5268, 0
  %v5296 = vsel %vm304, %v5269, 0
  %v5299 = vsel %vm304, %v5270, 0
  %v5302 = vsel %vm304, %v5271, 0
  %v5305 = vsel %vm304, %v5272, 0
  %v5308 = vsel %vm304, %v5273, 0
  %v5311 = vsel %vm304, %v5274, 0
  %v5314 = vsel %vm304, %v5275, 0
  %v5317 = vsel %vm304, %v5276, 0
  %5319 = vmatpush.msra.mxu0 0.0
  %5320 = vmatpush.msra.mxu0 0.0
  %5321 = vmatpush.msra.mxu0 0.0
  %5322 = vmatpush.msra.mxu0 0.0
  %5323 = vmatpush.msra.mxu0 0.0
  %5324 = vmatpush.msra.mxu0 0.0
  %5325 = vmatpush.msra.mxu0 0.0
  %5326 = vmatpush.msra.mxu0 0.0
  %5327 = vmatpush.msra.mxu0 0.0
  %5328 = vmatpush.msra.mxu0 0.0
  %5329 = vmatpush.msra.mxu0 0.0
  %5330 = vmatpush.msra.mxu0 0.0
  %5331 = vmatpush.msra.mxu0 0.0
  %5332 = vmatpush.msra.mxu0 0.0
  %5333 = vmatpush.msra.mxu0 %v5279
  %5334 = vmatpush.msra.mxu0 %v5278
  %5335 = vmatmul.f32.gmra.mxu0 %v5281
  %v5336 = vpop.f32.mrf.mxu0
  %v5337 = vadd.f32 0.0, %v5336
  %5338 = vmatmul.f32.gmra.mxu0 %v5284
  %v5339 = vpop.f32.mrf.mxu0
  %v5340 = vadd.f32 0.0, %v5339
  %5341 = vmatmul.f32.gmra.mxu0 %v5287
  %v5342 = vpop.f32.mrf.mxu0
  %v5343 = vadd.f32 0.0, %v5342
  %5344 = vmatmul.f32.gmra.mxu0 %v5290
  %v5345 = vpop.f32.mrf.mxu0
  %v5346 = vadd.f32 0.0, %v5345
  %5347 = vmatmul.f32.gmra.mxu0 %v5293
  %v5348 = vpop.f32.mrf.mxu0
  %v5349 = vadd.f32 0.0, %v5348
  %5350 = vmatmul.f32.gmra.mxu0 %v5296
  %v5351 = vpop.f32.mrf.mxu0
  %v5352 = vadd.f32 0.0, %v5351
  %5353 = vmatmul.f32.gmra.mxu0 %v5299
  %v5354 = vpop.f32.mrf.mxu0
  %v5355 = vadd.f32 0.0, %v5354
  %5356 = vmatmul.f32.gmra.mxu0 %v5302
  %v5357 = vpop.f32.mrf.mxu0
  %v5358 = vadd.f32 0.0, %v5357
  %5359 = vmatmul.f32.gmra.mxu0 %v5305
  %v5360 = vpop.f32.mrf.mxu0
  %v5361 = vadd.f32 0.0, %v5360
  %5362 = vmatmul.f32.gmra.mxu0 %v5308
  %v5363 = vpop.f32.mrf.mxu0
  %v5364 = vadd.f32 0.0, %v5363
  %5365 = vmatmul.f32.gmra.mxu0 %v5311
  %v5366 = vpop.f32.mrf.mxu0
  %v5367 = vadd.f32 0.0, %v5366
  %5368 = vmatmul.f32.gmra.mxu0 %v5314
  %v5369 = vpop.f32.mrf.mxu0
  %v5370 = vadd.f32 0.0, %v5369
  %5371 = vmatmul.f32.gmra.mxu0 %v5317
  %v5372 = vpop.f32.mrf.mxu0
  %v5373 = vadd.f32 0.0, %v5372
  %5374 = vdwg.mxu0
  %v5375 = vadd.f32 %v5142, %v5337
  %v5376 = vadd.f32 %v5143, %v5340
  %v5377 = vadd.f32 %v5144, %v5343
  %v5378 = vadd.f32 %v5145, %v5346
  %v5379 = vadd.f32 %v5146, %v5349
  %v5380 = vadd.f32 %v5147, %v5352
  %v5381 = vadd.f32 %v5148, %v5355
  %v5382 = vadd.f32 %v5149, %v5358
  %v5383 = vadd.f32 %v5150, %v5361
  %v5384 = vadd.f32 %v5151, %v5364
  %v5385 = vadd.f32 %v5152, %v5367
  %v5386 = vadd.f32 %v5153, %v5370
  %v5387 = vadd.f32 %v5154, %v5373
  %s5388 = scalar_lea.vmem %s0, 2392
  %v5389 = vld [vmem:[%s5388] sm:$0xff]
  %v5390 = vld [vmem:[%s5388 + $0x8] sm:$0xff]
  %v5391 = vld [vmem:[%s5388 + $0x10] sm:$0xff]
  %v5392 = vld [vmem:[%s5388 + $0x18] sm:$0xff]
  %v5393 = vld [vmem:[%s5388 + $0x20] sm:$0xff]
  %v5394 = vld [vmem:[%s5388 + $0x28] sm:$0xff]
  %v5395 = vld [vmem:[%s5388 + $0x30] sm:$0xff]
  %v5396 = vld [vmem:[%s5388 + $0x38] sm:$0xff]
  %v5397 = vld [vmem:[%s5388 + $0x40] sm:$0xff]
  %v5398 = vld [vmem:[%s5388 + $0x48] sm:$0xff]
  %v5399 = vld [vmem:[%s5388 + $0x50] sm:$0xff]
  %v5400 = vld [vmem:[%s5388 + $0x58] sm:$0xff]
  %v5401 = vld [vmem:[%s5388 + $0x60] sm:$0xff]
  %v5403 = vsel %vm64, %v5389, 0
  %v5406 = vsel %vm64, %v5390, 0
  %v5409 = vsel %vm64, %v5391, 0
  %v5412 = vsel %vm64, %v5392, 0
  %v5415 = vsel %vm64, %v5393, 0
  %v5418 = vsel %vm64, %v5394, 0
  %v5421 = vsel %vm64, %v5395, 0
  %v5424 = vsel %vm64, %v5396, 0
  %v5427 = vsel %vm64, %v5397, 0
  %v5430 = vsel %vm64, %v5398, 0
  %v5433 = vsel %vm64, %v5399, 0
  %v5436 = vsel %vm64, %v5400, 0
  %v5439 = vsel %vm64, %v5401, 0
  %5441 = vmatpush.msra.mxu0 0.0
  %5442 = vmatpush.msra.mxu0 0.0
  %5443 = vmatpush.msra.mxu0 0.0
  %5444 = vmatpush.msra.mxu0 %v106
  %5445 = vmatpush.msra.mxu0 %v45
  %5446 = vmatpush.msra.mxu0 %v44
  %5447 = vmatpush.msra.mxu0 %v43
  %5448 = vmatpush.msra.mxu0 %v42
  %5449 = vmatpush.msra.mxu0 %v41
  %5450 = vmatpush.msra.mxu0 %v40
  %5451 = vmatpush.msra.mxu0 %v39
  %5452 = vmatpush.msra.mxu0 %v38
  %5453 = vmatpush.msra.mxu0 %v37
  %5454 = vmatpush.msra.mxu0 %v36
  %5455 = vmatpush.msra.mxu0 %v35
  %5456 = vmatpush.msra.mxu0 %v34
  %5457 = vmatmul.f32.gmra.mxu0 %v5403
  %v5458 = vpop.f32.mrf.mxu0
  %v5459 = vadd.f32 %v62, %v5458
  %5460 = vmatmul.f32.gmra.mxu0 %v5406
  %v5461 = vpop.f32.mrf.mxu0
  %v5462 = vadd.f32 %v62, %v5461
  %5463 = vmatmul.f32.gmra.mxu0 %v5409
  %v5464 = vpop.f32.mrf.mxu0
  %v5465 = vadd.f32 %v62, %v5464
  %5466 = vmatmul.f32.gmra.mxu0 %v5412
  %v5467 = vpop.f32.mrf.mxu0
  %v5468 = vadd.f32 %v62, %v5467
  %5469 = vmatmul.f32.gmra.mxu0 %v5415
  %v5470 = vpop.f32.mrf.mxu0
  %v5471 = vadd.f32 %v62, %v5470
  %5472 = vmatmul.f32.gmra.mxu0 %v5418
  %v5473 = vpop.f32.mrf.mxu0
  %v5474 = vadd.f32 %v62, %v5473
  %5475 = vmatmul.f32.gmra.mxu0 %v5421
  %v5476 = vpop.f32.mrf.mxu0
  %v5477 = vadd.f32 %v62, %v5476
  %5478 = vmatmul.f32.gmra.mxu0 %v5424
  %v5479 = vpop.f32.mrf.mxu0
  %v5480 = vadd.f32 %v62, %v5479
  %5481 = vmatmul.f32.gmra.mxu0 %v5427
  %v5482 = vpop.f32.mrf.mxu0
  %v5483 = vadd.f32 %v62, %v5482
  %5484 = vmatmul.f32.gmra.mxu0 %v5430
  %v5485 = vpop.f32.mrf.mxu0
  %v5486 = vadd.f32 %v62, %v5485
  %5487 = vmatmul.f32.gmra.mxu0 %v5433
  %v5488 = vpop.f32.mrf.mxu0
  %v5489 = vadd.f32 %v62, %v5488
  %5490 = vmatmul.f32.gmra.mxu0 %v5436
  %v5491 = vpop.f32.mrf.mxu0
  %v5492 = vadd.f32 %v62, %v5491
  %5493 = vmatmul.f32.gmra.mxu0 %v5439
  %v5494 = vpop.f32.mrf.mxu0
  %v5495 = vadd.f32 %v62, %v5494
  %5496 = vdwg.mxu0
  %v5497 = vmax.f32 %v5459, 0.0
  %v5498 = vmax.f32 %v5462, 0.0
  %v5499 = vmax.f32 %v5465, 0.0
  %v5500 = vmax.f32 %v5468, 0.0
  %v5501 = vmax.f32 %v5471, 0.0
  %v5502 = vmax.f32 %v5474, 0.0
  %v5503 = vmax.f32 %v5477, 0.0
  %v5504 = vmax.f32 %v5480, 0.0
  %v5505 = vmax.f32 %v5483, 0.0
  %v5506 = vmax.f32 %v5486, 0.0
  %v5507 = vmax.f32 %v5489, 0.0
  %v5508 = vmax.f32 %v5492, 0.0
  %v5509 = vmax.f32 %v5495, 0.0
  %s5510 = scalar_lea.vmem %s3, 368
  %v5511 = vld [vmem:[%s5510] sm:$0xff]
  %v5512 = vld [vmem:[%s5510 + $0x8] sm:$0xff]
  %v5514 = vsel %vm304, %v5497, 0
  %v5517 = vsel %vm304, %v5498, 0
  %v5520 = vsel %vm304, %v5499, 0
  %v5523 = vsel %vm304, %v5500, 0
  %v5526 = vsel %vm304, %v5501, 0
  %v5529 = vsel %vm304, %v5502, 0
  %v5532 = vsel %vm304, %v5503, 0
  %v5535 = vsel %vm304, %v5504, 0
  %v5538 = vsel %vm304, %v5505, 0
  %v5541 = vsel %vm304, %v5506, 0
  %v5544 = vsel %vm304, %v5507, 0
  %v5547 = vsel %vm304, %v5508, 0
  %v5550 = vsel %vm304, %v5509, 0
  %5552 = vmatpush.msra.mxu0 0.0
  %5553 = vmatpush.msra.mxu0 0.0
  %5554 = vmatpush.msra.mxu0 0.0
  %5555 = vmatpush.msra.mxu0 0.0
  %5556 = vmatpush.msra.mxu0 0.0
  %5557 = vmatpush.msra.mxu0 0.0
  %5558 = vmatpush.msra.mxu0 0.0
  %5559 = vmatpush.msra.mxu0 0.0
  %5560 = vmatpush.msra.mxu0 0.0
  %5561 = vmatpush.msra.mxu0 0.0
  %5562 = vmatpush.msra.mxu0 0.0
  %5563 = vmatpush.msra.mxu0 0.0
  %5564 = vmatpush.msra.mxu0 0.0
  %5565 = vmatpush.msra.mxu0 0.0
  %5566 = vmatpush.msra.mxu0 %v5512
  %5567 = vmatpush.msra.mxu0 %v5511
  %5568 = vmatmul.f32.gmra.mxu0 %v5514
  %v5569 = vpop.f32.mrf.mxu0
  %v5570 = vadd.f32 0.0, %v5569
  %5571 = vmatmul.f32.gmra.mxu0 %v5517
  %v5572 = vpop.f32.mrf.mxu0
  %v5573 = vadd.f32 0.0, %v5572
  %5574 = vmatmul.f32.gmra.mxu0 %v5520
  %v5575 = vpop.f32.mrf.mxu0
  %v5576 = vadd.f32 0.0, %v5575
  %5577 = vmatmul.f32.gmra.mxu0 %v5523
  %v5578 = vpop.f32.mrf.mxu0
  %v5579 = vadd.f32 0.0, %v5578
  %5580 = vmatmul.f32.gmra.mxu0 %v5526
  %v5581 = vpop.f32.mrf.mxu0
  %v5582 = vadd.f32 0.0, %v5581
  %5583 = vmatmul.f32.gmra.mxu0 %v5529
  %v5584 = vpop.f32.mrf.mxu0
  %v5585 = vadd.f32 0.0, %v5584
  %5586 = vmatmul.f32.gmra.mxu0 %v5532
  %v5587 = vpop.f32.mrf.mxu0
  %v5588 = vadd.f32 0.0, %v5587
  %5589 = vmatmul.f32.gmra.mxu0 %v5535
  %v5590 = vpop.f32.mrf.mxu0
  %v5591 = vadd.f32 0.0, %v5590
  %5592 = vmatmul.f32.gmra.mxu0 %v5538
  %v5593 = vpop.f32.mrf.mxu0
  %v5594 = vadd.f32 0.0, %v5593
  %5595 = vmatmul.f32.gmra.mxu0 %v5541
  %v5596 = vpop.f32.mrf.mxu0
  %v5597 = vadd.f32 0.0, %v5596
  %5598 = vmatmul.f32.gmra.mxu0 %v5544
  %v5599 = vpop.f32.mrf.mxu0
  %v5600 = vadd.f32 0.0, %v5599
  %5601 = vmatmul.f32.gmra.mxu0 %v5547
  %v5602 = vpop.f32.mrf.mxu0
  %v5603 = vadd.f32 0.0, %v5602
  %5604 = vmatmul.f32.gmra.mxu0 %v5550
  %v5605 = vpop.f32.mrf.mxu0
  %v5606 = vadd.f32 0.0, %v5605
  %5607 = vdwg.mxu0
  %v5608 = vadd.f32 %v5375, %v5570
  %v5609 = vadd.f32 %v5376, %v5573
  %v5610 = vadd.f32 %v5377, %v5576
  %v5611 = vadd.f32 %v5378, %v5579
  %v5612 = vadd.f32 %v5379, %v5582
  %v5613 = vadd.f32 %v5380, %v5585
  %v5614 = vadd.f32 %v5381, %v5588
  %v5615 = vadd.f32 %v5382, %v5591
  %v5616 = vadd.f32 %v5383, %v5594
  %v5617 = vadd.f32 %v5384, %v5597
  %v5618 = vadd.f32 %v5385, %v5600
  %v5619 = vadd.f32 %v5386, %v5603
  %v5620 = vadd.f32 %v5387, %v5606
  %s5621 = scalar_lea.vmem %s0, 2496
  %v5622 = vld [vmem:[%s5621] sm:$0xff]
  %v5623 = vld [vmem:[%s5621 + $0x8] sm:$0xff]
  %v5624 = vld [vmem:[%s5621 + $0x10] sm:$0xff]
  %v5625 = vld [vmem:[%s5621 + $0x18] sm:$0xff]
  %v5626 = vld [vmem:[%s5621 + $0x20] sm:$0xff]
  %v5627 = vld [vmem:[%s5621 + $0x28] sm:$0xff]
  %v5628 = vld [vmem:[%s5621 + $0x30] sm:$0xff]
  %v5629 = vld [vmem:[%s5621 + $0x38] sm:$0xff]
  %v5630 = vld [vmem:[%s5621 + $0x40] sm:$0xff]
  %v5631 = vld [vmem:[%s5621 + $0x48] sm:$0xff]
  %v5632 = vld [vmem:[%s5621 + $0x50] sm:$0xff]
  %v5633 = vld [vmem:[%s5621 + $0x58] sm:$0xff]
  %v5634 = vld [vmem:[%s5621 + $0x60] sm:$0xff]
  %v5636 = vsel %vm64, %v5622, 0
  %v5639 = vsel %vm64, %v5623, 0
  %v5642 = vsel %vm64, %v5624, 0
  %v5645 = vsel %vm64, %v5625, 0
  %v5648 = vsel %vm64, %v5626, 0
  %v5651 = vsel %vm64, %v5627, 0
  %v5654 = vsel %vm64, %v5628, 0
  %v5657 = vsel %vm64, %v5629, 0
  %v5660 = vsel %vm64, %v5630, 0
  %v5663 = vsel %vm64, %v5631, 0
  %v5666 = vsel %vm64, %v5632, 0
  %v5669 = vsel %vm64, %v5633, 0
  %v5672 = vsel %vm64, %v5634, 0
  %5674 = vmatpush.msra.mxu0 0.0
  %5675 = vmatpush.msra.mxu0 0.0
  %5676 = vmatpush.msra.mxu0 0.0
  %5677 = vmatpush.msra.mxu0 %v106
  %5678 = vmatpush.msra.mxu0 %v45
  %5679 = vmatpush.msra.mxu0 %v44
  %5680 = vmatpush.msra.mxu0 %v43
  %5681 = vmatpush.msra.mxu0 %v42
  %5682 = vmatpush.msra.mxu0 %v41
  %5683 = vmatpush.msra.mxu0 %v40
  %5684 = vmatpush.msra.mxu0 %v39
  %5685 = vmatpush.msra.mxu0 %v38
  %5686 = vmatpush.msra.mxu0 %v37
  %5687 = vmatpush.msra.mxu0 %v36
  %5688 = vmatpush.msra.mxu0 %v35
  %5689 = vmatpush.msra.mxu0 %v34
  %5690 = vmatmul.f32.gmra.mxu0 %v5636
  %v5691 = vpop.f32.mrf.mxu0
  %v5692 = vadd.f32 %v62, %v5691
  %5693 = vmatmul.f32.gmra.mxu0 %v5639
  %v5694 = vpop.f32.mrf.mxu0
  %v5695 = vadd.f32 %v62, %v5694
  %5696 = vmatmul.f32.gmra.mxu0 %v5642
  %v5697 = vpop.f32.mrf.mxu0
  %v5698 = vadd.f32 %v62, %v5697
  %5699 = vmatmul.f32.gmra.mxu0 %v5645
  %v5700 = vpop.f32.mrf.mxu0
  %v5701 = vadd.f32 %v62, %v5700
  %5702 = vmatmul.f32.gmra.mxu0 %v5648
  %v5703 = vpop.f32.mrf.mxu0
  %v5704 = vadd.f32 %v62, %v5703
  %5705 = vmatmul.f32.gmra.mxu0 %v5651
  %v5706 = vpop.f32.mrf.mxu0
  %v5707 = vadd.f32 %v62, %v5706
  %5708 = vmatmul.f32.gmra.mxu0 %v5654
  %v5709 = vpop.f32.mrf.mxu0
  %v5710 = vadd.f32 %v62, %v5709
  %5711 = vmatmul.f32.gmra.mxu0 %v5657
  %v5712 = vpop.f32.mrf.mxu0
  %v5713 = vadd.f32 %v62, %v5712
  %5714 = vmatmul.f32.gmra.mxu0 %v5660
  %v5715 = vpop.f32.mrf.mxu0
  %v5716 = vadd.f32 %v62, %v5715
  %5717 = vmatmul.f32.gmra.mxu0 %v5663
  %v5718 = vpop.f32.mrf.mxu0
  %v5719 = vadd.f32 %v62, %v5718
  %5720 = vmatmul.f32.gmra.mxu0 %v5666
  %v5721 = vpop.f32.mrf.mxu0
  %v5722 = vadd.f32 %v62, %v5721
  %5723 = vmatmul.f32.gmra.mxu0 %v5669
  %v5724 = vpop.f32.mrf.mxu0
  %v5725 = vadd.f32 %v62, %v5724
  %5726 = vmatmul.f32.gmra.mxu0 %v5672
  %v5727 = vpop.f32.mrf.mxu0
  %v5728 = vadd.f32 %v62, %v5727
  %5729 = vdwg.mxu0
  %v5730 = vmax.f32 %v5692, 0.0
  %v5731 = vmax.f32 %v5695, 0.0
  %v5732 = vmax.f32 %v5698, 0.0
  %v5733 = vmax.f32 %v5701, 0.0
  %v5734 = vmax.f32 %v5704, 0.0
  %v5735 = vmax.f32 %v5707, 0.0
  %v5736 = vmax.f32 %v5710, 0.0
  %v5737 = vmax.f32 %v5713, 0.0
  %v5738 = vmax.f32 %v5716, 0.0
  %v5739 = vmax.f32 %v5719, 0.0
  %v5740 = vmax.f32 %v5722, 0.0
  %v5741 = vmax.f32 %v5725, 0.0
  %v5742 = vmax.f32 %v5728, 0.0
  %s5743 = scalar_lea.vmem %s3, 384
  %v5744 = vld [vmem:[%s5743] sm:$0xff]
  %v5745 = vld [vmem:[%s5743 + $0x8] sm:$0xff]
  %v5747 = vsel %vm304, %v5730, 0
  %v5750 = vsel %vm304, %v5731, 0
  %v5753 = vsel %vm304, %v5732, 0
  %v5756 = vsel %vm304, %v5733, 0
  %v5759 = vsel %vm304, %v5734, 0
  %v5762 = vsel %vm304, %v5735, 0
  %v5765 = vsel %vm304, %v5736, 0
  %v5768 = vsel %vm304, %v5737, 0
  %v5771 = vsel %vm304, %v5738, 0
  %v5774 = vsel %vm304, %v5739, 0
  %v5777 = vsel %vm304, %v5740, 0
  %v5780 = vsel %vm304, %v5741, 0
  %v5783 = vsel %vm304, %v5742, 0
  %5785 = vmatpush.msra.mxu0 0.0
  %5786 = vmatpush.msra.mxu0 0.0
  %5787 = vmatpush.msra.mxu0 0.0
  %5788 = vmatpush.msra.mxu0 0.0
  %5789 = vmatpush.msra.mxu0 0.0
  %5790 = vmatpush.msra.mxu0 0.0
  %5791 = vmatpush.msra.mxu0 0.0
  %5792 = vmatpush.msra.mxu0 0.0
  %5793 = vmatpush.msra.mxu0 0.0
  %5794 = vmatpush.msra.mxu0 0.0
  %5795 = vmatpush.msra.mxu0 0.0
  %5796 = vmatpush.msra.mxu0 0.0
  %5797 = vmatpush.msra.mxu0 0.0
  %5798 = vmatpush.msra.mxu0 0.0
  %5799 = vmatpush.msra.mxu0 %v5745
  %5800 = vmatpush.msra.mxu0 %v5744
  %5801 = vmatmul.f32.gmra.mxu0 %v5747
  %v5802 = vpop.f32.mrf.mxu0
  %v5803 = vadd.f32 0.0, %v5802
  %5804 = vmatmul.f32.gmra.mxu0 %v5750
  %v5805 = vpop.f32.mrf.mxu0
  %v5806 = vadd.f32 0.0, %v5805
  %5807 = vmatmul.f32.gmra.mxu0 %v5753
  %v5808 = vpop.f32.mrf.mxu0
  %v5809 = vadd.f32 0.0, %v5808
  %5810 = vmatmul.f32.gmra.mxu0 %v5756
  %v5811 = vpop.f32.mrf.mxu0
  %v5812 = vadd.f32 0.0, %v5811
  %5813 = vmatmul.f32.gmra.mxu0 %v5759
  %v5814 = vpop.f32.mrf.mxu0
  %v5815 = vadd.f32 0.0, %v5814
  %5816 = vmatmul.f32.gmra.mxu0 %v5762
  %v5817 = vpop.f32.mrf.mxu0
  %v5818 = vadd.f32 0.0, %v5817
  %5819 = vmatmul.f32.gmra.mxu0 %v5765
  %v5820 = vpop.f32.mrf.mxu0
  %v5821 = vadd.f32 0.0, %v5820
  %5822 = vmatmul.f32.gmra.mxu0 %v5768
  %v5823 = vpop.f32.mrf.mxu0
  %v5824 = vadd.f32 0.0, %v5823
  %5825 = vmatmul.f32.gmra.mxu0 %v5771
  %v5826 = vpop.f32.mrf.mxu0
  %v5827 = vadd.f32 0.0, %v5826
  %5828 = vmatmul.f32.gmra.mxu0 %v5774
  %v5829 = vpop.f32.mrf.mxu0
  %v5830 = vadd.f32 0.0, %v5829
  %5831 = vmatmul.f32.gmra.mxu0 %v5777
  %v5832 = vpop.f32.mrf.mxu0
  %v5833 = vadd.f32 0.0, %v5832
  %5834 = vmatmul.f32.gmra.mxu0 %v5780
  %v5835 = vpop.f32.mrf.mxu0
  %v5836 = vadd.f32 0.0, %v5835
  %5837 = vmatmul.f32.gmra.mxu0 %v5783
  %v5838 = vpop.f32.mrf.mxu0
  %v5839 = vadd.f32 0.0, %v5838
  %5840 = vdwg.mxu0
  %v5841 = vadd.f32 %v5608, %v5803
  %v5842 = vadd.f32 %v5609, %v5806
  %v5843 = vadd.f32 %v5610, %v5809
  %v5844 = vadd.f32 %v5611, %v5812
  %v5845 = vadd.f32 %v5612, %v5815
  %v5846 = vadd.f32 %v5613, %v5818
  %v5847 = vadd.f32 %v5614, %v5821
  %v5848 = vadd.f32 %v5615, %v5824
  %v5849 = vadd.f32 %v5616, %v5827
  %v5850 = vadd.f32 %v5617, %v5830
  %v5851 = vadd.f32 %v5618, %v5833
  %v5852 = vadd.f32 %v5619, %v5836
  %v5853 = vadd.f32 %v5620, %v5839
  %v5854 = vld [vmem:[%s4] sm:$0x1]
  %v5856 = vperm.slane %v5854, 0
  %v5858 = vadd.f32 %v5841, %v5856
  %v5859 = vadd.f32 %v5842, %v5856
  %v5860 = vadd.f32 %v5843, %v5856
  %v5861 = vadd.f32 %v5844, %v5856
  %v5862 = vadd.f32 %v5845, %v5856
  %v5863 = vadd.f32 %v5846, %v5856
  %v5864 = vadd.f32 %v5847, %v5856
  %v5865 = vadd.f32 %v5848, %v5856
  %v5866 = vadd.f32 %v5849, %v5856
  %v5867 = vadd.f32 %v5850, %v5856
  %v5868 = vadd.f32 %v5851, %v5856
  %v5869 = vadd.f32 %v5852, %v5856
  %v5870 = vadd.f32 %v5853, %v5856
  %v5871 = vmax.f32 %v5858, 0.0
  %v5872 = vmax.f32 %v5859, 0.0
  %v5873 = vmax.f32 %v5860, 0.0
  %v5874 = vmax.f32 %v5861, 0.0
  %v5875 = vmax.f32 %v5862, 0.0
  %v5876 = vmax.f32 %v5863, 0.0
  %v5877 = vmax.f32 %v5864, 0.0
  %v5878 = vmax.f32 %v5865, 0.0
  %v5879 = vmax.f32 %v5866, 0.0
  %v5880 = vmax.f32 %v5867, 0.0
  %v5881 = vmax.f32 %v5868, 0.0
  %v5882 = vmax.f32 %v5869, 0.0
  %v5883 = vmax.f32 %v5870, 0.0
  %vm5884 = vcmask 261120
  %5885 = vst.msk [vmem:[#allocation2] sm:$0xff] %vm5884, %v5871
  %5886 = vst.msk [vmem:[#allocation2 + $0x8] sm:$0xff] %vm5884, %v5872
  %5887 = vst.msk [vmem:[#allocation2 + $0x10] sm:$0xff] %vm5884, %v5873
  %5888 = vst.msk [vmem:[#allocation2 + $0x18] sm:$0xff] %vm5884, %v5874
  %5889 = vst.msk [vmem:[#allocation2 + $0x20] sm:$0xff] %vm5884, %v5875
  %5890 = vst.msk [vmem:[#allocation2 + $0x28] sm:$0xff] %vm5884, %v5876
  %5891 = vst.msk [vmem:[#allocation2 + $0x30] sm:$0xff] %vm5884, %v5877
  %5892 = vst.msk [vmem:[#allocation2 + $0x38] sm:$0xff] %vm5884, %v5878
  %5893 = vst.msk [vmem:[#allocation2 + $0x40] sm:$0xff] %vm5884, %v5879
  %5894 = vst.msk [vmem:[#allocation2 + $0x48] sm:$0xff] %vm5884, %v5880
  %5895 = vst.msk [vmem:[#allocation2 + $0x50] sm:$0xff] %vm5884, %v5881
  %5896 = vst.msk [vmem:[#allocation2 + $0x58] sm:$0xff] %vm5884, %v5882
  %5897 = vst.msk [vmem:[#allocation2 + $0x60] sm:$0xff] %vm5884, %v5883
  %v5898 = vld [vmem:[%s6] sm:$0x1]
  %v5899 = vld [vmem:[#allocation2] sm:$0x3]
  %v5900 = vld [vmem:[%s5] sm:$0xff]
  %v5901 = vld [vmem:[%s5 + $0x8] sm:$0xff]
  %v5902 = vld [vmem:[%s5 + $0x10] sm:$0xff]
  %v5903 = vld [vmem:[%s5 + $0x18] sm:$0xff]
  %v5904 = vld [vmem:[#allocation2 + $0x2] sm:$0x3]
  %s5905 = scalar_lea.vmem %s5, 32
  %v5906 = vld [vmem:[%s5905] sm:$0xff]
  %v5907 = vld [vmem:[%s5905 + $0x8] sm:$0xff]
  %v5908 = vld [vmem:[%s5905 + $0x10] sm:$0xff]
  %v5909 = vld [vmem:[%s5905 + $0x18] sm:$0xff]
  %v5911 = vsel %vm5884, %v5904, 0
  %5913 = vmatpush.msra.mxu0 0.0
  %5914 = vmatpush.msra.mxu0 0.0
  %5915 = vmatpush.msra.mxu0 0.0
  %5916 = vmatpush.msra.mxu0 0.0
  %5917 = vmatpush.msra.mxu0 0.0
  %5918 = vmatpush.msra.mxu0 0.0
  %5919 = vmatpush.msra.mxu0 0.0
  %5920 = vmatpush.msra.mxu0 0.0
  %5921 = vmatpush.msra.mxu0 0.0
  %5922 = vmatpush.msra.mxu0 0.0
  %5923 = vmatpush.msra.mxu0 0.0
  %5924 = vmatpush.msra.mxu0 0.0
  %5925 = vmatpush.msra.mxu0 %v5909
  %5926 = vmatpush.msra.mxu0 %v5908
  %5927 = vmatpush.msra.mxu0 %v5907
  %5928 = vmatpush.msra.mxu0 %v5906
  %5929 = vmatmul.f32.gmra.mxu0 %v5911
  %v5930 = vpop.f32.mrf.mxu0
  %v5931 = vadd.f32 0.0, %v5930
  %5932 = vdwg.mxu0
  %v5934 = vsel %vm5884, %v5899, 0
  %5936 = vmatpush.msra.mxu0 0.0
  %5937 = vmatpush.msra.mxu0 0.0
  %5938 = vmatpush.msra.mxu0 0.0
  %5939 = vmatpush.msra.mxu0 0.0
  %5940 = vmatpush.msra.mxu0 0.0
  %5941 = vmatpush.msra.mxu0 0.0
  %5942 = vmatpush.msra.mxu0 0.0
  %5943 = vmatpush.msra.mxu0 0.0
  %5944 = vmatpush.msra.mxu0 0.0
  %5945 = vmatpush.msra.mxu0 0.0
  %5946 = vmatpush.msra.mxu0 0.0
  %5947 = vmatpush.msra.mxu0 0.0
  %5948 = vmatpush.msra.mxu0 %v5903
  %5949 = vmatpush.msra.mxu0 %v5902
  %5950 = vmatpush.msra.mxu0 %v5901
  %5951 = vmatpush.msra.mxu0 %v5900
  %5952 = vmatmul.f32.gmra.mxu0 %v5934
  %v5953 = vpop.f32.mrf.mxu0
  %v5954 = vadd.f32 %v5931, %v5953
  %5955 = vdwg.mxu0
  %v5956 = vld [vmem:[#allocation2 + $0x4] sm:$0x3]
  %s5957 = scalar_lea.vmem %s5, 64
  %v5958 = vld [vmem:[%s5957] sm:$0xff]
  %v5959 = vld [vmem:[%s5957 + $0x8] sm:$0xff]
  %v5960 = vld [vmem:[%s5957 + $0x10] sm:$0xff]
  %v5961 = vld [vmem:[%s5957 + $0x18] sm:$0xff]
  %v5963 = vsel %vm5884, %v5956, 0
  %5965 = vmatpush.msra.mxu0 0.0
  %5966 = vmatpush.msra.mxu0 0.0
  %5967 = vmatpush.msra.mxu0 0.0
  %5968 = vmatpush.msra.mxu0 0.0
  %5969 = vmatpush.msra.mxu0 0.0
  %5970 = vmatpush.msra.mxu0 0.0
  %5971 = vmatpush.msra.mxu0 0.0
  %5972 = vmatpush.msra.mxu0 0.0
  %5973 = vmatpush.msra.mxu0 0.0
  %5974 = vmatpush.msra.mxu0 0.0
  %5975 = vmatpush.msra.mxu0 0.0
  %5976 = vmatpush.msra.mxu0 0.0
  %5977 = vmatpush.msra.mxu0 %v5961
  %5978 = vmatpush.msra.mxu0 %v5960
  %5979 = vmatpush.msra.mxu0 %v5959
  %5980 = vmatpush.msra.mxu0 %v5958
  %5981 = vmatmul.f32.gmra.mxu0 %v5963
  %v5982 = vpop.f32.mrf.mxu0
  %v5983 = vadd.f32 0.0, %v5982
  %5984 = vdwg.mxu0
  %v5985 = vadd.f32 %v5954, %v5983
  %v5986 = vld [vmem:[#allocation2 + $0x6] sm:$0x3]
  %s5987 = scalar_lea.vmem %s5, 96
  %v5988 = vld [vmem:[%s5987] sm:$0xff]
  %v5989 = vld [vmem:[%s5987 + $0x8] sm:$0xff]
  %v5990 = vld [vmem:[%s5987 + $0x10] sm:$0xff]
  %v5991 = vld [vmem:[%s5987 + $0x18] sm:$0xff]
  %v5993 = vsel %vm5884, %v5986, 0
  %5995 = vmatpush.msra.mxu0 0.0
  %5996 = vmatpush.msra.mxu0 0.0
  %5997 = vmatpush.msra.mxu0 0.0
  %5998 = vmatpush.msra.mxu0 0.0
  %5999 = vmatpush.msra.mxu0 0.0
  %6000 = vmatpush.msra.mxu0 0.0
  %6001 = vmatpush.msra.mxu0 0.0
  %6002 = vmatpush.msra.mxu0 0.0
  %6003 = vmatpush.msra.mxu0 0.0
  %6004 = vmatpush.msra.mxu0 0.0
  %6005 = vmatpush.msra.mxu0 0.0
  %6006 = vmatpush.msra.mxu0 0.0
  %6007 = vmatpush.msra.mxu0 %v5991
  %6008 = vmatpush.msra.mxu0 %v5990
  %6009 = vmatpush.msra.mxu0 %v5989
  %6010 = vmatpush.msra.mxu0 %v5988
  %6011 = vmatmul.f32.gmra.mxu0 %v5993
  %v6012 = vpop.f32.mrf.mxu0
  %v6013 = vadd.f32 0.0, %v6012
  %6014 = vdwg.mxu0
  %v6015 = vadd.f32 %v5985, %v6013
  %v6016 = vld [vmem:[#allocation2 + $0x8] sm:$0x3]
  %s6017 = scalar_lea.vmem %s5, 128
  %v6018 = vld [vmem:[%s6017] sm:$0xff]
  %v6019 = vld [vmem:[%s6017 + $0x8] sm:$0xff]
  %v6020 = vld [vmem:[%s6017 + $0x10] sm:$0xff]
  %v6021 = vld [vmem:[%s6017 + $0x18] sm:$0xff]
  %v6023 = vsel %vm5884, %v6016, 0
  %6025 = vmatpush.msra.mxu0 0.0
  %6026 = vmatpush.msra.mxu0 0.0
  %6027 = vmatpush.msra.mxu0 0.0
  %6028 = vmatpush.msra.mxu0 0.0
  %6029 = vmatpush.msra.mxu0 0.0
  %6030 = vmatpush.msra.mxu0 0.0
  %6031 = vmatpush.msra.mxu0 0.0
  %6032 = vmatpush.msra.mxu0 0.0
  %6033 = vmatpush.msra.mxu0 0.0
  %6034 = vmatpush.msra.mxu0 0.0
  %6035 = vmatpush.msra.mxu0 0.0
  %6036 = vmatpush.msra.mxu0 0.0
  %6037 = vmatpush.msra.mxu0 %v6021
  %6038 = vmatpush.msra.mxu0 %v6020
  %6039 = vmatpush.msra.mxu0 %v6019
  %6040 = vmatpush.msra.mxu0 %v6018
  %6041 = vmatmul.f32.gmra.mxu0 %v6023
  %v6042 = vpop.f32.mrf.mxu0
  %v6043 = vadd.f32 0.0, %v6042
  %6044 = vdwg.mxu0
  %v6045 = vadd.f32 %v6015, %v6043
  %v6046 = vld [vmem:[#allocation2 + $0xe] sm:$0x3]
  %s6047 = scalar_lea.vmem %s5, 160
  %v6048 = vld [vmem:[%s6047] sm:$0xff]
  %v6049 = vld [vmem:[%s6047 + $0x8] sm:$0xff]
  %v6050 = vld [vmem:[%s6047 + $0x10] sm:$0xff]
  %v6051 = vld [vmem:[%s6047 + $0x18] sm:$0xff]
  %v6053 = vsel %vm5884, %v6046, 0
  %6055 = vmatpush.msra.mxu0 0.0
  %6056 = vmatpush.msra.mxu0 0.0
  %6057 = vmatpush.msra.mxu0 0.0
  %6058 = vmatpush.msra.mxu0 0.0
  %6059 = vmatpush.msra.mxu0 0.0
  %6060 = vmatpush.msra.mxu0 0.0
  %6061 = vmatpush.msra.mxu0 0.0
  %6062 = vmatpush.msra.mxu0 0.0
  %6063 = vmatpush.msra.mxu0 0.0
  %6064 = vmatpush.msra.mxu0 0.0
  %6065 = vmatpush.msra.mxu0 0.0
  %6066 = vmatpush.msra.mxu0 0.0
  %6067 = vmatpush.msra.mxu0 %v6051
  %6068 = vmatpush.msra.mxu0 %v6050
  %6069 = vmatpush.msra.mxu0 %v6049
  %6070 = vmatpush.msra.mxu0 %v6048
  %6071 = vmatmul.f32.gmra.mxu0 %v6053
  %v6072 = vpop.f32.mrf.mxu0
  %v6073 = vadd.f32 0.0, %v6072
  %6074 = vdwg.mxu0
  %v6075 = vadd.f32 %v6045, %v6073
  %v6076 = vld [vmem:[#allocation2 + $0x10] sm:$0x3]
  %s6077 = scalar_lea.vmem %s5, 192
  %v6078 = vld [vmem:[%s6077] sm:$0xff]
  %v6079 = vld [vmem:[%s6077 + $0x8] sm:$0xff]
  %v6080 = vld [vmem:[%s6077 + $0x10] sm:$0xff]
  %v6081 = vld [vmem:[%s6077 + $0x18] sm:$0xff]
  %v6083 = vsel %vm5884, %v6076, 0
  %6085 = vmatpush.msra.mxu0 0.0
  %6086 = vmatpush.msra.mxu0 0.0
  %6087 = vmatpush.msra.mxu0 0.0
  %6088 = vmatpush.msra.mxu0 0.0
  %6089 = vmatpush.msra.mxu0 0.0
  %6090 = vmatpush.msra.mxu0 0.0
  %6091 = vmatpush.msra.mxu0 0.0
  %6092 = vmatpush.msra.mxu0 0.0
  %6093 = vmatpush.msra.mxu0 0.0
  %6094 = vmatpush.msra.mxu0 0.0
  %6095 = vmatpush.msra.mxu0 0.0
  %6096 = vmatpush.msra.mxu0 0.0
  %6097 = vmatpush.msra.mxu0 %v6081
  %6098 = vmatpush.msra.mxu0 %v6080
  %6099 = vmatpush.msra.mxu0 %v6079
  %6100 = vmatpush.msra.mxu0 %v6078
  %6101 = vmatmul.f32.gmra.mxu0 %v6083
  %v6102 = vpop.f32.mrf.mxu0
  %v6103 = vadd.f32 0.0, %v6102
  %6104 = vdwg.mxu0
  %v6105 = vadd.f32 %v6075, %v6103
  %v6106 = vld [vmem:[#allocation2 + $0x12] sm:$0x3]
  %s6107 = scalar_lea.vmem %s5, 224
  %v6108 = vld [vmem:[%s6107] sm:$0xff]
  %v6109 = vld [vmem:[%s6107 + $0x8] sm:$0xff]
  %v6110 = vld [vmem:[%s6107 + $0x10] sm:$0xff]
  %v6111 = vld [vmem:[%s6107 + $0x18] sm:$0xff]
  %v6113 = vsel %vm5884, %v6106, 0
  %6115 = vmatpush.msra.mxu0 0.0
  %6116 = vmatpush.msra.mxu0 0.0
  %6117 = vmatpush.msra.mxu0 0.0
  %6118 = vmatpush.msra.mxu0 0.0
  %6119 = vmatpush.msra.mxu0 0.0
  %6120 = vmatpush.msra.mxu0 0.0
  %6121 = vmatpush.msra.mxu0 0.0
  %6122 = vmatpush.msra.mxu0 0.0
  %6123 = vmatpush.msra.mxu0 0.0
  %6124 = vmatpush.msra.mxu0 0.0
  %6125 = vmatpush.msra.mxu0 0.0
  %6126 = vmatpush.msra.mxu0 0.0
  %6127 = vmatpush.msra.mxu0 %v6111
  %6128 = vmatpush.msra.mxu0 %v6110
  %6129 = vmatpush.msra.mxu0 %v6109
  %6130 = vmatpush.msra.mxu0 %v6108
  %6131 = vmatmul.f32.gmra.mxu0 %v6113
  %v6132 = vpop.f32.mrf.mxu0
  %v6133 = vadd.f32 0.0, %v6132
  %6134 = vdwg.mxu0
  %v6135 = vadd.f32 %v6105, %v6133
  %v6136 = vld [vmem:[#allocation2 + $0x14] sm:$0x3]
  %s6137 = scalar_lea.vmem %s5, 256
  %v6138 = vld [vmem:[%s6137] sm:$0xff]
  %v6139 = vld [vmem:[%s6137 + $0x8] sm:$0xff]
  %v6140 = vld [vmem:[%s6137 + $0x10] sm:$0xff]
  %v6141 = vld [vmem:[%s6137 + $0x18] sm:$0xff]
  %v6143 = vsel %vm5884, %v6136, 0
  %6145 = vmatpush.msra.mxu0 0.0
  %6146 = vmatpush.msra.mxu0 0.0
  %6147 = vmatpush.msra.mxu0 0.0
  %6148 = vmatpush.msra.mxu0 0.0
  %6149 = vmatpush.msra.mxu0 0.0
  %6150 = vmatpush.msra.mxu0 0.0
  %6151 = vmatpush.msra.mxu0 0.0
  %6152 = vmatpush.msra.mxu0 0.0
  %6153 = vmatpush.msra.mxu0 0.0
  %6154 = vmatpush.msra.mxu0 0.0
  %6155 = vmatpush.msra.mxu0 0.0
  %6156 = vmatpush.msra.mxu0 0.0
  %6157 = vmatpush.msra.mxu0 %v6141
  %6158 = vmatpush.msra.mxu0 %v6140
  %6159 = vmatpush.msra.mxu0 %v6139
  %6160 = vmatpush.msra.mxu0 %v6138
  %6161 = vmatmul.f32.gmra.mxu0 %v6143
  %v6162 = vpop.f32.mrf.mxu0
  %v6163 = vadd.f32 0.0, %v6162
  %6164 = vdwg.mxu0
  %v6165 = vadd.f32 %v6135, %v6163
  %v6166 = vld [vmem:[#allocation2 + $0x16] sm:$0x3]
  %s6167 = scalar_lea.vmem %s5, 288
  %v6168 = vld [vmem:[%s6167] sm:$0xff]
  %v6169 = vld [vmem:[%s6167 + $0x8] sm:$0xff]
  %v6170 = vld [vmem:[%s6167 + $0x10] sm:$0xff]
  %v6171 = vld [vmem:[%s6167 + $0x18] sm:$0xff]
  %v6173 = vsel %vm5884, %v6166, 0
  %6175 = vmatpush.msra.mxu0 0.0
  %6176 = vmatpush.msra.mxu0 0.0
  %6177 = vmatpush.msra.mxu0 0.0
  %6178 = vmatpush.msra.mxu0 0.0
  %6179 = vmatpush.msra.mxu0 0.0
  %6180 = vmatpush.msra.mxu0 0.0
  %6181 = vmatpush.msra.mxu0 0.0
  %6182 = vmatpush.msra.mxu0 0.0
  %6183 = vmatpush.msra.mxu0 0.0
  %6184 = vmatpush.msra.mxu0 0.0
  %6185 = vmatpush.msra.mxu0 0.0
  %6186 = vmatpush.msra.mxu0 0.0
  %6187 = vmatpush.msra.mxu0 %v6171
  %6188 = vmatpush.msra.mxu0 %v6170
  %6189 = vmatpush.msra.mxu0 %v6169
  %6190 = vmatpush.msra.mxu0 %v6168
  %6191 = vmatmul.f32.gmra.mxu0 %v6173
  %v6192 = vpop.f32.mrf.mxu0
  %v6193 = vadd.f32 0.0, %v6192
  %6194 = vdwg.mxu0
  %v6195 = vadd.f32 %v6165, %v6193
  %v6196 = vld [vmem:[#allocation2 + $0x1c] sm:$0x3]
  %s6197 = scalar_lea.vmem %s5, 320
  %v6198 = vld [vmem:[%s6197] sm:$0xff]
  %v6199 = vld [vmem:[%s6197 + $0x8] sm:$0xff]
  %v6200 = vld [vmem:[%s6197 + $0x10] sm:$0xff]
  %v6201 = vld [vmem:[%s6197 + $0x18] sm:$0xff]
  %v6203 = vsel %vm5884, %v6196, 0
  %6205 = vmatpush.msra.mxu0 0.0
  %6206 = vmatpush.msra.mxu0 0.0
  %6207 = vmatpush.msra.mxu0 0.0
  %6208 = vmatpush.msra.mxu0 0.0
  %6209 = vmatpush.msra.mxu0 0.0
  %6210 = vmatpush.msra.mxu0 0.0
  %6211 = vmatpush.msra.mxu0 0.0
  %6212 = vmatpush.msra.mxu0 0.0
  %6213 = vmatpush.msra.mxu0 0.0
  %6214 = vmatpush.msra.mxu0 0.0
  %6215 = vmatpush.msra.mxu0 0.0
  %6216 = vmatpush.msra.mxu0 0.0
  %6217 = vmatpush.msra.mxu0 %v6201
  %6218 = vmatpush.msra.mxu0 %v6200
  %6219 = vmatpush.msra.mxu0 %v6199
  %6220 = vmatpush.msra.mxu0 %v6198
  %6221 = vmatmul.f32.gmra.mxu0 %v6203
  %v6222 = vpop.f32.mrf.mxu0
  %v6223 = vadd.f32 0.0, %v6222
  %6224 = vdwg.mxu0
  %v6225 = vadd.f32 %v6195, %v6223
  %v6226 = vld [vmem:[#allocation2 + $0x1e] sm:$0x3]
  %s6227 = scalar_lea.vmem %s5, 352
  %v6228 = vld [vmem:[%s6227] sm:$0xff]
  %v6229 = vld [vmem:[%s6227 + $0x8] sm:$0xff]
  %v6230 = vld [vmem:[%s6227 + $0x10] sm:$0xff]
  %v6231 = vld [vmem:[%s6227 + $0x18] sm:$0xff]
  %v6233 = vsel %vm5884, %v6226, 0
  %6235 = vmatpush.msra.mxu0 0.0
  %6236 = vmatpush.msra.mxu0 0.0
  %6237 = vmatpush.msra.mxu0 0.0
  %6238 = vmatpush.msra.mxu0 0.0
  %6239 = vmatpush.msra.mxu0 0.0
  %6240 = vmatpush.msra.mxu0 0.0
  %6241 = vmatpush.msra.mxu0 0.0
  %6242 = vmatpush.msra.mxu0 0.0
  %6243 = vmatpush.msra.mxu0 0.0
  %6244 = vmatpush.msra.mxu0 0.0
  %6245 = vmatpush.msra.mxu0 0.0
  %6246 = vmatpush.msra.mxu0 0.0
  %6247 = vmatpush.msra.mxu0 %v6231
  %6248 = vmatpush.msra.mxu0 %v6230
  %6249 = vmatpush.msra.mxu0 %v6229
  %6250 = vmatpush.msra.mxu0 %v6228
  %6251 = vmatmul.f32.gmra.mxu0 %v6233
  %v6252 = vpop.f32.mrf.mxu0
  %v6253 = vadd.f32 0.0, %v6252
  %6254 = vdwg.mxu0
  %v6255 = vadd.f32 %v6225, %v6253
  %v6256 = vld [vmem:[#allocation2 + $0x20] sm:$0x3]
  %s6257 = scalar_lea.vmem %s5, 384
  %v6258 = vld [vmem:[%s6257] sm:$0xff]
  %v6259 = vld [vmem:[%s6257 + $0x8] sm:$0xff]
  %v6260 = vld [vmem:[%s6257 + $0x10] sm:$0xff]
  %v6261 = vld [vmem:[%s6257 + $0x18] sm:$0xff]
  %v6263 = vsel %vm5884, %v6256, 0
  %6265 = vmatpush.msra.mxu0 0.0
  %6266 = vmatpush.msra.mxu0 0.0
  %6267 = vmatpush.msra.mxu0 0.0
  %6268 = vmatpush.msra.mxu0 0.0
  %6269 = vmatpush.msra.mxu0 0.0
  %6270 = vmatpush.msra.mxu0 0.0
  %6271 = vmatpush.msra.mxu0 0.0
  %6272 = vmatpush.msra.mxu0 0.0
  %6273 = vmatpush.msra.mxu0 0.0
  %6274 = vmatpush.msra.mxu0 0.0
  %6275 = vmatpush.msra.mxu0 0.0
  %6276 = vmatpush.msra.mxu0 0.0
  %6277 = vmatpush.msra.mxu0 %v6261
  %6278 = vmatpush.msra.mxu0 %v6260
  %6279 = vmatpush.msra.mxu0 %v6259
  %6280 = vmatpush.msra.mxu0 %v6258
  %6281 = vmatmul.f32.gmra.mxu0 %v6263
  %v6282 = vpop.f32.mrf.mxu0
  %v6283 = vadd.f32 0.0, %v6282
  %6284 = vdwg.mxu0
  %v6285 = vadd.f32 %v6255, %v6283
  %v6286 = vld [vmem:[#allocation2 + $0x22] sm:$0x3]
  %s6287 = scalar_lea.vmem %s5, 416
  %v6288 = vld [vmem:[%s6287] sm:$0xff]
  %v6289 = vld [vmem:[%s6287 + $0x8] sm:$0xff]
  %v6290 = vld [vmem:[%s6287 + $0x10] sm:$0xff]
  %v6291 = vld [vmem:[%s6287 + $0x18] sm:$0xff]
  %v6293 = vsel %vm5884, %v6286, 0
  %6295 = vmatpush.msra.mxu0 0.0
  %6296 = vmatpush.msra.mxu0 0.0
  %6297 = vmatpush.msra.mxu0 0.0
  %6298 = vmatpush.msra.mxu0 0.0
  %6299 = vmatpush.msra.mxu0 0.0
  %6300 = vmatpush.msra.mxu0 0.0
  %6301 = vmatpush.msra.mxu0 0.0
  %6302 = vmatpush.msra.mxu0 0.0
  %6303 = vmatpush.msra.mxu0 0.0
  %6304 = vmatpush.msra.mxu0 0.0
  %6305 = vmatpush.msra.mxu0 0.0
  %6306 = vmatpush.msra.mxu0 0.0
  %6307 = vmatpush.msra.mxu0 %v6291
  %6308 = vmatpush.msra.mxu0 %v6290
  %6309 = vmatpush.msra.mxu0 %v6289
  %6310 = vmatpush.msra.mxu0 %v6288
  %6311 = vmatmul.f32.gmra.mxu0 %v6293
  %v6312 = vpop.f32.mrf.mxu0
  %v6313 = vadd.f32 0.0, %v6312
  %6314 = vdwg.mxu0
  %v6315 = vadd.f32 %v6285, %v6313
  %v6316 = vld [vmem:[#allocation2 + $0x24] sm:$0x3]
  %s6317 = scalar_lea.vmem %s5, 448
  %v6318 = vld [vmem:[%s6317] sm:$0xff]
  %v6319 = vld [vmem:[%s6317 + $0x8] sm:$0xff]
  %v6320 = vld [vmem:[%s6317 + $0x10] sm:$0xff]
  %v6321 = vld [vmem:[%s6317 + $0x18] sm:$0xff]
  %v6323 = vsel %vm5884, %v6316, 0
  %6325 = vmatpush.msra.mxu0 0.0
  %6326 = vmatpush.msra.mxu0 0.0
  %6327 = vmatpush.msra.mxu0 0.0
  %6328 = vmatpush.msra.mxu0 0.0
  %6329 = vmatpush.msra.mxu0 0.0
  %6330 = vmatpush.msra.mxu0 0.0
  %6331 = vmatpush.msra.mxu0 0.0
  %6332 = vmatpush.msra.mxu0 0.0
  %6333 = vmatpush.msra.mxu0 0.0
  %6334 = vmatpush.msra.mxu0 0.0
  %6335 = vmatpush.msra.mxu0 0.0
  %6336 = vmatpush.msra.mxu0 0.0
  %6337 = vmatpush.msra.mxu0 %v6321
  %6338 = vmatpush.msra.mxu0 %v6320
  %6339 = vmatpush.msra.mxu0 %v6319
  %6340 = vmatpush.msra.mxu0 %v6318
  %6341 = vmatmul.f32.gmra.mxu0 %v6323
  %v6342 = vpop.f32.mrf.mxu0
  %v6343 = vadd.f32 0.0, %v6342
  %6344 = vdwg.mxu0
  %v6345 = vadd.f32 %v6315, %v6343
  %v6346 = vld [vmem:[#allocation2 + $0x2a] sm:$0x3]
  %s6347 = scalar_lea.vmem %s5, 480
  %v6348 = vld [vmem:[%s6347] sm:$0xff]
  %v6349 = vld [vmem:[%s6347 + $0x8] sm:$0xff]
  %v6350 = vld [vmem:[%s6347 + $0x10] sm:$0xff]
  %v6351 = vld [vmem:[%s6347 + $0x18] sm:$0xff]
  %v6353 = vsel %vm5884, %v6346, 0
  %6355 = vmatpush.msra.mxu0 0.0
  %6356 = vmatpush.msra.mxu0 0.0
  %6357 = vmatpush.msra.mxu0 0.0
  %6358 = vmatpush.msra.mxu0 0.0
  %6359 = vmatpush.msra.mxu0 0.0
  %6360 = vmatpush.msra.mxu0 0.0
  %6361 = vmatpush.msra.mxu0 0.0
  %6362 = vmatpush.msra.mxu0 0.0
  %6363 = vmatpush.msra.mxu0 0.0
  %6364 = vmatpush.msra.mxu0 0.0
  %6365 = vmatpush.msra.mxu0 0.0
  %6366 = vmatpush.msra.mxu0 0.0
  %6367 = vmatpush.msra.mxu0 %v6351
  %6368 = vmatpush.msra.mxu0 %v6350
  %6369 = vmatpush.msra.mxu0 %v6349
  %6370 = vmatpush.msra.mxu0 %v6348
  %6371 = vmatmul.f32.gmra.mxu0 %v6353
  %v6372 = vpop.f32.mrf.mxu0
  %v6373 = vadd.f32 0.0, %v6372
  %6374 = vdwg.mxu0
  %v6375 = vadd.f32 %v6345, %v6373
  %v6376 = vld [vmem:[#allocation2 + $0x2c] sm:$0x3]
  %s6377 = scalar_lea.vmem %s5, 512
  %v6378 = vld [vmem:[%s6377] sm:$0xff]
  %v6379 = vld [vmem:[%s6377 + $0x8] sm:$0xff]
  %v6380 = vld [vmem:[%s6377 + $0x10] sm:$0xff]
  %v6381 = vld [vmem:[%s6377 + $0x18] sm:$0xff]
  %v6383 = vsel %vm5884, %v6376, 0
  %6385 = vmatpush.msra.mxu0 0.0
  %6386 = vmatpush.msra.mxu0 0.0
  %6387 = vmatpush.msra.mxu0 0.0
  %6388 = vmatpush.msra.mxu0 0.0
  %6389 = vmatpush.msra.mxu0 0.0
  %6390 = vmatpush.msra.mxu0 0.0
  %6391 = vmatpush.msra.mxu0 0.0
  %6392 = vmatpush.msra.mxu0 0.0
  %6393 = vmatpush.msra.mxu0 0.0
  %6394 = vmatpush.msra.mxu0 0.0
  %6395 = vmatpush.msra.mxu0 0.0
  %6396 = vmatpush.msra.mxu0 0.0
  %6397 = vmatpush.msra.mxu0 %v6381
  %6398 = vmatpush.msra.mxu0 %v6380
  %6399 = vmatpush.msra.mxu0 %v6379
  %6400 = vmatpush.msra.mxu0 %v6378
  %6401 = vmatmul.f32.gmra.mxu0 %v6383
  %v6402 = vpop.f32.mrf.mxu0
  %v6403 = vadd.f32 0.0, %v6402
  %6404 = vdwg.mxu0
  %v6405 = vadd.f32 %v6375, %v6403
  %v6406 = vld [vmem:[#allocation2 + $0x2e] sm:$0x3]
  %s6407 = scalar_lea.vmem %s5, 544
  %v6408 = vld [vmem:[%s6407] sm:$0xff]
  %v6409 = vld [vmem:[%s6407 + $0x8] sm:$0xff]
  %v6410 = vld [vmem:[%s6407 + $0x10] sm:$0xff]
  %v6411 = vld [vmem:[%s6407 + $0x18] sm:$0xff]
  %v6413 = vsel %vm5884, %v6406, 0
  %6415 = vmatpush.msra.mxu0 0.0
  %6416 = vmatpush.msra.mxu0 0.0
  %6417 = vmatpush.msra.mxu0 0.0
  %6418 = vmatpush.msra.mxu0 0.0
  %6419 = vmatpush.msra.mxu0 0.0
  %6420 = vmatpush.msra.mxu0 0.0
  %6421 = vmatpush.msra.mxu0 0.0
  %6422 = vmatpush.msra.mxu0 0.0
  %6423 = vmatpush.msra.mxu0 0.0
  %6424 = vmatpush.msra.mxu0 0.0
  %6425 = vmatpush.msra.mxu0 0.0
  %6426 = vmatpush.msra.mxu0 0.0
  %6427 = vmatpush.msra.mxu0 %v6411
  %6428 = vmatpush.msra.mxu0 %v6410
  %6429 = vmatpush.msra.mxu0 %v6409
  %6430 = vmatpush.msra.mxu0 %v6408
  %6431 = vmatmul.f32.gmra.mxu0 %v6413
  %v6432 = vpop.f32.mrf.mxu0
  %v6433 = vadd.f32 0.0, %v6432
  %6434 = vdwg.mxu0
  %v6435 = vadd.f32 %v6405, %v6433
  %v6436 = vld [vmem:[#allocation2 + $0x30] sm:$0x3]
  %s6437 = scalar_lea.vmem %s5, 576
  %v6438 = vld [vmem:[%s6437] sm:$0xff]
  %v6439 = vld [vmem:[%s6437 + $0x8] sm:$0xff]
  %v6440 = vld [vmem:[%s6437 + $0x10] sm:$0xff]
  %v6441 = vld [vmem:[%s6437 + $0x18] sm:$0xff]
  %v6443 = vsel %vm5884, %v6436, 0
  %6445 = vmatpush.msra.mxu0 0.0
  %6446 = vmatpush.msra.mxu0 0.0
  %6447 = vmatpush.msra.mxu0 0.0
  %6448 = vmatpush.msra.mxu0 0.0
  %6449 = vmatpush.msra.mxu0 0.0
  %6450 = vmatpush.msra.mxu0 0.0
  %6451 = vmatpush.msra.mxu0 0.0
  %6452 = vmatpush.msra.mxu0 0.0
  %6453 = vmatpush.msra.mxu0 0.0
  %6454 = vmatpush.msra.mxu0 0.0
  %6455 = vmatpush.msra.mxu0 0.0
  %6456 = vmatpush.msra.mxu0 0.0
  %6457 = vmatpush.msra.mxu0 %v6441
  %6458 = vmatpush.msra.mxu0 %v6440
  %6459 = vmatpush.msra.mxu0 %v6439
  %6460 = vmatpush.msra.mxu0 %v6438
  %6461 = vmatmul.f32.gmra.mxu0 %v6443
  %v6462 = vpop.f32.mrf.mxu0
  %v6463 = vadd.f32 0.0, %v6462
  %6464 = vdwg.mxu0
  %v6465 = vadd.f32 %v6435, %v6463
  %v6466 = vld [vmem:[#allocation2 + $0x32] sm:$0x3]
  %s6467 = scalar_lea.vmem %s5, 608
  %v6468 = vld [vmem:[%s6467] sm:$0xff]
  %v6469 = vld [vmem:[%s6467 + $0x8] sm:$0xff]
  %v6470 = vld [vmem:[%s6467 + $0x10] sm:$0xff]
  %v6471 = vld [vmem:[%s6467 + $0x18] sm:$0xff]
  %v6473 = vsel %vm5884, %v6466, 0
  %6475 = vmatpush.msra.mxu0 0.0
  %6476 = vmatpush.msra.mxu0 0.0
  %6477 = vmatpush.msra.mxu0 0.0
  %6478 = vmatpush.msra.mxu0 0.0
  %6479 = vmatpush.msra.mxu0 0.0
  %6480 = vmatpush.msra.mxu0 0.0
  %6481 = vmatpush.msra.mxu0 0.0
  %6482 = vmatpush.msra.mxu0 0.0
  %6483 = vmatpush.msra.mxu0 0.0
  %6484 = vmatpush.msra.mxu0 0.0
  %6485 = vmatpush.msra.mxu0 0.0
  %6486 = vmatpush.msra.mxu0 0.0
  %6487 = vmatpush.msra.mxu0 %v6471
  %6488 = vmatpush.msra.mxu0 %v6470
  %6489 = vmatpush.msra.mxu0 %v6469
  %6490 = vmatpush.msra.mxu0 %v6468
  %6491 = vmatmul.f32.gmra.mxu0 %v6473
  %v6492 = vpop.f32.mrf.mxu0
  %v6493 = vadd.f32 0.0, %v6492
  %6494 = vdwg.mxu0
  %v6495 = vadd.f32 %v6465, %v6493
  %v6496 = vld [vmem:[#allocation2 + $0x38] sm:$0x3]
  %s6497 = scalar_lea.vmem %s5, 640
  %v6498 = vld [vmem:[%s6497] sm:$0xff]
  %v6499 = vld [vmem:[%s6497 + $0x8] sm:$0xff]
  %v6500 = vld [vmem:[%s6497 + $0x10] sm:$0xff]
  %v6501 = vld [vmem:[%s6497 + $0x18] sm:$0xff]
  %v6503 = vsel %vm5884, %v6496, 0
  %6505 = vmatpush.msra.mxu0 0.0
  %6506 = vmatpush.msra.mxu0 0.0
  %6507 = vmatpush.msra.mxu0 0.0
  %6508 = vmatpush.msra.mxu0 0.0
  %6509 = vmatpush.msra.mxu0 0.0
  %6510 = vmatpush.msra.mxu0 0.0
  %6511 = vmatpush.msra.mxu0 0.0
  %6512 = vmatpush.msra.mxu0 0.0
  %6513 = vmatpush.msra.mxu0 0.0
  %6514 = vmatpush.msra.mxu0 0.0
  %6515 = vmatpush.msra.mxu0 0.0
  %6516 = vmatpush.msra.mxu0 0.0
  %6517 = vmatpush.msra.mxu0 %v6501
  %6518 = vmatpush.msra.mxu0 %v6500
  %6519 = vmatpush.msra.mxu0 %v6499
  %6520 = vmatpush.msra.mxu0 %v6498
  %6521 = vmatmul.f32.gmra.mxu0 %v6503
  %v6522 = vpop.f32.mrf.mxu0
  %v6523 = vadd.f32 0.0, %v6522
  %6524 = vdwg.mxu0
  %v6525 = vadd.f32 %v6495, %v6523
  %v6526 = vld [vmem:[#allocation2 + $0x3a] sm:$0x3]
  %s6527 = scalar_lea.vmem %s5, 672
  %v6528 = vld [vmem:[%s6527] sm:$0xff]
  %v6529 = vld [vmem:[%s6527 + $0x8] sm:$0xff]
  %v6530 = vld [vmem:[%s6527 + $0x10] sm:$0xff]
  %v6531 = vld [vmem:[%s6527 + $0x18] sm:$0xff]
  %v6533 = vsel %vm5884, %v6526, 0
  %6535 = vmatpush.msra.mxu0 0.0
  %6536 = vmatpush.msra.mxu0 0.0
  %6537 = vmatpush.msra.mxu0 0.0
  %6538 = vmatpush.msra.mxu0 0.0
  %6539 = vmatpush.msra.mxu0 0.0
  %6540 = vmatpush.msra.mxu0 0.0
  %6541 = vmatpush.msra.mxu0 0.0
  %6542 = vmatpush.msra.mxu0 0.0
  %6543 = vmatpush.msra.mxu0 0.0
  %6544 = vmatpush.msra.mxu0 0.0
  %6545 = vmatpush.msra.mxu0 0.0
  %6546 = vmatpush.msra.mxu0 0.0
  %6547 = vmatpush.msra.mxu0 %v6531
  %6548 = vmatpush.msra.mxu0 %v6530
  %6549 = vmatpush.msra.mxu0 %v6529
  %6550 = vmatpush.msra.mxu0 %v6528
  %6551 = vmatmul.f32.gmra.mxu0 %v6533
  %v6552 = vpop.f32.mrf.mxu0
  %v6553 = vadd.f32 0.0, %v6552
  %6554 = vdwg.mxu0
  %v6555 = vadd.f32 %v6525, %v6553
  %v6556 = vld [vmem:[#allocation2 + $0x3c] sm:$0x3]
  %s6557 = scalar_lea.vmem %s5, 704
  %v6558 = vld [vmem:[%s6557] sm:$0xff]
  %v6559 = vld [vmem:[%s6557 + $0x8] sm:$0xff]
  %v6560 = vld [vmem:[%s6557 + $0x10] sm:$0xff]
  %v6561 = vld [vmem:[%s6557 + $0x18] sm:$0xff]
  %v6563 = vsel %vm5884, %v6556, 0
  %6565 = vmatpush.msra.mxu0 0.0
  %6566 = vmatpush.msra.mxu0 0.0
  %6567 = vmatpush.msra.mxu0 0.0
  %6568 = vmatpush.msra.mxu0 0.0
  %6569 = vmatpush.msra.mxu0 0.0
  %6570 = vmatpush.msra.mxu0 0.0
  %6571 = vmatpush.msra.mxu0 0.0
  %6572 = vmatpush.msra.mxu0 0.0
  %6573 = vmatpush.msra.mxu0 0.0
  %6574 = vmatpush.msra.mxu0 0.0
  %6575 = vmatpush.msra.mxu0 0.0
  %6576 = vmatpush.msra.mxu0 0.0
  %6577 = vmatpush.msra.mxu0 %v6561
  %6578 = vmatpush.msra.mxu0 %v6560
  %6579 = vmatpush.msra.mxu0 %v6559
  %6580 = vmatpush.msra.mxu0 %v6558
  %6581 = vmatmul.f32.gmra.mxu0 %v6563
  %v6582 = vpop.f32.mrf.mxu0
  %v6583 = vadd.f32 0.0, %v6582
  %6584 = vdwg.mxu0
  %v6585 = vadd.f32 %v6555, %v6583
  %v6586 = vld [vmem:[#allocation2 + $0x3e] sm:$0x3]
  %s6587 = scalar_lea.vmem %s5, 736
  %v6588 = vld [vmem:[%s6587] sm:$0xff]
  %v6589 = vld [vmem:[%s6587 + $0x8] sm:$0xff]
  %v6590 = vld [vmem:[%s6587 + $0x10] sm:$0xff]
  %v6591 = vld [vmem:[%s6587 + $0x18] sm:$0xff]
  %v6593 = vsel %vm5884, %v6586, 0
  %6595 = vmatpush.msra.mxu0 0.0
  %6596 = vmatpush.msra.mxu0 0.0
  %6597 = vmatpush.msra.mxu0 0.0
  %6598 = vmatpush.msra.mxu0 0.0
  %6599 = vmatpush.msra.mxu0 0.0
  %6600 = vmatpush.msra.mxu0 0.0
  %6601 = vmatpush.msra.mxu0 0.0
  %6602 = vmatpush.msra.mxu0 0.0
  %6603 = vmatpush.msra.mxu0 0.0
  %6604 = vmatpush.msra.mxu0 0.0
  %6605 = vmatpush.msra.mxu0 0.0
  %6606 = vmatpush.msra.mxu0 0.0
  %6607 = vmatpush.msra.mxu0 %v6591
  %6608 = vmatpush.msra.mxu0 %v6590
  %6609 = vmatpush.msra.mxu0 %v6589
  %6610 = vmatpush.msra.mxu0 %v6588
  %6611 = vmatmul.f32.gmra.mxu0 %v6593
  %v6612 = vpop.f32.mrf.mxu0
  %v6613 = vadd.f32 0.0, %v6612
  %6614 = vdwg.mxu0
  %v6615 = vadd.f32 %v6585, %v6613
  %v6616 = vld [vmem:[#allocation2 + $0x40] sm:$0x3]
  %s6617 = scalar_lea.vmem %s5, 768
  %v6618 = vld [vmem:[%s6617] sm:$0xff]
  %v6619 = vld [vmem:[%s6617 + $0x8] sm:$0xff]
  %v6620 = vld [vmem:[%s6617 + $0x10] sm:$0xff]
  %v6621 = vld [vmem:[%s6617 + $0x18] sm:$0xff]
  %v6623 = vsel %vm5884, %v6616, 0
  %6625 = vmatpush.msra.mxu0 0.0
  %6626 = vmatpush.msra.mxu0 0.0
  %6627 = vmatpush.msra.mxu0 0.0
  %6628 = vmatpush.msra.mxu0 0.0
  %6629 = vmatpush.msra.mxu0 0.0
  %6630 = vmatpush.msra.mxu0 0.0
  %6631 = vmatpush.msra.mxu0 0.0
  %6632 = vmatpush.msra.mxu0 0.0
  %6633 = vmatpush.msra.mxu0 0.0
  %6634 = vmatpush.msra.mxu0 0.0
  %6635 = vmatpush.msra.mxu0 0.0
  %6636 = vmatpush.msra.mxu0 0.0
  %6637 = vmatpush.msra.mxu0 %v6621
  %6638 = vmatpush.msra.mxu0 %v6620
  %6639 = vmatpush.msra.mxu0 %v6619
  %6640 = vmatpush.msra.mxu0 %v6618
  %6641 = vmatmul.f32.gmra.mxu0 %v6623
  %v6642 = vpop.f32.mrf.mxu0
  %v6643 = vadd.f32 0.0, %v6642
  %6644 = vdwg.mxu0
  %v6645 = vadd.f32 %v6615, %v6643
  %v6647 = vperm.slane %v5898, 0
  %v6649 = vadd.f32 %v6645, %v6647
  %v6650 = vmax.f32 %v6649, 0.0
  %6651 = vmatpush.msra.mxu0 0.0
  %6652 = vmatpush.msra.mxu0 0.0
  %6653 = vmatpush.msra.mxu0 0.0
  %6654 = vmatpush.msra.mxu0 0.0
  %6655 = vmatpush.msra.mxu0 0.0
  %6656 = vmatpush.msra.mxu0 0.0
  %6657 = vmatpush.msra.mxu0 0.0
  %6658 = vmatpush.msra.mxu0 0.0
  %6659 = vmatpush.msra.mxu0 0.0
  %6660 = vmatpush.msra.mxu0 0.0
  %6661 = vmatpush.msra.mxu0 0.0
  %6662 = vmatpush.msra.mxu0 0.0
  %6663 = vmatpush.msra.mxu0 %v5909
  %6664 = vmatpush.msra.mxu0 %v5908
  %6665 = vmatpush.msra.mxu0 %v5907
  %6666 = vmatpush.msra.mxu0 %v5906
  %6667 = vmatmul.f32.gmra.mxu0 %v5993
  %v6668 = vpop.f32.mrf.mxu0
  %v6669 = vadd.f32 0.0, %v6668
  %6670 = vdwg.mxu0
  %6671 = vmatpush.msra.mxu0 0.0
  %6672 = vmatpush.msra.mxu0 0.0
  %6673 = vmatpush.msra.mxu0 0.0
  %6674 = vmatpush.msra.mxu0 0.0
  %6675 = vmatpush.msra.mxu0 0.0
  %6676 = vmatpush.msra.mxu0 0.0
  %6677 = vmatpush.msra.mxu0 0.0
  %6678 = vmatpush.msra.mxu0 0.0
  %6679 = vmatpush.msra.mxu0 0.0
  %6680 = vmatpush.msra.mxu0 0.0
  %6681 = vmatpush.msra.mxu0 0.0
  %6682 = vmatpush.msra.mxu0 0.0
  %6683 = vmatpush.msra.mxu0 %v5903
  %6684 = vmatpush.msra.mxu0 %v5902
  %6685 = vmatpush.msra.mxu0 %v5901
  %6686 = vmatpush.msra.mxu0 %v5900
  %6687 = vmatmul.f32.gmra.mxu0 %v5963
  %v6688 = vpop.f32.mrf.mxu0
  %v6689 = vadd.f32 %v6669, %v6688
  %6690 = vdwg.mxu0
  %6691 = vmatpush.msra.mxu0 0.0
  %6692 = vmatpush.msra.mxu0 0.0
  %6693 = vmatpush.msra.mxu0 0.0
  %6694 = vmatpush.msra.mxu0 0.0
  %6695 = vmatpush.msra.mxu0 0.0
  %6696 = vmatpush.msra.mxu0 0.0
  %6697 = vmatpush.msra.mxu0 0.0
  %6698 = vmatpush.msra.mxu0 0.0
  %6699 = vmatpush.msra.mxu0 0.0
  %6700 = vmatpush.msra.mxu0 0.0
  %6701 = vmatpush.msra.mxu0 0.0
  %6702 = vmatpush.msra.mxu0 0.0
  %6703 = vmatpush.msra.mxu0 %v5961
  %6704 = vmatpush.msra.mxu0 %v5960
  %6705 = vmatpush.msra.mxu0 %v5959
  %6706 = vmatpush.msra.mxu0 %v5958
  %6707 = vmatmul.f32.gmra.mxu0 %v6023
  %v6708 = vpop.f32.mrf.mxu0
  %v6709 = vadd.f32 0.0, %v6708
  %6710 = vdwg.mxu0
  %v6711 = vadd.f32 %v6689, %v6709
  %v6712 = vld [vmem:[#allocation2 + $0xa] sm:$0x3]
  %v6714 = vsel %vm5884, %v6712, 0
  %6716 = vmatpush.msra.mxu0 0.0
  %6717 = vmatpush.msra.mxu0 0.0
  %6718 = vmatpush.msra.mxu0 0.0
  %6719 = vmatpush.msra.mxu0 0.0
  %6720 = vmatpush.msra.mxu0 0.0
  %6721 = vmatpush.msra.mxu0 0.0
  %6722 = vmatpush.msra.mxu0 0.0
  %6723 = vmatpush.msra.mxu0 0.0
  %6724 = vmatpush.msra.mxu0 0.0
  %6725 = vmatpush.msra.mxu0 0.0
  %6726 = vmatpush.msra.mxu0 0.0
  %6727 = vmatpush.msra.mxu0 0.0
  %6728 = vmatpush.msra.mxu0 %v5991
  %6729 = vmatpush.msra.mxu0 %v5990
  %6730 = vmatpush.msra.mxu0 %v5989
  %6731 = vmatpush.msra.mxu0 %v5988
  %6732 = vmatmul.f32.gmra.mxu0 %v6714
  %v6733 = vpop.f32.mrf.mxu0
  %v6734 = vadd.f32 0.0, %v6733
  %6735 = vdwg.mxu0
  %v6736 = vadd.f32 %v6711, %v6734
  %v6737 = vld [vmem:[#allocation2 + $0xc] sm:$0x3]
  %v6739 = vsel %vm5884, %v6737, 0
  %6741 = vmatpush.msra.mxu0 0.0
  %6742 = vmatpush.msra.mxu0 0.0
  %6743 = vmatpush.msra.mxu0 0.0
  %6744 = vmatpush.msra.mxu0 0.0
  %6745 = vmatpush.msra.mxu0 0.0
  %6746 = vmatpush.msra.mxu0 0.0
  %6747 = vmatpush.msra.mxu0 0.0
  %6748 = vmatpush.msra.mxu0 0.0
  %6749 = vmatpush.msra.mxu0 0.0
  %6750 = vmatpush.msra.mxu0 0.0
  %6751 = vmatpush.msra.mxu0 0.0
  %6752 = vmatpush.msra.mxu0 0.0
  %6753 = vmatpush.msra.mxu0 %v6021
  %6754 = vmatpush.msra.mxu0 %v6020
  %6755 = vmatpush.msra.mxu0 %v6019
  %6756 = vmatpush.msra.mxu0 %v6018
  %6757 = vmatmul.f32.gmra.mxu0 %v6739
  %v6758 = vpop.f32.mrf.mxu0
  %v6759 = vadd.f32 0.0, %v6758
  %6760 = vdwg.mxu0
  %v6761 = vadd.f32 %v6736, %v6759
  %6762 = vmatpush.msra.mxu0 0.0
  %6763 = vmatpush.msra.mxu0 0.0
  %6764 = vmatpush.msra.mxu0 0.0
  %6765 = vmatpush.msra.mxu0 0.0
  %6766 = vmatpush.msra.mxu0 0.0
  %6767 = vmatpush.msra.mxu0 0.0
  %6768 = vmatpush.msra.mxu0 0.0
  %6769 = vmatpush.msra.mxu0 0.0
  %6770 = vmatpush.msra.mxu0 0.0
  %6771 = vmatpush.msra.mxu0 0.0
  %6772 = vmatpush.msra.mxu0 0.0
  %6773 = vmatpush.msra.mxu0 0.0
  %6774 = vmatpush.msra.mxu0 %v6051
  %6775 = vmatpush.msra.mxu0 %v6050
  %6776 = vmatpush.msra.mxu0 %v6049
  %6777 = vmatpush.msra.mxu0 %v6048
  %6778 = vmatmul.f32.gmra.mxu0 %v6113
  %v6779 = vpop.f32.mrf.mxu0
  %v6780 = vadd.f32 0.0, %v6779
  %6781 = vdwg.mxu0
  %v6782 = vadd.f32 %v6761, %v6780
  %6783 = vmatpush.msra.mxu0 0.0
  %6784 = vmatpush.msra.mxu0 0.0
  %6785 = vmatpush.msra.mxu0 0.0
  %6786 = vmatpush.msra.mxu0 0.0
  %6787 = vmatpush.msra.mxu0 0.0
  %6788 = vmatpush.msra.mxu0 0.0
  %6789 = vmatpush.msra.mxu0 0.0
  %6790 = vmatpush.msra.mxu0 0.0
  %6791 = vmatpush.msra.mxu0 0.0
  %6792 = vmatpush.msra.mxu0 0.0
  %6793 = vmatpush.msra.mxu0 0.0
  %6794 = vmatpush.msra.mxu0 0.0
  %6795 = vmatpush.msra.mxu0 %v6081
  %6796 = vmatpush.msra.mxu0 %v6080
  %6797 = vmatpush.msra.mxu0 %v6079
  %6798 = vmatpush.msra.mxu0 %v6078
  %6799 = vmatmul.f32.gmra.mxu0 %v6143
  %v6800 = vpop.f32.mrf.mxu0
  %v6801 = vadd.f32 0.0, %v6800
  %6802 = vdwg.mxu0
  %v6803 = vadd.f32 %v6782, %v6801
  %6804 = vmatpush.msra.mxu0 0.0
  %6805 = vmatpush.msra.mxu0 0.0
  %6806 = vmatpush.msra.mxu0 0.0
  %6807 = vmatpush.msra.mxu0 0.0
  %6808 = vmatpush.msra.mxu0 0.0
  %6809 = vmatpush.msra.mxu0 0.0
  %6810 = vmatpush.msra.mxu0 0.0
  %6811 = vmatpush.msra.mxu0 0.0
  %6812 = vmatpush.msra.mxu0 0.0
  %6813 = vmatpush.msra.mxu0 0.0
  %6814 = vmatpush.msra.mxu0 0.0
  %6815 = vmatpush.msra.mxu0 0.0
  %6816 = vmatpush.msra.mxu0 %v6111
  %6817 = vmatpush.msra.mxu0 %v6110
  %6818 = vmatpush.msra.mxu0 %v6109
  %6819 = vmatpush.msra.mxu0 %v6108
  %6820 = vmatmul.f32.gmra.mxu0 %v6173
  %v6821 = vpop.f32.mrf.mxu0
  %v6822 = vadd.f32 0.0, %v6821
  %6823 = vdwg.mxu0
  %v6824 = vadd.f32 %v6803, %v6822
  %v6825 = vld [vmem:[#allocation2 + $0x18] sm:$0x3]
  %v6827 = vsel %vm5884, %v6825, 0
  %6829 = vmatpush.msra.mxu0 0.0
  %6830 = vmatpush.msra.mxu0 0.0
  %6831 = vmatpush.msra.mxu0 0.0
  %6832 = vmatpush.msra.mxu0 0.0
  %6833 = vmatpush.msra.mxu0 0.0
  %6834 = vmatpush.msra.mxu0 0.0
  %6835 = vmatpush.msra.mxu0 0.0
  %6836 = vmatpush.msra.mxu0 0.0
  %6837 = vmatpush.msra.mxu0 0.0
  %6838 = vmatpush.msra.mxu0 0.0
  %6839 = vmatpush.msra.mxu0 0.0
  %6840 = vmatpush.msra.mxu0 0.0
  %6841 = vmatpush.msra.mxu0 %v6141
  %6842 = vmatpush.msra.mxu0 %v6140
  %6843 = vmatpush.msra.mxu0 %v6139
  %6844 = vmatpush.msra.mxu0 %v6138
  %6845 = vmatmul.f32.gmra.mxu0 %v6827
  %v6846 = vpop.f32.mrf.mxu0
  %v6847 = vadd.f32 0.0, %v6846
  %6848 = vdwg.mxu0
  %v6849 = vadd.f32 %v6824, %v6847
  %v6850 = vld [vmem:[#allocation2 + $0x1a] sm:$0x3]
  %v6852 = vsel %vm5884, %v6850, 0
  %6854 = vmatpush.msra.mxu0 0.0
  %6855 = vmatpush.msra.mxu0 0.0
  %6856 = vmatpush.msra.mxu0 0.0
  %6857 = vmatpush.msra.mxu0 0.0
  %6858 = vmatpush.msra.mxu0 0.0
  %6859 = vmatpush.msra.mxu0 0.0
  %6860 = vmatpush.msra.mxu0 0.0
  %6861 = vmatpush.msra.mxu0 0.0
  %6862 = vmatpush.msra.mxu0 0.0
  %6863 = vmatpush.msra.mxu0 0.0
  %6864 = vmatpush.msra.mxu0 0.0
  %6865 = vmatpush.msra.mxu0 0.0
  %6866 = vmatpush.msra.mxu0 %v6171
  %6867 = vmatpush.msra.mxu0 %v6170
  %6868 = vmatpush.msra.mxu0 %v6169
  %6869 = vmatpush.msra.mxu0 %v6168
  %6870 = vmatmul.f32.gmra.mxu0 %v6852
  %v6871 = vpop.f32.mrf.mxu0
  %v6872 = vadd.f32 0.0, %v6871
  %6873 = vdwg.mxu0
  %v6874 = vadd.f32 %v6849, %v6872
  %6875 = vmatpush.msra.mxu0 0.0
  %6876 = vmatpush.msra.mxu0 0.0
  %6877 = vmatpush.msra.mxu0 0.0
  %6878 = vmatpush.msra.mxu0 0.0
  %6879 = vmatpush.msra.mxu0 0.0
  %6880 = vmatpush.msra.mxu0 0.0
  %6881 = vmatpush.msra.mxu0 0.0
  %6882 = vmatpush.msra.mxu0 0.0
  %6883 = vmatpush.msra.mxu0 0.0
  %6884 = vmatpush.msra.mxu0 0.0
  %6885 = vmatpush.msra.mxu0 0.0
  %6886 = vmatpush.msra.mxu0 0.0
  %6887 = vmatpush.msra.mxu0 %v6201
  %6888 = vmatpush.msra.mxu0 %v6200
  %6889 = vmatpush.msra.mxu0 %v6199
  %6890 = vmatpush.msra.mxu0 %v6198
  %6891 = vmatmul.f32.gmra.mxu0 %v6263
  %v6892 = vpop.f32.mrf.mxu0
  %v6893 = vadd.f32 0.0, %v6892
  %6894 = vdwg.mxu0
  %v6895 = vadd.f32 %v6874, %v6893
  %6896 = vmatpush.msra.mxu0 0.0
  %6897 = vmatpush.msra.mxu0 0.0
  %6898 = vmatpush.msra.mxu0 0.0
  %6899 = vmatpush.msra.mxu0 0.0
  %6900 = vmatpush.msra.mxu0 0.0
  %6901 = vmatpush.msra.mxu0 0.0
  %6902 = vmatpush.msra.mxu0 0.0
  %6903 = vmatpush.msra.mxu0 0.0
  %6904 = vmatpush.msra.mxu0 0.0
  %6905 = vmatpush.msra.mxu0 0.0
  %6906 = vmatpush.msra.mxu0 0.0
  %6907 = vmatpush.msra.mxu0 0.0
  %6908 = vmatpush.msra.mxu0 %v6231
  %6909 = vmatpush.msra.mxu0 %v6230
  %6910 = vmatpush.msra.mxu0 %v6229
  %6911 = vmatpush.msra.mxu0 %v6228
  %6912 = vmatmul.f32.gmra.mxu0 %v6293
  %v6913 = vpop.f32.mrf.mxu0
  %v6914 = vadd.f32 0.0, %v6913
  %6915 = vdwg.mxu0
  %v6916 = vadd.f32 %v6895, %v6914
  %6917 = vmatpush.msra.mxu0 0.0
  %6918 = vmatpush.msra.mxu0 0.0
  %6919 = vmatpush.msra.mxu0 0.0
  %6920 = vmatpush.msra.mxu0 0.0
  %6921 = vmatpush.msra.mxu0 0.0
  %6922 = vmatpush.msra.mxu0 0.0
  %6923 = vmatpush.msra.mxu0 0.0
  %6924 = vmatpush.msra.mxu0 0.0
  %6925 = vmatpush.msra.mxu0 0.0
  %6926 = vmatpush.msra.mxu0 0.0
  %6927 = vmatpush.msra.mxu0 0.0
  %6928 = vmatpush.msra.mxu0 0.0
  %6929 = vmatpush.msra.mxu0 %v6261
  %6930 = vmatpush.msra.mxu0 %v6260
  %6931 = vmatpush.msra.mxu0 %v6259
  %6932 = vmatpush.msra.mxu0 %v6258
  %6933 = vmatmul.f32.gmra.mxu0 %v6323
  %v6934 = vpop.f32.mrf.mxu0
  %v6935 = vadd.f32 0.0, %v6934
  %6936 = vdwg.mxu0
  %v6937 = vadd.f32 %v6916, %v6935
  %v6938 = vld [vmem:[#allocation2 + $0x26] sm:$0x3]
  %v6940 = vsel %vm5884, %v6938, 0
  %6942 = vmatpush.msra.mxu0 0.0
  %6943 = vmatpush.msra.mxu0 0.0
  %6944 = vmatpush.msra.mxu0 0.0
  %6945 = vmatpush.msra.mxu0 0.0
  %6946 = vmatpush.msra.mxu0 0.0
  %6947 = vmatpush.msra.mxu0 0.0
  %6948 = vmatpush.msra.mxu0 0.0
  %6949 = vmatpush.msra.mxu0 0.0
  %6950 = vmatpush.msra.mxu0 0.0
  %6951 = vmatpush.msra.mxu0 0.0
  %6952 = vmatpush.msra.mxu0 0.0
  %6953 = vmatpush.msra.mxu0 0.0
  %6954 = vmatpush.msra.mxu0 %v6291
  %6955 = vmatpush.msra.mxu0 %v6290
  %6956 = vmatpush.msra.mxu0 %v6289
  %6957 = vmatpush.msra.mxu0 %v6288
  %6958 = vmatmul.f32.gmra.mxu0 %v6940
  %v6959 = vpop.f32.mrf.mxu0
  %v6960 = vadd.f32 0.0, %v6959
  %6961 = vdwg.mxu0
  %v6962 = vadd.f32 %v6937, %v6960
  %v6963 = vld [vmem:[#allocation2 + $0x28] sm:$0x3]
  %v6965 = vsel %vm5884, %v6963, 0
  %6967 = vmatpush.msra.mxu0 0.0
  %6968 = vmatpush.msra.mxu0 0.0
  %6969 = vmatpush.msra.mxu0 0.0
  %6970 = vmatpush.msra.mxu0 0.0
  %6971 = vmatpush.msra.mxu0 0.0
  %6972 = vmatpush.msra.mxu0 0.0
  %6973 = vmatpush.msra.mxu0 0.0
  %6974 = vmatpush.msra.mxu0 0.0
  %6975 = vmatpush.msra.mxu0 0.0
  %6976 = vmatpush.msra.mxu0 0.0
  %6977 = vmatpush.msra.mxu0 0.0
  %6978 = vmatpush.msra.mxu0 0.0
  %6979 = vmatpush.msra.mxu0 %v6321
  %6980 = vmatpush.msra.mxu0 %v6320
  %6981 = vmatpush.msra.mxu0 %v6319
  %6982 = vmatpush.msra.mxu0 %v6318
  %6983 = vmatmul.f32.gmra.mxu0 %v6965
  %v6984 = vpop.f32.mrf.mxu0
  %v6985 = vadd.f32 0.0, %v6984
  %6986 = vdwg.mxu0
  %v6987 = vadd.f32 %v6962, %v6985
  %6988 = vmatpush.msra.mxu0 0.0
  %6989 = vmatpush.msra.mxu0 0.0
  %6990 = vmatpush.msra.mxu0 0.0
  %6991 = vmatpush.msra.mxu0 0.0
  %6992 = vmatpush.msra.mxu0 0.0
  %6993 = vmatpush.msra.mxu0 0.0
  %6994 = vmatpush.msra.mxu0 0.0
  %6995 = vmatpush.msra.mxu0 0.0
  %6996 = vmatpush.msra.mxu0 0.0
  %6997 = vmatpush.msra.mxu0 0.0
  %6998 = vmatpush.msra.mxu0 0.0
  %6999 = vmatpush.msra.mxu0 0.0
  %7000 = vmatpush.msra.mxu0 %v6351
  %7001 = vmatpush.msra.mxu0 %v6350
  %7002 = vmatpush.msra.mxu0 %v6349
  %7003 = vmatpush.msra.mxu0 %v6348
  %7004 = vmatmul.f32.gmra.mxu0 %v6413
  %v7005 = vpop.f32.mrf.mxu0
  %v7006 = vadd.f32 0.0, %v7005
  %7007 = vdwg.mxu0
  %v7008 = vadd.f32 %v6987, %v7006
  %7009 = vmatpush.msra.mxu0 0.0
  %7010 = vmatpush.msra.mxu0 0.0
  %7011 = vmatpush.msra.mxu0 0.0
  %7012 = vmatpush.msra.mxu0 0.0
  %7013 = vmatpush.msra.mxu0 0.0
  %7014 = vmatpush.msra.mxu0 0.0
  %7015 = vmatpush.msra.mxu0 0.0
  %7016 = vmatpush.msra.mxu0 0.0
  %7017 = vmatpush.msra.mxu0 0.0
  %7018 = vmatpush.msra.mxu0 0.0
  %7019 = vmatpush.msra.mxu0 0.0
  %7020 = vmatpush.msra.mxu0 0.0
  %7021 = vmatpush.msra.mxu0 %v6381
  %7022 = vmatpush.msra.mxu0 %v6380
  %7023 = vmatpush.msra.mxu0 %v6379
  %7024 = vmatpush.msra.mxu0 %v6378
  %7025 = vmatmul.f32.gmra.mxu0 %v6443
  %v7026 = vpop.f32.mrf.mxu0
  %v7027 = vadd.f32 0.0, %v7026
  %7028 = vdwg.mxu0
  %v7029 = vadd.f32 %v7008, %v7027
  %7030 = vmatpush.msra.mxu0 0.0
  %7031 = vmatpush.msra.mxu0 0.0
  %7032 = vmatpush.msra.mxu0 0.0
  %7033 = vmatpush.msra.mxu0 0.0
  %7034 = vmatpush.msra.mxu0 0.0
  %7035 = vmatpush.msra.mxu0 0.0
  %7036 = vmatpush.msra.mxu0 0.0
  %7037 = vmatpush.msra.mxu0 0.0
  %7038 = vmatpush.msra.mxu0 0.0
  %7039 = vmatpush.msra.mxu0 0.0
  %7040 = vmatpush.msra.mxu0 0.0
  %7041 = vmatpush.msra.mxu0 0.0
  %7042 = vmatpush.msra.mxu0 %v6411
  %7043 = vmatpush.msra.mxu0 %v6410
  %7044 = vmatpush.msra.mxu0 %v6409
  %7045 = vmatpush.msra.mxu0 %v6408
  %7046 = vmatmul.f32.gmra.mxu0 %v6473
  %v7047 = vpop.f32.mrf.mxu0
  %v7048 = vadd.f32 0.0, %v7047
  %7049 = vdwg.mxu0
  %v7050 = vadd.f32 %v7029, %v7048
  %v7051 = vld [vmem:[#allocation2 + $0x34] sm:$0x3]
  %v7053 = vsel %vm5884, %v7051, 0
  %7055 = vmatpush.msra.mxu0 0.0
  %7056 = vmatpush.msra.mxu0 0.0
  %7057 = vmatpush.msra.mxu0 0.0
  %7058 = vmatpush.msra.mxu0 0.0
  %7059 = vmatpush.msra.mxu0 0.0
  %7060 = vmatpush.msra.mxu0 0.0
  %7061 = vmatpush.msra.mxu0 0.0
  %7062 = vmatpush.msra.mxu0 0.0
  %7063 = vmatpush.msra.mxu0 0.0
  %7064 = vmatpush.msra.mxu0 0.0
  %7065 = vmatpush.msra.mxu0 0.0
  %7066 = vmatpush.msra.mxu0 0.0
  %7067 = vmatpush.msra.mxu0 %v6441
  %7068 = vmatpush.msra.mxu0 %v6440
  %7069 = vmatpush.msra.mxu0 %v6439
  %7070 = vmatpush.msra.mxu0 %v6438
  %7071 = vmatmul.f32.gmra.mxu0 %v7053
  %v7072 = vpop.f32.mrf.mxu0
  %v7073 = vadd.f32 0.0, %v7072
  %7074 = vdwg.mxu0
  %v7075 = vadd.f32 %v7050, %v7073
  %v7076 = vld [vmem:[#allocation2 + $0x36] sm:$0x3]
  %v7078 = vsel %vm5884, %v7076, 0
  %7080 = vmatpush.msra.mxu0 0.0
  %7081 = vmatpush.msra.mxu0 0.0
  %7082 = vmatpush.msra.mxu0 0.0
  %7083 = vmatpush.msra.mxu0 0.0
  %7084 = vmatpush.msra.mxu0 0.0
  %7085 = vmatpush.msra.mxu0 0.0
  %7086 = vmatpush.msra.mxu0 0.0
  %7087 = vmatpush.msra.mxu0 0.0
  %7088 = vmatpush.msra.mxu0 0.0
  %7089 = vmatpush.msra.mxu0 0.0
  %7090 = vmatpush.msra.mxu0 0.0
  %7091 = vmatpush.msra.mxu0 0.0
  %7092 = vmatpush.msra.mxu0 %v6471
  %7093 = vmatpush.msra.mxu0 %v6470
  %7094 = vmatpush.msra.mxu0 %v6469
  %7095 = vmatpush.msra.mxu0 %v6468
  %7096 = vmatmul.f32.gmra.mxu0 %v7078
  %v7097 = vpop.f32.mrf.mxu0
  %v7098 = vadd.f32 0.0, %v7097
  %7099 = vdwg.mxu0
  %v7100 = vadd.f32 %v7075, %v7098
  %7101 = vmatpush.msra.mxu0 0.0
  %7102 = vmatpush.msra.mxu0 0.0
  %7103 = vmatpush.msra.mxu0 0.0
  %7104 = vmatpush.msra.mxu0 0.0
  %7105 = vmatpush.msra.mxu0 0.0
  %7106 = vmatpush.msra.mxu0 0.0
  %7107 = vmatpush.msra.mxu0 0.0
  %7108 = vmatpush.msra.mxu0 0.0
  %7109 = vmatpush.msra.mxu0 0.0
  %7110 = vmatpush.msra.mxu0 0.0
  %7111 = vmatpush.msra.mxu0 0.0
  %7112 = vmatpush.msra.mxu0 0.0
  %7113 = vmatpush.msra.mxu0 %v6501
  %7114 = vmatpush.msra.mxu0 %v6500
  %7115 = vmatpush.msra.mxu0 %v6499
  %7116 = vmatpush.msra.mxu0 %v6498
  %7117 = vmatmul.f32.gmra.mxu0 %v6563
  %v7118 = vpop.f32.mrf.mxu0
  %v7119 = vadd.f32 0.0, %v7118
  %7120 = vdwg.mxu0
  %v7121 = vadd.f32 %v7100, %v7119
  %7122 = vmatpush.msra.mxu0 0.0
  %7123 = vmatpush.msra.mxu0 0.0
  %7124 = vmatpush.msra.mxu0 0.0
  %7125 = vmatpush.msra.mxu0 0.0
  %7126 = vmatpush.msra.mxu0 0.0
  %7127 = vmatpush.msra.mxu0 0.0
  %7128 = vmatpush.msra.mxu0 0.0
  %7129 = vmatpush.msra.mxu0 0.0
  %7130 = vmatpush.msra.mxu0 0.0
  %7131 = vmatpush.msra.mxu0 0.0
  %7132 = vmatpush.msra.mxu0 0.0
  %7133 = vmatpush.msra.mxu0 0.0
  %7134 = vmatpush.msra.mxu0 %v6531
  %7135 = vmatpush.msra.mxu0 %v6530
  %7136 = vmatpush.msra.mxu0 %v6529
  %7137 = vmatpush.msra.mxu0 %v6528
  %7138 = vmatmul.f32.gmra.mxu0 %v6593
  %v7139 = vpop.f32.mrf.mxu0
  %v7140 = vadd.f32 0.0, %v7139
  %7141 = vdwg.mxu0
  %v7142 = vadd.f32 %v7121, %v7140
  %7143 = vmatpush.msra.mxu0 0.0
  %7144 = vmatpush.msra.mxu0 0.0
  %7145 = vmatpush.msra.mxu0 0.0
  %7146 = vmatpush.msra.mxu0 0.0
  %7147 = vmatpush.msra.mxu0 0.0
  %7148 = vmatpush.msra.mxu0 0.0
  %7149 = vmatpush.msra.mxu0 0.0
  %7150 = vmatpush.msra.mxu0 0.0
  %7151 = vmatpush.msra.mxu0 0.0
  %7152 = vmatpush.msra.mxu0 0.0
  %7153 = vmatpush.msra.mxu0 0.0
  %7154 = vmatpush.msra.mxu0 0.0
  %7155 = vmatpush.msra.mxu0 %v6561
  %7156 = vmatpush.msra.mxu0 %v6560
  %7157 = vmatpush.msra.mxu0 %v6559
  %7158 = vmatpush.msra.mxu0 %v6558
  %7159 = vmatmul.f32.gmra.mxu0 %v6623
  %v7160 = vpop.f32.mrf.mxu0
  %v7161 = vadd.f32 0.0, %v7160
  %7162 = vdwg.mxu0
  %v7163 = vadd.f32 %v7142, %v7161
  %v7164 = vld [vmem:[#allocation2 + $0x42] sm:$0x3]
  %v7166 = vsel %vm5884, %v7164, 0
  %7168 = vmatpush.msra.mxu0 0.0
  %7169 = vmatpush.msra.mxu0 0.0
  %7170 = vmatpush.msra.mxu0 0.0
  %7171 = vmatpush.msra.mxu0 0.0
  %7172 = vmatpush.msra.mxu0 0.0
  %7173 = vmatpush.msra.mxu0 0.0
  %7174 = vmatpush.msra.mxu0 0.0
  %7175 = vmatpush.msra.mxu0 0.0
  %7176 = vmatpush.msra.mxu0 0.0
  %7177 = vmatpush.msra.mxu0 0.0
  %7178 = vmatpush.msra.mxu0 0.0
  %7179 = vmatpush.msra.mxu0 0.0
  %7180 = vmatpush.msra.mxu0 %v6591
  %7181 = vmatpush.msra.mxu0 %v6590
  %7182 = vmatpush.msra.mxu0 %v6589
  %7183 = vmatpush.msra.mxu0 %v6588
  %7184 = vmatmul.f32.gmra.mxu0 %v7166
  %v7185 = vpop.f32.mrf.mxu0
  %v7186 = vadd.f32 0.0, %v7185
  %7187 = vdwg.mxu0
  %v7188 = vadd.f32 %v7163, %v7186
  %v7189 = vld [vmem:[#allocation2 + $0x44] sm:$0x3]
  %v7191 = vsel %vm5884, %v7189, 0
  %7193 = vmatpush.msra.mxu0 0.0
  %7194 = vmatpush.msra.mxu0 0.0
  %7195 = vmatpush.msra.mxu0 0.0
  %7196 = vmatpush.msra.mxu0 0.0
  %7197 = vmatpush.msra.mxu0 0.0
  %7198 = vmatpush.msra.mxu0 0.0
  %7199 = vmatpush.msra.mxu0 0.0
  %7200 = vmatpush.msra.mxu0 0.0
  %7201 = vmatpush.msra.mxu0 0.0
  %7202 = vmatpush.msra.mxu0 0.0
  %7203 = vmatpush.msra.mxu0 0.0
  %7204 = vmatpush.msra.mxu0 0.0
  %7205 = vmatpush.msra.mxu0 %v6621
  %7206 = vmatpush.msra.mxu0 %v6620
  %7207 = vmatpush.msra.mxu0 %v6619
  %7208 = vmatpush.msra.mxu0 %v6618
  %7209 = vmatmul.f32.gmra.mxu0 %v7191
  %v7210 = vpop.f32.mrf.mxu0
  %v7211 = vadd.f32 0.0, %v7210
  %7212 = vdwg.mxu0
  %v7213 = vadd.f32 %v7188, %v7211
  %v7214 = vadd.f32 %v7213, %v6647
  %v7215 = vmax.f32 %v7214, 0.0
  %7216 = vmatpush.msra.mxu0 0.0
  %7217 = vmatpush.msra.mxu0 0.0
  %7218 = vmatpush.msra.mxu0 0.0
  %7219 = vmatpush.msra.mxu0 0.0
  %7220 = vmatpush.msra.mxu0 0.0
  %7221 = vmatpush.msra.mxu0 0.0
  %7222 = vmatpush.msra.mxu0 0.0
  %7223 = vmatpush.msra.mxu0 0.0
  %7224 = vmatpush.msra.mxu0 0.0
  %7225 = vmatpush.msra.mxu0 0.0
  %7226 = vmatpush.msra.mxu0 0.0
  %7227 = vmatpush.msra.mxu0 0.0
  %7228 = vmatpush.msra.mxu0 %v5909
  %7229 = vmatpush.msra.mxu0 %v5908
  %7230 = vmatpush.msra.mxu0 %v5907
  %7231 = vmatpush.msra.mxu0 %v5906
  %7232 = vmatmul.f32.gmra.mxu0 %v6233
  %v7233 = vpop.f32.mrf.mxu0
  %v7234 = vadd.f32 0.0, %v7233
  %7235 = vdwg.mxu0
  %7236 = vmatpush.msra.mxu0 0.0
  %7237 = vmatpush.msra.mxu0 0.0
  %7238 = vmatpush.msra.mxu0 0.0
  %7239 = vmatpush.msra.mxu0 0.0
  %7240 = vmatpush.msra.mxu0 0.0
  %7241 = vmatpush.msra.mxu0 0.0
  %7242 = vmatpush.msra.mxu0 0.0
  %7243 = vmatpush.msra.mxu0 0.0
  %7244 = vmatpush.msra.mxu0 0.0
  %7245 = vmatpush.msra.mxu0 0.0
  %7246 = vmatpush.msra.mxu0 0.0
  %7247 = vmatpush.msra.mxu0 0.0
  %7248 = vmatpush.msra.mxu0 %v5903
  %7249 = vmatpush.msra.mxu0 %v5902
  %7250 = vmatpush.msra.mxu0 %v5901
  %7251 = vmatpush.msra.mxu0 %v5900
  %7252 = vmatmul.f32.gmra.mxu0 %v6203
  %v7253 = vpop.f32.mrf.mxu0
  %v7254 = vadd.f32 %v7234, %v7253
  %7255 = vdwg.mxu0
  %7256 = vmatpush.msra.mxu0 0.0
  %7257 = vmatpush.msra.mxu0 0.0
  %7258 = vmatpush.msra.mxu0 0.0
  %7259 = vmatpush.msra.mxu0 0.0
  %7260 = vmatpush.msra.mxu0 0.0
  %7261 = vmatpush.msra.mxu0 0.0
  %7262 = vmatpush.msra.mxu0 0.0
  %7263 = vmatpush.msra.mxu0 0.0
  %7264 = vmatpush.msra.mxu0 0.0
  %7265 = vmatpush.msra.mxu0 0.0
  %7266 = vmatpush.msra.mxu0 0.0
  %7267 = vmatpush.msra.mxu0 0.0
  %7268 = vmatpush.msra.mxu0 %v5961
  %7269 = vmatpush.msra.mxu0 %v5960
  %7270 = vmatpush.msra.mxu0 %v5959
  %7271 = vmatpush.msra.mxu0 %v5958
  %7272 = vmatmul.f32.gmra.mxu0 %v6263
  %v7273 = vpop.f32.mrf.mxu0
  %v7274 = vadd.f32 0.0, %v7273
  %7275 = vdwg.mxu0
  %v7276 = vadd.f32 %v7254, %v7274
  %7277 = vmatpush.msra.mxu0 0.0
  %7278 = vmatpush.msra.mxu0 0.0
  %7279 = vmatpush.msra.mxu0 0.0
  %7280 = vmatpush.msra.mxu0 0.0
  %7281 = vmatpush.msra.mxu0 0.0
  %7282 = vmatpush.msra.mxu0 0.0
  %7283 = vmatpush.msra.mxu0 0.0
  %7284 = vmatpush.msra.mxu0 0.0
  %7285 = vmatpush.msra.mxu0 0.0
  %7286 = vmatpush.msra.mxu0 0.0
  %7287 = vmatpush.msra.mxu0 0.0
  %7288 = vmatpush.msra.mxu0 0.0
  %7289 = vmatpush.msra.mxu0 %v5991
  %7290 = vmatpush.msra.mxu0 %v5990
  %7291 = vmatpush.msra.mxu0 %v5989
  %7292 = vmatpush.msra.mxu0 %v5988
  %7293 = vmatmul.f32.gmra.mxu0 %v6293
  %v7294 = vpop.f32.mrf.mxu0
  %v7295 = vadd.f32 0.0, %v7294
  %7296 = vdwg.mxu0
  %v7297 = vadd.f32 %v7276, %v7295
  %7298 = vmatpush.msra.mxu0 0.0
  %7299 = vmatpush.msra.mxu0 0.0
  %7300 = vmatpush.msra.mxu0 0.0
  %7301 = vmatpush.msra.mxu0 0.0
  %7302 = vmatpush.msra.mxu0 0.0
  %7303 = vmatpush.msra.mxu0 0.0
  %7304 = vmatpush.msra.mxu0 0.0
  %7305 = vmatpush.msra.mxu0 0.0
  %7306 = vmatpush.msra.mxu0 0.0
  %7307 = vmatpush.msra.mxu0 0.0
  %7308 = vmatpush.msra.mxu0 0.0
  %7309 = vmatpush.msra.mxu0 0.0
  %7310 = vmatpush.msra.mxu0 %v6021
  %7311 = vmatpush.msra.mxu0 %v6020
  %7312 = vmatpush.msra.mxu0 %v6019
  %7313 = vmatpush.msra.mxu0 %v6018
  %7314 = vmatmul.f32.gmra.mxu0 %v6323
  %v7315 = vpop.f32.mrf.mxu0
  %v7316 = vadd.f32 0.0, %v7315
  %7317 = vdwg.mxu0
  %v7318 = vadd.f32 %v7297, %v7316
  %7319 = vmatpush.msra.mxu0 0.0
  %7320 = vmatpush.msra.mxu0 0.0
  %7321 = vmatpush.msra.mxu0 0.0
  %7322 = vmatpush.msra.mxu0 0.0
  %7323 = vmatpush.msra.mxu0 0.0
  %7324 = vmatpush.msra.mxu0 0.0
  %7325 = vmatpush.msra.mxu0 0.0
  %7326 = vmatpush.msra.mxu0 0.0
  %7327 = vmatpush.msra.mxu0 0.0
  %7328 = vmatpush.msra.mxu0 0.0
  %7329 = vmatpush.msra.mxu0 0.0
  %7330 = vmatpush.msra.mxu0 0.0
  %7331 = vmatpush.msra.mxu0 %v6051
  %7332 = vmatpush.msra.mxu0 %v6050
  %7333 = vmatpush.msra.mxu0 %v6049
  %7334 = vmatpush.msra.mxu0 %v6048
  %7335 = vmatmul.f32.gmra.mxu0 %v6353
  %v7336 = vpop.f32.mrf.mxu0
  %v7337 = vadd.f32 0.0, %v7336
  %7338 = vdwg.mxu0
  %v7339 = vadd.f32 %v7318, %v7337
  %7340 = vmatpush.msra.mxu0 0.0
  %7341 = vmatpush.msra.mxu0 0.0
  %7342 = vmatpush.msra.mxu0 0.0
  %7343 = vmatpush.msra.mxu0 0.0
  %7344 = vmatpush.msra.mxu0 0.0
  %7345 = vmatpush.msra.mxu0 0.0
  %7346 = vmatpush.msra.mxu0 0.0
  %7347 = vmatpush.msra.mxu0 0.0
  %7348 = vmatpush.msra.mxu0 0.0
  %7349 = vmatpush.msra.mxu0 0.0
  %7350 = vmatpush.msra.mxu0 0.0
  %7351 = vmatpush.msra.mxu0 0.0
  %7352 = vmatpush.msra.mxu0 %v6081
  %7353 = vmatpush.msra.mxu0 %v6080
  %7354 = vmatpush.msra.mxu0 %v6079
  %7355 = vmatpush.msra.mxu0 %v6078
  %7356 = vmatmul.f32.gmra.mxu0 %v6383
  %v7357 = vpop.f32.mrf.mxu0
  %v7358 = vadd.f32 0.0, %v7357
  %7359 = vdwg.mxu0
  %v7360 = vadd.f32 %v7339, %v7358
  %7361 = vmatpush.msra.mxu0 0.0
  %7362 = vmatpush.msra.mxu0 0.0
  %7363 = vmatpush.msra.mxu0 0.0
  %7364 = vmatpush.msra.mxu0 0.0
  %7365 = vmatpush.msra.mxu0 0.0
  %7366 = vmatpush.msra.mxu0 0.0
  %7367 = vmatpush.msra.mxu0 0.0
  %7368 = vmatpush.msra.mxu0 0.0
  %7369 = vmatpush.msra.mxu0 0.0
  %7370 = vmatpush.msra.mxu0 0.0
  %7371 = vmatpush.msra.mxu0 0.0
  %7372 = vmatpush.msra.mxu0 0.0
  %7373 = vmatpush.msra.mxu0 %v6111
  %7374 = vmatpush.msra.mxu0 %v6110
  %7375 = vmatpush.msra.mxu0 %v6109
  %7376 = vmatpush.msra.mxu0 %v6108
  %7377 = vmatmul.f32.gmra.mxu0 %v6413
  %v7378 = vpop.f32.mrf.mxu0
  %v7379 = vadd.f32 0.0, %v7378
  %7380 = vdwg.mxu0
  %v7381 = vadd.f32 %v7360, %v7379
  %7382 = vmatpush.msra.mxu0 0.0
  %7383 = vmatpush.msra.mxu0 0.0
  %7384 = vmatpush.msra.mxu0 0.0
  %7385 = vmatpush.msra.mxu0 0.0
  %7386 = vmatpush.msra.mxu0 0.0
  %7387 = vmatpush.msra.mxu0 0.0
  %7388 = vmatpush.msra.mxu0 0.0
  %7389 = vmatpush.msra.mxu0 0.0
  %7390 = vmatpush.msra.mxu0 0.0
  %7391 = vmatpush.msra.mxu0 0.0
  %7392 = vmatpush.msra.mxu0 0.0
  %7393 = vmatpush.msra.mxu0 0.0
  %7394 = vmatpush.msra.mxu0 %v6141
  %7395 = vmatpush.msra.mxu0 %v6140
  %7396 = vmatpush.msra.mxu0 %v6139
  %7397 = vmatpush.msra.mxu0 %v6138
  %7398 = vmatmul.f32.gmra.mxu0 %v6443
  %v7399 = vpop.f32.mrf.mxu0
  %v7400 = vadd.f32 0.0, %v7399
  %7401 = vdwg.mxu0
  %v7402 = vadd.f32 %v7381, %v7400
  %7403 = vmatpush.msra.mxu0 0.0
  %7404 = vmatpush.msra.mxu0 0.0
  %7405 = vmatpush.msra.mxu0 0.0
  %7406 = vmatpush.msra.mxu0 0.0
  %7407 = vmatpush.msra.mxu0 0.0
  %7408 = vmatpush.msra.mxu0 0.0
  %7409 = vmatpush.msra.mxu0 0.0
  %7410 = vmatpush.msra.mxu0 0.0
  %7411 = vmatpush.msra.mxu0 0.0
  %7412 = vmatpush.msra.mxu0 0.0
  %7413 = vmatpush.msra.mxu0 0.0
  %7414 = vmatpush.msra.mxu0 0.0
  %7415 = vmatpush.msra.mxu0 %v6171
  %7416 = vmatpush.msra.mxu0 %v6170
  %7417 = vmatpush.msra.mxu0 %v6169
  %7418 = vmatpush.msra.mxu0 %v6168
  %7419 = vmatmul.f32.gmra.mxu0 %v6473
  %v7420 = vpop.f32.mrf.mxu0
  %v7421 = vadd.f32 0.0, %v7420
  %7422 = vdwg.mxu0
  %v7423 = vadd.f32 %v7402, %v7421
  %7424 = vmatpush.msra.mxu0 0.0
  %7425 = vmatpush.msra.mxu0 0.0
  %7426 = vmatpush.msra.mxu0 0.0
  %7427 = vmatpush.msra.mxu0 0.0
  %7428 = vmatpush.msra.mxu0 0.0
  %7429 = vmatpush.msra.mxu0 0.0
  %7430 = vmatpush.msra.mxu0 0.0
  %7431 = vmatpush.msra.mxu0 0.0
  %7432 = vmatpush.msra.mxu0 0.0
  %7433 = vmatpush.msra.mxu0 0.0
  %7434 = vmatpush.msra.mxu0 0.0
  %7435 = vmatpush.msra.mxu0 0.0
  %7436 = vmatpush.msra.mxu0 %v6201
  %7437 = vmatpush.msra.mxu0 %v6200
  %7438 = vmatpush.msra.mxu0 %v6199
  %7439 = vmatpush.msra.mxu0 %v6198
  %7440 = vmatmul.f32.gmra.mxu0 %v6503
  %v7441 = vpop.f32.mrf.mxu0
  %v7442 = vadd.f32 0.0, %v7441
  %7443 = vdwg.mxu0
  %v7444 = vadd.f32 %v7423, %v7442
  %7445 = vmatpush.msra.mxu0 0.0
  %7446 = vmatpush.msra.mxu0 0.0
  %7447 = vmatpush.msra.mxu0 0.0
  %7448 = vmatpush.msra.mxu0 0.0
  %7449 = vmatpush.msra.mxu0 0.0
  %7450 = vmatpush.msra.mxu0 0.0
  %7451 = vmatpush.msra.mxu0 0.0
  %7452 = vmatpush.msra.mxu0 0.0
  %7453 = vmatpush.msra.mxu0 0.0
  %7454 = vmatpush.msra.mxu0 0.0
  %7455 = vmatpush.msra.mxu0 0.0
  %7456 = vmatpush.msra.mxu0 0.0
  %7457 = vmatpush.msra.mxu0 %v6231
  %7458 = vmatpush.msra.mxu0 %v6230
  %7459 = vmatpush.msra.mxu0 %v6229
  %7460 = vmatpush.msra.mxu0 %v6228
  %7461 = vmatmul.f32.gmra.mxu0 %v6533
  %v7462 = vpop.f32.mrf.mxu0
  %v7463 = vadd.f32 0.0, %v7462
  %7464 = vdwg.mxu0
  %v7465 = vadd.f32 %v7444, %v7463
  %7466 = vmatpush.msra.mxu0 0.0
  %7467 = vmatpush.msra.mxu0 0.0
  %7468 = vmatpush.msra.mxu0 0.0
  %7469 = vmatpush.msra.mxu0 0.0
  %7470 = vmatpush.msra.mxu0 0.0
  %7471 = vmatpush.msra.mxu0 0.0
  %7472 = vmatpush.msra.mxu0 0.0
  %7473 = vmatpush.msra.mxu0 0.0
  %7474 = vmatpush.msra.mxu0 0.0
  %7475 = vmatpush.msra.mxu0 0.0
  %7476 = vmatpush.msra.mxu0 0.0
  %7477 = vmatpush.msra.mxu0 0.0
  %7478 = vmatpush.msra.mxu0 %v6261
  %7479 = vmatpush.msra.mxu0 %v6260
  %7480 = vmatpush.msra.mxu0 %v6259
  %7481 = vmatpush.msra.mxu0 %v6258
  %7482 = vmatmul.f32.gmra.mxu0 %v6563
  %v7483 = vpop.f32.mrf.mxu0
  %v7484 = vadd.f32 0.0, %v7483
  %7485 = vdwg.mxu0
  %v7486 = vadd.f32 %v7465, %v7484
  %7487 = vmatpush.msra.mxu0 0.0
  %7488 = vmatpush.msra.mxu0 0.0
  %7489 = vmatpush.msra.mxu0 0.0
  %7490 = vmatpush.msra.mxu0 0.0
  %7491 = vmatpush.msra.mxu0 0.0
  %7492 = vmatpush.msra.mxu0 0.0
  %7493 = vmatpush.msra.mxu0 0.0
  %7494 = vmatpush.msra.mxu0 0.0
  %7495 = vmatpush.msra.mxu0 0.0
  %7496 = vmatpush.msra.mxu0 0.0
  %7497 = vmatpush.msra.mxu0 0.0
  %7498 = vmatpush.msra.mxu0 0.0
  %7499 = vmatpush.msra.mxu0 %v6291
  %7500 = vmatpush.msra.mxu0 %v6290
  %7501 = vmatpush.msra.mxu0 %v6289
  %7502 = vmatpush.msra.mxu0 %v6288
  %7503 = vmatmul.f32.gmra.mxu0 %v6593
  %v7504 = vpop.f32.mrf.mxu0
  %v7505 = vadd.f32 0.0, %v7504
  %7506 = vdwg.mxu0
  %v7507 = vadd.f32 %v7486, %v7505
  %7508 = vmatpush.msra.mxu0 0.0
  %7509 = vmatpush.msra.mxu0 0.0
  %7510 = vmatpush.msra.mxu0 0.0
  %7511 = vmatpush.msra.mxu0 0.0
  %7512 = vmatpush.msra.mxu0 0.0
  %7513 = vmatpush.msra.mxu0 0.0
  %7514 = vmatpush.msra.mxu0 0.0
  %7515 = vmatpush.msra.mxu0 0.0
  %7516 = vmatpush.msra.mxu0 0.0
  %7517 = vmatpush.msra.mxu0 0.0
  %7518 = vmatpush.msra.mxu0 0.0
  %7519 = vmatpush.msra.mxu0 0.0
  %7520 = vmatpush.msra.mxu0 %v6321
  %7521 = vmatpush.msra.mxu0 %v6320
  %7522 = vmatpush.msra.mxu0 %v6319
  %7523 = vmatpush.msra.mxu0 %v6318
  %7524 = vmatmul.f32.gmra.mxu0 %v6623
  %v7525 = vpop.f32.mrf.mxu0
  %v7526 = vadd.f32 0.0, %v7525
  %7527 = vdwg.mxu0
  %v7528 = vadd.f32 %v7507, %v7526
  %v7529 = vld [vmem:[#allocation2 + $0x46] sm:$0x3]
  %v7531 = vsel %vm5884, %v7529, 0
  %7533 = vmatpush.msra.mxu0 0.0
  %7534 = vmatpush.msra.mxu0 0.0
  %7535 = vmatpush.msra.mxu0 0.0
  %7536 = vmatpush.msra.mxu0 0.0
  %7537 = vmatpush.msra.mxu0 0.0
  %7538 = vmatpush.msra.mxu0 0.0
  %7539 = vmatpush.msra.mxu0 0.0
  %7540 = vmatpush.msra.mxu0 0.0
  %7541 = vmatpush.msra.mxu0 0.0
  %7542 = vmatpush.msra.mxu0 0.0
  %7543 = vmatpush.msra.mxu0 0.0
  %7544 = vmatpush.msra.mxu0 0.0
  %7545 = vmatpush.msra.mxu0 %v6351
  %7546 = vmatpush.msra.mxu0 %v6350
  %7547 = vmatpush.msra.mxu0 %v6349
  %7548 = vmatpush.msra.mxu0 %v6348
  %7549 = vmatmul.f32.gmra.mxu0 %v7531
  %v7550 = vpop.f32.mrf.mxu0
  %v7551 = vadd.f32 0.0, %v7550
  %7552 = vdwg.mxu0
  %v7553 = vadd.f32 %v7528, %v7551
  %v7554 = vld [vmem:[#allocation2 + $0x48] sm:$0x3]
  %v7556 = vsel %vm5884, %v7554, 0
  %7558 = vmatpush.msra.mxu0 0.0
  %7559 = vmatpush.msra.mxu0 0.0
  %7560 = vmatpush.msra.mxu0 0.0
  %7561 = vmatpush.msra.mxu0 0.0
  %7562 = vmatpush.msra.mxu0 0.0
  %7563 = vmatpush.msra.mxu0 0.0
  %7564 = vmatpush.msra.mxu0 0.0
  %7565 = vmatpush.msra.mxu0 0.0
  %7566 = vmatpush.msra.mxu0 0.0
  %7567 = vmatpush.msra.mxu0 0.0
  %7568 = vmatpush.msra.mxu0 0.0
  %7569 = vmatpush.msra.mxu0 0.0
  %7570 = vmatpush.msra.mxu0 %v6381
  %7571 = vmatpush.msra.mxu0 %v6380
  %7572 = vmatpush.msra.mxu0 %v6379
  %7573 = vmatpush.msra.mxu0 %v6378
  %7574 = vmatmul.f32.gmra.mxu0 %v7556
  %v7575 = vpop.f32.mrf.mxu0
  %v7576 = vadd.f32 0.0, %v7575
  %7577 = vdwg.mxu0
  %v7578 = vadd.f32 %v7553, %v7576
  %v7579 = vld [vmem:[#allocation2 + $0x4a] sm:$0x3]
  %v7581 = vsel %vm5884, %v7579, 0
  %7583 = vmatpush.msra.mxu0 0.0
  %7584 = vmatpush.msra.mxu0 0.0
  %7585 = vmatpush.msra.mxu0 0.0
  %7586 = vmatpush.msra.mxu0 0.0
  %7587 = vmatpush.msra.mxu0 0.0
  %7588 = vmatpush.msra.mxu0 0.0
  %7589 = vmatpush.msra.mxu0 0.0
  %7590 = vmatpush.msra.mxu0 0.0
  %7591 = vmatpush.msra.mxu0 0.0
  %7592 = vmatpush.msra.mxu0 0.0
  %7593 = vmatpush.msra.mxu0 0.0
  %7594 = vmatpush.msra.mxu0 0.0
  %7595 = vmatpush.msra.mxu0 %v6411
  %7596 = vmatpush.msra.mxu0 %v6410
  %7597 = vmatpush.msra.mxu0 %v6409
  %7598 = vmatpush.msra.mxu0 %v6408
  %7599 = vmatmul.f32.gmra.mxu0 %v7581
  %v7600 = vpop.f32.mrf.mxu0
  %v7601 = vadd.f32 0.0, %v7600
  %7602 = vdwg.mxu0
  %v7603 = vadd.f32 %v7578, %v7601
  %v7604 = vld [vmem:[#allocation2 + $0x4c] sm:$0x3]
  %v7606 = vsel %vm5884, %v7604, 0
  %7608 = vmatpush.msra.mxu0 0.0
  %7609 = vmatpush.msra.mxu0 0.0
  %7610 = vmatpush.msra.mxu0 0.0
  %7611 = vmatpush.msra.mxu0 0.0
  %7612 = vmatpush.msra.mxu0 0.0
  %7613 = vmatpush.msra.mxu0 0.0
  %7614 = vmatpush.msra.mxu0 0.0
  %7615 = vmatpush.msra.mxu0 0.0
  %7616 = vmatpush.msra.mxu0 0.0
  %7617 = vmatpush.msra.mxu0 0.0
  %7618 = vmatpush.msra.mxu0 0.0
  %7619 = vmatpush.msra.mxu0 0.0
  %7620 = vmatpush.msra.mxu0 %v6441
  %7621 = vmatpush.msra.mxu0 %v6440
  %7622 = vmatpush.msra.mxu0 %v6439
  %7623 = vmatpush.msra.mxu0 %v6438
  %7624 = vmatmul.f32.gmra.mxu0 %v7606
  %v7625 = vpop.f32.mrf.mxu0
  %v7626 = vadd.f32 0.0, %v7625
  %7627 = vdwg.mxu0
  %v7628 = vadd.f32 %v7603, %v7626
  %v7629 = vld [vmem:[#allocation2 + $0x4e] sm:$0x3]
  %v7631 = vsel %vm5884, %v7629, 0
  %7633 = vmatpush.msra.mxu0 0.0
  %7634 = vmatpush.msra.mxu0 0.0
  %7635 = vmatpush.msra.mxu0 0.0
  %7636 = vmatpush.msra.mxu0 0.0
  %7637 = vmatpush.msra.mxu0 0.0
  %7638 = vmatpush.msra.mxu0 0.0
  %7639 = vmatpush.msra.mxu0 0.0
  %7640 = vmatpush.msra.mxu0 0.0
  %7641 = vmatpush.msra.mxu0 0.0
  %7642 = vmatpush.msra.mxu0 0.0
  %7643 = vmatpush.msra.mxu0 0.0
  %7644 = vmatpush.msra.mxu0 0.0
  %7645 = vmatpush.msra.mxu0 %v6471
  %7646 = vmatpush.msra.mxu0 %v6470
  %7647 = vmatpush.msra.mxu0 %v6469
  %7648 = vmatpush.msra.mxu0 %v6468
  %7649 = vmatmul.f32.gmra.mxu0 %v7631
  %v7650 = vpop.f32.mrf.mxu0
  %v7651 = vadd.f32 0.0, %v7650
  %7652 = vdwg.mxu0
  %v7653 = vadd.f32 %v7628, %v7651
  %v7654 = vld [vmem:[#allocation2 + $0x54] sm:$0x3]
  %v7656 = vsel %vm5884, %v7654, 0
  %7658 = vmatpush.msra.mxu0 0.0
  %7659 = vmatpush.msra.mxu0 0.0
  %7660 = vmatpush.msra.mxu0 0.0
  %7661 = vmatpush.msra.mxu0 0.0
  %7662 = vmatpush.msra.mxu0 0.0
  %7663 = vmatpush.msra.mxu0 0.0
  %7664 = vmatpush.msra.mxu0 0.0
  %7665 = vmatpush.msra.mxu0 0.0
  %7666 = vmatpush.msra.mxu0 0.0
  %7667 = vmatpush.msra.mxu0 0.0
  %7668 = vmatpush.msra.mxu0 0.0
  %7669 = vmatpush.msra.mxu0 0.0
  %7670 = vmatpush.msra.mxu0 %v6501
  %7671 = vmatpush.msra.mxu0 %v6500
  %7672 = vmatpush.msra.mxu0 %v6499
  %7673 = vmatpush.msra.mxu0 %v6498
  %7674 = vmatmul.f32.gmra.mxu0 %v7656
  %v7675 = vpop.f32.mrf.mxu0
  %v7676 = vadd.f32 0.0, %v7675
  %7677 = vdwg.mxu0
  %v7678 = vadd.f32 %v7653, %v7676
  %v7679 = vld [vmem:[#allocation2 + $0x56] sm:$0x3]
  %v7681 = vsel %vm5884, %v7679, 0
  %7683 = vmatpush.msra.mxu0 0.0
  %7684 = vmatpush.msra.mxu0 0.0
  %7685 = vmatpush.msra.mxu0 0.0
  %7686 = vmatpush.msra.mxu0 0.0
  %7687 = vmatpush.msra.mxu0 0.0
  %7688 = vmatpush.msra.mxu0 0.0
  %7689 = vmatpush.msra.mxu0 0.0
  %7690 = vmatpush.msra.mxu0 0.0
  %7691 = vmatpush.msra.mxu0 0.0
  %7692 = vmatpush.msra.mxu0 0.0
  %7693 = vmatpush.msra.mxu0 0.0
  %7694 = vmatpush.msra.mxu0 0.0
  %7695 = vmatpush.msra.mxu0 %v6531
  %7696 = vmatpush.msra.mxu0 %v6530
  %7697 = vmatpush.msra.mxu0 %v6529
  %7698 = vmatpush.msra.mxu0 %v6528
  %7699 = vmatmul.f32.gmra.mxu0 %v7681
  %v7700 = vpop.f32.mrf.mxu0
  %v7701 = vadd.f32 0.0, %v7700
  %7702 = vdwg.mxu0
  %v7703 = vadd.f32 %v7678, %v7701
  %v7704 = vld [vmem:[#allocation2 + $0x58] sm:$0x3]
  %v7706 = vsel %vm5884, %v7704, 0
  %7708 = vmatpush.msra.mxu0 0.0
  %7709 = vmatpush.msra.mxu0 0.0
  %7710 = vmatpush.msra.mxu0 0.0
  %7711 = vmatpush.msra.mxu0 0.0
  %7712 = vmatpush.msra.mxu0 0.0
  %7713 = vmatpush.msra.mxu0 0.0
  %7714 = vmatpush.msra.mxu0 0.0
  %7715 = vmatpush.msra.mxu0 0.0
  %7716 = vmatpush.msra.mxu0 0.0
  %7717 = vmatpush.msra.mxu0 0.0
  %7718 = vmatpush.msra.mxu0 0.0
  %7719 = vmatpush.msra.mxu0 0.0
  %7720 = vmatpush.msra.mxu0 %v6561
  %7721 = vmatpush.msra.mxu0 %v6560
  %7722 = vmatpush.msra.mxu0 %v6559
  %7723 = vmatpush.msra.mxu0 %v6558
  %7724 = vmatmul.f32.gmra.mxu0 %v7706
  %v7725 = vpop.f32.mrf.mxu0
  %v7726 = vadd.f32 0.0, %v7725
  %7727 = vdwg.mxu0
  %v7728 = vadd.f32 %v7703, %v7726
  %v7729 = vld [vmem:[#allocation2 + $0x5a] sm:$0x3]
  %v7731 = vsel %vm5884, %v7729, 0
  %7733 = vmatpush.msra.mxu0 0.0
  %7734 = vmatpush.msra.mxu0 0.0
  %7735 = vmatpush.msra.mxu0 0.0
  %7736 = vmatpush.msra.mxu0 0.0
  %7737 = vmatpush.msra.mxu0 0.0
  %7738 = vmatpush.msra.mxu0 0.0
  %7739 = vmatpush.msra.mxu0 0.0
  %7740 = vmatpush.msra.mxu0 0.0
  %7741 = vmatpush.msra.mxu0 0.0
  %7742 = vmatpush.msra.mxu0 0.0
  %7743 = vmatpush.msra.mxu0 0.0
  %7744 = vmatpush.msra.mxu0 0.0
  %7745 = vmatpush.msra.mxu0 %v6591
  %7746 = vmatpush.msra.mxu0 %v6590
  %7747 = vmatpush.msra.mxu0 %v6589
  %7748 = vmatpush.msra.mxu0 %v6588
  %7749 = vmatmul.f32.gmra.mxu0 %v7731
  %v7750 = vpop.f32.mrf.mxu0
  %v7751 = vadd.f32 0.0, %v7750
  %7752 = vdwg.mxu0
  %v7753 = vadd.f32 %v7728, %v7751
  %v7754 = vld [vmem:[#allocation2 + $0x5c] sm:$0x3]
  %v7756 = vsel %vm5884, %v7754, 0
  %7758 = vmatpush.msra.mxu0 0.0
  %7759 = vmatpush.msra.mxu0 0.0
  %7760 = vmatpush.msra.mxu0 0.0
  %7761 = vmatpush.msra.mxu0 0.0
  %7762 = vmatpush.msra.mxu0 0.0
  %7763 = vmatpush.msra.mxu0 0.0
  %7764 = vmatpush.msra.mxu0 0.0
  %7765 = vmatpush.msra.mxu0 0.0
  %7766 = vmatpush.msra.mxu0 0.0
  %7767 = vmatpush.msra.mxu0 0.0
  %7768 = vmatpush.msra.mxu0 0.0
  %7769 = vmatpush.msra.mxu0 0.0
  %7770 = vmatpush.msra.mxu0 %v6621
  %7771 = vmatpush.msra.mxu0 %v6620
  %7772 = vmatpush.msra.mxu0 %v6619
  %7773 = vmatpush.msra.mxu0 %v6618
  %7774 = vmatmul.f32.gmra.mxu0 %v7756
  %v7775 = vpop.f32.mrf.mxu0
  %v7776 = vadd.f32 0.0, %v7775
  %7777 = vdwg.mxu0
  %v7778 = vadd.f32 %v7753, %v7776
  %v7779 = vadd.f32 %v7778, %v6647
  %v7780 = vmax.f32 %v7779, 0.0
  %7781 = vmatpush.msra.mxu0 0.0
  %7782 = vmatpush.msra.mxu0 0.0
  %7783 = vmatpush.msra.mxu0 0.0
  %7784 = vmatpush.msra.mxu0 0.0
  %7785 = vmatpush.msra.mxu0 0.0
  %7786 = vmatpush.msra.mxu0 0.0
  %7787 = vmatpush.msra.mxu0 0.0
  %7788 = vmatpush.msra.mxu0 0.0
  %7789 = vmatpush.msra.mxu0 0.0
  %7790 = vmatpush.msra.mxu0 0.0
  %7791 = vmatpush.msra.mxu0 0.0
  %7792 = vmatpush.msra.mxu0 0.0
  %7793 = vmatpush.msra.mxu0 %v5909
  %7794 = vmatpush.msra.mxu0 %v5908
  %7795 = vmatpush.msra.mxu0 %v5907
  %7796 = vmatpush.msra.mxu0 %v5906
  %7797 = vmatmul.f32.gmra.mxu0 %v6293
  %v7798 = vpop.f32.mrf.mxu0
  %v7799 = vadd.f32 0.0, %v7798
  %7800 = vdwg.mxu0
  %7801 = vmatpush.msra.mxu0 0.0
  %7802 = vmatpush.msra.mxu0 0.0
  %7803 = vmatpush.msra.mxu0 0.0
  %7804 = vmatpush.msra.mxu0 0.0
  %7805 = vmatpush.msra.mxu0 0.0
  %7806 = vmatpush.msra.mxu0 0.0
  %7807 = vmatpush.msra.mxu0 0.0
  %7808 = vmatpush.msra.mxu0 0.0
  %7809 = vmatpush.msra.mxu0 0.0
  %7810 = vmatpush.msra.mxu0 0.0
  %7811 = vmatpush.msra.mxu0 0.0
  %7812 = vmatpush.msra.mxu0 0.0
  %7813 = vmatpush.msra.mxu0 %v5903
  %7814 = vmatpush.msra.mxu0 %v5902
  %7815 = vmatpush.msra.mxu0 %v5901
  %7816 = vmatpush.msra.mxu0 %v5900
  %7817 = vmatmul.f32.gmra.mxu0 %v6263
  %v7818 = vpop.f32.mrf.mxu0
  %v7819 = vadd.f32 %v7799, %v7818
  %7820 = vdwg.mxu0
  %7821 = vmatpush.msra.mxu0 0.0
  %7822 = vmatpush.msra.mxu0 0.0
  %7823 = vmatpush.msra.mxu0 0.0
  %7824 = vmatpush.msra.mxu0 0.0
  %7825 = vmatpush.msra.mxu0 0.0
  %7826 = vmatpush.msra.mxu0 0.0
  %7827 = vmatpush.msra.mxu0 0.0
  %7828 = vmatpush.msra.mxu0 0.0
  %7829 = vmatpush.msra.mxu0 0.0
  %7830 = vmatpush.msra.mxu0 0.0
  %7831 = vmatpush.msra.mxu0 0.0
  %7832 = vmatpush.msra.mxu0 0.0
  %7833 = vmatpush.msra.mxu0 %v5961
  %7834 = vmatpush.msra.mxu0 %v5960
  %7835 = vmatpush.msra.mxu0 %v5959
  %7836 = vmatpush.msra.mxu0 %v5958
  %7837 = vmatmul.f32.gmra.mxu0 %v6323
  %v7838 = vpop.f32.mrf.mxu0
  %v7839 = vadd.f32 0.0, %v7838
  %7840 = vdwg.mxu0
  %v7841 = vadd.f32 %v7819, %v7839
  %7842 = vmatpush.msra.mxu0 0.0
  %7843 = vmatpush.msra.mxu0 0.0
  %7844 = vmatpush.msra.mxu0 0.0
  %7845 = vmatpush.msra.mxu0 0.0
  %7846 = vmatpush.msra.mxu0 0.0
  %7847 = vmatpush.msra.mxu0 0.0
  %7848 = vmatpush.msra.mxu0 0.0
  %7849 = vmatpush.msra.mxu0 0.0
  %7850 = vmatpush.msra.mxu0 0.0
  %7851 = vmatpush.msra.mxu0 0.0
  %7852 = vmatpush.msra.mxu0 0.0
  %7853 = vmatpush.msra.mxu0 0.0
  %7854 = vmatpush.msra.mxu0 %v5991
  %7855 = vmatpush.msra.mxu0 %v5990
  %7856 = vmatpush.msra.mxu0 %v5989
  %7857 = vmatpush.msra.mxu0 %v5988
  %7858 = vmatmul.f32.gmra.mxu0 %v6940
  %v7859 = vpop.f32.mrf.mxu0
  %v7860 = vadd.f32 0.0, %v7859
  %7861 = vdwg.mxu0
  %v7862 = vadd.f32 %v7841, %v7860
  %7863 = vmatpush.msra.mxu0 0.0
  %7864 = vmatpush.msra.mxu0 0.0
  %7865 = vmatpush.msra.mxu0 0.0
  %7866 = vmatpush.msra.mxu0 0.0
  %7867 = vmatpush.msra.mxu0 0.0
  %7868 = vmatpush.msra.mxu0 0.0
  %7869 = vmatpush.msra.mxu0 0.0
  %7870 = vmatpush.msra.mxu0 0.0
  %7871 = vmatpush.msra.mxu0 0.0
  %7872 = vmatpush.msra.mxu0 0.0
  %7873 = vmatpush.msra.mxu0 0.0
  %7874 = vmatpush.msra.mxu0 0.0
  %7875 = vmatpush.msra.mxu0 %v6021
  %7876 = vmatpush.msra.mxu0 %v6020
  %7877 = vmatpush.msra.mxu0 %v6019
  %7878 = vmatpush.msra.mxu0 %v6018
  %7879 = vmatmul.f32.gmra.mxu0 %v6965
  %v7880 = vpop.f32.mrf.mxu0
  %v7881 = vadd.f32 0.0, %v7880
  %7882 = vdwg.mxu0
  %v7883 = vadd.f32 %v7862, %v7881
  %7884 = vmatpush.msra.mxu0 0.0
  %7885 = vmatpush.msra.mxu0 0.0
  %7886 = vmatpush.msra.mxu0 0.0
  %7887 = vmatpush.msra.mxu0 0.0
  %7888 = vmatpush.msra.mxu0 0.0
  %7889 = vmatpush.msra.mxu0 0.0
  %7890 = vmatpush.msra.mxu0 0.0
  %7891 = vmatpush.msra.mxu0 0.0
  %7892 = vmatpush.msra.mxu0 0.0
  %7893 = vmatpush.msra.mxu0 0.0
  %7894 = vmatpush.msra.mxu0 0.0
  %7895 = vmatpush.msra.mxu0 0.0
  %7896 = vmatpush.msra.mxu0 %v6051
  %7897 = vmatpush.msra.mxu0 %v6050
  %7898 = vmatpush.msra.mxu0 %v6049
  %7899 = vmatpush.msra.mxu0 %v6048
  %7900 = vmatmul.f32.gmra.mxu0 %v6413
  %v7901 = vpop.f32.mrf.mxu0
  %v7902 = vadd.f32 0.0, %v7901
  %7903 = vdwg.mxu0
  %v7904 = vadd.f32 %v7883, %v7902
  %7905 = vmatpush.msra.mxu0 0.0
  %7906 = vmatpush.msra.mxu0 0.0
  %7907 = vmatpush.msra.mxu0 0.0
  %7908 = vmatpush.msra.mxu0 0.0
  %7909 = vmatpush.msra.mxu0 0.0
  %7910 = vmatpush.msra.mxu0 0.0
  %7911 = vmatpush.msra.mxu0 0.0
  %7912 = vmatpush.msra.mxu0 0.0
  %7913 = vmatpush.msra.mxu0 0.0
  %7914 = vmatpush.msra.mxu0 0.0
  %7915 = vmatpush.msra.mxu0 0.0
  %7916 = vmatpush.msra.mxu0 0.0
  %7917 = vmatpush.msra.mxu0 %v6081
  %7918 = vmatpush.msra.mxu0 %v6080
  %7919 = vmatpush.msra.mxu0 %v6079
  %7920 = vmatpush.msra.mxu0 %v6078
  %7921 = vmatmul.f32.gmra.mxu0 %v6443
  %v7922 = vpop.f32.mrf.mxu0
  %v7923 = vadd.f32 0.0, %v7922
  %7924 = vdwg.mxu0
  %v7925 = vadd.f32 %v7904, %v7923
  %7926 = vmatpush.msra.mxu0 0.0
  %7927 = vmatpush.msra.mxu0 0.0
  %7928 = vmatpush.msra.mxu0 0.0
  %7929 = vmatpush.msra.mxu0 0.0
  %7930 = vmatpush.msra.mxu0 0.0
  %7931 = vmatpush.msra.mxu0 0.0
  %7932 = vmatpush.msra.mxu0 0.0
  %7933 = vmatpush.msra.mxu0 0.0
  %7934 = vmatpush.msra.mxu0 0.0
  %7935 = vmatpush.msra.mxu0 0.0
  %7936 = vmatpush.msra.mxu0 0.0
  %7937 = vmatpush.msra.mxu0 0.0
  %7938 = vmatpush.msra.mxu0 %v6111
  %7939 = vmatpush.msra.mxu0 %v6110
  %7940 = vmatpush.msra.mxu0 %v6109
  %7941 = vmatpush.msra.mxu0 %v6108
  %7942 = vmatmul.f32.gmra.mxu0 %v6473
  %v7943 = vpop.f32.mrf.mxu0
  %v7944 = vadd.f32 0.0, %v7943
  %7945 = vdwg.mxu0
  %v7946 = vadd.f32 %v7925, %v7944
  %7947 = vmatpush.msra.mxu0 0.0
  %7948 = vmatpush.msra.mxu0 0.0
  %7949 = vmatpush.msra.mxu0 0.0
  %7950 = vmatpush.msra.mxu0 0.0
  %7951 = vmatpush.msra.mxu0 0.0
  %7952 = vmatpush.msra.mxu0 0.0
  %7953 = vmatpush.msra.mxu0 0.0
  %7954 = vmatpush.msra.mxu0 0.0
  %7955 = vmatpush.msra.mxu0 0.0
  %7956 = vmatpush.msra.mxu0 0.0
  %7957 = vmatpush.msra.mxu0 0.0
  %7958 = vmatpush.msra.mxu0 0.0
  %7959 = vmatpush.msra.mxu0 %v6141
  %7960 = vmatpush.msra.mxu0 %v6140
  %7961 = vmatpush.msra.mxu0 %v6139
  %7962 = vmatpush.msra.mxu0 %v6138
  %7963 = vmatmul.f32.gmra.mxu0 %v7053
  %v7964 = vpop.f32.mrf.mxu0
  %v7965 = vadd.f32 0.0, %v7964
  %7966 = vdwg.mxu0
  %v7967 = vadd.f32 %v7946, %v7965
  %7968 = vmatpush.msra.mxu0 0.0
  %7969 = vmatpush.msra.mxu0 0.0
  %7970 = vmatpush.msra.mxu0 0.0
  %7971 = vmatpush.msra.mxu0 0.0
  %7972 = vmatpush.msra.mxu0 0.0
  %7973 = vmatpush.msra.mxu0 0.0
  %7974 = vmatpush.msra.mxu0 0.0
  %7975 = vmatpush.msra.mxu0 0.0
  %7976 = vmatpush.msra.mxu0 0.0
  %7977 = vmatpush.msra.mxu0 0.0
  %7978 = vmatpush.msra.mxu0 0.0
  %7979 = vmatpush.msra.mxu0 0.0
  %7980 = vmatpush.msra.mxu0 %v6171
  %7981 = vmatpush.msra.mxu0 %v6170
  %7982 = vmatpush.msra.mxu0 %v6169
  %7983 = vmatpush.msra.mxu0 %v6168
  %7984 = vmatmul.f32.gmra.mxu0 %v7078
  %v7985 = vpop.f32.mrf.mxu0
  %v7986 = vadd.f32 0.0, %v7985
  %7987 = vdwg.mxu0
  %v7988 = vadd.f32 %v7967, %v7986
  %7989 = vmatpush.msra.mxu0 0.0
  %7990 = vmatpush.msra.mxu0 0.0
  %7991 = vmatpush.msra.mxu0 0.0
  %7992 = vmatpush.msra.mxu0 0.0
  %7993 = vmatpush.msra.mxu0 0.0
  %7994 = vmatpush.msra.mxu0 0.0
  %7995 = vmatpush.msra.mxu0 0.0
  %7996 = vmatpush.msra.mxu0 0.0
  %7997 = vmatpush.msra.mxu0 0.0
  %7998 = vmatpush.msra.mxu0 0.0
  %7999 = vmatpush.msra.mxu0 0.0
  %8000 = vmatpush.msra.mxu0 0.0
  %8001 = vmatpush.msra.mxu0 %v6201
  %8002 = vmatpush.msra.mxu0 %v6200
  %8003 = vmatpush.msra.mxu0 %v6199
  %8004 = vmatpush.msra.mxu0 %v6198
  %8005 = vmatmul.f32.gmra.mxu0 %v6563
  %v8006 = vpop.f32.mrf.mxu0
  %v8007 = vadd.f32 0.0, %v8006
  %8008 = vdwg.mxu0
  %v8009 = vadd.f32 %v7988, %v8007
  %8010 = vmatpush.msra.mxu0 0.0
  %8011 = vmatpush.msra.mxu0 0.0
  %8012 = vmatpush.msra.mxu0 0.0
  %8013 = vmatpush.msra.mxu0 0.0
  %8014 = vmatpush.msra.mxu0 0.0
  %8015 = vmatpush.msra.mxu0 0.0
  %8016 = vmatpush.msra.mxu0 0.0
  %8017 = vmatpush.msra.mxu0 0.0
  %8018 = vmatpush.msra.mxu0 0.0
  %8019 = vmatpush.msra.mxu0 0.0
  %8020 = vmatpush.msra.mxu0 0.0
  %8021 = vmatpush.msra.mxu0 0.0
  %8022 = vmatpush.msra.mxu0 %v6231
  %8023 = vmatpush.msra.mxu0 %v6230
  %8024 = vmatpush.msra.mxu0 %v6229
  %8025 = vmatpush.msra.mxu0 %v6228
  %8026 = vmatmul.f32.gmra.mxu0 %v6593
  %v8027 = vpop.f32.mrf.mxu0
  %v8028 = vadd.f32 0.0, %v8027
  %8029 = vdwg.mxu0
  %v8030 = vadd.f32 %v8009, %v8028
  %8031 = vmatpush.msra.mxu0 0.0
  %8032 = vmatpush.msra.mxu0 0.0
  %8033 = vmatpush.msra.mxu0 0.0
  %8034 = vmatpush.msra.mxu0 0.0
  %8035 = vmatpush.msra.mxu0 0.0
  %8036 = vmatpush.msra.mxu0 0.0
  %8037 = vmatpush.msra.mxu0 0.0
  %8038 = vmatpush.msra.mxu0 0.0
  %8039 = vmatpush.msra.mxu0 0.0
  %8040 = vmatpush.msra.mxu0 0.0
  %8041 = vmatpush.msra.mxu0 0.0
  %8042 = vmatpush.msra.mxu0 0.0
  %8043 = vmatpush.msra.mxu0 %v6261
  %8044 = vmatpush.msra.mxu0 %v6260
  %8045 = vmatpush.msra.mxu0 %v6259
  %8046 = vmatpush.msra.mxu0 %v6258
  %8047 = vmatmul.f32.gmra.mxu0 %v6623
  %v8048 = vpop.f32.mrf.mxu0
  %v8049 = vadd.f32 0.0, %v8048
  %8050 = vdwg.mxu0
  %v8051 = vadd.f32 %v8030, %v8049
  %8052 = vmatpush.msra.mxu0 0.0
  %8053 = vmatpush.msra.mxu0 0.0
  %8054 = vmatpush.msra.mxu0 0.0
  %8055 = vmatpush.msra.mxu0 0.0
  %8056 = vmatpush.msra.mxu0 0.0
  %8057 = vmatpush.msra.mxu0 0.0
  %8058 = vmatpush.msra.mxu0 0.0
  %8059 = vmatpush.msra.mxu0 0.0
  %8060 = vmatpush.msra.mxu0 0.0
  %8061 = vmatpush.msra.mxu0 0.0
  %8062 = vmatpush.msra.mxu0 0.0
  %8063 = vmatpush.msra.mxu0 0.0
  %8064 = vmatpush.msra.mxu0 %v6291
  %8065 = vmatpush.msra.mxu0 %v6290
  %8066 = vmatpush.msra.mxu0 %v6289
  %8067 = vmatpush.msra.mxu0 %v6288
  %8068 = vmatmul.f32.gmra.mxu0 %v7166
  %v8069 = vpop.f32.mrf.mxu0
  %v8070 = vadd.f32 0.0, %v8069
  %8071 = vdwg.mxu0
  %v8072 = vadd.f32 %v8051, %v8070
  %8073 = vmatpush.msra.mxu0 0.0
  %8074 = vmatpush.msra.mxu0 0.0
  %8075 = vmatpush.msra.mxu0 0.0
  %8076 = vmatpush.msra.mxu0 0.0
  %8077 = vmatpush.msra.mxu0 0.0
  %8078 = vmatpush.msra.mxu0 0.0
  %8079 = vmatpush.msra.mxu0 0.0
  %8080 = vmatpush.msra.mxu0 0.0
  %8081 = vmatpush.msra.mxu0 0.0
  %8082 = vmatpush.msra.mxu0 0.0
  %8083 = vmatpush.msra.mxu0 0.0
  %8084 = vmatpush.msra.mxu0 0.0
  %8085 = vmatpush.msra.mxu0 %v6321
  %8086 = vmatpush.msra.mxu0 %v6320
  %8087 = vmatpush.msra.mxu0 %v6319
  %8088 = vmatpush.msra.mxu0 %v6318
  %8089 = vmatmul.f32.gmra.mxu0 %v7191
  %v8090 = vpop.f32.mrf.mxu0
  %v8091 = vadd.f32 0.0, %v8090
  %8092 = vdwg.mxu0
  %v8093 = vadd.f32 %v8072, %v8091
  %8094 = vmatpush.msra.mxu0 0.0
  %8095 = vmatpush.msra.mxu0 0.0
  %8096 = vmatpush.msra.mxu0 0.0
  %8097 = vmatpush.msra.mxu0 0.0
  %8098 = vmatpush.msra.mxu0 0.0
  %8099 = vmatpush.msra.mxu0 0.0
  %8100 = vmatpush.msra.mxu0 0.0
  %8101 = vmatpush.msra.mxu0 0.0
  %8102 = vmatpush.msra.mxu0 0.0
  %8103 = vmatpush.msra.mxu0 0.0
  %8104 = vmatpush.msra.mxu0 0.0
  %8105 = vmatpush.msra.mxu0 0.0
  %8106 = vmatpush.msra.mxu0 %v6351
  %8107 = vmatpush.msra.mxu0 %v6350
  %8108 = vmatpush.msra.mxu0 %v6349
  %8109 = vmatpush.msra.mxu0 %v6348
  %8110 = vmatmul.f32.gmra.mxu0 %v7581
  %v8111 = vpop.f32.mrf.mxu0
  %v8112 = vadd.f32 0.0, %v8111
  %8113 = vdwg.mxu0
  %v8114 = vadd.f32 %v8093, %v8112
  %8115 = vmatpush.msra.mxu0 0.0
  %8116 = vmatpush.msra.mxu0 0.0
  %8117 = vmatpush.msra.mxu0 0.0
  %8118 = vmatpush.msra.mxu0 0.0
  %8119 = vmatpush.msra.mxu0 0.0
  %8120 = vmatpush.msra.mxu0 0.0
  %8121 = vmatpush.msra.mxu0 0.0
  %8122 = vmatpush.msra.mxu0 0.0
  %8123 = vmatpush.msra.mxu0 0.0
  %8124 = vmatpush.msra.mxu0 0.0
  %8125 = vmatpush.msra.mxu0 0.0
  %8126 = vmatpush.msra.mxu0 0.0
  %8127 = vmatpush.msra.mxu0 %v6381
  %8128 = vmatpush.msra.mxu0 %v6380
  %8129 = vmatpush.msra.mxu0 %v6379
  %8130 = vmatpush.msra.mxu0 %v6378
  %8131 = vmatmul.f32.gmra.mxu0 %v7606
  %v8132 = vpop.f32.mrf.mxu0
  %v8133 = vadd.f32 0.0, %v8132
  %8134 = vdwg.mxu0
  %v8135 = vadd.f32 %v8114, %v8133
  %8136 = vmatpush.msra.mxu0 0.0
  %8137 = vmatpush.msra.mxu0 0.0
  %8138 = vmatpush.msra.mxu0 0.0
  %8139 = vmatpush.msra.mxu0 0.0
  %8140 = vmatpush.msra.mxu0 0.0
  %8141 = vmatpush.msra.mxu0 0.0
  %8142 = vmatpush.msra.mxu0 0.0
  %8143 = vmatpush.msra.mxu0 0.0
  %8144 = vmatpush.msra.mxu0 0.0
  %8145 = vmatpush.msra.mxu0 0.0
  %8146 = vmatpush.msra.mxu0 0.0
  %8147 = vmatpush.msra.mxu0 0.0
  %8148 = vmatpush.msra.mxu0 %v6411
  %8149 = vmatpush.msra.mxu0 %v6410
  %8150 = vmatpush.msra.mxu0 %v6409
  %8151 = vmatpush.msra.mxu0 %v6408
  %8152 = vmatmul.f32.gmra.mxu0 %v7631
  %v8153 = vpop.f32.mrf.mxu0
  %v8154 = vadd.f32 0.0, %v8153
  %8155 = vdwg.mxu0
  %v8156 = vadd.f32 %v8135, %v8154
  %v8157 = vld [vmem:[#allocation2 + $0x50] sm:$0x3]
  %v8159 = vsel %vm5884, %v8157, 0
  %8161 = vmatpush.msra.mxu0 0.0
  %8162 = vmatpush.msra.mxu0 0.0
  %8163 = vmatpush.msra.mxu0 0.0
  %8164 = vmatpush.msra.mxu0 0.0
  %8165 = vmatpush.msra.mxu0 0.0
  %8166 = vmatpush.msra.mxu0 0.0
  %8167 = vmatpush.msra.mxu0 0.0
  %8168 = vmatpush.msra.mxu0 0.0
  %8169 = vmatpush.msra.mxu0 0.0
  %8170 = vmatpush.msra.mxu0 0.0
  %8171 = vmatpush.msra.mxu0 0.0
  %8172 = vmatpush.msra.mxu0 0.0
  %8173 = vmatpush.msra.mxu0 %v6441
  %8174 = vmatpush.msra.mxu0 %v6440
  %8175 = vmatpush.msra.mxu0 %v6439
  %8176 = vmatpush.msra.mxu0 %v6438
  %8177 = vmatmul.f32.gmra.mxu0 %v8159
  %v8178 = vpop.f32.mrf.mxu0
  %v8179 = vadd.f32 0.0, %v8178
  %8180 = vdwg.mxu0
  %v8181 = vadd.f32 %v8156, %v8179
  %v8182 = vld [vmem:[#allocation2 + $0x52] sm:$0x3]
  %v8184 = vsel %vm5884, %v8182, 0
  %8186 = vmatpush.msra.mxu0 0.0
  %8187 = vmatpush.msra.mxu0 0.0
  %8188 = vmatpush.msra.mxu0 0.0
  %8189 = vmatpush.msra.mxu0 0.0
  %8190 = vmatpush.msra.mxu0 0.0
  %8191 = vmatpush.msra.mxu0 0.0
  %8192 = vmatpush.msra.mxu0 0.0
  %8193 = vmatpush.msra.mxu0 0.0
  %8194 = vmatpush.msra.mxu0 0.0
  %8195 = vmatpush.msra.mxu0 0.0
  %8196 = vmatpush.msra.mxu0 0.0
  %8197 = vmatpush.msra.mxu0 0.0
  %8198 = vmatpush.msra.mxu0 %v6471
  %8199 = vmatpush.msra.mxu0 %v6470
  %8200 = vmatpush.msra.mxu0 %v6469
  %8201 = vmatpush.msra.mxu0 %v6468
  %8202 = vmatmul.f32.gmra.mxu0 %v8184
  %v8203 = vpop.f32.mrf.mxu0
  %v8204 = vadd.f32 0.0, %v8203
  %8205 = vdwg.mxu0
  %v8206 = vadd.f32 %v8181, %v8204
  %8207 = vmatpush.msra.mxu0 0.0
  %8208 = vmatpush.msra.mxu0 0.0
  %8209 = vmatpush.msra.mxu0 0.0
  %8210 = vmatpush.msra.mxu0 0.0
  %8211 = vmatpush.msra.mxu0 0.0
  %8212 = vmatpush.msra.mxu0 0.0
  %8213 = vmatpush.msra.mxu0 0.0
  %8214 = vmatpush.msra.mxu0 0.0
  %8215 = vmatpush.msra.mxu0 0.0
  %8216 = vmatpush.msra.mxu0 0.0
  %8217 = vmatpush.msra.mxu0 0.0
  %8218 = vmatpush.msra.mxu0 0.0
  %8219 = vmatpush.msra.mxu0 %v6501
  %8220 = vmatpush.msra.mxu0 %v6500
  %8221 = vmatpush.msra.mxu0 %v6499
  %8222 = vmatpush.msra.mxu0 %v6498
  %8223 = vmatmul.f32.gmra.mxu0 %v7706
  %v8224 = vpop.f32.mrf.mxu0
  %v8225 = vadd.f32 0.0, %v8224
  %8226 = vdwg.mxu0
  %v8227 = vadd.f32 %v8206, %v8225
  %8228 = vmatpush.msra.mxu0 0.0
  %8229 = vmatpush.msra.mxu0 0.0
  %8230 = vmatpush.msra.mxu0 0.0
  %8231 = vmatpush.msra.mxu0 0.0
  %8232 = vmatpush.msra.mxu0 0.0
  %8233 = vmatpush.msra.mxu0 0.0
  %8234 = vmatpush.msra.mxu0 0.0
  %8235 = vmatpush.msra.mxu0 0.0
  %8236 = vmatpush.msra.mxu0 0.0
  %8237 = vmatpush.msra.mxu0 0.0
  %8238 = vmatpush.msra.mxu0 0.0
  %8239 = vmatpush.msra.mxu0 0.0
  %8240 = vmatpush.msra.mxu0 %v6531
  %8241 = vmatpush.msra.mxu0 %v6530
  %8242 = vmatpush.msra.mxu0 %v6529
  %8243 = vmatpush.msra.mxu0 %v6528
  %8244 = vmatmul.f32.gmra.mxu0 %v7731
  %v8245 = vpop.f32.mrf.mxu0
  %v8246 = vadd.f32 0.0, %v8245
  %8247 = vdwg.mxu0
  %v8248 = vadd.f32 %v8227, %v8246
  %8249 = vmatpush.msra.mxu0 0.0
  %8250 = vmatpush.msra.mxu0 0.0
  %8251 = vmatpush.msra.mxu0 0.0
  %8252 = vmatpush.msra.mxu0 0.0
  %8253 = vmatpush.msra.mxu0 0.0
  %8254 = vmatpush.msra.mxu0 0.0
  %8255 = vmatpush.msra.mxu0 0.0
  %8256 = vmatpush.msra.mxu0 0.0
  %8257 = vmatpush.msra.mxu0 0.0
  %8258 = vmatpush.msra.mxu0 0.0
  %8259 = vmatpush.msra.mxu0 0.0
  %8260 = vmatpush.msra.mxu0 0.0
  %8261 = vmatpush.msra.mxu0 %v6561
  %8262 = vmatpush.msra.mxu0 %v6560
  %8263 = vmatpush.msra.mxu0 %v6559
  %8264 = vmatpush.msra.mxu0 %v6558
  %8265 = vmatmul.f32.gmra.mxu0 %v7756
  %v8266 = vpop.f32.mrf.mxu0
  %v8267 = vadd.f32 0.0, %v8266
  %8268 = vdwg.mxu0
  %v8269 = vadd.f32 %v8248, %v8267
  %v8270 = vld [vmem:[#allocation2 + $0x5e] sm:$0x3]
  %v8272 = vsel %vm5884, %v8270, 0
  %8274 = vmatpush.msra.mxu0 0.0
  %8275 = vmatpush.msra.mxu0 0.0
  %8276 = vmatpush.msra.mxu0 0.0
  %8277 = vmatpush.msra.mxu0 0.0
  %8278 = vmatpush.msra.mxu0 0.0
  %8279 = vmatpush.msra.mxu0 0.0
  %8280 = vmatpush.msra.mxu0 0.0
  %8281 = vmatpush.msra.mxu0 0.0
  %8282 = vmatpush.msra.mxu0 0.0
  %8283 = vmatpush.msra.mxu0 0.0
  %8284 = vmatpush.msra.mxu0 0.0
  %8285 = vmatpush.msra.mxu0 0.0
  %8286 = vmatpush.msra.mxu0 %v6591
  %8287 = vmatpush.msra.mxu0 %v6590
  %8288 = vmatpush.msra.mxu0 %v6589
  %8289 = vmatpush.msra.mxu0 %v6588
  %8290 = vmatmul.f32.gmra.mxu0 %v8272
  %v8291 = vpop.f32.mrf.mxu0
  %v8292 = vadd.f32 0.0, %v8291
  %8293 = vdwg.mxu0
  %v8294 = vadd.f32 %v8269, %v8292
  %v8295 = vld [vmem:[#allocation2 + $0x60] sm:$0x3]
  %v8297 = vsel %vm5884, %v8295, 0
  %8299 = vmatpush.msra.mxu0 0.0
  %8300 = vmatpush.msra.mxu0 0.0
  %8301 = vmatpush.msra.mxu0 0.0
  %8302 = vmatpush.msra.mxu0 0.0
  %8303 = vmatpush.msra.mxu0 0.0
  %8304 = vmatpush.msra.mxu0 0.0
  %8305 = vmatpush.msra.mxu0 0.0
  %8306 = vmatpush.msra.mxu0 0.0
  %8307 = vmatpush.msra.mxu0 0.0
  %8308 = vmatpush.msra.mxu0 0.0
  %8309 = vmatpush.msra.mxu0 0.0
  %8310 = vmatpush.msra.mxu0 0.0
  %8311 = vmatpush.msra.mxu0 %v6621
  %8312 = vmatpush.msra.mxu0 %v6620
  %8313 = vmatpush.msra.mxu0 %v6619
  %8314 = vmatpush.msra.mxu0 %v6618
  %8315 = vmatmul.f32.gmra.mxu0 %v8297
  %v8316 = vpop.f32.mrf.mxu0
  %v8317 = vadd.f32 0.0, %v8316
  %8318 = vdwg.mxu0
  %v8319 = vadd.f32 %v8294, %v8317
  %v8320 = vadd.f32 %v8319, %v6647
  %v8321 = vmax.f32 %v8320, 0.0
  %8323 = vrot.lane.b32.xlu0 %v7215, 32
  %v8324 = vpop.permute.xlu0 %8323
  %8327 = vrot.lane.b32.xlu0 %v7780, 64
  %v8328 = vpop.permute.xlu0 %8327
  %8331 = vrot.lane.b32.xlu0 %v8321, 96
  %v8332 = vpop.permute.xlu0 %8331
  %v8334 = vsel %vm5884, %v6650, %v8324
  %vm8335 = vcmask 523264
  %v8336 = vsel %vm8335, %v8334, %v8328
  %vm8337 = vcmask 785408
  %v8338 = vsel %vm8337, %v8336, %v8332
  %8339 = vst [vmem:[%s9] sm:$0x3] %v8338
  %v8340 = vld [vmem:[%s7] sm:$0xff]
  %v8341 = vld [vmem:[%s7 + $0x8] sm:$0xff]
  %v8342 = vld [vmem:[%s7 + $0x10] sm:$0xff]
  %v8343 = vld [vmem:[%s7 + $0x18] sm:$0xff]
  %v8344 = vld [vmem:[%s7 + $0x20] sm:$0xff]
  %v8345 = vld [vmem:[%s7 + $0x28] sm:$0xff]
  %v8346 = vld [vmem:[%s7 + $0x30] sm:$0xff]
  %v8347 = vld [vmem:[%s7 + $0x38] sm:$0xff]
  %v8348 = vld [vmem:[%s7 + $0x40] sm:$0xff]
  %v8349 = vld [vmem:[%s7 + $0x48] sm:$0xff]
  %v8350 = vld [vmem:[%s7 + $0x50] sm:$0xff]
  %v8351 = vld [vmem:[%s7 + $0x58] sm:$0xff]
  %v8352 = vld [vmem:[%s7 + $0x60] sm:$0xff]
  %v8353 = vld [vmem:[%s7 + $0x68] sm:$0xff]
  %v8354 = vld [vmem:[%s7 + $0x70] sm:$0xff]
  %v8355 = vld [vmem:[%s7 + $0x78] sm:$0xff]
  %v8356 = vld [vmem:[%s8] sm:$0x1]
  %v8358 = vperm.slane %v8356, 0
  %8360 = vmatpush.msra.mxu0 %v8355
  %8361 = vmatpush.msra.mxu0 %v8354
  %8362 = vmatpush.msra.mxu0 %v8353
  %8363 = vmatpush.msra.mxu0 %v8352
  %8364 = vmatpush.msra.mxu0 %v8351
  %8365 = vmatpush.msra.mxu0 %v8350
  %8366 = vmatpush.msra.mxu0 %v8349
  %8367 = vmatpush.msra.mxu0 %v8348
  %8368 = vmatpush.msra.mxu0 %v8347
  %8369 = vmatpush.msra.mxu0 %v8346
  %8370 = vmatpush.msra.mxu0 %v8345
  %8371 = vmatpush.msra.mxu0 %v8344
  %8372 = vmatpush.msra.mxu0 %v8343
  %8373 = vmatpush.msra.mxu0 %v8342
  %8374 = vmatpush.msra.mxu0 %v8341
  %8375 = vmatpush.msra.mxu0 %v8340
  %8376 = vmatmul.f32.gmra.mxu0 %v8338
  %v8377 = vpop.f32.mrf.mxu0
  %v8378 = vadd.f32 %v8358, %v8377
  %8379 = vdwg.mxu0
  %8380 = vst [vmem:[%s10] sm:$0x3] %v8378
  // Predicated region
  $region38: #{_horde_forward_impl.1} parent=0 // pred_check
    _
  $region39: #{_horde_forward_impl.1} parent=0 // pred_check_branch
    %8382 = sbr.rel (0) target = $region41
  $region40: #{_horde_forward_impl.1} parent=0 // pred_region
    _
  $region41: #{_horde_forward_impl.1} parent=0 // pred_fallthru
    _
  // Predicated region
  $region42: #{_horde_forward_impl.1} parent=0 // pred_check
    _
  $region43: #{_horde_forward_impl.1} parent=0 // pred_check_branch
    %8384 = sbr.rel (0) target = $region45
  $region44: #{_horde_forward_impl.1} parent=0 // pred_region
    _
  $region45: #{_horde_forward_impl.1} parent=0 // pred_fallthru
    _
  // Predicated region
  $region46: #{_horde_forward_impl.1} parent=0 // pred_check
    _
  $region47: #{_horde_forward_impl.1} parent=0 // pred_check_branch
    %8386 = sbr.rel (0) target = $region49
  $region48: #{_horde_forward_impl.1} parent=0 // pred_region
    _
  $region49: #{_horde_forward_impl.1} parent=0 // pred_fallthru
    _
  // Predicated region
  $region50: #{_horde_forward_impl.1} parent=0 // pred_check
    _
  $region51: #{_horde_forward_impl.1} parent=0 // pred_check_branch
    %8388 = sbr.rel (0) target = $region53
  $region52: #{_horde_forward_impl.1} parent=0 // pred_region
    _
  $region53: #{_horde_forward_impl.1} parent=0 // pred_fallthru
    _

</llo_original>
